<compile_context>
chip_gen: v5e
topology: v5e:2x2
jax: 0.10.0
libtpu: 0.0.40
codegen_flags: <defaults>
</compile_context>

<pallas_src>
import functools

import jax
import jax.numpy as jnp
from jax import lax
from jax.experimental import pallas as pl
from jax.experimental.pallas import tpu as pltpu

EPS = 1e-5
LEAKY_SLOPE = 0.2
TM_ROWS = 512                         # row tile for mem-bound elementwise kernels
VMEM_LIMIT_BYTES = 32 * 1024 * 1024   # explicit budget; safe on v5e/v6e/v7x
# Set to jnp.bfloat16 on v6e/v7x for higher MXU throughput (f32 accumulate kept);
# left at f32 here to preserve the PyTorch forward numerics.
MATMUL_INPUT_DTYPE = jnp.float32


def _cparams(grid_rank):
    return pltpu.CompilerParams(
        dimension_semantics=("parallel",) * grid_rank,
        vmem_limit_bytes=VMEM_LIMIT_BYTES)


# ----------------------------- Pallas kernels ------------------------------ #

def _conv_taps_kernel(x_ref, w_ref, o_ref, sum_ref, sq_ref, *, k, ho, wo):
    """Fused stride-1 conv for one padded image + BN partial-stats epilogue.

    x_ref:   (Hp, Wp, Cin)   reflection-padded NHWC image (batch dim squeezed)
    w_ref:   (k*k, Cin, Cout) per-tap weights (BN0 scale already folded in)
    o_ref:   (Ho*Wo, Cout)   conv output rows for this image
    sum_ref: (1, Cout)       per-image partial sum   (for fused BatchNorm stats)
    sq_ref:  (1, Cout)       per-image partial sum of squares
    """
    cin = x_ref.shape[-1]
    cout = w_ref.shape[-1]
    acc = jnp.zeros((ho * wo, cout), jnp.float32)
    for kh in range(k):
        for kw in range(k):
            xs = x_ref[kh:kh + ho, kw:kw + wo, :].reshape(ho * wo, cin)
            wt = w_ref[kh * k + kw]                                  # (Cin, Cout)
            acc = acc + jnp.dot(xs.astype(MATMUL_INPUT_DTYPE),
                                wt.astype(MATMUL_INPUT_DTYPE),
                                preferred_element_type=jnp.float32)
    o_ref[...] = acc.astype(o_ref.dtype)
    sum_ref[...] = jnp.sum(acc, axis=0, keepdims=True)
    sq_ref[...] = jnp.sum(acc * acc, axis=0, keepdims=True)


def _bn_act_matmul_stats_kernel(z_ref, scale_ref, bias_ref, w_ref,
                                o_ref, sum_ref, sq_ref, *, slope, rows_valid, tm):
    """Fused: BN1 affine + LeakyReLU -> 1x1 conv (matmul) -> BN2 partial stats.

    Eliminates the HBM round-trip of the a1 activation.  `rows_valid` (static) is
    set only when the row axis was zero-padded; those padded rows pass through the
    affine+act (becoming nonzero) so they must be masked out of the statistics.
    """
    a = z_ref[...].astype(jnp.float32) * scale_ref[...] + bias_ref[...]
    a = jnp.where(a >= 0, a, slope * a)
    acc = jnp.dot(a.astype(MATMUL_INPUT_DTYPE),
                  w_ref[...].astype(MATMUL_INPUT_DTYPE),
                  preferred_element_type=jnp.float32)
    o_ref[...] = acc.astype(o_ref.dtype)
    if rows_valid is not None:
        row = pl.program_id(0) * tm + lax.broadcasted_iota(jnp.int32, acc.shape, 0)
        acc = jnp.where(row < rows_valid, acc, 0.0)
    sum_ref[...] = jnp.sum(acc, axis=0, keepdims=True)
    sq_ref[...] = jnp.sum(acc * acc, axis=0, keepdims=True)


def _stats_partial_kernel(x_ref, sum_ref, sq_ref):
    """Per-tile channel sum / sum-of-squares (per-tile partials, parallel grid)."""
    x = x_ref[...].astype(jnp.float32)
    sum_ref[...] = jnp.sum(x, axis=0, keepdims=True)
    sq_ref[...] = jnp.sum(x * x, axis=0, keepdims=True)


def _affine_act_kernel(x_ref, scale_ref, bias_ref, o_ref, *, slope):
    """y = leaky_relu(x * scale + bias)  (per-channel BatchNorm affine + act)."""
    z = x_ref[...] * scale_ref[...] + bias_ref[...]
    o_ref[...] = jnp.where(z >= 0, z, slope * z).astype(o_ref.dtype)


# ----------------------------- Pallas wrappers ----------------------------- #

def _pad_rows(x, tm):
    """Zero-pad rows to a multiple of tm (ragged tiles) and return true row count."""
    m = x.shape[0]
    mp = pl.cdiv(m, tm) * tm
    if mp != m:
        x = jnp.pad(x, ((0, mp - m),) + ((0, 0),) * (x.ndim - 1))
    return x, m


def finalize_stats(sum_partials, sq_partials, count):
    total = jnp.sum(sum_partials, axis=0)        # (1, C)
    total_sq = jnp.sum(sq_partials, axis=0)      # (1, C)
    mean = total / count
    # clamp: f32 cancellation can make E[x^2]-E[x]^2 slightly negative
    var = jnp.maximum(total_sq / count - mean * mean, 0.0)
    return mean, var


def pallas_conv_taps(x_padded, w_taps):
    """Fused conv over the k*k taps.  x_padded: (N, Hp, Wp, Cin); w_taps: (k*k, Cin, Cout)."""
    n, hp, wp, cin = x_padded.shape
    kk, _, cout = w_taps.shape
    k = int(round(kk ** 0.5))
    ho, wo = hp - k + 1, wp - k + 1
    kernel = functools.partial(_conv_taps_kernel, k=k, ho=ho, wo=wo)
    # TODO(synk): for large images, also tile the H axis (overlapping input strips).
    out, s, ss = pl.pallas_call(
        kernel,
        out_shape=(jax.ShapeDtypeStruct((n, ho * wo, cout), jnp.float32),
                   jax.ShapeDtypeStruct((n, 1, cout), jnp.float32),
                   jax.ShapeDtypeStruct((n, 1, cout), jnp.float32)),
        grid=(n,),
        in_specs=[
            pl.BlockSpec((None, hp, wp, cin), lambda i: (i, 0, 0, 0)),
            pl.BlockSpec((kk, cin, cout), lambda i: (0, 0, 0)),
        ],
        out_specs=(
            pl.BlockSpec((None, ho * wo, cout), lambda i: (i, 0, 0)),
            pl.BlockSpec((None, 1, cout), lambda i: (i, 0, 0)),
            pl.BlockSpec((None, 1, cout), lambda i: (i, 0, 0)),
        ),
        compiler_params=_cparams(1),
    )(x_padded.astype(jnp.float32), w_taps.astype(jnp.float32))
    return out.reshape(n * ho * wo, cout), s, ss


def pallas_bn_act_matmul_stats(z, scale, bias, w, slope, tm=TM_ROWS):
    """Fused BN affine + LeakyReLU + (M,K)@(K,Cout) matmul + BN partial stats."""
    _, kdim = z.shape
    cout = w.shape[1]
    z_p, m_true = _pad_rows(z.astype(jnp.float32), tm)
    g = z_p.shape[0] // tm
    rows_valid = m_true if z_p.shape[0] != m_true else None
    kernel = functools.partial(_bn_act_matmul_stats_kernel,
                               slope=slope, rows_valid=rows_valid, tm=tm)
    out, s, ss = pl.pallas_call(
        kernel,
        out_shape=(jax.ShapeDtypeStruct((z_p.shape[0], cout), jnp.float32),
                   jax.ShapeDtypeStruct((g, 1, cout), jnp.float32),
                   jax.ShapeDtypeStruct((g, 1, cout), jnp.float32)),
        grid=(g,),
        in_specs=[pl.BlockSpec((tm, kdim), lambda i: (i, 0)),
                  pl.BlockSpec((1, kdim), lambda i: (0, 0)),
                  pl.BlockSpec((1, kdim), lambda i: (0, 0)),
                  pl.BlockSpec((kdim, cout), lambda i: (0, 0))],
        out_specs=(pl.BlockSpec((tm, cout), lambda i: (i, 0)),
                   pl.BlockSpec((None, 1, cout), lambda i: (i, 0, 0)),
                   pl.BlockSpec((None, 1, cout), lambda i: (i, 0, 0))),
        compiler_params=_cparams(1),
    )(z_p, scale.astype(jnp.float32), bias.astype(jnp.float32), w.astype(jnp.float32))
    return out[:m_true], s, ss


def pallas_channel_stats(x, tm=TM_ROWS):
    """Per-channel mean / biased variance over the row axis of a (M, C) matrix."""
    m, c = x.shape
    x_p, _ = _pad_rows(x.astype(jnp.float32), tm)   # zero rows don't affect sums
    g = x_p.shape[0] // tm
    s, ss = pl.pallas_call(
        _stats_partial_kernel,
        out_shape=(jax.ShapeDtypeStruct((g, 1, c), jnp.float32),
                   jax.ShapeDtypeStruct((g, 1, c), jnp.float32)),
        grid=(g,),
        in_specs=[pl.BlockSpec((tm, c), lambda i: (i, 0))],
        out_specs=(pl.BlockSpec((None, 1, c), lambda i: (i, 0, 0)),
                   pl.BlockSpec((None, 1, c), lambda i: (i, 0, 0))),
        compiler_params=_cparams(1),
    )(x_p)
    return finalize_stats(s, ss, m)


def pallas_affine_act(x, scale, bias, slope, tm=TM_ROWS):
    m, c = x.shape
    x_p, m_true = _pad_rows(x.astype(jnp.float32), tm)
    g = x_p.shape[0] // tm
    kernel = functools.partial(_affine_act_kernel, slope=slope)
    out = pl.pallas_call(
        kernel,
        out_shape=jax.ShapeDtypeStruct((x_p.shape[0], c), jnp.float32),
        grid=(g,),
        in_specs=[pl.BlockSpec((tm, c), lambda i: (i, 0)),
                  pl.BlockSpec((1, c), lambda i: (0, 0)),
                  pl.BlockSpec((1, c), lambda i: (0, 0))],
        out_specs=pl.BlockSpec((tm, c), lambda i: (i, 0)),
        compiler_params=_cparams(1),
    )(x_p, scale.astype(jnp.float32), bias.astype(jnp.float32))
    return out[:m_true]


# ------------------------------- forward pass ------------------------------ #

def upsample_block_forward(x_nchw, params, kernel_size=3):
    """UpsampleBlock.forward: method='nearest', scale_factor=2, skip_depth=0,
    BatchNorm2d in training mode (batch statistics)."""
    n, cin, h, w = x_nchw.shape
    x_nhwc = jnp.transpose(x_nchw, (0, 2, 3, 1))

    # BN0 batch stats of the upsampled tensor == stats of x (nearest x2 repeat
    # preserves per-channel mean and biased variance).  BN0's scale is folded
    # into conv1's weights; its shift and conv1's bias become per-output-channel
    # constants that cancel exactly under conv1's training-mode BN -> dropped.
    mean0, var0 = pallas_channel_stats(x_nhwc.reshape(n * h * w, cin))
    del mean0  # only the scale survives the folding
    scale0 = params["gamma0"].reshape(1, cin) / jnp.sqrt(var0 + EPS)     # (1, Cin)

    # nearest x2 upsample + reflection pad (cheap XLA glue; the Pallas conv kernel
    # reads all k*k taps from this single padded tensor).
    up = jnp.repeat(jnp.repeat(x_nhwc, 2, axis=1), 2, axis=2)            # (N,2H,2W,Cin)
    k = kernel_size
    pad = (k - 1 + 1) // 2                                               # stride = 1
    if pad > 0:
        xp = jnp.pad(up, ((0, 0), (pad, pad), (pad, pad), (0, 0)), mode="reflect")
    else:
        xp = up

    # conv1 (k x k, stride 1, bias dropped) with BN0 scale folded into the weights.
    # PyTorch weight (out, in, kh, kw) -> (kh, kw, in, out) -> (k*k, in, out)
    w1 = params["w1"] * scale0.reshape(1, cin, 1, 1)
    w1_taps = jnp.transpose(w1, (2, 3, 1, 0)).reshape(k * k, cin, -1)
    z1, s1, ss1 = pallas_conv_taps(xp, w1_taps)          # (N*2H*2W, Cout) + partials
    m1 = z1.shape[0]
    mean1, var1 = finalize_stats(s1, ss1, m1)
    scale1 = params["gamma1"].reshape(1, -1) / jnp.sqrt(var1 + EPS)
    bias1 = params["beta1"].reshape(1, -1) - mean1 * scale1

    # conv2 (1 x 1, stride 1, bias dropped under BN2): fused BN1 affine + LeakyReLU
    # + matmul + BN2 partial-stats epilogue -> a1 never touches HBM.
    w2_mat = jnp.transpose(params["w2"][:, :, 0, 0], (1, 0))             # (Cout, Cout)
    z2, s2, ss2 = pallas_bn_act_matmul_stats(z1, scale1, bias1, w2_mat, LEAKY_SLOPE)
    mean2, var2 = finalize_stats(s2, ss2, m1)
    scale2 = params["gamma2"].reshape(1, -1) / jnp.sqrt(var2 + EPS)
    bias2 = params["beta2"].reshape(1, -1) - mean2 * scale2
    a2 = pallas_affine_act(z2, scale2, bias2, LEAKY_SLOPE)

    out = a2.reshape(n, 2 * h, 2 * w, -1)
    return jnp.transpose(out, (0, 3, 1, 2))                              # NHWC -> NCHW


# --------------------------- params / reference ---------------------------- #

def init_params(key, in_channels, out_channels, kernel_size):
    ks = jax.random.split(key, 10)
    # b1 / b2 are kept for parameter parity with the PyTorch module; they cancel
    # exactly under the training-mode BatchNorm that follows each conv.
    return {
        "gamma0": 1.0 + 0.1 * jax.random.normal(ks[0], (in_channels,), jnp.float32),
        "beta0": 0.1 * jax.random.normal(ks[1], (in_channels,), jnp.float32),
        "w1": 0.1 * jax.random.normal(
            ks[2], (out_channels, in_channels, kernel_size, kernel_size), jnp.float32),
        "b1": 0.1 * jax.random.normal(ks[3], (out_channels,), jnp.float32),
        "gamma1": 1.0 + 0.1 * jax.random.normal(ks[4], (out_channels,), jnp.float32),
        "beta1": 0.1 * jax.random.normal(ks[5], (out_channels,), jnp.float32),
        "w2": 0.1 * jax.random.normal(
            ks[6], (out_channels, out_channels, 1, 1), jnp.float32),
        "b2": 0.1 * jax.random.normal(ks[7], (out_channels,), jnp.float32),
        "gamma2": 1.0 + 0.1 * jax.random.normal(ks[8], (out_channels,), jnp.float32),
        "beta2": 0.1 * jax.random.normal(ks[9], (out_channels,), jnp.float32),
    }


def reference_forward(x, params, kernel_size):
    """Plain-JAX replica of the PyTorch module (no folding), for validation."""
    def bn(t, gamma, beta):
        mean = jnp.mean(t, axis=(0, 2, 3), keepdims=True)
        var = jnp.mean((t - mean) ** 2, axis=(0, 2, 3), keepdims=True)
        return (gamma.reshape(1, -1, 1, 1) * (t - mean) / jnp.sqrt(var + EPS)
                + beta.reshape(1, -1, 1, 1))

    def leaky(t):
        return jnp.where(t >= 0, t, LEAKY_SLOPE * t)

    def conv(t, wgt, b, k):
        p = (k - 1 + 1) // 2
        if p > 0:
            t = jnp.pad(t, ((0, 0), (0, 0), (p, p), (p, p)), mode="reflect")
        out = lax.conv_general_dilated(
            t, wgt, (1, 1), "VALID", dimension_numbers=("NCHW", "OIHW", "NCHW"))
        return out + b.reshape(1, -1, 1, 1)

    up = jnp.repeat(jnp.repeat(x, 2, axis=2), 2, axis=3)
    out = bn(up, params["gamma0"], params["beta0"])
    out = leaky(bn(conv(out, params["w1"], params["b1"], kernel_size),
                   params["gamma1"], params["beta1"]))
    out = leaky(bn(conv(out, params["w2"], params["b2"], 1),
                   params["gamma2"], params["beta2"]))
    return out


if __name__ == "__main__":
    key = jax.random.PRNGKey(0)
    k_x, k_p = jax.random.split(key)

    batch, in_channels, out_channels, spatial, kernel_size = 2, 4, 8, 16, 3
    x = jax.random.normal(k_x, (batch, in_channels, spatial, spatial), jnp.float32)
    params = init_params(k_p, in_channels, out_channels, kernel_size)

    fwd = jax.jit(functools.partial(upsample_block_forward, kernel_size=kernel_size))
    out = fwd(x, params)
    jax.block_until_ready(out)

    assert out.shape == (batch, out_channels, 2 * spatial, 2 * spatial), out.shape
    assert bool(jnp.all(jnp.isfinite(out)))

    ref = reference_forward(x, params, kernel_size)
    max_err = float(jnp.max(jnp.abs(out - ref)))
    assert max_err < 1e-2, f"mismatch vs reference: max abs err = {max_err}"

    print("KERNEL_OK")
</pallas_src>

<mosaic_0001>
module attributes {stable_mosaic.version = 11 : i64} {
  func.func @_stats_partial_kernel(%arg0: i32, %arg1: memref<512x4xf32, #tpu.memory_space<vmem>>, %arg2: memref<1x1x4xf32, #tpu.memory_space<vmem>>, %arg3: memref<1x1x4xf32, #tpu.memory_space<vmem>>) attributes {dimension_semantics = [#tpu.dimension_semantics<parallel>], iteration_bounds = array<i64: 1>, scalar_prefetch = 0 : i64, scratch_operands = 0 : i64, tpu.core_type = #tpu.core_type<tc>, window_params = [{transform_indices = @transform_0, window_bounds = array<i64: 512, 4>}, {transform_indices = @transform_1, window_bounds = array<i64: 1, 1, 4>}, {transform_indices = @transform_2, window_bounds = array<i64: 1, 1, 4>}]} {
    %c0 = arith.constant 0 : index
    %c0_0 = arith.constant 0 : index
    %0 = vector.load %arg1[%c0, %c0_0] : memref<512x4xf32, #tpu.memory_space<vmem>>, vector<512x4xf32>
    %cst = arith.constant dense<0.000000e+00> : vector<4xf32>
    %1 = vector.multi_reduction <add>, %0, %cst [0] : vector<512x4xf32> to vector<4xf32>
    %2 = vector.shape_cast %1 : vector<4xf32> to vector<1x4xf32>
    %c0_1 = arith.constant 0 : index
    %c0_2 = arith.constant 0 : index
    %c0_3 = arith.constant 0 : index
    %3 = vector.load %arg2[%c0_1, %c0_2, %c0_3] : memref<1x1x4xf32, #tpu.memory_space<vmem>>, vector<1x1x4xf32>
    %4 = vector.shape_cast %3 : vector<1x1x4xf32> to vector<1x4xf32>
    %5 = vector.shape_cast %2 : vector<1x4xf32> to vector<1x1x4xf32>
    tpu.vector_store %arg2[%c0_1, %c0_2, %c0_3], %5 {strides = array<i32>} : memref<1x1x4xf32, #tpu.memory_space<vmem>>, vector<1x1x4xf32>,
    %6 = arith.mulf %0, %0 : vector<512x4xf32>
    %cst_4 = arith.constant dense<0.000000e+00> : vector<4xf32>
    %7 = vector.multi_reduction <add>, %6, %cst_4 [0] : vector<512x4xf32> to vector<4xf32>
    %8 = vector.shape_cast %7 : vector<4xf32> to vector<1x4xf32>
    %c0_5 = arith.constant 0 : index
    %c0_6 = arith.constant 0 : index
    %c0_7 = arith.constant 0 : index
    %9 = vector.load %arg3[%c0_5, %c0_6, %c0_7] : memref<1x1x4xf32, #tpu.memory_space<vmem>>, vector<1x1x4xf32>
    %10 = vector.shape_cast %9 : vector<1x1x4xf32> to vector<1x4xf32>
    %11 = vector.shape_cast %8 : vector<1x4xf32> to vector<1x1x4xf32>
    tpu.vector_store %arg3[%c0_5, %c0_6, %c0_7], %11 {strides = array<i32>} : memref<1x1x4xf32, #tpu.memory_space<vmem>>, vector<1x1x4xf32>,
    return
  }
  func.func @transform_0(%arg0: i32) -> (i32, i32) {
    %c0_i32 = arith.constant 0 : i32
    %c0_i32_0 = arith.constant 0 : i32
    return %arg0, %c0_i32 : i32, i32
  }
  func.func @transform_1(%arg0: i32) -> (i32, i32, i32) {
    %c0_i32 = arith.constant 0 : i32
    %c0_i32_0 = arith.constant 0 : i32
    %c0_i32_1 = arith.constant 0 : i32
    return %arg0, %c0_i32, %c0_i32_0 : i32, i32, i32
  }
  func.func @transform_2(%arg0: i32) -> (i32, i32, i32) {
    %c0_i32 = arith.constant 0 : i32
    %c0_i32_0 = arith.constant 0 : i32
    %c0_i32_1 = arith.constant 0 : i32
    return %arg0, %c0_i32, %c0_i32_0 : i32, i32, i32
  }
}

module attributes {stable_mosaic.version = 11 : i64} {
  func.func @_conv_taps_kernel(%arg0: i32, %arg1: memref<1x34x34x4xf32, #tpu.memory_space<vmem>>, %arg2: memref<9x4x8xf32, #tpu.memory_space<vmem>>, %arg3: memref<1x1024x8xf32, #tpu.memory_space<vmem>>, %arg4: memref<1x1x8xf32, #tpu.memory_space<vmem>>, %arg5: memref<1x1x8xf32, #tpu.memory_space<vmem>>) attributes {dimension_semantics = [#tpu.dimension_semantics<parallel>], iteration_bounds = array<i64: 2>, scalar_prefetch = 0 : i64, scratch_operands = 0 : i64, tpu.core_type = #tpu.core_type<tc>, window_params = [{transform_indices = @transform_0, window_bounds = array<i64: 1, 34, 34, 4>}, {pipeline_mode = #tpu.pipeline_mode<synchronous>, transform_indices = @transform_1, window_bounds = array<i64: 9, 4, 8>}, {transform_indices = @transform_2, window_bounds = array<i64: 1, 1024, 8>}, {transform_indices = @transform_3, window_bounds = array<i64: 1, 1, 8>}, {transform_indices = @transform_4, window_bounds = array<i64: 1, 1, 8>}]} {
    %cst = arith.constant 0.000000e+00 : f32
    %0 = vector.broadcast %cst : f32 to vector<1024x8xf32>
    %c0 = arith.constant 0 : index
    %c0_0 = arith.constant 0 : index
    %c0_1 = arith.constant 0 : index
    %c0_2 = arith.constant 0 : index
    %1 = vector.load %arg1[%c0, %c0_0, %c0_1, %c0_2] : memref<1x34x34x4xf32, #tpu.memory_space<vmem>>, vector<1x32x32x4xf32>
    %2 = vector.shape_cast %1 : vector<1x32x32x4xf32> to vector<32x32x4xf32>
    %3 = vector.shape_cast %2 : vector<32x32x4xf32> to vector<1024x4xf32>
    %c0_3 = arith.constant 0 : index
    %c0_4 = arith.constant 0 : index
    %c0_5 = arith.constant 0 : index
    %4 = vector.load %arg2[%c0_3, %c0_4, %c0_5] : memref<9x4x8xf32, #tpu.memory_space<vmem>>, vector<1x4x8xf32>
    %5 = vector.shape_cast %4 : vector<1x4x8xf32> to vector<4x8xf32>
    %cst_6 = arith.constant dense<0.000000e+00> : vector<1024x8xf32>
    %6 = tpu.matmul %3, %5, %cst_6 {dimension_numbers = #tpu.dot_dimension_numbers<[1], [0], [0], [1], [0, 0, 1, 1], [], []>} : vector<1024x4xf32>, vector<4x8xf32>, vector<1024x8xf32> -> vector<1024x8xf32>
    %7 = arith.addf %0, %6 : vector<1024x8xf32>
    %c0_7 = arith.constant 0 : index
    %c0_8 = arith.constant 0 : index
    %c1 = arith.constant 1 : index
    %c0_9 = arith.constant 0 : index
    %8 = vector.load %arg1[%c0_7, %c0_8, %c1, %c0_9] : memref<1x34x34x4xf32, #tpu.memory_space<vmem>>, vector<1x32x32x4xf32>
    %9 = vector.shape_cast %8 : vector<1x32x32x4xf32> to vector<32x32x4xf32>
    %10 = vector.shape_cast %9 : vector<32x32x4xf32> to vector<1024x4xf32>
    %c1_10 = arith.constant 1 : index
    %c0_11 = arith.constant 0 : index
    %c0_12 = arith.constant 0 : index
    %11 = vector.load %arg2[%c1_10, %c0_11, %c0_12] : memref<9x4x8xf32, #tpu.memory_space<vmem>>, vector<1x4x8xf32>
    %12 = vector.shape_cast %11 : vector<1x4x8xf32> to vector<4x8xf32>
    %cst_13 = arith.constant dense<0.000000e+00> : vector<1024x8xf32>
    %13 = tpu.matmul %10, %12, %cst_13 {dimension_numbers = #tpu.dot_dimension_numbers<[1], [0], [0], [1], [0, 0, 1, 1], [], []>} : vector<1024x4xf32>, vector<4x8xf32>, vector<1024x8xf32> -> vector<1024x8xf32>
    %14 = arith.addf %7, %13 : vector<1024x8xf32>
    %c0_14 = arith.constant 0 : index
    %c0_15 = arith.constant 0 : index
    %c2 = arith.constant 2 : index
    %c0_16 = arith.constant 0 : index
    %15 = vector.load %arg1[%c0_14, %c0_15, %c2, %c0_16] : memref<1x34x34x4xf32, #tpu.memory_space<vmem>>, vector<1x32x32x4xf32>
    %16 = vector.shape_cast %15 : vector<1x32x32x4xf32> to vector<32x32x4xf32>
    %17 = vector.shape_cast %16 : vector<32x32x4xf32> to vector<1024x4xf32>
    %c2_17 = arith.constant 2 : index
    %c0_18 = arith.constant 0 : index
    %c0_19 = arith.constant 0 : index
    %18 = vector.load %arg2[%c2_17, %c0_18, %c0_19] : memref<9x4x8xf32, #tpu.memory_space<vmem>>, vector<1x4x8xf32>
    %19 = vector.shape_cast %18 : vector<1x4x8xf32> to vector<4x8xf32>
    %cst_20 = arith.constant dense<0.000000e+00> : vector<1024x8xf32>
    %20 = tpu.matmul %17, %19, %cst_20 {dimension_numbers = #tpu.dot_dimension_numbers<[1], [0], [0], [1], [0, 0, 1, 1], [], []>} : vector<1024x4xf32>, vector<4x8xf32>, vector<1024x8xf32> -> vector<1024x8xf32>
    %21 = arith.addf %14, %20 : vector<1024x8xf32>
    %c0_21 = arith.constant 0 : index
    %c1_22 = arith.constant 1 : index
    %c0_23 = arith.constant 0 : index
    %c0_24 = arith.constant 0 : index
    %22 = vector.load %arg1[%c0_21, %c1_22, %c0_23, %c0_24] : memref<1x34x34x4xf32, #tpu.memory_space<vmem>>, vector<1x32x32x4xf32>
    %23 = vector.shape_cast %22 : vector<1x32x32x4xf32> to vector<32x32x4xf32>
    %24 = vector.shape_cast %23 : vector<32x32x4xf32> to vector<1024x4xf32>
    %c3 = arith.constant 3 : index
    %c0_25 = arith.constant 0 : index
    %c0_26 = arith.constant 0 : index
    %25 = vector.load %arg2[%c3, %c0_25, %c0_26] : memref<9x4x8xf32, #tpu.memory_space<vmem>>, vector<1x4x8xf32>
    %26 = vector.shape_cast %25 : vector<1x4x8xf32> to vector<4x8xf32>
    %cst_27 = arith.constant dense<0.000000e+00> : vector<1024x8xf32>
    %27 = tpu.matmul %24, %26, %cst_27 {dimension_numbers = #tpu.dot_dimension_numbers<[1], [0], [0], [1], [0, 0, 1, 1], [], []>} : vector<1024x4xf32>, vector<4x8xf32>, vector<1024x8xf32> -> vector<1024x8xf32>
    %28 = arith.addf %21, %27 : vector<1024x8xf32>
    %c0_28 = arith.constant 0 : index
    %c1_29 = arith.constant 1 : index
    %c1_30 = arith.constant 1 : index
    %c0_31 = arith.constant 0 : index
    %29 = vector.load %arg1[%c0_28, %c1_29, %c1_30, %c0_31] : memref<1x34x34x4xf32, #tpu.memory_space<vmem>>, vector<1x32x32x4xf32>
    %30 = vector.shape_cast %29 : vector<1x32x32x4xf32> to vector<32x32x4xf32>
    %31 = vector.shape_cast %30 : vector<32x32x4xf32> to vector<1024x4xf32>
    %c4 = arith.constant 4 : index
    %c0_32 = arith.constant 0 : index
    %c0_33 = arith.constant 0 : index
    %32 = vector.load %arg2[%c4, %c0_32, %c0_33] : memref<9x4x8xf32, #tpu.memory_space<vmem>>, vector<1x4x8xf32>
    %33 = vector.shape_cast %32 : vector<1x4x8xf32> to vector<4x8xf32>
    %cst_34 = arith.constant dense<0.000000e+00> : vector<1024x8xf32>
    %34 = tpu.matmul %31, %33, %cst_34 {dimension_numbers = #tpu.dot_dimension_numbers<[1], [0], [0], [1], [0, 0, 1, 1], [], []>} : vector<1024x4xf32>, vector<4x8xf32>, vector<1024x8xf32> -> vector<1024x8xf32>
    %35 = arith.addf %28, %34 : vector<1024x8xf32>
    %c0_35 = arith.constant 0 : index
    %c1_36 = arith.constant 1 : index
    %c2_37 = arith.constant 2 : index
    %c0_38 = arith.constant 0 : index
    %36 = vector.load %arg1[%c0_35, %c1_36, %c2_37, %c0_38] : memref<1x34x34x4xf32, #tpu.memory_space<vmem>>, vector<1x32x32x4xf32>
    %37 = vector.shape_cast %36 : vector<1x32x32x4xf32> to vector<32x32x4xf32>
    %38 = vector.shape_cast %37 : vector<32x32x4xf32> to vector<1024x4xf32>
    %c5 = arith.constant 5 : index
    %c0_39 = arith.constant 0 : index
    %c0_40 = arith.constant 0 : index
    %39 = vector.load %arg2[%c5, %c0_39, %c0_40] : memref<9x4x8xf32, #tpu.memory_space<vmem>>, vector<1x4x8xf32>
    %40 = vector.shape_cast %39 : vector<1x4x8xf32> to vector<4x8xf32>
    %cst_41 = arith.constant dense<0.000000e+00> : vector<1024x8xf32>
    %41 = tpu.matmul %38, %40, %cst_41 {dimension_numbers = #tpu.dot_dimension_numbers<[1], [0], [0], [1], [0, 0, 1, 1], [], []>} : vector<1024x4xf32>, vector<4x8xf32>, vector<1024x8xf32> -> vector<1024x8xf32>
    %42 = arith.addf %35, %41 : vector<1024x8xf32>
    %c0_42 = arith.constant 0 : index
    %c2_43 = arith.constant 2 : index
    %c0_44 = arith.constant 0 : index
    %c0_45 = arith.constant 0 : index
    %43 = vector.load %arg1[%c0_42, %c2_43, %c0_44, %c0_45] : memref<1x34x34x4xf32, #tpu.memory_space<vmem>>, vector<1x32x32x4xf32>
    %44 = vector.shape_cast %43 : vector<1x32x32x4xf32> to vector<32x32x4xf32>
    %45 = vector.shape_cast %44 : vector<32x32x4xf32> to vector<1024x4xf32>
    %c6 = arith.constant 6 : index
    %c0_46 = arith.constant 0 : index
    %c0_47 = arith.constant 0 : index
    %46 = vector.load %arg2[%c6, %c0_46, %c0_47] : memref<9x4x8xf32, #tpu.memory_space<vmem>>, vector<1x4x8xf32>
    %47 = vector.shape_cast %46 : vector<1x4x8xf32> to vector<4x8xf32>
    %cst_48 = arith.constant dense<0.000000e+00> : vector<1024x8xf32>
    %48 = tpu.matmul %45, %47, %cst_48 {dimension_numbers = #tpu.dot_dimension_numbers<[1], [0], [0], [1], [0, 0, 1, 1], [], []>} : vector<1024x4xf32>, vector<4x8xf32>, vector<1024x8xf32> -> vector<1024x8xf32>
    %49 = arith.addf %42, %48 : vector<1024x8xf32>
    %c0_49 = arith.constant 0 : index
    %c2_50 = arith.constant 2 : index
    %c1_51 = arith.constant 1 : index
    %c0_52 = arith.constant 0 : index
    %50 = vector.load %arg1[%c0_49, %c2_50, %c1_51, %c0_52] : memref<1x34x34x4xf32, #tpu.memory_space<vmem>>, vector<1x32x32x4xf32>
    %51 = vector.shape_cast %50 : vector<1x32x32x4xf32> to vector<32x32x4xf32>
    %52 = vector.shape_cast %51 : vector<32x32x4xf32> to vector<1024x4xf32>
    %c7 = arith.constant 7 : index
    %c0_53 = arith.constant 0 : index
    %c0_54 = arith.constant 0 : index
    %53 = vector.load %arg2[%c7, %c0_53, %c0_54] : memref<9x4x8xf32, #tpu.memory_space<vmem>>, vector<1x4x8xf32>
    %54 = vector.shape_cast %53 : vector<1x4x8xf32> to vector<4x8xf32>
    %cst_55 = arith.constant dense<0.000000e+00> : vector<1024x8xf32>
    %55 = tpu.matmul %52, %54, %cst_55 {dimension_numbers = #tpu.dot_dimension_numbers<[1], [0], [0], [1], [0, 0, 1, 1], [], []>} : vector<1024x4xf32>, vector<4x8xf32>, vector<1024x8xf32> -> vector<1024x8xf32>
    %56 = arith.addf %49, %55 : vector<1024x8xf32>
    %c0_56 = arith.constant 0 : index
    %c2_57 = arith.constant 2 : index
    %c2_58 = arith.constant 2 : index
    %c0_59 = arith.constant 0 : index
    %57 = vector.load %arg1[%c0_56, %c2_57, %c2_58, %c0_59] : memref<1x34x34x4xf32, #tpu.memory_space<vmem>>, vector<1x32x32x4xf32>
    %58 = vector.shape_cast %57 : vector<1x32x32x4xf32> to vector<32x32x4xf32>
    %59 = vector.shape_cast %58 : vector<32x32x4xf32> to vector<1024x4xf32>
    %c8 = arith.constant 8 : index
    %c0_60 = arith.constant 0 : index
    %c0_61 = arith.constant 0 : index
    %60 = vector.load %arg2[%c8, %c0_60, %c0_61] : memref<9x4x8xf32, #tpu.memory_space<vmem>>, vector<1x4x8xf32>
    %61 = vector.shape_cast %60 : vector<1x4x8xf32> to vector<4x8xf32>
    %cst_62 = arith.constant dense<0.000000e+00> : vector<1024x8xf32>
    %62 = tpu.matmul %59, %61, %cst_62 {dimension_numbers = #tpu.dot_dimension_numbers<[1], [0], [0], [1], [0, 0, 1, 1], [], []>} : vector<1024x4xf32>, vector<4x8xf32>, vector<1024x8xf32> -> vector<1024x8xf32>
    %63 = arith.addf %56, %62 : vector<1024x8xf32>
    %c0_63 = arith.constant 0 : index
    %c0_64 = arith.constant 0 : index
    %c0_65 = arith.constant 0 : index
    %64 = vector.load %arg3[%c0_63, %c0_64, %c0_65] : memref<1x1024x8xf32, #tpu.memory_space<vmem>>, vector<1x1024x8xf32>
    %65 = vector.shape_cast %64 : vector<1x1024x8xf32> to vector<1024x8xf32>
    %66 = vector.shape_cast %63 : vector<1024x8xf32> to vector<1x1024x8xf32>
    tpu.vector_store %arg3[%c0_63, %c0_64, %c0_65], %66 {strides = array<i32>} : memref<1x1024x8xf32, #tpu.memory_space<vmem>>, vector<1x1024x8xf32>,
    %cst_66 = arith.constant dense<0.000000e+00> : vector<8xf32>
    %67 = vector.multi_reduction <add>, %63, %cst_66 [0] : vector<1024x8xf32> to vector<8xf32>
    %68 = vector.shape_cast %67 : vector<8xf32> to vector<1x8xf32>
    %c0_67 = arith.constant 0 : index
    %c0_68 = arith.constant 0 : index
    %c0_69 = arith.constant 0 : index
    %69 = vector.load %arg4[%c0_67, %c0_68, %c0_69] : memref<1x1x8xf32, #tpu.memory_space<vmem>>, vector<1x1x8xf32>
    %70 = vector.shape_cast %69 : vector<1x1x8xf32> to vector<1x8xf32>
    %71 = vector.shape_cast %68 : vector<1x8xf32> to vector<1x1x8xf32>
    tpu.vector_store %arg4[%c0_67, %c0_68, %c0_69], %71 {strides = array<i32>} : memref<1x1x8xf32, #tpu.memory_space<vmem>>, vector<1x1x8xf32>,
    %72 = arith.mulf %63, %63 : vector<1024x8xf32>
    %cst_70 = arith.constant dense<0.000000e+00> : vector<8xf32>
    %73 = vector.multi_reduction <add>, %72, %cst_70 [0] : vector<1024x8xf32> to vector<8xf32>
    %74 = vector.shape_cast %73 : vector<8xf32> to vector<1x8xf32>
    %c0_71 = arith.constant 0 : index
    %c0_72 = arith.constant 0 : index
    %c0_73 = arith.constant 0 : index
    %75 = vector.load %arg5[%c0_71, %c0_72, %c0_73] : memref<1x1x8xf32, #tpu.memory_space<vmem>>, vector<1x1x8xf32>
    %76 = vector.shape_cast %75 : vector<1x1x8xf32> to vector<1x8xf32>
    %77 = vector.shape_cast %74 : vector<1x8xf32> to vector<1x1x8xf32>
    tpu.vector_store %arg5[%c0_71, %c0_72, %c0_73], %77 {strides = array<i32>} : memref<1x1x8xf32, #tpu.memory_space<vmem>>, vector<1x1x8xf32>,
    return
  }
  func.func @transform_0(%arg0: i32) -> (i32, i32, i32, i32) {
    %c0_i32 = arith.constant 0 : i32
    %c0_i32_0 = arith.constant 0 : i32
    %c0_i32_1 = arith.constant 0 : i32
    %c0_i32_2 = arith.constant 0 : i32
    return %arg0, %c0_i32, %c0_i32_0, %c0_i32_1 : i32, i32, i32, i32
  }
  func.func @transform_1(%arg0: i32) -> (i32, i32, i32) {
    %c0_i32 = arith.constant 0 : i32
    %c0_i32_0 = arith.constant 0 : i32
    %c0_i32_1 = arith.constant 0 : i32
    %c0_i32_2 = arith.constant 0 : i32
    return %c0_i32, %c0_i32_0, %c0_i32_1 : i32, i32, i32
  }
  func.func @transform_2(%arg0: i32) -> (i32, i32, i32) {
    %c0_i32 = arith.constant 0 : i32
    %c0_i32_0 = arith.constant 0 : i32
    %c0_i32_1 = arith.constant 0 : i32
    return %arg0, %c0_i32, %c0_i32_0 : i32, i32, i32
  }
  func.func @transform_3(%arg0: i32) -> (i32, i32, i32) {
    %c0_i32 = arith.constant 0 : i32
    %c0_i32_0 = arith.constant 0 : i32
    %c0_i32_1 = arith.constant 0 : i32
    return %arg0, %c0_i32, %c0_i32_0 : i32, i32, i32
  }
  func.func @transform_4(%arg0: i32) -> (i32, i32, i32) {
    %c0_i32 = arith.constant 0 : i32
    %c0_i32_0 = arith.constant 0 : i32
    %c0_i32_1 = arith.constant 0 : i32
    return %arg0, %c0_i32, %c0_i32_0 : i32, i32, i32
  }
}

module attributes {stable_mosaic.version = 11 : i64} {
  func.func @_bn_act_matmul_stats_kernel(%arg0: i32, %arg1: memref<512x8xf32, #tpu.memory_space<vmem>>, %arg2: memref<1x8xf32, #tpu.memory_space<vmem>>, %arg3: memref<1x8xf32, #tpu.memory_space<vmem>>, %arg4: memref<8x8xf32, #tpu.memory_space<vmem>>, %arg5: memref<512x8xf32, #tpu.memory_space<vmem>>, %arg6: memref<1x1x8xf32, #tpu.memory_space<vmem>>, %arg7: memref<1x1x8xf32, #tpu.memory_space<vmem>>) attributes {dimension_semantics = [#tpu.dimension_semantics<parallel>], iteration_bounds = array<i64: 4>, scalar_prefetch = 0 : i64, scratch_operands = 0 : i64, tpu.core_type = #tpu.core_type<tc>, window_params = [{transform_indices = @transform_0, window_bounds = array<i64: 512, 8>}, {pipeline_mode = #tpu.pipeline_mode<synchronous>, transform_indices = @transform_1, window_bounds = array<i64: 1, 8>}, {pipeline_mode = #tpu.pipeline_mode<synchronous>, transform_indices = @transform_2, window_bounds = array<i64: 1, 8>}, {pipeline_mode = #tpu.pipeline_mode<synchronous>, transform_indices = @transform_3, window_bounds = array<i64: 8, 8>}, {transform_indices = @transform_4, window_bounds = array<i64: 512, 8>}, {transform_indices = @transform_5, window_bounds = array<i64: 1, 1, 8>}, {transform_indices = @transform_6, window_bounds = array<i64: 1, 1, 8>}]} {
    %c0 = arith.constant 0 : index
    %c0_0 = arith.constant 0 : index
    %0 = vector.load %arg1[%c0, %c0_0] : memref<512x8xf32, #tpu.memory_space<vmem>>, vector<512x8xf32>
    %c0_1 = arith.constant 0 : index
    %c0_2 = arith.constant 0 : index
    %1 = vector.load %arg2[%c0_1, %c0_2] : memref<1x8xf32, #tpu.memory_space<vmem>>, vector<1x8xf32>
    %2 = vector.broadcast %1 : vector<1x8xf32> to vector<512x8xf32>
    %3 = arith.mulf %0, %2 : vector<512x8xf32>
    %c0_3 = arith.constant 0 : index
    %c0_4 = arith.constant 0 : index
    %4 = vector.load %arg3[%c0_3, %c0_4] : memref<1x8xf32, #tpu.memory_space<vmem>>, vector<1x8xf32>
    %5 = vector.broadcast %4 : vector<1x8xf32> to vector<512x8xf32>
    %6 = arith.addf %3, %5 : vector<512x8xf32>
    %cst = arith.constant 0.000000e+00 : f32
    %7 = vector.broadcast %cst : f32 to vector<512x8xf32>
    %8 = arith.cmpf oge, %6, %7 : vector<512x8xf32>
    %cst_5 = arith.constant 2.000000e-01 : f32
    %9 = vector.broadcast %cst_5 : f32 to vector<512x8xf32>
    %10 = arith.mulf %9, %6 : vector<512x8xf32>
    %11 = arith.select %8, %6, %10 : vector<512x8xi1>, vector<512x8xf32>
    %c0_6 = arith.constant 0 : index
    %c0_7 = arith.constant 0 : index
    %12 = vector.load %arg4[%c0_6, %c0_7] : memref<8x8xf32, #tpu.memory_space<vmem>>, vector<8x8xf32>
    %cst_8 = arith.constant dense<0.000000e+00> : vector<512x8xf32>
    %13 = tpu.matmul %11, %12, %cst_8 {dimension_numbers = #tpu.dot_dimension_numbers<[1], [0], [0], [1], [0, 0, 1, 1], [], []>} : vector<512x8xf32>, vector<8x8xf32>, vector<512x8xf32> -> vector<512x8xf32>
    %c0_9 = arith.constant 0 : index
    %c0_10 = arith.constant 0 : index
    %14 = vector.load %arg5[%c0_9, %c0_10] : memref<512x8xf32, #tpu.memory_space<vmem>>, vector<512x8xf32>
    tpu.vector_store %arg5[%c0_9, %c0_10], %13 {strides = array<i32>} : memref<512x8xf32, #tpu.memory_space<vmem>>, vector<512x8xf32>,
    %cst_11 = arith.constant dense<0.000000e+00> : vector<8xf32>
    %15 = vector.multi_reduction <add>, %13, %cst_11 [0] : vector<512x8xf32> to vector<8xf32>
    %16 = vector.shape_cast %15 : vector<8xf32> to vector<1x8xf32>
    %c0_12 = arith.constant 0 : index
    %c0_13 = arith.constant 0 : index
    %c0_14 = arith.constant 0 : index
    %17 = vector.load %arg6[%c0_12, %c0_13, %c0_14] : memref<1x1x8xf32, #tpu.memory_space<vmem>>, vector<1x1x8xf32>
    %18 = vector.shape_cast %17 : vector<1x1x8xf32> to vector<1x8xf32>
    %19 = vector.shape_cast %16 : vector<1x8xf32> to vector<1x1x8xf32>
    tpu.vector_store %arg6[%c0_12, %c0_13, %c0_14], %19 {strides = array<i32>} : memref<1x1x8xf32, #tpu.memory_space<vmem>>, vector<1x1x8xf32>,
    %20 = arith.mulf %13, %13 : vector<512x8xf32>
    %cst_15 = arith.constant dense<0.000000e+00> : vector<8xf32>
    %21 = vector.multi_reduction <add>, %20, %cst_15 [0] : vector<512x8xf32> to vector<8xf32>
    %22 = vector.shape_cast %21 : vector<8xf32> to vector<1x8xf32>
    %c0_16 = arith.constant 0 : index
    %c0_17 = arith.constant 0 : index
    %c0_18 = arith.constant 0 : index
    %23 = vector.load %arg7[%c0_16, %c0_17, %c0_18] : memref<1x1x8xf32, #tpu.memory_space<vmem>>, vector<1x1x8xf32>
    %24 = vector.shape_cast %23 : vector<1x1x8xf32> to vector<1x8xf32>
    %25 = vector.shape_cast %22 : vector<1x8xf32> to vector<1x1x8xf32>
    tpu.vector_store %arg7[%c0_16, %c0_17, %c0_18], %25 {strides = array<i32>} : memref<1x1x8xf32, #tpu.memory_space<vmem>>, vector<1x1x8xf32>,
    return
  }
  func.func @transform_0(%arg0: i32) -> (i32, i32) {
    %c0_i32 = arith.constant 0 : i32
    %c0_i32_0 = arith.constant 0 : i32
    return %arg0, %c0_i32 : i32, i32
  }
  func.func @transform_1(%arg0: i32) -> (i32, i32) {
    %c0_i32 = arith.constant 0 : i32
    %c0_i32_0 = arith.constant 0 : i32
    %c0_i32_1 = arith.constant 0 : i32
    return %c0_i32, %c0_i32_0 : i32, i32
  }
  func.func @transform_2(%arg0: i32) -> (i32, i32) {
    %c0_i32 = arith.constant 0 : i32
    %c0_i32_0 = arith.constant 0 : i32
    %c0_i32_1 = arith.constant 0 : i32
    return %c0_i32, %c0_i32_0 : i32, i32
  }
  func.func @transform_3(%arg0: i32) -> (i32, i32) {
    %c0_i32 = arith.constant 0 : i32
    %c0_i32_0 = arith.constant 0 : i32
    %c0_i32_1 = arith.constant 0 : i32
    return %c0_i32, %c0_i32_0 : i32, i32
  }
  func.func @transform_4(%arg0: i32) -> (i32, i32) {
    %c0_i32 = arith.constant 0 : i32
    %c0_i32_0 = arith.constant 0 : i32
    return %arg0, %c0_i32 : i32, i32
  }
  func.func @transform_5(%arg0: i32) -> (i32, i32, i32) {
    %c0_i32 = arith.constant 0 : i32
    %c0_i32_0 = arith.constant 0 : i32
    %c0_i32_1 = arith.constant 0 : i32
    return %arg0, %c0_i32, %c0_i32_0 : i32, i32, i32
  }
  func.func @transform_6(%arg0: i32) -> (i32, i32, i32) {
    %c0_i32 = arith.constant 0 : i32
    %c0_i32_0 = arith.constant 0 : i32
    %c0_i32_1 = arith.constant 0 : i32
    return %arg0, %c0_i32, %c0_i32_0 : i32, i32, i32
  }
}

module attributes {stable_mosaic.version = 11 : i64} {
  func.func @_affine_act_kernel(%arg0: i32, %arg1: memref<512x8xf32, #tpu.memory_space<vmem>>, %arg2: memref<1x8xf32, #tpu.memory_space<vmem>>, %arg3: memref<1x8xf32, #tpu.memory_space<vmem>>, %arg4: memref<512x8xf32, #tpu.memory_space<vmem>>) attributes {dimension_semantics = [#tpu.dimension_semantics<parallel>], iteration_bounds = array<i64: 4>, scalar_prefetch = 0 : i64, scratch_operands = 0 : i64, tpu.core_type = #tpu.core_type<tc>, window_params = [{transform_indices = @transform_0, window_bounds = array<i64: 512, 8>}, {pipeline_mode = #tpu.pipeline_mode<synchronous>, transform_indices = @transform_1, window_bounds = array<i64: 1, 8>}, {pipeline_mode = #tpu.pipeline_mode<synchronous>, transform_indices = @transform_2, window_bounds = array<i64: 1, 8>}, {transform_indices = @transform_3, window_bounds = array<i64: 512, 8>}]} {
    %c0 = arith.constant 0 : index
    %c0_0 = arith.constant 0 : index
    %0 = vector.load %arg1[%c0, %c0_0] : memref<512x8xf32, #tpu.memory_space<vmem>>, vector<512x8xf32>
    %c0_1 = arith.constant 0 : index
    %c0_2 = arith.constant 0 : index
    %1 = vector.load %arg2[%c0_1, %c0_2] : memref<1x8xf32, #tpu.memory_space<vmem>>, vector<1x8xf32>
    %2 = vector.broadcast %1 : vector<1x8xf32> to vector<512x8xf32>
    %3 = arith.mulf %0, %2 : vector<512x8xf32>
    %c0_3 = arith.constant 0 : index
    %c0_4 = arith.constant 0 : index
    %4 = vector.load %arg3[%c0_3, %c0_4] : memref<1x8xf32, #tpu.memory_space<vmem>>, vector<1x8xf32>
    %5 = vector.broadcast %4 : vector<1x8xf32> to vector<512x8xf32>
    %6 = arith.addf %3, %5 : vector<512x8xf32>
    %cst = arith.constant 0.000000e+00 : f32
    %7 = vector.broadcast %cst : f32 to vector<512x8xf32>
    %8 = arith.cmpf oge, %6, %7 : vector<512x8xf32>
    %cst_5 = arith.constant 2.000000e-01 : f32
    %9 = vector.broadcast %cst_5 : f32 to vector<512x8xf32>
    %10 = arith.mulf %9, %6 : vector<512x8xf32>
    %11 = arith.select %8, %6, %10 : vector<512x8xi1>, vector<512x8xf32>
    %c0_6 = arith.constant 0 : index
    %c0_7 = arith.constant 0 : index
    %12 = vector.load %arg4[%c0_6, %c0_7] : memref<512x8xf32, #tpu.memory_space<vmem>>, vector<512x8xf32>
    tpu.vector_store %arg4[%c0_6, %c0_7], %11 {strides = array<i32>} : memref<512x8xf32, #tpu.memory_space<vmem>>, vector<512x8xf32>,
    return
  }
  func.func @transform_0(%arg0: i32) -> (i32, i32) {
    %c0_i32 = arith.constant 0 : i32
    %c0_i32_0 = arith.constant 0 : i32
    return %arg0, %c0_i32 : i32, i32
  }
  func.func @transform_1(%arg0: i32) -> (i32, i32) {
    %c0_i32 = arith.constant 0 : i32
    %c0_i32_0 = arith.constant 0 : i32
    %c0_i32_1 = arith.constant 0 : i32
    return %c0_i32, %c0_i32_0 : i32, i32
  }
  func.func @transform_2(%arg0: i32) -> (i32, i32) {
    %c0_i32 = arith.constant 0 : i32
    %c0_i32_0 = arith.constant 0 : i32
    %c0_i32_1 = arith.constant 0 : i32
    return %c0_i32, %c0_i32_0 : i32, i32
  }
  func.func @transform_3(%arg0: i32) -> (i32, i32) {
    %c0_i32 = arith.constant 0 : i32
    %c0_i32_0 = arith.constant 0 : i32
    return %arg0, %c0_i32 : i32, i32
  }
}

</mosaic_0001>

<llo_original>
// kernel: upsample_block_forward.4
$region0: #{upsample_block_forward.4}
  #allocation0 [shape = 'u32[]', space=smem, size = 0x4, offset = 0x4, fixed_abs, tag = 'smem constant byte address 0x4 - core index']
  #allocation1 [shape = 'u32[72,128]{1,0:T(1,128)}', space=vmem, size = 0x9000, scoped, tag = 'internal scratch']
  %s0 = inlined_call_operand.vmem [shape: f32[512,4], index: 0, kind: input, shape index: {}]
  %s1 = inlined_call_operand.vmem [shape: f32[1,1,4], index: 1, kind: output, shape index: {0}]
  %s2 = inlined_call_operand.vmem [shape: f32[1,1,4], index: 2, kind: output, shape index: {1}]
  %3 = xla_tuple %s1, %s2
  %s4 = sld [smem:[#allocation0]]
  $region22: #{upsample_block_forward.4} parent=0
    _
  %s6 = ssub.s32 1, %s4
  %s7 = scalar_select 0, %s6, %s4
  // Predicated region
  $region2: #{upsample_block_forward.4} parent=0 // pred_check
    _
  $region3: #{upsample_block_forward.4} parent=0 // pred_check_branch
    %9 = sbr.rel (0) target = $region5
  $region4: #{upsample_block_forward.4} parent=0 // pred_region
    _
  $region5: #{upsample_block_forward.4} parent=0 // pred_fallthru
    _
  %v10 = vld [vmem:[%s0] sm:$0xff]
  %v11 = vld [vmem:[%s0 + $0x8] sm:$0xff]
  %v12 = vld [vmem:[%s0 + $0x10] sm:$0xff]
  %v13 = vld [vmem:[%s0 + $0x18] sm:$0xff]
  %v14 = vld [vmem:[%s0 + $0x20] sm:$0xff]
  %v15 = vld [vmem:[%s0 + $0x28] sm:$0xff]
  %v16 = vld [vmem:[%s0 + $0x30] sm:$0xff]
  %v17 = vld [vmem:[%s0 + $0x38] sm:$0xff]
  %v18 = vld [vmem:[%s0 + $0x40] sm:$0xff]
  %v19 = vld [vmem:[%s0 + $0x48] sm:$0xff]
  %v20 = vld [vmem:[%s0 + $0x50] sm:$0xff]
  %v21 = vld [vmem:[%s0 + $0x58] sm:$0xff]
  %v22 = vld [vmem:[%s0 + $0x60] sm:$0xff]
  %v23 = vld [vmem:[%s0 + $0x68] sm:$0xff]
  %v24 = vld [vmem:[%s0 + $0x70] sm:$0xff]
  %v25 = vld [vmem:[%s0 + $0x78] sm:$0xff]
  %v26 = vld [vmem:[%s0 + $0x80] sm:$0xff]
  %v27 = vld [vmem:[%s0 + $0x88] sm:$0xff]
  %v28 = vld [vmem:[%s0 + $0x90] sm:$0xff]
  %v29 = vld [vmem:[%s0 + $0x98] sm:$0xff]
  %v30 = vld [vmem:[%s0 + $0xa0] sm:$0xff]
  %v31 = vld [vmem:[%s0 + $0xa8] sm:$0xff]
  %v32 = vld [vmem:[%s0 + $0xb0] sm:$0xff]
  %v33 = vld [vmem:[%s0 + $0xb8] sm:$0xff]
  %v34 = vld [vmem:[%s0 + $0xc0] sm:$0xff]
  %v35 = vld [vmem:[%s0 + $0xc8] sm:$0xff]
  %v36 = vld [vmem:[%s0 + $0xd0] sm:$0xff]
  %v37 = vld [vmem:[%s0 + $0xd8] sm:$0xff]
  %v38 = vld [vmem:[%s0 + $0xe0] sm:$0xff]
  %v39 = vld [vmem:[%s0 + $0xe8] sm:$0xff]
  %v40 = vld [vmem:[%s0 + $0xf0] sm:$0xff]
  %v41 = vld [vmem:[%s0 + $0xf8] sm:$0xff]
  %v42 = vld [vmem:[%s0 + $0x100] sm:$0xff]
  %v43 = vld [vmem:[%s0 + $0x108] sm:$0xff]
  %v44 = vld [vmem:[%s0 + $0x110] sm:$0xff]
  %v45 = vld [vmem:[%s0 + $0x118] sm:$0xff]
  %v46 = vld [vmem:[%s0 + $0x120] sm:$0xff]
  %v47 = vld [vmem:[%s0 + $0x128] sm:$0xff]
  %v48 = vld [vmem:[%s0 + $0x130] sm:$0xff]
  %v49 = vld [vmem:[%s0 + $0x138] sm:$0xff]
  %v50 = vld [vmem:[%s0 + $0x140] sm:$0xff]
  %v51 = vld [vmem:[%s0 + $0x148] sm:$0xff]
  %v52 = vld [vmem:[%s0 + $0x150] sm:$0xff]
  %v53 = vld [vmem:[%s0 + $0x158] sm:$0xff]
  %v54 = vld [vmem:[%s0 + $0x160] sm:$0xff]
  %v55 = vld [vmem:[%s0 + $0x168] sm:$0xff]
  %v56 = vld [vmem:[%s0 + $0x170] sm:$0xff]
  %v57 = vld [vmem:[%s0 + $0x178] sm:$0xff]
  %v58 = vld [vmem:[%s0 + $0x180] sm:$0xff]
  %v59 = vld [vmem:[%s0 + $0x188] sm:$0xff]
  %v60 = vld [vmem:[%s0 + $0x190] sm:$0xff]
  %v61 = vld [vmem:[%s0 + $0x198] sm:$0xff]
  %v62 = vld [vmem:[%s0 + $0x1a0] sm:$0xff]
  %v63 = vld [vmem:[%s0 + $0x1a8] sm:$0xff]
  %v64 = vld [vmem:[%s0 + $0x1b0] sm:$0xff]
  %v65 = vld [vmem:[%s0 + $0x1b8] sm:$0xff]
  %v66 = vld [vmem:[%s0 + $0x1c0] sm:$0xff]
  %v67 = vld [vmem:[%s0 + $0x1c8] sm:$0xff]
  %v68 = vld [vmem:[%s0 + $0x1d0] sm:$0xff]
  %v69 = vld [vmem:[%s0 + $0x1d8] sm:$0xff]
  %v70 = vld [vmem:[%s0 + $0x1e0] sm:$0xff]
  %v71 = vld [vmem:[%s0 + $0x1e8] sm:$0xff]
  %v72 = vld [vmem:[%s0 + $0x1f0] sm:$0xff]
  %v73 = vld [vmem:[%s0 + $0x1f8] sm:$0xff]
  %vm74 = vcmask 31744
  %v75 = vsel %vm74, %v10, 0.0
  %v76 = vsel %vm74, %v11, 0.0
  %v77 = vadd.f32 %v75, %v76
  %v78 = vsel %vm74, %v12, 0.0
  %v79 = vadd.f32 %v77, %v78
  %v80 = vsel %vm74, %v13, 0.0
  %v81 = vadd.f32 %v79, %v80
  %v82 = vsel %vm74, %v14, 0.0
  %v83 = vadd.f32 %v81, %v82
  %v84 = vsel %vm74, %v15, 0.0
  %v85 = vadd.f32 %v83, %v84
  %v86 = vsel %vm74, %v16, 0.0
  %v87 = vadd.f32 %v85, %v86
  %v88 = vsel %vm74, %v17, 0.0
  %v89 = vadd.f32 %v87, %v88
  %v90 = vsel %vm74, %v18, 0.0
  %v91 = vadd.f32 %v89, %v90
  %v92 = vsel %vm74, %v19, 0.0
  %v93 = vadd.f32 %v91, %v92
  %v94 = vsel %vm74, %v20, 0.0
  %v95 = vadd.f32 %v93, %v94
  %v96 = vsel %vm74, %v21, 0.0
  %v97 = vadd.f32 %v95, %v96
  %v98 = vsel %vm74, %v22, 0.0
  %v99 = vadd.f32 %v97, %v98
  %v100 = vsel %vm74, %v23, 0.0
  %v101 = vadd.f32 %v99, %v100
  %v102 = vsel %vm74, %v24, 0.0
  %v103 = vadd.f32 %v101, %v102
  %v104 = vsel %vm74, %v25, 0.0
  %v105 = vadd.f32 %v103, %v104
  %v106 = vsel %vm74, %v26, 0.0
  %v107 = vadd.f32 %v105, %v106
  %v108 = vsel %vm74, %v27, 0.0
  %v109 = vadd.f32 %v107, %v108
  %v110 = vsel %vm74, %v28, 0.0
  %v111 = vadd.f32 %v109, %v110
  %v112 = vsel %vm74, %v29, 0.0
  %v113 = vadd.f32 %v111, %v112
  %v114 = vsel %vm74, %v30, 0.0
  %v115 = vadd.f32 %v113, %v114
  %v116 = vsel %vm74, %v31, 0.0
  %v117 = vadd.f32 %v115, %v116
  %v118 = vsel %vm74, %v32, 0.0
  %v119 = vadd.f32 %v117, %v118
  %v120 = vsel %vm74, %v33, 0.0
  %v121 = vadd.f32 %v119, %v120
  %v122 = vsel %vm74, %v34, 0.0
  %v123 = vadd.f32 %v121, %v122
  %v124 = vsel %vm74, %v35, 0.0
  %v125 = vadd.f32 %v123, %v124
  %v126 = vsel %vm74, %v36, 0.0
  %v127 = vadd.f32 %v125, %v126
  %v128 = vsel %vm74, %v37, 0.0
  %v129 = vadd.f32 %v127, %v128
  %v130 = vsel %vm74, %v38, 0.0
  %v131 = vadd.f32 %v129, %v130
  %v132 = vsel %vm74, %v39, 0.0
  %v133 = vadd.f32 %v131, %v132
  %v134 = vsel %vm74, %v40, 0.0
  %v135 = vadd.f32 %v133, %v134
  %v136 = vsel %vm74, %v41, 0.0
  %v137 = vadd.f32 %v135, %v136
  %v138 = vsel %vm74, %v42, 0.0
  %v139 = vadd.f32 %v137, %v138
  %v140 = vsel %vm74, %v43, 0.0
  %v141 = vadd.f32 %v139, %v140
  %v142 = vsel %vm74, %v44, 0.0
  %v143 = vadd.f32 %v141, %v142
  %v144 = vsel %vm74, %v45, 0.0
  %v145 = vadd.f32 %v143, %v144
  %v146 = vsel %vm74, %v46, 0.0
  %v147 = vadd.f32 %v145, %v146
  %v148 = vsel %vm74, %v47, 0.0
  %v149 = vadd.f32 %v147, %v148
  %v150 = vsel %vm74, %v48, 0.0
  %v151 = vadd.f32 %v149, %v150
  %v152 = vsel %vm74, %v49, 0.0
  %v153 = vadd.f32 %v151, %v152
  %v154 = vsel %vm74, %v50, 0.0
  %v155 = vadd.f32 %v153, %v154
  %v156 = vsel %vm74, %v51, 0.0
  %v157 = vadd.f32 %v155, %v156
  %v158 = vsel %vm74, %v52, 0.0
  %v159 = vadd.f32 %v157, %v158
  %v160 = vsel %vm74, %v53, 0.0
  %v161 = vadd.f32 %v159, %v160
  %v162 = vsel %vm74, %v54, 0.0
  %v163 = vadd.f32 %v161, %v162
  %v164 = vsel %vm74, %v55, 0.0
  %v165 = vadd.f32 %v163, %v164
  %v166 = vsel %vm74, %v56, 0.0
  %v167 = vadd.f32 %v165, %v166
  %v168 = vsel %vm74, %v57, 0.0
  %v169 = vadd.f32 %v167, %v168
  %v170 = vsel %vm74, %v58, 0.0
  %v171 = vadd.f32 %v169, %v170
  %v172 = vsel %vm74, %v59, 0.0
  %v173 = vadd.f32 %v171, %v172
  %v174 = vsel %vm74, %v60, 0.0
  %v175 = vadd.f32 %v173, %v174
  %v176 = vsel %vm74, %v61, 0.0
  %v177 = vadd.f32 %v175, %v176
  %v178 = vsel %vm74, %v62, 0.0
  %v179 = vadd.f32 %v177, %v178
  %v180 = vsel %vm74, %v63, 0.0
  %v181 = vadd.f32 %v179, %v180
  %v182 = vsel %vm74, %v64, 0.0
  %v183 = vadd.f32 %v181, %v182
  %v184 = vsel %vm74, %v65, 0.0
  %v185 = vadd.f32 %v183, %v184
  %v186 = vsel %vm74, %v66, 0.0
  %v187 = vadd.f32 %v185, %v186
  %v188 = vsel %vm74, %v67, 0.0
  %v189 = vadd.f32 %v187, %v188
  %v190 = vsel %vm74, %v68, 0.0
  %v191 = vadd.f32 %v189, %v190
  %v192 = vsel %vm74, %v69, 0.0
  %v193 = vadd.f32 %v191, %v192
  %v194 = vsel %vm74, %v70, 0.0
  %v195 = vadd.f32 %v193, %v194
  %v196 = vsel %vm74, %v71, 0.0
  %v197 = vadd.f32 %v195, %v196
  %v198 = vsel %vm74, %v72, 0.0
  %v199 = vadd.f32 %v197, %v198
  %v200 = vsel %vm74, %v73, 0.0
  %v201 = vadd.f32 %v199, %v200
  %v202 = vrot.slane %v201, 4
  %v203 = vadd.f32 %v201, %v202
  %v204 = vrot.slane %v203, 2
  %v205 = vadd.f32 %v203, %v204
  %v206 = vrot.slane %v205, 1
  %v207 = vadd.f32 %v205, %v206
  %vm208 = vcmask 24576
  %209 = vst.msk [vmem:[%s1] sm:$0x1] %vm208, %v207
  %v210 = vmul.f32 %v10, %v10
  %v211 = vmul.f32 %v11, %v11
  %v212 = vmul.f32 %v12, %v12
  %v213 = vmul.f32 %v13, %v13
  %v214 = vmul.f32 %v14, %v14
  %v215 = vmul.f32 %v15, %v15
  %v216 = vmul.f32 %v16, %v16
  %v217 = vmul.f32 %v17, %v17
  %v218 = vmul.f32 %v18, %v18
  %v219 = vmul.f32 %v19, %v19
  %v220 = vmul.f32 %v20, %v20
  %v221 = vmul.f32 %v21, %v21
  %v222 = vmul.f32 %v22, %v22
  %v223 = vmul.f32 %v23, %v23
  %v224 = vmul.f32 %v24, %v24
  %v225 = vmul.f32 %v25, %v25
  %v226 = vmul.f32 %v26, %v26
  %v227 = vmul.f32 %v27, %v27
  %v228 = vmul.f32 %v28, %v28
  %v229 = vmul.f32 %v29, %v29
  %v230 = vmul.f32 %v30, %v30
  %v231 = vmul.f32 %v31, %v31
  %v232 = vmul.f32 %v32, %v32
  %v233 = vmul.f32 %v33, %v33
  %v234 = vmul.f32 %v34, %v34
  %v235 = vmul.f32 %v35, %v35
  %v236 = vmul.f32 %v36, %v36
  %v237 = vmul.f32 %v37, %v37
  %v238 = vmul.f32 %v38, %v38
  %v239 = vmul.f32 %v39, %v39
  %v240 = vmul.f32 %v40, %v40
  %v241 = vmul.f32 %v41, %v41
  %v242 = vmul.f32 %v42, %v42
  %v243 = vmul.f32 %v43, %v43
  %v244 = vmul.f32 %v44, %v44
  %v245 = vmul.f32 %v45, %v45
  %v246 = vmul.f32 %v46, %v46
  %v247 = vmul.f32 %v47, %v47
  %v248 = vmul.f32 %v48, %v48
  %v249 = vmul.f32 %v49, %v49
  %v250 = vmul.f32 %v50, %v50
  %v251 = vmul.f32 %v51, %v51
  %v252 = vmul.f32 %v52, %v52
  %v253 = vmul.f32 %v53, %v53
  %v254 = vmul.f32 %v54, %v54
  %v255 = vmul.f32 %v55, %v55
  %v256 = vmul.f32 %v56, %v56
  %v257 = vmul.f32 %v57, %v57
  %v258 = vmul.f32 %v58, %v58
  %v259 = vmul.f32 %v59, %v59
  %v260 = vmul.f32 %v60, %v60
  %v261 = vmul.f32 %v61, %v61
  %v262 = vmul.f32 %v62, %v62
  %v263 = vmul.f32 %v63, %v63
  %v264 = vmul.f32 %v64, %v64
  %v265 = vmul.f32 %v65, %v65
  %v266 = vmul.f32 %v66, %v66
  %v267 = vmul.f32 %v67, %v67
  %v268 = vmul.f32 %v68, %v68
  %v269 = vmul.f32 %v69, %v69
  %v270 = vmul.f32 %v70, %v70
  %v271 = vmul.f32 %v71, %v71
  %v272 = vmul.f32 %v72, %v72
  %v273 = vmul.f32 %v73, %v73
  %v274 = vsel %vm74, %v210, 0.0
  %v275 = vsel %vm74, %v211, 0.0
  %v276 = vadd.f32 %v274, %v275
  %v277 = vsel %vm74, %v212, 0.0
  %v278 = vadd.f32 %v276, %v277
  %v279 = vsel %vm74, %v213, 0.0
  %v280 = vadd.f32 %v278, %v279
  %v281 = vsel %vm74, %v214, 0.0
  %v282 = vadd.f32 %v280, %v281
  %v283 = vsel %vm74, %v215, 0.0
  %v284 = vadd.f32 %v282, %v283
  %v285 = vsel %vm74, %v216, 0.0
  %v286 = vadd.f32 %v284, %v285
  %v287 = vsel %vm74, %v217, 0.0
  %v288 = vadd.f32 %v286, %v287
  %v289 = vsel %vm74, %v218, 0.0
  %v290 = vadd.f32 %v288, %v289
  %v291 = vsel %vm74, %v219, 0.0
  %v292 = vadd.f32 %v290, %v291
  %v293 = vsel %vm74, %v220, 0.0
  %v294 = vadd.f32 %v292, %v293
  %v295 = vsel %vm74, %v221, 0.0
  %v296 = vadd.f32 %v294, %v295
  %v297 = vsel %vm74, %v222, 0.0
  %v298 = vadd.f32 %v296, %v297
  %v299 = vsel %vm74, %v223, 0.0
  %v300 = vadd.f32 %v298, %v299
  %v301 = vsel %vm74, %v224, 0.0
  %v302 = vadd.f32 %v300, %v301
  %v303 = vsel %vm74, %v225, 0.0
  %v304 = vadd.f32 %v302, %v303
  %v305 = vsel %vm74, %v226, 0.0
  %v306 = vadd.f32 %v304, %v305
  %v307 = vsel %vm74, %v227, 0.0
  %v308 = vadd.f32 %v306, %v307
  %v309 = vsel %vm74, %v228, 0.0
  %v310 = vadd.f32 %v308, %v309
  %v311 = vsel %vm74, %v229, 0.0
  %v312 = vadd.f32 %v310, %v311
  %v313 = vsel %vm74, %v230, 0.0
  %v314 = vadd.f32 %v312, %v313
  %v315 = vsel %vm74, %v231, 0.0
  %v316 = vadd.f32 %v314, %v315
  %v317 = vsel %vm74, %v232, 0.0
  %v318 = vadd.f32 %v316, %v317
  %v319 = vsel %vm74, %v233, 0.0
  %v320 = vadd.f32 %v318, %v319
  %v321 = vsel %vm74, %v234, 0.0
  %v322 = vadd.f32 %v320, %v321
  %v323 = vsel %vm74, %v235, 0.0
  %v324 = vadd.f32 %v322, %v323
  %v325 = vsel %vm74, %v236, 0.0
  %v326 = vadd.f32 %v324, %v325
  %v327 = vsel %vm74, %v237, 0.0
  %v328 = vadd.f32 %v326, %v327
  %v329 = vsel %vm74, %v238, 0.0
  %v330 = vadd.f32 %v328, %v329
  %v331 = vsel %vm74, %v239, 0.0
  %v332 = vadd.f32 %v330, %v331
  %v333 = vsel %vm74, %v240, 0.0
  %v334 = vadd.f32 %v332, %v333
  %v335 = vsel %vm74, %v241, 0.0
  %v336 = vadd.f32 %v334, %v335
  %v337 = vsel %vm74, %v242, 0.0
  %v338 = vadd.f32 %v336, %v337
  %v339 = vsel %vm74, %v243, 0.0
  %v340 = vadd.f32 %v338, %v339
  %v341 = vsel %vm74, %v244, 0.0
  %v342 = vadd.f32 %v340, %v341
  %v343 = vsel %vm74, %v245, 0.0
  %v344 = vadd.f32 %v342, %v343
  %v345 = vsel %vm74, %v246, 0.0
  %v346 = vadd.f32 %v344, %v345
  %v347 = vsel %vm74, %v247, 0.0
  %v348 = vadd.f32 %v346, %v347
  %v349 = vsel %vm74, %v248, 0.0
  %v350 = vadd.f32 %v348, %v349
  %v351 = vsel %vm74, %v249, 0.0
  %v352 = vadd.f32 %v350, %v351
  %v353 = vsel %vm74, %v250, 0.0
  %v354 = vadd.f32 %v352, %v353
  %v355 = vsel %vm74, %v251, 0.0
  %v356 = vadd.f32 %v354, %v355
  %v357 = vsel %vm74, %v252, 0.0
  %v358 = vadd.f32 %v356, %v357
  %v359 = vsel %vm74, %v253, 0.0
  %v360 = vadd.f32 %v358, %v359
  %v361 = vsel %vm74, %v254, 0.0
  %v362 = vadd.f32 %v360, %v361
  %v363 = vsel %vm74, %v255, 0.0
  %v364 = vadd.f32 %v362, %v363
  %v365 = vsel %vm74, %v256, 0.0
  %v366 = vadd.f32 %v364, %v365
  %v367 = vsel %vm74, %v257, 0.0
  %v368 = vadd.f32 %v366, %v367
  %v369 = vsel %vm74, %v258, 0.0
  %v370 = vadd.f32 %v368, %v369
  %v371 = vsel %vm74, %v259, 0.0
  %v372 = vadd.f32 %v370, %v371
  %v373 = vsel %vm74, %v260, 0.0
  %v374 = vadd.f32 %v372, %v373
  %v375 = vsel %vm74, %v261, 0.0
  %v376 = vadd.f32 %v374, %v375
  %v377 = vsel %vm74, %v262, 0.0
  %v378 = vadd.f32 %v376, %v377
  %v379 = vsel %vm74, %v263, 0.0
  %v380 = vadd.f32 %v378, %v379
  %v381 = vsel %vm74, %v264, 0.0
  %v382 = vadd.f32 %v380, %v381
  %v383 = vsel %vm74, %v265, 0.0
  %v384 = vadd.f32 %v382, %v383
  %v385 = vsel %vm74, %v266, 0.0
  %v386 = vadd.f32 %v384, %v385
  %v387 = vsel %vm74, %v267, 0.0
  %v388 = vadd.f32 %v386, %v387
  %v389 = vsel %vm74, %v268, 0.0
  %v390 = vadd.f32 %v388, %v389
  %v391 = vsel %vm74, %v269, 0.0
  %v392 = vadd.f32 %v390, %v391
  %v393 = vsel %vm74, %v270, 0.0
  %v394 = vadd.f32 %v392, %v393
  %v395 = vsel %vm74, %v271, 0.0
  %v396 = vadd.f32 %v394, %v395
  %v397 = vsel %vm74, %v272, 0.0
  %v398 = vadd.f32 %v396, %v397
  %v399 = vsel %vm74, %v273, 0.0
  %v400 = vadd.f32 %v398, %v399
  %v401 = vrot.slane %v400, 4
  %v402 = vadd.f32 %v400, %v401
  %v403 = vrot.slane %v402, 2
  %v404 = vadd.f32 %v402, %v403
  %v405 = vrot.slane %v404, 1
  %v406 = vadd.f32 %v404, %v405
  %407 = vst.msk [vmem:[%s2] sm:$0x1] %vm208, %v406
  // Predicated region
  $region6: #{upsample_block_forward.4} parent=0 // pred_check
    _
  $region7: #{upsample_block_forward.4} parent=0 // pred_check_branch
    %409 = sbr.rel (0) target = $region9
  $region8: #{upsample_block_forward.4} parent=0 // pred_region
    _
  $region9: #{upsample_block_forward.4} parent=0 // pred_fallthru
    _
  // Predicated region
  $region10: #{upsample_block_forward.4} parent=0 // pred_check
    _
  $region11: #{upsample_block_forward.4} parent=0 // pred_check_branch
    %411 = sbr.rel (0) target = $region13
  $region12: #{upsample_block_forward.4} parent=0 // pred_region
    _
  $region13: #{upsample_block_forward.4} parent=0 // pred_fallthru
    _
  // Predicated region
  $region14: #{upsample_block_forward.4} parent=0 // pred_check
    _
  $region15: #{upsample_block_forward.4} parent=0 // pred_check_branch
    %413 = sbr.rel (0) target = $region17
  $region16: #{upsample_block_forward.4} parent=0 // pred_region
    _
  $region17: #{upsample_block_forward.4} parent=0 // pred_fallthru
    _
  // Predicated region
  $region18: #{upsample_block_forward.4} parent=0 // pred_check
    _
  $region19: #{upsample_block_forward.4} parent=0 // pred_check_branch
    %415 = sbr.rel (0) target = $region21
  $region20: #{upsample_block_forward.4} parent=0 // pred_region
    _
  $region21: #{upsample_block_forward.4} parent=0 // pred_fallthru
    _

// kernel: upsample_block_forward.6
$region0: #{upsample_block_forward.6}
  #allocation0 [shape = 'u32[]', space=smem, size = 0x4, offset = 0x4, fixed_abs, tag = 'smem constant byte address 0x4 - core index']
  #allocation1 [shape = 'u32[72,128]{1,0:T(1,128)}', space=vmem, size = 0x9000, scoped, tag = 'internal scratch']
  %s0 = inlined_call_operand.vmem [shape: f32[2048,8], index: 0, kind: input, shape index: {}]
  %s1 = inlined_call_operand.vmem [shape: f32[1,8], index: 1, kind: input, shape index: {}]
  %s2 = inlined_call_operand.vmem [shape: f32[1,8], index: 2, kind: input, shape index: {}]
  %s3 = inlined_call_operand.vmem [shape: f32[8,8], index: 3, kind: input, shape index: {}]
  %s4 = inlined_call_operand.vmem [shape: f32[2048,8], index: 4, kind: output, shape index: {0}]
  %s5 = inlined_call_operand.vmem [shape: f32[4,1,8], index: 5, kind: output, shape index: {1}]
  %s6 = inlined_call_operand.vmem [shape: f32[4,1,8], index: 6, kind: output, shape index: {2}]
  %7 = xla_tuple %s4, %s5, %s6
  %s8 = sld [smem:[#allocation0]]
  $region65: #{upsample_block_forward.6} parent=0
    _
  %s10 = ssub.s32 1, %s8
  %s11 = scalar_select 0, %s10, %s8
  loop: start=0, step=1, limit=6
  $region2: #{upsample_block_forward.6} parent=0 // loop_pre_header
    _
  $region3: #{upsample_block_forward.6} parent=0 // loop_header
    %s13 = sphi 0, %s17
    %p14 = scmp.ge.s32.totalorder %s13, 6
    %s23 = sphi 0, %s25
    %s26 = sphi 0, %s23
    %s27 = sphi 0, %s26
    %s43 = sphi 0, %s27
    %s47 = sphi 0, %s47
    %s49 = sphi 0, %s47
    %s50 = sphi 0, %s49
    %s64 = sphi 0, %s50
    %s68 = sphi 0, %s68
    %s70 = sphi 0, %s68
    %s71 = sphi 0, %s70
    %s85 = sphi 0, %s71
    %s89 = sphi 0, %s89
    %s91 = sphi 0, %s89
    %s92 = sphi 0, %s91
    %s106 = sphi 0, %s92
    %s112 = sphi 0, %s114
    %s115 = sphi 0, %s112
    %s116 = sphi 0, %s115
    %s132 = sphi 0, %s116
    %s138 = sphi 0, %s140
    %s141 = sphi 0, %s138
    %s142 = sphi 0, %s141
    %s158 = sphi 0, %s142
    %s164 = sphi 0, %s166
    %s167 = sphi 0, %s164
    %s168 = sphi 0, %s167
    %s184 = sphi 0, %s168
  $region4: #{upsample_block_forward.6} parent=0 // loop_header_branch
    %16 = sbr.rel (%p14) target = $region8
  $region5: #{upsample_block_forward.6} parent=0 // loop_body
    %s18 = ssub.s32 %s13, 1
    %s19 = ssub.s32 %s13, 2
    %s20 = sadd.s32 %s13, 1
    %s21 = ssub.s32 %s13, %s20
    %p22 = scmp.eq.s32.totalorder %s21, 0
    %s24 = sadd.s32 %s23, 1
    %s25 = scalar_select %p22, %s23, %s24
    %p28 = pneg %p22
    %p29 = scmp.eq.s32.totalorder %s13, 3
    %p30 = por %p28, %p29
    %p31 = scmp.ne.s32.totalorder %s23, %s26
    %p32 = scmp.eq.s32.totalorder %s13, 0
    %p33 = por %p31, %p32
    %p34 = scmp.ne.s32.totalorder %s23, %s26
    %p35 = scmp.eq.s32.totalorder %s18, 3
    %p36 = por %p34, %p35
    %p37 = scmp.ne.s32.totalorder %s26, %s27
    %p38 = scmp.eq.s32.totalorder %s18, 0
    %p39 = por %p37, %p38
    %p40 = scmp.ne.s32.totalorder %s26, %s27
    %p41 = scmp.eq.s32.totalorder %s19, 3
    %p42 = por %p40, %p41
    %p44 = scmp.ne.s32.totalorder %s27, %s43
    %p45 = scmp.eq.s32.totalorder %s19, 0
    %p46 = por %p44, %p45
    %s48 = sadd.s32 %s47, 1
    %p51 = scmp.eq.s32.totalorder %s13, 3
    %p52 = scmp.ne.s32.totalorder %s47, %s49
    %p53 = scmp.eq.s32.totalorder %s13, 0
    %p54 = por %p52, %p53
    %p55 = scmp.ne.s32.totalorder %s47, %s49
    %p56 = scmp.eq.s32.totalorder %s18, 3
    %p57 = por %p55, %p56
    %p58 = scmp.ne.s32.totalorder %s49, %s50
    %p59 = scmp.eq.s32.totalorder %s18, 0
    %p60 = por %p58, %p59
    %p61 = scmp.ne.s32.totalorder %s49, %s50
    %p62 = scmp.eq.s32.totalorder %s19, 3
    %p63 = por %p61, %p62
    %p65 = scmp.ne.s32.totalorder %s50, %s64
    %p66 = scmp.eq.s32.totalorder %s19, 0
    %p67 = por %p65, %p66
    %s69 = sadd.s32 %s68, 1
    %p72 = scmp.eq.s32.totalorder %s13, 3
    %p73 = scmp.ne.s32.totalorder %s68, %s70
    %p74 = scmp.eq.s32.totalorder %s13, 0
    %p75 = por %p73, %p74
    %p76 = scmp.ne.s32.totalorder %s68, %s70
    %p77 = scmp.eq.s32.totalorder %s18, 3
    %p78 = por %p76, %p77
    %p79 = scmp.ne.s32.totalorder %s70, %s71
    %p80 = scmp.eq.s32.totalorder %s18, 0
    %p81 = por %p79, %p80
    %p82 = scmp.ne.s32.totalorder %s70, %s71
    %p83 = scmp.eq.s32.totalorder %s19, 3
    %p84 = por %p82, %p83
    %p86 = scmp.ne.s32.totalorder %s71, %s85
    %p87 = scmp.eq.s32.totalorder %s19, 0
    %p88 = por %p86, %p87
    %s90 = sadd.s32 %s89, 1
    %p93 = scmp.eq.s32.totalorder %s13, 3
    %p94 = scmp.ne.s32.totalorder %s89, %s91
    %p95 = scmp.eq.s32.totalorder %s13, 0
    %p96 = por %p94, %p95
    %p97 = scmp.ne.s32.totalorder %s89, %s91
    %p98 = scmp.eq.s32.totalorder %s18, 3
    %p99 = por %p97, %p98
    %p100 = scmp.ne.s32.totalorder %s91, %s92
    %p101 = scmp.eq.s32.totalorder %s18, 0
    %p102 = por %p100, %p101
    %p103 = scmp.ne.s32.totalorder %s91, %s92
    %p104 = scmp.eq.s32.totalorder %s19, 3
    %p105 = por %p103, %p104
    %p107 = scmp.ne.s32.totalorder %s92, %s106
    %p108 = scmp.eq.s32.totalorder %s19, 0
    %p109 = por %p107, %p108
    %s110 = ssub.s32 %s13, %s20
    %p111 = scmp.eq.s32.totalorder %s110, 0
    %s113 = sadd.s32 %s112, 1
    %s114 = scalar_select %p111, %s112, %s113
    %p117 = pneg %p111
    %p118 = scmp.eq.s32.totalorder %s13, 3
    %p119 = por %p117, %p118
    %p120 = scmp.ne.s32.totalorder %s112, %s115
    %p121 = scmp.eq.s32.totalorder %s13, 0
    %p122 = por %p120, %p121
    %p123 = scmp.ne.s32.totalorder %s112, %s115
    %p124 = scmp.eq.s32.totalorder %s18, 3
    %p125 = por %p123, %p124
    %p126 = scmp.ne.s32.totalorder %s115, %s116
    %p127 = scmp.eq.s32.totalorder %s18, 0
    %p128 = por %p126, %p127
    %p129 = scmp.ne.s32.totalorder %s115, %s116
    %p130 = scmp.eq.s32.totalorder %s19, 3
    %p131 = por %p129, %p130
    %p133 = scmp.ne.s32.totalorder %s116, %s132
    %p134 = scmp.eq.s32.totalorder %s19, 0
    %p135 = por %p133, %p134
    %s136 = ssub.s32 %s13, %s20
    %p137 = scmp.eq.s32.totalorder %s136, 0
    %s139 = sadd.s32 %s138, 1
    %s140 = scalar_select %p137, %s138, %s139
    %p143 = pneg %p137
    %p144 = scmp.eq.s32.totalorder %s13, 3
    %p145 = por %p143, %p144
    %p146 = scmp.ne.s32.totalorder %s138, %s141
    %p147 = scmp.eq.s32.totalorder %s13, 0
    %p148 = por %p146, %p147
    %p149 = scmp.ne.s32.totalorder %s138, %s141
    %p150 = scmp.eq.s32.totalorder %s18, 3
    %p151 = por %p149, %p150
    %p152 = scmp.ne.s32.totalorder %s141, %s142
    %p153 = scmp.eq.s32.totalorder %s18, 0
    %p154 = por %p152, %p153
    %p155 = scmp.ne.s32.totalorder %s141, %s142
    %p156 = scmp.eq.s32.totalorder %s19, 3
    %p157 = por %p155, %p156
    %p159 = scmp.ne.s32.totalorder %s142, %s158
    %p160 = scmp.eq.s32.totalorder %s19, 0
    %p161 = por %p159, %p160
    %s162 = ssub.s32 %s13, %s20
    %p163 = scmp.eq.s32.totalorder %s162, 0
    %s165 = sadd.s32 %s164, 1
    %s166 = scalar_select %p163, %s164, %s165
    %p169 = pneg %p163
    %p170 = scmp.eq.s32.totalorder %s13, 3
    %p171 = por %p169, %p170
    %p172 = scmp.ne.s32.totalorder %s164, %s167
    %p173 = scmp.eq.s32.totalorder %s13, 0
    %p174 = por %p172, %p173
    %p175 = scmp.ne.s32.totalorder %s164, %s167
    %p176 = scmp.eq.s32.totalorder %s18, 3
    %p177 = por %p175, %p176
    %p178 = scmp.ne.s32.totalorder %s167, %s168
    %p179 = scmp.eq.s32.totalorder %s18, 0
    %p180 = por %p178, %p179
    %p181 = scmp.ne.s32.totalorder %s167, %s168
    %p182 = scmp.eq.s32.totalorder %s19, 3
    %p183 = por %p181, %p182
    %p185 = scmp.ne.s32.totalorder %s168, %s184
    %p186 = scmp.eq.s32.totalorder %s19, 0
    %p187 = por %p185, %p186
    %p188 = scmp.le.s32.totalorder 1, %s13
    %p189 = scmp.lt.s32.totalorder %s13, 5
    %p190 = pnand %p188, %p189
    %p191 = pneg %p190
    // Predicated region
    $region9: #{upsample_block_forward.6} parent=5 // pred_check
      _
    $region10: #{upsample_block_forward.6} parent=5 // pred_check_branch
      %193 = sbr.rel (%p190) target = $region12
    $region11: #{upsample_block_forward.6} parent=5 // pred_region
      %s194 = ssub.s32 %s13, 1
      // Predicated region
      $region13: #{upsample_block_forward.6} parent=11 // pred_check
        %p195 = pneg %p60
      $region14: #{upsample_block_forward.6} parent=11 // pred_check_branch
        %197 = sbr.rel (%p195) target = $region16
      $region15: #{upsample_block_forward.6} parent=11 // pred_region
        _
      $region16: #{upsample_block_forward.6} parent=11 // pred_fallthru
        _
      // Predicated region
      $region17: #{upsample_block_forward.6} parent=11 // pred_check
        %p198 = pneg %p81
      $region18: #{upsample_block_forward.6} parent=11 // pred_check_branch
        %200 = sbr.rel (%p198) target = $region20
      $region19: #{upsample_block_forward.6} parent=11 // pred_region
        _
      $region20: #{upsample_block_forward.6} parent=11 // pred_fallthru
        _
      // Predicated region
      $region21: #{upsample_block_forward.6} parent=11 // pred_check
        %p201 = pneg %p102
      $region22: #{upsample_block_forward.6} parent=11 // pred_check_branch
        %203 = sbr.rel (%p201) target = $region24
      $region23: #{upsample_block_forward.6} parent=11 // pred_region
        _
      $region24: #{upsample_block_forward.6} parent=11 // pred_fallthru
        _
    $region12: #{upsample_block_forward.6} parent=5 // pred_fallthru
      _
    %p204 = scmp.lt.s32.totalorder %s13, 4
    // Predicated region
    $region25: #{upsample_block_forward.6} parent=5 // pred_check
      %p205 = pneg %p204
    $region26: #{upsample_block_forward.6} parent=5 // pred_check_branch
      %207 = sbr.rel (%p205) target = $region28
    $region27: #{upsample_block_forward.6} parent=5 // pred_region
      // Predicated region
      $region29: #{upsample_block_forward.6} parent=27 // pred_check
        %p208 = pneg %p33
      $region30: #{upsample_block_forward.6} parent=27 // pred_check_branch
        %210 = sbr.rel (%p208) target = $region32
      $region31: #{upsample_block_forward.6} parent=27 // pred_region
        %s211 = smul.u32 64, %s13
        %p212 = scmp.lt.s32.totalorder %s211, 255
        %s213 = scalar_select %p212, %s211, 255
        %s214 = smul.addr %s213, 8
        %s215 = scalar_lea.vmem %s0, %s214
        %s216 = smul.u32 64, %s13
      $region32: #{upsample_block_forward.6} parent=27 // pred_fallthru
        _
    $region28: #{upsample_block_forward.6} parent=5 // pred_fallthru
      _
    %p217 = scmp.le.s32.totalorder 1, %s13
    %p218 = scmp.lt.s32.totalorder %s13, 5
    %p219 = pnand %p217, %p218
    %p220 = pneg %p219
    // Predicated region
    $region33: #{upsample_block_forward.6} parent=5 // pred_check
      _
    $region34: #{upsample_block_forward.6} parent=5 // pred_check_branch
      %222 = sbr.rel (%p219) target = $region36
    $region35: #{upsample_block_forward.6} parent=5 // pred_region
      %s223 = ssub.s32 %s13, 1
      %s224 = smul.u32 64, %s18
      %p225 = scmp.lt.s32.totalorder %s224, 255
      %s226 = scalar_select %p225, %s224, 255
      %s227 = smul.addr %s226, 8
      %s228 = scalar_lea.vmem %s0, %s227
      %p229 = pneg %p39
      %p230 = pneg %p36
      %p231 = pneg %p60
      %p232 = pneg %p57
      %p233 = pneg %p81
      %p234 = pneg %p78
      %p235 = pneg %p102
      %p236 = pneg %p99
      %p237 = pneg %p128
      %p238 = pneg %p125
      %s239 = smul.u32 64, %s18
      %p240 = scmp.lt.s32.totalorder %s239, 255
      %s241 = scalar_select %p240, %s239, 255
      %s242 = smul.addr %s241, 8
      %s243 = scalar_lea.vmem %s4, %s242
      %p244 = pneg %p154
      %p245 = pneg %p151
      %p246 = scmp.lt.s32.totalorder %s18, 3
      %s247 = scalar_select %p246, %s18, 3
      %s248 = scalar_lea.vmem %s5, %s247
      %p249 = pneg %p180
      %p250 = pneg %p177
      %p251 = scmp.lt.s32.totalorder %s18, 3
      %s252 = scalar_select %p251, %s18, 3
      %s253 = scalar_lea.vmem %s6, %s252
      %s254 = smul.u32 64, %s18
      %p255 = scmp.lt.s32.totalorder %s254, 255
      %s256 = scalar_select %p255, %s254, 255
      %s257 = smul.addr %s256, 8
      %s258 = scalar_lea.vmem %s0, %s257
      %s259 = smul.u32 64, %s18
      %s260 = smul.u32 64, %s18
      %p261 = scmp.lt.s32.totalorder %s260, 255
      %s262 = scalar_select %p261, %s260, 255
      %s263 = smul.addr %s262, 8
      %s264 = scalar_lea.vmem %s4, %s263
      %s265 = smul.u32 64, %s18
      %p266 = scmp.lt.s32.totalorder %s18, 3
      %s267 = scalar_select %p266, %s18, 3
      %s268 = scalar_lea.vmem %s5, %s267
      %p269 = scmp.lt.s32.totalorder %s18, 3
      %s270 = scalar_select %p269, %s18, 3
      %s271 = scalar_lea.vmem %s6, %s270
      %v272 = vld [vmem:[%s258] sm:$0xff]
      %v273 = vld [vmem:[%s258 + $0x8] sm:$0xff]
      %v274 = vld [vmem:[%s258 + $0x10] sm:$0xff]
      %v275 = vld [vmem:[%s258 + $0x18] sm:$0xff]
      %v276 = vld [vmem:[%s258 + $0x20] sm:$0xff]
      %v277 = vld [vmem:[%s258 + $0x28] sm:$0xff]
      %v278 = vld [vmem:[%s258 + $0x30] sm:$0xff]
      %v279 = vld [vmem:[%s258 + $0x38] sm:$0xff]
      %v280 = vld [vmem:[%s258 + $0x40] sm:$0xff]
      %v281 = vld [vmem:[%s258 + $0x48] sm:$0xff]
      %v282 = vld [vmem:[%s258 + $0x50] sm:$0xff]
      %v283 = vld [vmem:[%s258 + $0x58] sm:$0xff]
      %v284 = vld [vmem:[%s258 + $0x60] sm:$0xff]
      %v285 = vld [vmem:[%s258 + $0x68] sm:$0xff]
      %v286 = vld [vmem:[%s258 + $0x70] sm:$0xff]
      %v287 = vld [vmem:[%s258 + $0x78] sm:$0xff]
      %v288 = vld [vmem:[%s258 + $0x80] sm:$0xff]
      %v289 = vld [vmem:[%s258 + $0x88] sm:$0xff]
      %v290 = vld [vmem:[%s258 + $0x90] sm:$0xff]
      %v291 = vld [vmem:[%s258 + $0x98] sm:$0xff]
      %v292 = vld [vmem:[%s258 + $0xa0] sm:$0xff]
      %v293 = vld [vmem:[%s258 + $0xa8] sm:$0xff]
      %v294 = vld [vmem:[%s258 + $0xb0] sm:$0xff]
      %v295 = vld [vmem:[%s258 + $0xb8] sm:$0xff]
      %v296 = vld [vmem:[%s258 + $0xc0] sm:$0xff]
      %v297 = vld [vmem:[%s258 + $0xc8] sm:$0xff]
      %v298 = vld [vmem:[%s258 + $0xd0] sm:$0xff]
      %v299 = vld [vmem:[%s258 + $0xd8] sm:$0xff]
      %v300 = vld [vmem:[%s258 + $0xe0] sm:$0xff]
      %v301 = vld [vmem:[%s258 + $0xe8] sm:$0xff]
      %v302 = vld [vmem:[%s258 + $0xf0] sm:$0xff]
      %v303 = vld [vmem:[%s258 + $0xf8] sm:$0xff]
      %v304 = vld [vmem:[%s258 + $0x100] sm:$0xff]
      %v305 = vld [vmem:[%s258 + $0x108] sm:$0xff]
      %v306 = vld [vmem:[%s258 + $0x110] sm:$0xff]
      %v307 = vld [vmem:[%s258 + $0x118] sm:$0xff]
      %v308 = vld [vmem:[%s258 + $0x120] sm:$0xff]
      %v309 = vld [vmem:[%s258 + $0x128] sm:$0xff]
      %v310 = vld [vmem:[%s258 + $0x130] sm:$0xff]
      %v311 = vld [vmem:[%s258 + $0x138] sm:$0xff]
      %v312 = vld [vmem:[%s258 + $0x140] sm:$0xff]
      %v313 = vld [vmem:[%s258 + $0x148] sm:$0xff]
      %v314 = vld [vmem:[%s258 + $0x150] sm:$0xff]
      %v315 = vld [vmem:[%s258 + $0x158] sm:$0xff]
      %v316 = vld [vmem:[%s258 + $0x160] sm:$0xff]
      %v317 = vld [vmem:[%s258 + $0x168] sm:$0xff]
      %v318 = vld [vmem:[%s258 + $0x170] sm:$0xff]
      %v319 = vld [vmem:[%s258 + $0x178] sm:$0xff]
      %v320 = vld [vmem:[%s258 + $0x180] sm:$0xff]
      %v321 = vld [vmem:[%s258 + $0x188] sm:$0xff]
      %v322 = vld [vmem:[%s258 + $0x190] sm:$0xff]
      %v323 = vld [vmem:[%s258 + $0x198] sm:$0xff]
      %v324 = vld [vmem:[%s258 + $0x1a0] sm:$0xff]
      %v325 = vld [vmem:[%s258 + $0x1a8] sm:$0xff]
      %v326 = vld [vmem:[%s258 + $0x1b0] sm:$0xff]
      %v327 = vld [vmem:[%s258 + $0x1b8] sm:$0xff]
      %v328 = vld [vmem:[%s258 + $0x1c0] sm:$0xff]
      %v329 = vld [vmem:[%s258 + $0x1c8] sm:$0xff]
      %v330 = vld [vmem:[%s258 + $0x1d0] sm:$0xff]
      %v331 = vld [vmem:[%s258 + $0x1d8] sm:$0xff]
      %v332 = vld [vmem:[%s258 + $0x1e0] sm:$0xff]
      %v333 = vld [vmem:[%s258 + $0x1e8] sm:$0xff]
      %v334 = vld [vmem:[%s258 + $0x1f0] sm:$0xff]
      %v335 = vld [vmem:[%s258 + $0x1f8] sm:$0xff]
      %v336 = vld [vmem:[%s1] sm:$0x1]
      %v338 = vperm.slane %v336, 0
      %v340 = vmul.f32 %v272, %v338
      %v341 = vmul.f32 %v273, %v338
      %v342 = vmul.f32 %v274, %v338
      %v343 = vmul.f32 %v275, %v338
      %v344 = vmul.f32 %v276, %v338
      %v345 = vmul.f32 %v277, %v338
      %v346 = vmul.f32 %v278, %v338
      %v347 = vmul.f32 %v279, %v338
      %v348 = vmul.f32 %v280, %v338
      %v349 = vmul.f32 %v281, %v338
      %v350 = vmul.f32 %v282, %v338
      %v351 = vmul.f32 %v283, %v338
      %v352 = vmul.f32 %v284, %v338
      %v353 = vmul.f32 %v285, %v338
      %v354 = vmul.f32 %v286, %v338
      %v355 = vmul.f32 %v287, %v338
      %v356 = vmul.f32 %v288, %v338
      %v357 = vmul.f32 %v289, %v338
      %v358 = vmul.f32 %v290, %v338
      %v359 = vmul.f32 %v291, %v338
      %v360 = vmul.f32 %v292, %v338
      %v361 = vmul.f32 %v293, %v338
      %v362 = vmul.f32 %v294, %v338
      %v363 = vmul.f32 %v295, %v338
      %v364 = vmul.f32 %v296, %v338
      %v365 = vmul.f32 %v297, %v338
      %v366 = vmul.f32 %v298, %v338
      %v367 = vmul.f32 %v299, %v338
      %v368 = vmul.f32 %v300, %v338
      %v369 = vmul.f32 %v301, %v338
      %v370 = vmul.f32 %v302, %v338
      %v371 = vmul.f32 %v303, %v338
      %v372 = vmul.f32 %v304, %v338
      %v373 = vmul.f32 %v305, %v338
      %v374 = vmul.f32 %v306, %v338
      %v375 = vmul.f32 %v307, %v338
      %v376 = vmul.f32 %v308, %v338
      %v377 = vmul.f32 %v309, %v338
      %v378 = vmul.f32 %v310, %v338
      %v379 = vmul.f32 %v311, %v338
      %v380 = vmul.f32 %v312, %v338
      %v381 = vmul.f32 %v313, %v338
      %v382 = vmul.f32 %v314, %v338
      %v383 = vmul.f32 %v315, %v338
      %v384 = vmul.f32 %v316, %v338
      %v385 = vmul.f32 %v317, %v338
      %v386 = vmul.f32 %v318, %v338
      %v387 = vmul.f32 %v319, %v338
      %v388 = vmul.f32 %v320, %v338
      %v389 = vmul.f32 %v321, %v338
      %v390 = vmul.f32 %v322, %v338
      %v391 = vmul.f32 %v323, %v338
      %v392 = vmul.f32 %v324, %v338
      %v393 = vmul.f32 %v325, %v338
      %v394 = vmul.f32 %v326, %v338
      %v395 = vmul.f32 %v327, %v338
      %v396 = vmul.f32 %v328, %v338
      %v397 = vmul.f32 %v329, %v338
      %v398 = vmul.f32 %v330, %v338
      %v399 = vmul.f32 %v331, %v338
      %v400 = vmul.f32 %v332, %v338
      %v401 = vmul.f32 %v333, %v338
      %v402 = vmul.f32 %v334, %v338
      %v403 = vmul.f32 %v335, %v338
      %v404 = vld [vmem:[%s2] sm:$0x1]
      %v406 = vperm.slane %v404, 0
      %v408 = vadd.f32 %v340, %v406
      %v409 = vadd.f32 %v341, %v406
      %v410 = vadd.f32 %v342, %v406
      %v411 = vadd.f32 %v343, %v406
      %v412 = vadd.f32 %v344, %v406
      %v413 = vadd.f32 %v345, %v406
      %v414 = vadd.f32 %v346, %v406
      %v415 = vadd.f32 %v347, %v406
      %v416 = vadd.f32 %v348, %v406
      %v417 = vadd.f32 %v349, %v406
      %v418 = vadd.f32 %v350, %v406
      %v419 = vadd.f32 %v351, %v406
      %v420 = vadd.f32 %v352, %v406
      %v421 = vadd.f32 %v353, %v406
      %v422 = vadd.f32 %v354, %v406
      %v423 = vadd.f32 %v355, %v406
      %v424 = vadd.f32 %v356, %v406
      %v425 = vadd.f32 %v357, %v406
      %v426 = vadd.f32 %v358, %v406
      %v427 = vadd.f32 %v359, %v406
      %v428 = vadd.f32 %v360, %v406
      %v429 = vadd.f32 %v361, %v406
      %v430 = vadd.f32 %v362, %v406
      %v431 = vadd.f32 %v363, %v406
      %v432 = vadd.f32 %v364, %v406
      %v433 = vadd.f32 %v365, %v406
      %v434 = vadd.f32 %v366, %v406
      %v435 = vadd.f32 %v367, %v406
      %v436 = vadd.f32 %v368, %v406
      %v437 = vadd.f32 %v369, %v406
      %v438 = vadd.f32 %v370, %v406
      %v439 = vadd.f32 %v371, %v406
      %v440 = vadd.f32 %v372, %v406
      %v441 = vadd.f32 %v373, %v406
      %v442 = vadd.f32 %v374, %v406
      %v443 = vadd.f32 %v375, %v406
      %v444 = vadd.f32 %v376, %v406
      %v445 = vadd.f32 %v377, %v406
      %v446 = vadd.f32 %v378, %v406
      %v447 = vadd.f32 %v379, %v406
      %v448 = vadd.f32 %v380, %v406
      %v449 = vadd.f32 %v381, %v406
      %v450 = vadd.f32 %v382, %v406
      %v451 = vadd.f32 %v383, %v406
      %v452 = vadd.f32 %v384, %v406
      %v453 = vadd.f32 %v385, %v406
      %v454 = vadd.f32 %v386, %v406
      %v455 = vadd.f32 %v387, %v406
      %v456 = vadd.f32 %v388, %v406
      %v457 = vadd.f32 %v389, %v406
      %v458 = vadd.f32 %v390, %v406
      %v459 = vadd.f32 %v391, %v406
      %v460 = vadd.f32 %v392, %v406
      %v461 = vadd.f32 %v393, %v406
      %v462 = vadd.f32 %v394, %v406
      %v463 = vadd.f32 %v395, %v406
      %v464 = vadd.f32 %v396, %v406
      %v465 = vadd.f32 %v397, %v406
      %v466 = vadd.f32 %v398, %v406
      %v467 = vadd.f32 %v399, %v406
      %v468 = vadd.f32 %v400, %v406
      %v469 = vadd.f32 %v401, %v406
      %v470 = vadd.f32 %v402, %v406
      %v471 = vadd.f32 %v403, %v406
      %vm472 = vcmp.ge.f32.partialorder %v408, 0.0
      %vm473 = vcmp.ge.f32.partialorder %v409, 0.0
      %vm474 = vcmp.ge.f32.partialorder %v410, 0.0
      %vm475 = vcmp.ge.f32.partialorder %v411, 0.0
      %vm476 = vcmp.ge.f32.partialorder %v412, 0.0
      %vm477 = vcmp.ge.f32.partialorder %v413, 0.0
      %vm478 = vcmp.ge.f32.partialorder %v414, 0.0
      %vm479 = vcmp.ge.f32.partialorder %v415, 0.0
      %vm480 = vcmp.ge.f32.partialorder %v416, 0.0
      %vm481 = vcmp.ge.f32.partialorder %v417, 0.0
      %vm482 = vcmp.ge.f32.partialorder %v418, 0.0
      %vm483 = vcmp.ge.f32.partialorder %v419, 0.0
      %vm484 = vcmp.ge.f32.partialorder %v420, 0.0
      %vm485 = vcmp.ge.f32.partialorder %v421, 0.0
      %vm486 = vcmp.ge.f32.partialorder %v422, 0.0
      %vm487 = vcmp.ge.f32.partialorder %v423, 0.0
      %vm488 = vcmp.ge.f32.partialorder %v424, 0.0
      %vm489 = vcmp.ge.f32.partialorder %v425, 0.0
      %vm490 = vcmp.ge.f32.partialorder %v426, 0.0
      %vm491 = vcmp.ge.f32.partialorder %v427, 0.0
      %vm492 = vcmp.ge.f32.partialorder %v428, 0.0
      %vm493 = vcmp.ge.f32.partialorder %v429, 0.0
      %vm494 = vcmp.ge.f32.partialorder %v430, 0.0
      %vm495 = vcmp.ge.f32.partialorder %v431, 0.0
      %vm496 = vcmp.ge.f32.partialorder %v432, 0.0
      %vm497 = vcmp.ge.f32.partialorder %v433, 0.0
      %vm498 = vcmp.ge.f32.partialorder %v434, 0.0
      %vm499 = vcmp.ge.f32.partialorder %v435, 0.0
      %vm500 = vcmp.ge.f32.partialorder %v436, 0.0
      %vm501 = vcmp.ge.f32.partialorder %v437, 0.0
      %vm502 = vcmp.ge.f32.partialorder %v438, 0.0
      %vm503 = vcmp.ge.f32.partialorder %v439, 0.0
      %vm504 = vcmp.ge.f32.partialorder %v440, 0.0
      %vm505 = vcmp.ge.f32.partialorder %v441, 0.0
      %vm506 = vcmp.ge.f32.partialorder %v442, 0.0
      %vm507 = vcmp.ge.f32.partialorder %v443, 0.0
      %vm508 = vcmp.ge.f32.partialorder %v444, 0.0
      %vm509 = vcmp.ge.f32.partialorder %v445, 0.0
      %vm510 = vcmp.ge.f32.partialorder %v446, 0.0
      %vm511 = vcmp.ge.f32.partialorder %v447, 0.0
      %vm512 = vcmp.ge.f32.partialorder %v448, 0.0
      %vm513 = vcmp.ge.f32.partialorder %v449, 0.0
      %vm514 = vcmp.ge.f32.partialorder %v450, 0.0
      %vm515 = vcmp.ge.f32.partialorder %v451, 0.0
      %vm516 = vcmp.ge.f32.partialorder %v452, 0.0
      %vm517 = vcmp.ge.f32.partialorder %v453, 0.0
      %vm518 = vcmp.ge.f32.partialorder %v454, 0.0
      %vm519 = vcmp.ge.f32.partialorder %v455, 0.0
      %vm520 = vcmp.ge.f32.partialorder %v456, 0.0
      %vm521 = vcmp.ge.f32.partialorder %v457, 0.0
      %vm522 = vcmp.ge.f32.partialorder %v458, 0.0
      %vm523 = vcmp.ge.f32.partialorder %v459, 0.0
      %vm524 = vcmp.ge.f32.partialorder %v460, 0.0
      %vm525 = vcmp.ge.f32.partialorder %v461, 0.0
      %vm526 = vcmp.ge.f32.partialorder %v462, 0.0
      %vm527 = vcmp.ge.f32.partialorder %v463, 0.0
      %vm528 = vcmp.ge.f32.partialorder %v464, 0.0
      %vm529 = vcmp.ge.f32.partialorder %v465, 0.0
      %vm530 = vcmp.ge.f32.partialorder %v466, 0.0
      %vm531 = vcmp.ge.f32.partialorder %v467, 0.0
      %vm532 = vcmp.ge.f32.partialorder %v468, 0.0
      %vm533 = vcmp.ge.f32.partialorder %v469, 0.0
      %vm534 = vcmp.ge.f32.partialorder %v470, 0.0
      %vm535 = vcmp.ge.f32.partialorder %v471, 0.0
      %v536 = vmul.f32 %v408, 0.2
      %v537 = vmul.f32 %v409, 0.2
      %v538 = vmul.f32 %v410, 0.2
      %v539 = vmul.f32 %v411, 0.2
      %v540 = vmul.f32 %v412, 0.2
      %v541 = vmul.f32 %v413, 0.2
      %v542 = vmul.f32 %v414, 0.2
      %v543 = vmul.f32 %v415, 0.2
      %v544 = vmul.f32 %v416, 0.2
      %v545 = vmul.f32 %v417, 0.2
      %v546 = vmul.f32 %v418, 0.2
      %v547 = vmul.f32 %v419, 0.2
      %v548 = vmul.f32 %v420, 0.2
      %v549 = vmul.f32 %v421, 0.2
      %v550 = vmul.f32 %v422, 0.2
      %v551 = vmul.f32 %v423, 0.2
      %v552 = vmul.f32 %v424, 0.2
      %v553 = vmul.f32 %v425, 0.2
      %v554 = vmul.f32 %v426, 0.2
      %v555 = vmul.f32 %v427, 0.2
      %v556 = vmul.f32 %v428, 0.2
      %v557 = vmul.f32 %v429, 0.2
      %v558 = vmul.f32 %v430, 0.2
      %v559 = vmul.f32 %v431, 0.2
      %v560 = vmul.f32 %v432, 0.2
      %v561 = vmul.f32 %v433, 0.2
      %v562 = vmul.f32 %v434, 0.2
      %v563 = vmul.f32 %v435, 0.2
      %v564 = vmul.f32 %v436, 0.2
      %v565 = vmul.f32 %v437, 0.2
      %v566 = vmul.f32 %v438, 0.2
      %v567 = vmul.f32 %v439, 0.2
      %v568 = vmul.f32 %v440, 0.2
      %v569 = vmul.f32 %v441, 0.2
      %v570 = vmul.f32 %v442, 0.2
      %v571 = vmul.f32 %v443, 0.2
      %v572 = vmul.f32 %v444, 0.2
      %v573 = vmul.f32 %v445, 0.2
      %v574 = vmul.f32 %v446, 0.2
      %v575 = vmul.f32 %v447, 0.2
      %v576 = vmul.f32 %v448, 0.2
      %v577 = vmul.f32 %v449, 0.2
      %v578 = vmul.f32 %v450, 0.2
      %v579 = vmul.f32 %v451, 0.2
      %v580 = vmul.f32 %v452, 0.2
      %v581 = vmul.f32 %v453, 0.2
      %v582 = vmul.f32 %v454, 0.2
      %v583 = vmul.f32 %v455, 0.2
      %v584 = vmul.f32 %v456, 0.2
      %v585 = vmul.f32 %v457, 0.2
      %v586 = vmul.f32 %v458, 0.2
      %v587 = vmul.f32 %v459, 0.2
      %v588 = vmul.f32 %v460, 0.2
      %v589 = vmul.f32 %v461, 0.2
      %v590 = vmul.f32 %v462, 0.2
      %v591 = vmul.f32 %v463, 0.2
      %v592 = vmul.f32 %v464, 0.2
      %v593 = vmul.f32 %v465, 0.2
      %v594 = vmul.f32 %v466, 0.2
      %v595 = vmul.f32 %v467, 0.2
      %v596 = vmul.f32 %v468, 0.2
      %v597 = vmul.f32 %v469, 0.2
      %v598 = vmul.f32 %v470, 0.2
      %v599 = vmul.f32 %v471, 0.2
      %v600 = vsel %vm472, %v408, %v536
      %v601 = vsel %vm473, %v409, %v537
      %v602 = vsel %vm474, %v410, %v538
      %v603 = vsel %vm475, %v411, %v539
      %v604 = vsel %vm476, %v412, %v540
      %v605 = vsel %vm477, %v413, %v541
      %v606 = vsel %vm478, %v414, %v542
      %v607 = vsel %vm479, %v415, %v543
      %v608 = vsel %vm480, %v416, %v544
      %v609 = vsel %vm481, %v417, %v545
      %v610 = vsel %vm482, %v418, %v546
      %v611 = vsel %vm483, %v419, %v547
      %v612 = vsel %vm484, %v420, %v548
      %v613 = vsel %vm485, %v421, %v549
      %v614 = vsel %vm486, %v422, %v550
      %v615 = vsel %vm487, %v423, %v551
      %v616 = vsel %vm488, %v424, %v552
      %v617 = vsel %vm489, %v425, %v553
      %v618 = vsel %vm490, %v426, %v554
      %v619 = vsel %vm491, %v427, %v555
      %v620 = vsel %vm492, %v428, %v556
      %v621 = vsel %vm493, %v429, %v557
      %v622 = vsel %vm494, %v430, %v558
      %v623 = vsel %vm495, %v431, %v559
      %v624 = vsel %vm496, %v432, %v560
      %v625 = vsel %vm497, %v433, %v561
      %v626 = vsel %vm498, %v434, %v562
      %v627 = vsel %vm499, %v435, %v563
      %v628 = vsel %vm500, %v436, %v564
      %v629 = vsel %vm501, %v437, %v565
      %v630 = vsel %vm502, %v438, %v566
      %v631 = vsel %vm503, %v439, %v567
      %v632 = vsel %vm504, %v440, %v568
      %v633 = vsel %vm505, %v441, %v569
      %v634 = vsel %vm506, %v442, %v570
      %v635 = vsel %vm507, %v443, %v571
      %v636 = vsel %vm508, %v444, %v572
      %v637 = vsel %vm509, %v445, %v573
      %v638 = vsel %vm510, %v446, %v574
      %v639 = vsel %vm511, %v447, %v575
      %v640 = vsel %vm512, %v448, %v576
      %v641 = vsel %vm513, %v449, %v577
      %v642 = vsel %vm514, %v450, %v578
      %v643 = vsel %vm515, %v451, %v579
      %v644 = vsel %vm516, %v452, %v580
      %v645 = vsel %vm517, %v453, %v581
      %v646 = vsel %vm518, %v454, %v582
      %v647 = vsel %vm519, %v455, %v583
      %v648 = vsel %vm520, %v456, %v584
      %v649 = vsel %vm521, %v457, %v585
      %v650 = vsel %vm522, %v458, %v586
      %v651 = vsel %vm523, %v459, %v587
      %v652 = vsel %vm524, %v460, %v588
      %v653 = vsel %vm525, %v461, %v589
      %v654 = vsel %vm526, %v462, %v590
      %v655 = vsel %vm527, %v463, %v591
      %v656 = vsel %vm528, %v464, %v592
      %v657 = vsel %vm529, %v465, %v593
      %v658 = vsel %vm530, %v466, %v594
      %v659 = vsel %vm531, %v467, %v595
      %v660 = vsel %vm532, %v468, %v596
      %v661 = vsel %vm533, %v469, %v597
      %v662 = vsel %vm534, %v470, %v598
      %v663 = vsel %vm535, %v471, %v599
      %v664 = vld [vmem:[%s3] sm:$0xff]
      %vm665 = vcmask 64512
      %v667 = vsel %vm665, %v600, 0
      %v670 = vsel %vm665, %v601, 0
      %v673 = vsel %vm665, %v602, 0
      %v676 = vsel %vm665, %v603, 0
      %v679 = vsel %vm665, %v604, 0
      %v682 = vsel %vm665, %v605, 0
      %v685 = vsel %vm665, %v606, 0
      %v688 = vsel %vm665, %v607, 0
      %v691 = vsel %vm665, %v608, 0
      %v694 = vsel %vm665, %v609, 0
      %v697 = vsel %vm665, %v610, 0
      %v700 = vsel %vm665, %v611, 0
      %v703 = vsel %vm665, %v612, 0
      %v706 = vsel %vm665, %v613, 0
      %v709 = vsel %vm665, %v614, 0
      %v712 = vsel %vm665, %v615, 0
      %v715 = vsel %vm665, %v616, 0
      %v718 = vsel %vm665, %v617, 0
      %v721 = vsel %vm665, %v618, 0
      %v724 = vsel %vm665, %v619, 0
      %v727 = vsel %vm665, %v620, 0
      %v730 = vsel %vm665, %v621, 0
      %v733 = vsel %vm665, %v622, 0
      %v736 = vsel %vm665, %v623, 0
      %v739 = vsel %vm665, %v624, 0
      %v742 = vsel %vm665, %v625, 0
      %v745 = vsel %vm665, %v626, 0
      %v748 = vsel %vm665, %v627, 0
      %v751 = vsel %vm665, %v628, 0
      %v754 = vsel %vm665, %v629, 0
      %v757 = vsel %vm665, %v630, 0
      %v760 = vsel %vm665, %v631, 0
      %v763 = vsel %vm665, %v632, 0
      %v766 = vsel %vm665, %v633, 0
      %v769 = vsel %vm665, %v634, 0
      %v772 = vsel %vm665, %v635, 0
      %v775 = vsel %vm665, %v636, 0
      %v778 = vsel %vm665, %v637, 0
      %v781 = vsel %vm665, %v638, 0
      %v784 = vsel %vm665, %v639, 0
      %v787 = vsel %vm665, %v640, 0
      %v790 = vsel %vm665, %v641, 0
      %v793 = vsel %vm665, %v642, 0
      %v796 = vsel %vm665, %v643, 0
      %v799 = vsel %vm665, %v644, 0
      %v802 = vsel %vm665, %v645, 0
      %v805 = vsel %vm665, %v646, 0
      %v808 = vsel %vm665, %v647, 0
      %v811 = vsel %vm665, %v648, 0
      %v814 = vsel %vm665, %v649, 0
      %v817 = vsel %vm665, %v650, 0
      %v820 = vsel %vm665, %v651, 0
      %v823 = vsel %vm665, %v652, 0
      %v826 = vsel %vm665, %v653, 0
      %v829 = vsel %vm665, %v654, 0
      %v832 = vsel %vm665, %v655, 0
      %v835 = vsel %vm665, %v656, 0
      %v838 = vsel %vm665, %v657, 0
      %v841 = vsel %vm665, %v658, 0
      %v844 = vsel %vm665, %v659, 0
      %v847 = vsel %vm665, %v660, 0
      %v850 = vsel %vm665, %v661, 0
      %v853 = vsel %vm665, %v662, 0
      %v856 = vsel %vm665, %v663, 0
      %858 = vmatpush.msra.mxu0 0.0
      %859 = vmatpush.msra.mxu0 0.0
      %860 = vmatpush.msra.mxu0 0.0
      %861 = vmatpush.msra.mxu0 0.0
      %862 = vmatpush.msra.mxu0 0.0
      %863 = vmatpush.msra.mxu0 0.0
      %864 = vmatpush.msra.mxu0 0.0
      %865 = vmatpush.msra.mxu0 0.0
      %866 = vmatpush.msra.mxu0 0.0
      %867 = vmatpush.msra.mxu0 0.0
      %868 = vmatpush.msra.mxu0 0.0
      %869 = vmatpush.msra.mxu0 0.0
      %870 = vmatpush.msra.mxu0 0.0
      %871 = vmatpush.msra.mxu0 0.0
      %872 = vmatpush.msra.mxu0 0.0
      %873 = vmatpush.msra.mxu0 %v664
      %874 = vmatmul.f32.gmra.mxu0 %v667
      %v875 = vpop.f32.mrf.mxu0
      %v876 = vadd.f32 0.0, %v875
      %877 = vmatmul.f32.gmra.mxu0 %v670
      %v878 = vpop.f32.mrf.mxu0
      %v879 = vadd.f32 0.0, %v878
      %880 = vmatmul.f32.gmra.mxu0 %v673
      %v881 = vpop.f32.mrf.mxu0
      %v882 = vadd.f32 0.0, %v881
      %883 = vmatmul.f32.gmra.mxu0 %v676
      %v884 = vpop.f32.mrf.mxu0
      %v885 = vadd.f32 0.0, %v884
      %886 = vmatmul.f32.gmra.mxu0 %v679
      %v887 = vpop.f32.mrf.mxu0
      %v888 = vadd.f32 0.0, %v887
      %889 = vmatmul.f32.gmra.mxu0 %v682
      %v890 = vpop.f32.mrf.mxu0
      %v891 = vadd.f32 0.0, %v890
      %892 = vmatmul.f32.gmra.mxu0 %v685
      %v893 = vpop.f32.mrf.mxu0
      %v894 = vadd.f32 0.0, %v893
      %895 = vmatmul.f32.gmra.mxu0 %v688
      %v896 = vpop.f32.mrf.mxu0
      %v897 = vadd.f32 0.0, %v896
      %898 = vmatmul.f32.gmra.mxu0 %v691
      %v899 = vpop.f32.mrf.mxu0
      %v900 = vadd.f32 0.0, %v899
      %901 = vmatmul.f32.gmra.mxu0 %v694
      %v902 = vpop.f32.mrf.mxu0
      %v903 = vadd.f32 0.0, %v902
      %904 = vmatmul.f32.gmra.mxu0 %v697
      %v905 = vpop.f32.mrf.mxu0
      %v906 = vadd.f32 0.0, %v905
      %907 = vmatmul.f32.gmra.mxu0 %v700
      %v908 = vpop.f32.mrf.mxu0
      %v909 = vadd.f32 0.0, %v908
      %910 = vmatmul.f32.gmra.mxu0 %v703
      %v911 = vpop.f32.mrf.mxu0
      %v912 = vadd.f32 0.0, %v911
      %913 = vmatmul.f32.gmra.mxu0 %v706
      %v914 = vpop.f32.mrf.mxu0
      %v915 = vadd.f32 0.0, %v914
      %916 = vmatmul.f32.gmra.mxu0 %v709
      %v917 = vpop.f32.mrf.mxu0
      %v918 = vadd.f32 0.0, %v917
      %919 = vmatmul.f32.gmra.mxu0 %v712
      %v920 = vpop.f32.mrf.mxu0
      %v921 = vadd.f32 0.0, %v920
      %922 = vmatmul.f32.gmra.mxu0 %v715
      %v923 = vpop.f32.mrf.mxu0
      %v924 = vadd.f32 0.0, %v923
      %925 = vmatmul.f32.gmra.mxu0 %v718
      %v926 = vpop.f32.mrf.mxu0
      %v927 = vadd.f32 0.0, %v926
      %928 = vmatmul.f32.gmra.mxu0 %v721
      %v929 = vpop.f32.mrf.mxu0
      %v930 = vadd.f32 0.0, %v929
      %931 = vmatmul.f32.gmra.mxu0 %v724
      %v932 = vpop.f32.mrf.mxu0
      %v933 = vadd.f32 0.0, %v932
      %934 = vmatmul.f32.gmra.mxu0 %v727
      %v935 = vpop.f32.mrf.mxu0
      %v936 = vadd.f32 0.0, %v935
      %937 = vmatmul.f32.gmra.mxu0 %v730
      %v938 = vpop.f32.mrf.mxu0
      %v939 = vadd.f32 0.0, %v938
      %940 = vmatmul.f32.gmra.mxu0 %v733
      %v941 = vpop.f32.mrf.mxu0
      %v942 = vadd.f32 0.0, %v941
      %943 = vmatmul.f32.gmra.mxu0 %v736
      %v944 = vpop.f32.mrf.mxu0
      %v945 = vadd.f32 0.0, %v944
      %946 = vmatmul.f32.gmra.mxu0 %v739
      %v947 = vpop.f32.mrf.mxu0
      %v948 = vadd.f32 0.0, %v947
      %949 = vmatmul.f32.gmra.mxu0 %v742
      %v950 = vpop.f32.mrf.mxu0
      %v951 = vadd.f32 0.0, %v950
      %952 = vmatmul.f32.gmra.mxu0 %v745
      %v953 = vpop.f32.mrf.mxu0
      %v954 = vadd.f32 0.0, %v953
      %955 = vmatmul.f32.gmra.mxu0 %v748
      %v956 = vpop.f32.mrf.mxu0
      %v957 = vadd.f32 0.0, %v956
      %958 = vmatmul.f32.gmra.mxu0 %v751
      %v959 = vpop.f32.mrf.mxu0
      %v960 = vadd.f32 0.0, %v959
      %961 = vmatmul.f32.gmra.mxu0 %v754
      %v962 = vpop.f32.mrf.mxu0
      %v963 = vadd.f32 0.0, %v962
      %964 = vmatmul.f32.gmra.mxu0 %v757
      %v965 = vpop.f32.mrf.mxu0
      %v966 = vadd.f32 0.0, %v965
      %967 = vmatmul.f32.gmra.mxu0 %v760
      %v968 = vpop.f32.mrf.mxu0
      %v969 = vadd.f32 0.0, %v968
      %970 = vmatmul.f32.gmra.mxu0 %v763
      %v971 = vpop.f32.mrf.mxu0
      %v972 = vadd.f32 0.0, %v971
      %973 = vmatmul.f32.gmra.mxu0 %v766
      %v974 = vpop.f32.mrf.mxu0
      %v975 = vadd.f32 0.0, %v974
      %976 = vmatmul.f32.gmra.mxu0 %v769
      %v977 = vpop.f32.mrf.mxu0
      %v978 = vadd.f32 0.0, %v977
      %979 = vmatmul.f32.gmra.mxu0 %v772
      %v980 = vpop.f32.mrf.mxu0
      %v981 = vadd.f32 0.0, %v980
      %982 = vmatmul.f32.gmra.mxu0 %v775
      %v983 = vpop.f32.mrf.mxu0
      %v984 = vadd.f32 0.0, %v983
      %985 = vmatmul.f32.gmra.mxu0 %v778
      %v986 = vpop.f32.mrf.mxu0
      %v987 = vadd.f32 0.0, %v986
      %988 = vmatmul.f32.gmra.mxu0 %v781
      %v989 = vpop.f32.mrf.mxu0
      %v990 = vadd.f32 0.0, %v989
      %991 = vmatmul.f32.gmra.mxu0 %v784
      %v992 = vpop.f32.mrf.mxu0
      %v993 = vadd.f32 0.0, %v992
      %994 = vmatmul.f32.gmra.mxu0 %v787
      %v995 = vpop.f32.mrf.mxu0
      %v996 = vadd.f32 0.0, %v995
      %997 = vmatmul.f32.gmra.mxu0 %v790
      %v998 = vpop.f32.mrf.mxu0
      %v999 = vadd.f32 0.0, %v998
      %1000 = vmatmul.f32.gmra.mxu0 %v793
      %v1001 = vpop.f32.mrf.mxu0
      %v1002 = vadd.f32 0.0, %v1001
      %1003 = vmatmul.f32.gmra.mxu0 %v796
      %v1004 = vpop.f32.mrf.mxu0
      %v1005 = vadd.f32 0.0, %v1004
      %1006 = vmatmul.f32.gmra.mxu0 %v799
      %v1007 = vpop.f32.mrf.mxu0
      %v1008 = vadd.f32 0.0, %v1007
      %1009 = vmatmul.f32.gmra.mxu0 %v802
      %v1010 = vpop.f32.mrf.mxu0
      %v1011 = vadd.f32 0.0, %v1010
      %1012 = vmatmul.f32.gmra.mxu0 %v805
      %v1013 = vpop.f32.mrf.mxu0
      %v1014 = vadd.f32 0.0, %v1013
      %1015 = vmatmul.f32.gmra.mxu0 %v808
      %v1016 = vpop.f32.mrf.mxu0
      %v1017 = vadd.f32 0.0, %v1016
      %1018 = vmatmul.f32.gmra.mxu0 %v811
      %v1019 = vpop.f32.mrf.mxu0
      %v1020 = vadd.f32 0.0, %v1019
      %1021 = vmatmul.f32.gmra.mxu0 %v814
      %v1022 = vpop.f32.mrf.mxu0
      %v1023 = vadd.f32 0.0, %v1022
      %1024 = vmatmul.f32.gmra.mxu0 %v817
      %v1025 = vpop.f32.mrf.mxu0
      %v1026 = vadd.f32 0.0, %v1025
      %1027 = vmatmul.f32.gmra.mxu0 %v820
      %v1028 = vpop.f32.mrf.mxu0
      %v1029 = vadd.f32 0.0, %v1028
      %1030 = vmatmul.f32.gmra.mxu0 %v823
      %v1031 = vpop.f32.mrf.mxu0
      %v1032 = vadd.f32 0.0, %v1031
      %1033 = vmatmul.f32.gmra.mxu0 %v826
      %v1034 = vpop.f32.mrf.mxu0
      %v1035 = vadd.f32 0.0, %v1034
      %1036 = vmatmul.f32.gmra.mxu0 %v829
      %v1037 = vpop.f32.mrf.mxu0
      %v1038 = vadd.f32 0.0, %v1037
      %1039 = vmatmul.f32.gmra.mxu0 %v832
      %v1040 = vpop.f32.mrf.mxu0
      %v1041 = vadd.f32 0.0, %v1040
      %1042 = vmatmul.f32.gmra.mxu0 %v835
      %v1043 = vpop.f32.mrf.mxu0
      %v1044 = vadd.f32 0.0, %v1043
      %1045 = vmatmul.f32.gmra.mxu0 %v838
      %v1046 = vpop.f32.mrf.mxu0
      %v1047 = vadd.f32 0.0, %v1046
      %1048 = vmatmul.f32.gmra.mxu0 %v841
      %v1049 = vpop.f32.mrf.mxu0
      %v1050 = vadd.f32 0.0, %v1049
      %1051 = vmatmul.f32.gmra.mxu0 %v844
      %v1052 = vpop.f32.mrf.mxu0
      %v1053 = vadd.f32 0.0, %v1052
      %1054 = vmatmul.f32.gmra.mxu0 %v847
      %v1055 = vpop.f32.mrf.mxu0
      %v1056 = vadd.f32 0.0, %v1055
      %1057 = vmatmul.f32.gmra.mxu0 %v850
      %v1058 = vpop.f32.mrf.mxu0
      %v1059 = vadd.f32 0.0, %v1058
      %1060 = vmatmul.f32.gmra.mxu0 %v853
      %v1061 = vpop.f32.mrf.mxu0
      %v1062 = vadd.f32 0.0, %v1061
      %1063 = vmatmul.f32.gmra.mxu0 %v856
      %v1064 = vpop.f32.mrf.mxu0
      %v1065 = vadd.f32 0.0, %v1064
      %1066 = vdwg.mxu0
      %1067 = vst.msk [vmem:[%s264] sm:$0xff] %vm665, %v876
      %1068 = vst.msk [vmem:[%s264 + $0x8] sm:$0xff] %vm665, %v879
      %1069 = vst.msk [vmem:[%s264 + $0x10] sm:$0xff] %vm665, %v882
      %1070 = vst.msk [vmem:[%s264 + $0x18] sm:$0xff] %vm665, %v885
      %1071 = vst.msk [vmem:[%s264 + $0x20] sm:$0xff] %vm665, %v888
      %1072 = vst.msk [vmem:[%s264 + $0x28] sm:$0xff] %vm665, %v891
      %1073 = vst.msk [vmem:[%s264 + $0x30] sm:$0xff] %vm665, %v894
      %1074 = vst.msk [vmem:[%s264 + $0x38] sm:$0xff] %vm665, %v897
      %1075 = vst.msk [vmem:[%s264 + $0x40] sm:$0xff] %vm665, %v900
      %1076 = vst.msk [vmem:[%s264 + $0x48] sm:$0xff] %vm665, %v903
      %1077 = vst.msk [vmem:[%s264 + $0x50] sm:$0xff] %vm665, %v906
      %1078 = vst.msk [vmem:[%s264 + $0x58] sm:$0xff] %vm665, %v909
      %1079 = vst.msk [vmem:[%s264 + $0x60] sm:$0xff] %vm665, %v912
      %1080 = vst.msk [vmem:[%s264 + $0x68] sm:$0xff] %vm665, %v915
      %1081 = vst.msk [vmem:[%s264 + $0x70] sm:$0xff] %vm665, %v918
      %1082 = vst.msk [vmem:[%s264 + $0x78] sm:$0xff] %vm665, %v921
      %1083 = vst.msk [vmem:[%s264 + $0x80] sm:$0xff] %vm665, %v924
      %1084 = vst.msk [vmem:[%s264 + $0x88] sm:$0xff] %vm665, %v927
      %1085 = vst.msk [vmem:[%s264 + $0x90] sm:$0xff] %vm665, %v930
      %1086 = vst.msk [vmem:[%s264 + $0x98] sm:$0xff] %vm665, %v933
      %1087 = vst.msk [vmem:[%s264 + $0xa0] sm:$0xff] %vm665, %v936
      %1088 = vst.msk [vmem:[%s264 + $0xa8] sm:$0xff] %vm665, %v939
      %1089 = vst.msk [vmem:[%s264 + $0xb0] sm:$0xff] %vm665, %v942
      %1090 = vst.msk [vmem:[%s264 + $0xb8] sm:$0xff] %vm665, %v945
      %1091 = vst.msk [vmem:[%s264 + $0xc0] sm:$0xff] %vm665, %v948
      %1092 = vst.msk [vmem:[%s264 + $0xc8] sm:$0xff] %vm665, %v951
      %1093 = vst.msk [vmem:[%s264 + $0xd0] sm:$0xff] %vm665, %v954
      %1094 = vst.msk [vmem:[%s264 + $0xd8] sm:$0xff] %vm665, %v957
      %1095 = vst.msk [vmem:[%s264 + $0xe0] sm:$0xff] %vm665, %v960
      %1096 = vst.msk [vmem:[%s264 + $0xe8] sm:$0xff] %vm665, %v963
      %1097 = vst.msk [vmem:[%s264 + $0xf0] sm:$0xff] %vm665, %v966
      %1098 = vst.msk [vmem:[%s264 + $0xf8] sm:$0xff] %vm665, %v969
      %1099 = vst.msk [vmem:[%s264 + $0x100] sm:$0xff] %vm665, %v972
      %1100 = vst.msk [vmem:[%s264 + $0x108] sm:$0xff] %vm665, %v975
      %1101 = vst.msk [vmem:[%s264 + $0x110] sm:$0xff] %vm665, %v978
      %1102 = vst.msk [vmem:[%s264 + $0x118] sm:$0xff] %vm665, %v981
      %1103 = vst.msk [vmem:[%s264 + $0x120] sm:$0xff] %vm665, %v984
      %1104 = vst.msk [vmem:[%s264 + $0x128] sm:$0xff] %vm665, %v987
      %1105 = vst.msk [vmem:[%s264 + $0x130] sm:$0xff] %vm665, %v990
      %1106 = vst.msk [vmem:[%s264 + $0x138] sm:$0xff] %vm665, %v993
      %1107 = vst.msk [vmem:[%s264 + $0x140] sm:$0xff] %vm665, %v996
      %1108 = vst.msk [vmem:[%s264 + $0x148] sm:$0xff] %vm665, %v999
      %1109 = vst.msk [vmem:[%s264 + $0x150] sm:$0xff] %vm665, %v1002
      %1110 = vst.msk [vmem:[%s264 + $0x158] sm:$0xff] %vm665, %v1005
      %1111 = vst.msk [vmem:[%s264 + $0x160] sm:$0xff] %vm665, %v1008
      %1112 = vst.msk [vmem:[%s264 + $0x168] sm:$0xff] %vm665, %v1011
      %1113 = vst.msk [vmem:[%s264 + $0x170] sm:$0xff] %vm665, %v1014
      %1114 = vst.msk [vmem:[%s264 + $0x178] sm:$0xff] %vm665, %v1017
      %1115 = vst.msk [vmem:[%s264 + $0x180] sm:$0xff] %vm665, %v1020
      %1116 = vst.msk [vmem:[%s264 + $0x188] sm:$0xff] %vm665, %v1023
      %1117 = vst.msk [vmem:[%s264 + $0x190] sm:$0xff] %vm665, %v1026
      %1118 = vst.msk [vmem:[%s264 + $0x198] sm:$0xff] %vm665, %v1029
      %1119 = vst.msk [vmem:[%s264 + $0x1a0] sm:$0xff] %vm665, %v1032
      %1120 = vst.msk [vmem:[%s264 + $0x1a8] sm:$0xff] %vm665, %v1035
      %1121 = vst.msk [vmem:[%s264 + $0x1b0] sm:$0xff] %vm665, %v1038
      %1122 = vst.msk [vmem:[%s264 + $0x1b8] sm:$0xff] %vm665, %v1041
      %1123 = vst.msk [vmem:[%s264 + $0x1c0] sm:$0xff] %vm665, %v1044
      %1124 = vst.msk [vmem:[%s264 + $0x1c8] sm:$0xff] %vm665, %v1047
      %1125 = vst.msk [vmem:[%s264 + $0x1d0] sm:$0xff] %vm665, %v1050
      %1126 = vst.msk [vmem:[%s264 + $0x1d8] sm:$0xff] %vm665, %v1053
      %1127 = vst.msk [vmem:[%s264 + $0x1e0] sm:$0xff] %vm665, %v1056
      %1128 = vst.msk [vmem:[%s264 + $0x1e8] sm:$0xff] %vm665, %v1059
      %1129 = vst.msk [vmem:[%s264 + $0x1f0] sm:$0xff] %vm665, %v1062
      %1130 = vst.msk [vmem:[%s264 + $0x1f8] sm:$0xff] %vm665, %v1065
      %v1131 = vsel %vm665, %v876, 0.0
      %v1132 = vsel %vm665, %v879, 0.0
      %v1133 = vadd.f32 %v1131, %v1132
      %v1134 = vsel %vm665, %v882, 0.0
      %v1135 = vadd.f32 %v1133, %v1134
      %v1136 = vsel %vm665, %v885, 0.0
      %v1137 = vadd.f32 %v1135, %v1136
      %v1138 = vsel %vm665, %v888, 0.0
      %v1139 = vadd.f32 %v1137, %v1138
      %v1140 = vsel %vm665, %v891, 0.0
      %v1141 = vadd.f32 %v1139, %v1140
      %v1142 = vsel %vm665, %v894, 0.0
      %v1143 = vadd.f32 %v1141, %v1142
      %v1144 = vsel %vm665, %v897, 0.0
      %v1145 = vadd.f32 %v1143, %v1144
      %v1146 = vsel %vm665, %v900, 0.0
      %v1147 = vadd.f32 %v1145, %v1146
      %v1148 = vsel %vm665, %v903, 0.0
      %v1149 = vadd.f32 %v1147, %v1148
      %v1150 = vsel %vm665, %v906, 0.0
      %v1151 = vadd.f32 %v1149, %v1150
      %v1152 = vsel %vm665, %v909, 0.0
      %v1153 = vadd.f32 %v1151, %v1152
      %v1154 = vsel %vm665, %v912, 0.0
      %v1155 = vadd.f32 %v1153, %v1154
      %v1156 = vsel %vm665, %v915, 0.0
      %v1157 = vadd.f32 %v1155, %v1156
      %v1158 = vsel %vm665, %v918, 0.0
      %v1159 = vadd.f32 %v1157, %v1158
      %v1160 = vsel %vm665, %v921, 0.0
      %v1161 = vadd.f32 %v1159, %v1160
      %v1162 = vsel %vm665, %v924, 0.0
      %v1163 = vadd.f32 %v1161, %v1162
      %v1164 = vsel %vm665, %v927, 0.0
      %v1165 = vadd.f32 %v1163, %v1164
      %v1166 = vsel %vm665, %v930, 0.0
      %v1167 = vadd.f32 %v1165, %v1166
      %v1168 = vsel %vm665, %v933, 0.0
      %v1169 = vadd.f32 %v1167, %v1168
      %v1170 = vsel %vm665, %v936, 0.0
      %v1171 = vadd.f32 %v1169, %v1170
      %v1172 = vsel %vm665, %v939, 0.0
      %v1173 = vadd.f32 %v1171, %v1172
      %v1174 = vsel %vm665, %v942, 0.0
      %v1175 = vadd.f32 %v1173, %v1174
      %v1176 = vsel %vm665, %v945, 0.0
      %v1177 = vadd.f32 %v1175, %v1176
      %v1178 = vsel %vm665, %v948, 0.0
      %v1179 = vadd.f32 %v1177, %v1178
      %v1180 = vsel %vm665, %v951, 0.0
      %v1181 = vadd.f32 %v1179, %v1180
      %v1182 = vsel %vm665, %v954, 0.0
      %v1183 = vadd.f32 %v1181, %v1182
      %v1184 = vsel %vm665, %v957, 0.0
      %v1185 = vadd.f32 %v1183, %v1184
      %v1186 = vsel %vm665, %v960, 0.0
      %v1187 = vadd.f32 %v1185, %v1186
      %v1188 = vsel %vm665, %v963, 0.0
      %v1189 = vadd.f32 %v1187, %v1188
      %v1190 = vsel %vm665, %v966, 0.0
      %v1191 = vadd.f32 %v1189, %v1190
      %v1192 = vsel %vm665, %v969, 0.0
      %v1193 = vadd.f32 %v1191, %v1192
      %v1194 = vsel %vm665, %v972, 0.0
      %v1195 = vadd.f32 %v1193, %v1194
      %v1196 = vsel %vm665, %v975, 0.0
      %v1197 = vadd.f32 %v1195, %v1196
      %v1198 = vsel %vm665, %v978, 0.0
      %v1199 = vadd.f32 %v1197, %v1198
      %v1200 = vsel %vm665, %v981, 0.0
      %v1201 = vadd.f32 %v1199, %v1200
      %v1202 = vsel %vm665, %v984, 0.0
      %v1203 = vadd.f32 %v1201, %v1202
      %v1204 = vsel %vm665, %v987, 0.0
      %v1205 = vadd.f32 %v1203, %v1204
      %v1206 = vsel %vm665, %v990, 0.0
      %v1207 = vadd.f32 %v1205, %v1206
      %v1208 = vsel %vm665, %v993, 0.0
      %v1209 = vadd.f32 %v1207, %v1208
      %v1210 = vsel %vm665, %v996, 0.0
      %v1211 = vadd.f32 %v1209, %v1210
      %v1212 = vsel %vm665, %v999, 0.0
      %v1213 = vadd.f32 %v1211, %v1212
      %v1214 = vsel %vm665, %v1002, 0.0
      %v1215 = vadd.f32 %v1213, %v1214
      %v1216 = vsel %vm665, %v1005, 0.0
      %v1217 = vadd.f32 %v1215, %v1216
      %v1218 = vsel %vm665, %v1008, 0.0
      %v1219 = vadd.f32 %v1217, %v1218
      %v1220 = vsel %vm665, %v1011, 0.0
      %v1221 = vadd.f32 %v1219, %v1220
      %v1222 = vsel %vm665, %v1014, 0.0
      %v1223 = vadd.f32 %v1221, %v1222
      %v1224 = vsel %vm665, %v1017, 0.0
      %v1225 = vadd.f32 %v1223, %v1224
      %v1226 = vsel %vm665, %v1020, 0.0
      %v1227 = vadd.f32 %v1225, %v1226
      %v1228 = vsel %vm665, %v1023, 0.0
      %v1229 = vadd.f32 %v1227, %v1228
      %v1230 = vsel %vm665, %v1026, 0.0
      %v1231 = vadd.f32 %v1229, %v1230
      %v1232 = vsel %vm665, %v1029, 0.0
      %v1233 = vadd.f32 %v1231, %v1232
      %v1234 = vsel %vm665, %v1032, 0.0
      %v1235 = vadd.f32 %v1233, %v1234
      %v1236 = vsel %vm665, %v1035, 0.0
      %v1237 = vadd.f32 %v1235, %v1236
      %v1238 = vsel %vm665, %v1038, 0.0
      %v1239 = vadd.f32 %v1237, %v1238
      %v1240 = vsel %vm665, %v1041, 0.0
      %v1241 = vadd.f32 %v1239, %v1240
      %v1242 = vsel %vm665, %v1044, 0.0
      %v1243 = vadd.f32 %v1241, %v1242
      %v1244 = vsel %vm665, %v1047, 0.0
      %v1245 = vadd.f32 %v1243, %v1244
      %v1246 = vsel %vm665, %v1050, 0.0
      %v1247 = vadd.f32 %v1245, %v1246
      %v1248 = vsel %vm665, %v1053, 0.0
      %v1249 = vadd.f32 %v1247, %v1248
      %v1250 = vsel %vm665, %v1056, 0.0
      %v1251 = vadd.f32 %v1249, %v1250
      %v1252 = vsel %vm665, %v1059, 0.0
      %v1253 = vadd.f32 %v1251, %v1252
      %v1254 = vsel %vm665, %v1062, 0.0
      %v1255 = vadd.f32 %v1253, %v1254
      %v1256 = vsel %vm665, %v1065, 0.0
      %v1257 = vadd.f32 %v1255, %v1256
      %v1258 = vrot.slane %v1257, 4
      %v1259 = vadd.f32 %v1257, %v1258
      %v1260 = vrot.slane %v1259, 2
      %v1261 = vadd.f32 %v1259, %v1260
      %v1262 = vrot.slane %v1261, 1
      %v1263 = vadd.f32 %v1261, %v1262
      %vm1264 = vcmask 57344
      %1265 = vst.msk [vmem:[%s268] sm:$0x1] %vm1264, %v1263
      %v1266 = vmul.f32 %v876, %v876
      %v1267 = vmul.f32 %v879, %v879
      %v1268 = vmul.f32 %v882, %v882
      %v1269 = vmul.f32 %v885, %v885
      %v1270 = vmul.f32 %v888, %v888
      %v1271 = vmul.f32 %v891, %v891
      %v1272 = vmul.f32 %v894, %v894
      %v1273 = vmul.f32 %v897, %v897
      %v1274 = vmul.f32 %v900, %v900
      %v1275 = vmul.f32 %v903, %v903
      %v1276 = vmul.f32 %v906, %v906
      %v1277 = vmul.f32 %v909, %v909
      %v1278 = vmul.f32 %v912, %v912
      %v1279 = vmul.f32 %v915, %v915
      %v1280 = vmul.f32 %v918, %v918
      %v1281 = vmul.f32 %v921, %v921
      %v1282 = vmul.f32 %v924, %v924
      %v1283 = vmul.f32 %v927, %v927
      %v1284 = vmul.f32 %v930, %v930
      %v1285 = vmul.f32 %v933, %v933
      %v1286 = vmul.f32 %v936, %v936
      %v1287 = vmul.f32 %v939, %v939
      %v1288 = vmul.f32 %v942, %v942
      %v1289 = vmul.f32 %v945, %v945
      %v1290 = vmul.f32 %v948, %v948
      %v1291 = vmul.f32 %v951, %v951
      %v1292 = vmul.f32 %v954, %v954
      %v1293 = vmul.f32 %v957, %v957
      %v1294 = vmul.f32 %v960, %v960
      %v1295 = vmul.f32 %v963, %v963
      %v1296 = vmul.f32 %v966, %v966
      %v1297 = vmul.f32 %v969, %v969
      %v1298 = vmul.f32 %v972, %v972
      %v1299 = vmul.f32 %v975, %v975
      %v1300 = vmul.f32 %v978, %v978
      %v1301 = vmul.f32 %v981, %v981
      %v1302 = vmul.f32 %v984, %v984
      %v1303 = vmul.f32 %v987, %v987
      %v1304 = vmul.f32 %v990, %v990
      %v1305 = vmul.f32 %v993, %v993
      %v1306 = vmul.f32 %v996, %v996
      %v1307 = vmul.f32 %v999, %v999
      %v1308 = vmul.f32 %v1002, %v1002
      %v1309 = vmul.f32 %v1005, %v1005
      %v1310 = vmul.f32 %v1008, %v1008
      %v1311 = vmul.f32 %v1011, %v1011
      %v1312 = vmul.f32 %v1014, %v1014
      %v1313 = vmul.f32 %v1017, %v1017
      %v1314 = vmul.f32 %v1020, %v1020
      %v1315 = vmul.f32 %v1023, %v1023
      %v1316 = vmul.f32 %v1026, %v1026
      %v1317 = vmul.f32 %v1029, %v1029
      %v1318 = vmul.f32 %v1032, %v1032
      %v1319 = vmul.f32 %v1035, %v1035
      %v1320 = vmul.f32 %v1038, %v1038
      %v1321 = vmul.f32 %v1041, %v1041
      %v1322 = vmul.f32 %v1044, %v1044
      %v1323 = vmul.f32 %v1047, %v1047
      %v1324 = vmul.f32 %v1050, %v1050
      %v1325 = vmul.f32 %v1053, %v1053
      %v1326 = vmul.f32 %v1056, %v1056
      %v1327 = vmul.f32 %v1059, %v1059
      %v1328 = vmul.f32 %v1062, %v1062
      %v1329 = vmul.f32 %v1065, %v1065
      %v1330 = vsel %vm665, %v1266, 0.0
      %v1331 = vsel %vm665, %v1267, 0.0
      %v1332 = vadd.f32 %v1330, %v1331
      %v1333 = vsel %vm665, %v1268, 0.0
      %v1334 = vadd.f32 %v1332, %v1333
      %v1335 = vsel %vm665, %v1269, 0.0
      %v1336 = vadd.f32 %v1334, %v1335
      %v1337 = vsel %vm665, %v1270, 0.0
      %v1338 = vadd.f32 %v1336, %v1337
      %v1339 = vsel %vm665, %v1271, 0.0
      %v1340 = vadd.f32 %v1338, %v1339
      %v1341 = vsel %vm665, %v1272, 0.0
      %v1342 = vadd.f32 %v1340, %v1341
      %v1343 = vsel %vm665, %v1273, 0.0
      %v1344 = vadd.f32 %v1342, %v1343
      %v1345 = vsel %vm665, %v1274, 0.0
      %v1346 = vadd.f32 %v1344, %v1345
      %v1347 = vsel %vm665, %v1275, 0.0
      %v1348 = vadd.f32 %v1346, %v1347
      %v1349 = vsel %vm665, %v1276, 0.0
      %v1350 = vadd.f32 %v1348, %v1349
      %v1351 = vsel %vm665, %v1277, 0.0
      %v1352 = vadd.f32 %v1350, %v1351
      %v1353 = vsel %vm665, %v1278, 0.0
      %v1354 = vadd.f32 %v1352, %v1353
      %v1355 = vsel %vm665, %v1279, 0.0
      %v1356 = vadd.f32 %v1354, %v1355
      %v1357 = vsel %vm665, %v1280, 0.0
      %v1358 = vadd.f32 %v1356, %v1357
      %v1359 = vsel %vm665, %v1281, 0.0
      %v1360 = vadd.f32 %v1358, %v1359
      %v1361 = vsel %vm665, %v1282, 0.0
      %v1362 = vadd.f32 %v1360, %v1361
      %v1363 = vsel %vm665, %v1283, 0.0
      %v1364 = vadd.f32 %v1362, %v1363
      %v1365 = vsel %vm665, %v1284, 0.0
      %v1366 = vadd.f32 %v1364, %v1365
      %v1367 = vsel %vm665, %v1285, 0.0
      %v1368 = vadd.f32 %v1366, %v1367
      %v1369 = vsel %vm665, %v1286, 0.0
      %v1370 = vadd.f32 %v1368, %v1369
      %v1371 = vsel %vm665, %v1287, 0.0
      %v1372 = vadd.f32 %v1370, %v1371
      %v1373 = vsel %vm665, %v1288, 0.0
      %v1374 = vadd.f32 %v1372, %v1373
      %v1375 = vsel %vm665, %v1289, 0.0
      %v1376 = vadd.f32 %v1374, %v1375
      %v1377 = vsel %vm665, %v1290, 0.0
      %v1378 = vadd.f32 %v1376, %v1377
      %v1379 = vsel %vm665, %v1291, 0.0
      %v1380 = vadd.f32 %v1378, %v1379
      %v1381 = vsel %vm665, %v1292, 0.0
      %v1382 = vadd.f32 %v1380, %v1381
      %v1383 = vsel %vm665, %v1293, 0.0
      %v1384 = vadd.f32 %v1382, %v1383
      %v1385 = vsel %vm665, %v1294, 0.0
      %v1386 = vadd.f32 %v1384, %v1385
      %v1387 = vsel %vm665, %v1295, 0.0
      %v1388 = vadd.f32 %v1386, %v1387
      %v1389 = vsel %vm665, %v1296, 0.0
      %v1390 = vadd.f32 %v1388, %v1389
      %v1391 = vsel %vm665, %v1297, 0.0
      %v1392 = vadd.f32 %v1390, %v1391
      %v1393 = vsel %vm665, %v1298, 0.0
      %v1394 = vadd.f32 %v1392, %v1393
      %v1395 = vsel %vm665, %v1299, 0.0
      %v1396 = vadd.f32 %v1394, %v1395
      %v1397 = vsel %vm665, %v1300, 0.0
      %v1398 = vadd.f32 %v1396, %v1397
      %v1399 = vsel %vm665, %v1301, 0.0
      %v1400 = vadd.f32 %v1398, %v1399
      %v1401 = vsel %vm665, %v1302, 0.0
      %v1402 = vadd.f32 %v1400, %v1401
      %v1403 = vsel %vm665, %v1303, 0.0
      %v1404 = vadd.f32 %v1402, %v1403
      %v1405 = vsel %vm665, %v1304, 0.0
      %v1406 = vadd.f32 %v1404, %v1405
      %v1407 = vsel %vm665, %v1305, 0.0
      %v1408 = vadd.f32 %v1406, %v1407
      %v1409 = vsel %vm665, %v1306, 0.0
      %v1410 = vadd.f32 %v1408, %v1409
      %v1411 = vsel %vm665, %v1307, 0.0
      %v1412 = vadd.f32 %v1410, %v1411
      %v1413 = vsel %vm665, %v1308, 0.0
      %v1414 = vadd.f32 %v1412, %v1413
      %v1415 = vsel %vm665, %v1309, 0.0
      %v1416 = vadd.f32 %v1414, %v1415
      %v1417 = vsel %vm665, %v1310, 0.0
      %v1418 = vadd.f32 %v1416, %v1417
      %v1419 = vsel %vm665, %v1311, 0.0
      %v1420 = vadd.f32 %v1418, %v1419
      %v1421 = vsel %vm665, %v1312, 0.0
      %v1422 = vadd.f32 %v1420, %v1421
      %v1423 = vsel %vm665, %v1313, 0.0
      %v1424 = vadd.f32 %v1422, %v1423
      %v1425 = vsel %vm665, %v1314, 0.0
      %v1426 = vadd.f32 %v1424, %v1425
      %v1427 = vsel %vm665, %v1315, 0.0
      %v1428 = vadd.f32 %v1426, %v1427
      %v1429 = vsel %vm665, %v1316, 0.0
      %v1430 = vadd.f32 %v1428, %v1429
      %v1431 = vsel %vm665, %v1317, 0.0
      %v1432 = vadd.f32 %v1430, %v1431
      %v1433 = vsel %vm665, %v1318, 0.0
      %v1434 = vadd.f32 %v1432, %v1433
      %v1435 = vsel %vm665, %v1319, 0.0
      %v1436 = vadd.f32 %v1434, %v1435
      %v1437 = vsel %vm665, %v1320, 0.0
      %v1438 = vadd.f32 %v1436, %v1437
      %v1439 = vsel %vm665, %v1321, 0.0
      %v1440 = vadd.f32 %v1438, %v1439
      %v1441 = vsel %vm665, %v1322, 0.0
      %v1442 = vadd.f32 %v1440, %v1441
      %v1443 = vsel %vm665, %v1323, 0.0
      %v1444 = vadd.f32 %v1442, %v1443
      %v1445 = vsel %vm665, %v1324, 0.0
      %v1446 = vadd.f32 %v1444, %v1445
      %v1447 = vsel %vm665, %v1325, 0.0
      %v1448 = vadd.f32 %v1446, %v1447
      %v1449 = vsel %vm665, %v1326, 0.0
      %v1450 = vadd.f32 %v1448, %v1449
      %v1451 = vsel %vm665, %v1327, 0.0
      %v1452 = vadd.f32 %v1450, %v1451
      %v1453 = vsel %vm665, %v1328, 0.0
      %v1454 = vadd.f32 %v1452, %v1453
      %v1455 = vsel %vm665, %v1329, 0.0
      %v1456 = vadd.f32 %v1454, %v1455
      %v1457 = vrot.slane %v1456, 4
      %v1458 = vadd.f32 %v1456, %v1457
      %v1459 = vrot.slane %v1458, 2
      %v1460 = vadd.f32 %v1458, %v1459
      %v1461 = vrot.slane %v1460, 1
      %v1462 = vadd.f32 %v1460, %v1461
      %1463 = vst.msk [vmem:[%s271] sm:$0x1] %vm1264, %v1462
      %s1464 = smul.u32 64, %s18
      %p1465 = scmp.lt.s32.totalorder %s1464, 255
      %s1466 = scalar_select %p1465, %s1464, 255
      %s1467 = smul.addr %s1466, 8
      %s1468 = scalar_lea.vmem %s4, %s1467
      %p1469 = scmp.lt.s32.totalorder %s18, 3
      %s1470 = scalar_select %p1469, %s18, 3
      %s1471 = scalar_lea.vmem %s5, %s1470
      %p1472 = scmp.lt.s32.totalorder %s18, 3
      %s1473 = scalar_select %p1472, %s18, 3
      %s1474 = scalar_lea.vmem %s6, %s1473
      // Predicated region
      $region37: #{upsample_block_forward.6} parent=35 // pred_check
        %p1475 = pneg %p125
      $region38: #{upsample_block_forward.6} parent=35 // pred_check_branch
        %1477 = sbr.rel (%p1475) target = $region40
      $region39: #{upsample_block_forward.6} parent=35 // pred_region
        %s1478 = smul.u32 64, %s18
      $region40: #{upsample_block_forward.6} parent=35 // pred_fallthru
        _
      // Predicated region
      $region41: #{upsample_block_forward.6} parent=35 // pred_check
        %p1479 = pneg %p151
      $region42: #{upsample_block_forward.6} parent=35 // pred_check_branch
        %1481 = sbr.rel (%p1479) target = $region44
      $region43: #{upsample_block_forward.6} parent=35 // pred_region
        _
      $region44: #{upsample_block_forward.6} parent=35 // pred_fallthru
        _
      // Predicated region
      $region45: #{upsample_block_forward.6} parent=35 // pred_check
        %p1482 = pneg %p177
      $region46: #{upsample_block_forward.6} parent=35 // pred_check_branch
        %1484 = sbr.rel (%p1482) target = $region48
      $region47: #{upsample_block_forward.6} parent=35 // pred_region
        _
      $region48: #{upsample_block_forward.6} parent=35 // pred_fallthru
        _
    $region36: #{upsample_block_forward.6} parent=5 // pred_fallthru
      _
    %p1485 = scmp.le.s32.totalorder 2, %s13
    // Predicated region
    $region49: #{upsample_block_forward.6} parent=5 // pred_check
      %p1486 = pneg %p1485
    $region50: #{upsample_block_forward.6} parent=5 // pred_check_branch
      %1488 = sbr.rel (%p1486) target = $region52
    $region51: #{upsample_block_forward.6} parent=5 // pred_region
      %s1489 = ssub.s32 %s13, 2
      // Predicated region
      $region53: #{upsample_block_forward.6} parent=51 // pred_check
        %p1490 = pneg %p131
      $region54: #{upsample_block_forward.6} parent=51 // pred_check_branch
        %1492 = sbr.rel (%p1490) target = $region56
      $region55: #{upsample_block_forward.6} parent=51 // pred_region
        %s1493 = smul.u32 64, %s19
        %p1494 = scmp.lt.s32.totalorder %s1493, 255
        %s1495 = scalar_select %p1494, %s1493, 255
        %s1496 = smul.addr %s1495, 8
        %s1497 = scalar_lea.vmem %s4, %s1496
      $region56: #{upsample_block_forward.6} parent=51 // pred_fallthru
        _
      // Predicated region
      $region57: #{upsample_block_forward.6} parent=51 // pred_check
        %p1498 = pneg %p157
      $region58: #{upsample_block_forward.6} parent=51 // pred_check_branch
        %1500 = sbr.rel (%p1498) target = $region60
      $region59: #{upsample_block_forward.6} parent=51 // pred_region
        %p1501 = scmp.lt.s32.totalorder %s19, 3
        %s1502 = scalar_select %p1501, %s19, 3
        %s1503 = scalar_lea.vmem %s5, %s1502
      $region60: #{upsample_block_forward.6} parent=51 // pred_fallthru
        _
      // Predicated region
      $region61: #{upsample_block_forward.6} parent=51 // pred_check
        %p1504 = pneg %p183
      $region62: #{upsample_block_forward.6} parent=51 // pred_check_branch
        %1506 = sbr.rel (%p1504) target = $region64
      $region63: #{upsample_block_forward.6} parent=51 // pred_region
        %p1507 = scmp.lt.s32.totalorder %s19, 3
        %s1508 = scalar_select %p1507, %s19, 3
        %s1509 = scalar_lea.vmem %s6, %s1508
      $region64: #{upsample_block_forward.6} parent=51 // pred_fallthru
        _
    $region52: #{upsample_block_forward.6} parent=5 // pred_fallthru
      _
  $region6: #{upsample_block_forward.6} parent=0 // loop_footer
    %s17 = sadd.s32 1, %s13
  $region7: #{upsample_block_forward.6} parent=0 // loop_footer_branch
    %12 = sbr.rel target = $region3
  $region8: #{upsample_block_forward.6} parent=0 // loop_exit
    _

// kernel: upsample_block_forward.7
$region0: #{upsample_block_forward.7}
  #allocation0 [shape = 'u32[]', space=smem, size = 0x4, offset = 0x4, fixed_abs, tag = 'smem constant byte address 0x4 - core index']
  #allocation1 [shape = 'u32[72,128]{1,0:T(1,128)}', space=vmem, size = 0x9000, scoped, tag = 'internal scratch']
  %s0 = inlined_call_operand.vmem [shape: f32[2048,8], index: 0, kind: input, shape index: {}]
  %s1 = inlined_call_operand.vmem [shape: f32[1,8], index: 1, kind: input, shape index: {}]
  %s2 = inlined_call_operand.vmem [shape: f32[1,8], index: 2, kind: input, shape index: {}]
  %s3 = inlined_call_operand.vmem [shape: f32[2048,8], index: 3, kind: output, shape index: {}]
  %s4 = sld [smem:[#allocation0]]
  $region45: #{upsample_block_forward.7} parent=0
    _
  %s6 = ssub.s32 1, %s4
  %s7 = scalar_select 0, %s6, %s4
  loop: start=0, step=1, limit=6
  $region2: #{upsample_block_forward.7} parent=0 // loop_pre_header
    _
  $region3: #{upsample_block_forward.7} parent=0 // loop_header
    %s9 = sphi 0, %s13
    %p10 = scmp.ge.s32.totalorder %s9, 6
    %s19 = sphi 0, %s21
    %s22 = sphi 0, %s19
    %s23 = sphi 0, %s22
    %s39 = sphi 0, %s23
    %s43 = sphi 0, %s43
    %s45 = sphi 0, %s43
    %s46 = sphi 0, %s45
    %s60 = sphi 0, %s46
    %s64 = sphi 0, %s64
    %s66 = sphi 0, %s64
    %s67 = sphi 0, %s66
    %s81 = sphi 0, %s67
    %s87 = sphi 0, %s89
    %s90 = sphi 0, %s87
    %s91 = sphi 0, %s90
    %s107 = sphi 0, %s91
  $region4: #{upsample_block_forward.7} parent=0 // loop_header_branch
    %12 = sbr.rel (%p10) target = $region8
  $region5: #{upsample_block_forward.7} parent=0 // loop_body
    %s14 = ssub.s32 %s9, 1
    %s15 = ssub.s32 %s9, 2
    %s16 = sadd.s32 %s9, 1
    %s17 = ssub.s32 %s9, %s16
    %p18 = scmp.eq.s32.totalorder %s17, 0
    %s20 = sadd.s32 %s19, 1
    %s21 = scalar_select %p18, %s19, %s20
    %p24 = pneg %p18
    %p25 = scmp.eq.s32.totalorder %s9, 3
    %p26 = por %p24, %p25
    %p27 = scmp.ne.s32.totalorder %s19, %s22
    %p28 = scmp.eq.s32.totalorder %s9, 0
    %p29 = por %p27, %p28
    %p30 = scmp.ne.s32.totalorder %s19, %s22
    %p31 = scmp.eq.s32.totalorder %s14, 3
    %p32 = por %p30, %p31
    %p33 = scmp.ne.s32.totalorder %s22, %s23
    %p34 = scmp.eq.s32.totalorder %s14, 0
    %p35 = por %p33, %p34
    %p36 = scmp.ne.s32.totalorder %s22, %s23
    %p37 = scmp.eq.s32.totalorder %s15, 3
    %p38 = por %p36, %p37
    %p40 = scmp.ne.s32.totalorder %s23, %s39
    %p41 = scmp.eq.s32.totalorder %s15, 0
    %p42 = por %p40, %p41
    %s44 = sadd.s32 %s43, 1
    %p47 = scmp.eq.s32.totalorder %s9, 3
    %p48 = scmp.ne.s32.totalorder %s43, %s45
    %p49 = scmp.eq.s32.totalorder %s9, 0
    %p50 = por %p48, %p49
    %p51 = scmp.ne.s32.totalorder %s43, %s45
    %p52 = scmp.eq.s32.totalorder %s14, 3
    %p53 = por %p51, %p52
    %p54 = scmp.ne.s32.totalorder %s45, %s46
    %p55 = scmp.eq.s32.totalorder %s14, 0
    %p56 = por %p54, %p55
    %p57 = scmp.ne.s32.totalorder %s45, %s46
    %p58 = scmp.eq.s32.totalorder %s15, 3
    %p59 = por %p57, %p58
    %p61 = scmp.ne.s32.totalorder %s46, %s60
    %p62 = scmp.eq.s32.totalorder %s15, 0
    %p63 = por %p61, %p62
    %s65 = sadd.s32 %s64, 1
    %p68 = scmp.eq.s32.totalorder %s9, 3
    %p69 = scmp.ne.s32.totalorder %s64, %s66
    %p70 = scmp.eq.s32.totalorder %s9, 0
    %p71 = por %p69, %p70
    %p72 = scmp.ne.s32.totalorder %s64, %s66
    %p73 = scmp.eq.s32.totalorder %s14, 3
    %p74 = por %p72, %p73
    %p75 = scmp.ne.s32.totalorder %s66, %s67
    %p76 = scmp.eq.s32.totalorder %s14, 0
    %p77 = por %p75, %p76
    %p78 = scmp.ne.s32.totalorder %s66, %s67
    %p79 = scmp.eq.s32.totalorder %s15, 3
    %p80 = por %p78, %p79
    %p82 = scmp.ne.s32.totalorder %s67, %s81
    %p83 = scmp.eq.s32.totalorder %s15, 0
    %p84 = por %p82, %p83
    %s85 = ssub.s32 %s9, %s16
    %p86 = scmp.eq.s32.totalorder %s85, 0
    %s88 = sadd.s32 %s87, 1
    %s89 = scalar_select %p86, %s87, %s88
    %p92 = pneg %p86
    %p93 = scmp.eq.s32.totalorder %s9, 3
    %p94 = por %p92, %p93
    %p95 = scmp.ne.s32.totalorder %s87, %s90
    %p96 = scmp.eq.s32.totalorder %s9, 0
    %p97 = por %p95, %p96
    %p98 = scmp.ne.s32.totalorder %s87, %s90
    %p99 = scmp.eq.s32.totalorder %s14, 3
    %p100 = por %p98, %p99
    %p101 = scmp.ne.s32.totalorder %s90, %s91
    %p102 = scmp.eq.s32.totalorder %s14, 0
    %p103 = por %p101, %p102
    %p104 = scmp.ne.s32.totalorder %s90, %s91
    %p105 = scmp.eq.s32.totalorder %s15, 3
    %p106 = por %p104, %p105
    %p108 = scmp.ne.s32.totalorder %s91, %s107
    %p109 = scmp.eq.s32.totalorder %s15, 0
    %p110 = por %p108, %p109
    %p111 = scmp.le.s32.totalorder 1, %s9
    %p112 = scmp.lt.s32.totalorder %s9, 5
    %p113 = pnand %p111, %p112
    %p114 = pneg %p113
    // Predicated region
    $region9: #{upsample_block_forward.7} parent=5 // pred_check
      _
    $region10: #{upsample_block_forward.7} parent=5 // pred_check_branch
      %116 = sbr.rel (%p113) target = $region12
    $region11: #{upsample_block_forward.7} parent=5 // pred_region
      %s117 = ssub.s32 %s9, 1
      // Predicated region
      $region13: #{upsample_block_forward.7} parent=11 // pred_check
        %p118 = pneg %p56
      $region14: #{upsample_block_forward.7} parent=11 // pred_check_branch
        %120 = sbr.rel (%p118) target = $region16
      $region15: #{upsample_block_forward.7} parent=11 // pred_region
        _
      $region16: #{upsample_block_forward.7} parent=11 // pred_fallthru
        _
      // Predicated region
      $region17: #{upsample_block_forward.7} parent=11 // pred_check
        %p121 = pneg %p77
      $region18: #{upsample_block_forward.7} parent=11 // pred_check_branch
        %123 = sbr.rel (%p121) target = $region20
      $region19: #{upsample_block_forward.7} parent=11 // pred_region
        _
      $region20: #{upsample_block_forward.7} parent=11 // pred_fallthru
        _
    $region12: #{upsample_block_forward.7} parent=5 // pred_fallthru
      _
    %p124 = scmp.lt.s32.totalorder %s9, 4
    // Predicated region
    $region21: #{upsample_block_forward.7} parent=5 // pred_check
      %p125 = pneg %p124
    $region22: #{upsample_block_forward.7} parent=5 // pred_check_branch
      %127 = sbr.rel (%p125) target = $region24
    $region23: #{upsample_block_forward.7} parent=5 // pred_region
      // Predicated region
      $region25: #{upsample_block_forward.7} parent=23 // pred_check
        %p128 = pneg %p29
      $region26: #{upsample_block_forward.7} parent=23 // pred_check_branch
        %130 = sbr.rel (%p128) target = $region28
      $region27: #{upsample_block_forward.7} parent=23 // pred_region
        %s131 = smul.u32 64, %s9
        %p132 = scmp.lt.s32.totalorder %s131, 255
        %s133 = scalar_select %p132, %s131, 255
        %s134 = smul.addr %s133, 8
        %s135 = scalar_lea.vmem %s0, %s134
        %s136 = smul.u32 64, %s9
      $region28: #{upsample_block_forward.7} parent=23 // pred_fallthru
        _
    $region24: #{upsample_block_forward.7} parent=5 // pred_fallthru
      _
    %p137 = scmp.le.s32.totalorder 1, %s9
    %p138 = scmp.lt.s32.totalorder %s9, 5
    %p139 = pnand %p137, %p138
    %p140 = pneg %p139
    // Predicated region
    $region29: #{upsample_block_forward.7} parent=5 // pred_check
      _
    $region30: #{upsample_block_forward.7} parent=5 // pred_check_branch
      %142 = sbr.rel (%p139) target = $region32
    $region31: #{upsample_block_forward.7} parent=5 // pred_region
      %s143 = ssub.s32 %s9, 1
      %s144 = smul.u32 64, %s14
      %p145 = scmp.lt.s32.totalorder %s144, 255
      %s146 = scalar_select %p145, %s144, 255
      %s147 = smul.addr %s146, 8
      %s148 = scalar_lea.vmem %s0, %s147
      %p149 = pneg %p35
      %p150 = pneg %p32
      %p151 = pneg %p56
      %p152 = pneg %p53
      %p153 = pneg %p77
      %p154 = pneg %p74
      %p155 = pneg %p103
      %p156 = pneg %p100
      %s157 = smul.u32 64, %s14
      %p158 = scmp.lt.s32.totalorder %s157, 255
      %s159 = scalar_select %p158, %s157, 255
      %s160 = smul.addr %s159, 8
      %s161 = scalar_lea.vmem %s3, %s160
      %s162 = smul.u32 64, %s14
      %p163 = scmp.lt.s32.totalorder %s162, 255
      %s164 = scalar_select %p163, %s162, 255
      %s165 = smul.addr %s164, 8
      %s166 = scalar_lea.vmem %s0, %s165
      %s167 = smul.u32 64, %s14
      %s168 = smul.u32 64, %s14
      %p169 = scmp.lt.s32.totalorder %s168, 255
      %s170 = scalar_select %p169, %s168, 255
      %s171 = smul.addr %s170, 8
      %s172 = scalar_lea.vmem %s3, %s171
      %s173 = smul.u32 64, %s14
      %v174 = vld [vmem:[%s166] sm:$0xff]
      %v175 = vld [vmem:[%s166 + $0x8] sm:$0xff]
      %v176 = vld [vmem:[%s166 + $0x10] sm:$0xff]
      %v177 = vld [vmem:[%s166 + $0x18] sm:$0xff]
      %v178 = vld [vmem:[%s166 + $0x20] sm:$0xff]
      %v179 = vld [vmem:[%s166 + $0x28] sm:$0xff]
      %v180 = vld [vmem:[%s166 + $0x30] sm:$0xff]
      %v181 = vld [vmem:[%s166 + $0x38] sm:$0xff]
      %v182 = vld [vmem:[%s166 + $0x40] sm:$0xff]
      %v183 = vld [vmem:[%s166 + $0x48] sm:$0xff]
      %v184 = vld [vmem:[%s166 + $0x50] sm:$0xff]
      %v185 = vld [vmem:[%s166 + $0x58] sm:$0xff]
      %v186 = vld [vmem:[%s166 + $0x60] sm:$0xff]
      %v187 = vld [vmem:[%s166 + $0x68] sm:$0xff]
      %v188 = vld [vmem:[%s166 + $0x70] sm:$0xff]
      %v189 = vld [vmem:[%s166 + $0x78] sm:$0xff]
      %v190 = vld [vmem:[%s166 + $0x80] sm:$0xff]
      %v191 = vld [vmem:[%s166 + $0x88] sm:$0xff]
      %v192 = vld [vmem:[%s166 + $0x90] sm:$0xff]
      %v193 = vld [vmem:[%s166 + $0x98] sm:$0xff]
      %v194 = vld [vmem:[%s166 + $0xa0] sm:$0xff]
      %v195 = vld [vmem:[%s166 + $0xa8] sm:$0xff]
      %v196 = vld [vmem:[%s166 + $0xb0] sm:$0xff]
      %v197 = vld [vmem:[%s166 + $0xb8] sm:$0xff]
      %v198 = vld [vmem:[%s166 + $0xc0] sm:$0xff]
      %v199 = vld [vmem:[%s166 + $0xc8] sm:$0xff]
      %v200 = vld [vmem:[%s166 + $0xd0] sm:$0xff]
      %v201 = vld [vmem:[%s166 + $0xd8] sm:$0xff]
      %v202 = vld [vmem:[%s166 + $0xe0] sm:$0xff]
      %v203 = vld [vmem:[%s166 + $0xe8] sm:$0xff]
      %v204 = vld [vmem:[%s166 + $0xf0] sm:$0xff]
      %v205 = vld [vmem:[%s166 + $0xf8] sm:$0xff]
      %v206 = vld [vmem:[%s166 + $0x100] sm:$0xff]
      %v207 = vld [vmem:[%s166 + $0x108] sm:$0xff]
      %v208 = vld [vmem:[%s166 + $0x110] sm:$0xff]
      %v209 = vld [vmem:[%s166 + $0x118] sm:$0xff]
      %v210 = vld [vmem:[%s166 + $0x120] sm:$0xff]
      %v211 = vld [vmem:[%s166 + $0x128] sm:$0xff]
      %v212 = vld [vmem:[%s166 + $0x130] sm:$0xff]
      %v213 = vld [vmem:[%s166 + $0x138] sm:$0xff]
      %v214 = vld [vmem:[%s166 + $0x140] sm:$0xff]
      %v215 = vld [vmem:[%s166 + $0x148] sm:$0xff]
      %v216 = vld [vmem:[%s166 + $0x150] sm:$0xff]
      %v217 = vld [vmem:[%s166 + $0x158] sm:$0xff]
      %v218 = vld [vmem:[%s166 + $0x160] sm:$0xff]
      %v219 = vld [vmem:[%s166 + $0x168] sm:$0xff]
      %v220 = vld [vmem:[%s166 + $0x170] sm:$0xff]
      %v221 = vld [vmem:[%s166 + $0x178] sm:$0xff]
      %v222 = vld [vmem:[%s166 + $0x180] sm:$0xff]
      %v223 = vld [vmem:[%s166 + $0x188] sm:$0xff]
      %v224 = vld [vmem:[%s166 + $0x190] sm:$0xff]
      %v225 = vld [vmem:[%s166 + $0x198] sm:$0xff]
      %v226 = vld [vmem:[%s166 + $0x1a0] sm:$0xff]
      %v227 = vld [vmem:[%s166 + $0x1a8] sm:$0xff]
      %v228 = vld [vmem:[%s166 + $0x1b0] sm:$0xff]
      %v229 = vld [vmem:[%s166 + $0x1b8] sm:$0xff]
      %v230 = vld [vmem:[%s166 + $0x1c0] sm:$0xff]
      %v231 = vld [vmem:[%s166 + $0x1c8] sm:$0xff]
      %v232 = vld [vmem:[%s166 + $0x1d0] sm:$0xff]
      %v233 = vld [vmem:[%s166 + $0x1d8] sm:$0xff]
      %v234 = vld [vmem:[%s166 + $0x1e0] sm:$0xff]
      %v235 = vld [vmem:[%s166 + $0x1e8] sm:$0xff]
      %v236 = vld [vmem:[%s166 + $0x1f0] sm:$0xff]
      %v237 = vld [vmem:[%s166 + $0x1f8] sm:$0xff]
      %v238 = vld [vmem:[%s1] sm:$0x1]
      %v240 = vperm.slane %v238, 0
      %v242 = vmul.f32 %v174, %v240
      %v243 = vmul.f32 %v175, %v240
      %v244 = vmul.f32 %v176, %v240
      %v245 = vmul.f32 %v177, %v240
      %v246 = vmul.f32 %v178, %v240
      %v247 = vmul.f32 %v179, %v240
      %v248 = vmul.f32 %v180, %v240
      %v249 = vmul.f32 %v181, %v240
      %v250 = vmul.f32 %v182, %v240
      %v251 = vmul.f32 %v183, %v240
      %v252 = vmul.f32 %v184, %v240
      %v253 = vmul.f32 %v185, %v240
      %v254 = vmul.f32 %v186, %v240
      %v255 = vmul.f32 %v187, %v240
      %v256 = vmul.f32 %v188, %v240
      %v257 = vmul.f32 %v189, %v240
      %v258 = vmul.f32 %v190, %v240
      %v259 = vmul.f32 %v191, %v240
      %v260 = vmul.f32 %v192, %v240
      %v261 = vmul.f32 %v193, %v240
      %v262 = vmul.f32 %v194, %v240
      %v263 = vmul.f32 %v195, %v240
      %v264 = vmul.f32 %v196, %v240
      %v265 = vmul.f32 %v197, %v240
      %v266 = vmul.f32 %v198, %v240
      %v267 = vmul.f32 %v199, %v240
      %v268 = vmul.f32 %v200, %v240
      %v269 = vmul.f32 %v201, %v240
      %v270 = vmul.f32 %v202, %v240
      %v271 = vmul.f32 %v203, %v240
      %v272 = vmul.f32 %v204, %v240
      %v273 = vmul.f32 %v205, %v240
      %v274 = vmul.f32 %v206, %v240
      %v275 = vmul.f32 %v207, %v240
      %v276 = vmul.f32 %v208, %v240
      %v277 = vmul.f32 %v209, %v240
      %v278 = vmul.f32 %v210, %v240
      %v279 = vmul.f32 %v211, %v240
      %v280 = vmul.f32 %v212, %v240
      %v281 = vmul.f32 %v213, %v240
      %v282 = vmul.f32 %v214, %v240
      %v283 = vmul.f32 %v215, %v240
      %v284 = vmul.f32 %v216, %v240
      %v285 = vmul.f32 %v217, %v240
      %v286 = vmul.f32 %v218, %v240
      %v287 = vmul.f32 %v219, %v240
      %v288 = vmul.f32 %v220, %v240
      %v289 = vmul.f32 %v221, %v240
      %v290 = vmul.f32 %v222, %v240
      %v291 = vmul.f32 %v223, %v240
      %v292 = vmul.f32 %v224, %v240
      %v293 = vmul.f32 %v225, %v240
      %v294 = vmul.f32 %v226, %v240
      %v295 = vmul.f32 %v227, %v240
      %v296 = vmul.f32 %v228, %v240
      %v297 = vmul.f32 %v229, %v240
      %v298 = vmul.f32 %v230, %v240
      %v299 = vmul.f32 %v231, %v240
      %v300 = vmul.f32 %v232, %v240
      %v301 = vmul.f32 %v233, %v240
      %v302 = vmul.f32 %v234, %v240
      %v303 = vmul.f32 %v235, %v240
      %v304 = vmul.f32 %v236, %v240
      %v305 = vmul.f32 %v237, %v240
      %v306 = vld [vmem:[%s2] sm:$0x1]
      %v308 = vperm.slane %v306, 0
      %v310 = vadd.f32 %v242, %v308
      %v311 = vadd.f32 %v243, %v308
      %v312 = vadd.f32 %v244, %v308
      %v313 = vadd.f32 %v245, %v308
      %v314 = vadd.f32 %v246, %v308
      %v315 = vadd.f32 %v247, %v308
      %v316 = vadd.f32 %v248, %v308
      %v317 = vadd.f32 %v249, %v308
      %v318 = vadd.f32 %v250, %v308
      %v319 = vadd.f32 %v251, %v308
      %v320 = vadd.f32 %v252, %v308
      %v321 = vadd.f32 %v253, %v308
      %v322 = vadd.f32 %v254, %v308
      %v323 = vadd.f32 %v255, %v308
      %v324 = vadd.f32 %v256, %v308
      %v325 = vadd.f32 %v257, %v308
      %v326 = vadd.f32 %v258, %v308
      %v327 = vadd.f32 %v259, %v308
      %v328 = vadd.f32 %v260, %v308
      %v329 = vadd.f32 %v261, %v308
      %v330 = vadd.f32 %v262, %v308
      %v331 = vadd.f32 %v263, %v308
      %v332 = vadd.f32 %v264, %v308
      %v333 = vadd.f32 %v265, %v308
      %v334 = vadd.f32 %v266, %v308
      %v335 = vadd.f32 %v267, %v308
      %v336 = vadd.f32 %v268, %v308
      %v337 = vadd.f32 %v269, %v308
      %v338 = vadd.f32 %v270, %v308
      %v339 = vadd.f32 %v271, %v308
      %v340 = vadd.f32 %v272, %v308
      %v341 = vadd.f32 %v273, %v308
      %v342 = vadd.f32 %v274, %v308
      %v343 = vadd.f32 %v275, %v308
      %v344 = vadd.f32 %v276, %v308
      %v345 = vadd.f32 %v277, %v308
      %v346 = vadd.f32 %v278, %v308
      %v347 = vadd.f32 %v279, %v308
      %v348 = vadd.f32 %v280, %v308
      %v349 = vadd.f32 %v281, %v308
      %v350 = vadd.f32 %v282, %v308
      %v351 = vadd.f32 %v283, %v308
      %v352 = vadd.f32 %v284, %v308
      %v353 = vadd.f32 %v285, %v308
      %v354 = vadd.f32 %v286, %v308
      %v355 = vadd.f32 %v287, %v308
      %v356 = vadd.f32 %v288, %v308
      %v357 = vadd.f32 %v289, %v308
      %v358 = vadd.f32 %v290, %v308
      %v359 = vadd.f32 %v291, %v308
      %v360 = vadd.f32 %v292, %v308
      %v361 = vadd.f32 %v293, %v308
      %v362 = vadd.f32 %v294, %v308
      %v363 = vadd.f32 %v295, %v308
      %v364 = vadd.f32 %v296, %v308
      %v365 = vadd.f32 %v297, %v308
      %v366 = vadd.f32 %v298, %v308
      %v367 = vadd.f32 %v299, %v308
      %v368 = vadd.f32 %v300, %v308
      %v369 = vadd.f32 %v301, %v308
      %v370 = vadd.f32 %v302, %v308
      %v371 = vadd.f32 %v303, %v308
      %v372 = vadd.f32 %v304, %v308
      %v373 = vadd.f32 %v305, %v308
      %vm374 = vcmp.ge.f32.partialorder %v310, 0.0
      %vm375 = vcmp.ge.f32.partialorder %v311, 0.0
      %vm376 = vcmp.ge.f32.partialorder %v312, 0.0
      %vm377 = vcmp.ge.f32.partialorder %v313, 0.0
      %vm378 = vcmp.ge.f32.partialorder %v314, 0.0
      %vm379 = vcmp.ge.f32.partialorder %v315, 0.0
      %vm380 = vcmp.ge.f32.partialorder %v316, 0.0
      %vm381 = vcmp.ge.f32.partialorder %v317, 0.0
      %vm382 = vcmp.ge.f32.partialorder %v318, 0.0
      %vm383 = vcmp.ge.f32.partialorder %v319, 0.0
      %vm384 = vcmp.ge.f32.partialorder %v320, 0.0
      %vm385 = vcmp.ge.f32.partialorder %v321, 0.0
      %vm386 = vcmp.ge.f32.partialorder %v322, 0.0
      %vm387 = vcmp.ge.f32.partialorder %v323, 0.0
      %vm388 = vcmp.ge.f32.partialorder %v324, 0.0
      %vm389 = vcmp.ge.f32.partialorder %v325, 0.0
      %vm390 = vcmp.ge.f32.partialorder %v326, 0.0
      %vm391 = vcmp.ge.f32.partialorder %v327, 0.0
      %vm392 = vcmp.ge.f32.partialorder %v328, 0.0
      %vm393 = vcmp.ge.f32.partialorder %v329, 0.0
      %vm394 = vcmp.ge.f32.partialorder %v330, 0.0
      %vm395 = vcmp.ge.f32.partialorder %v331, 0.0
      %vm396 = vcmp.ge.f32.partialorder %v332, 0.0
      %vm397 = vcmp.ge.f32.partialorder %v333, 0.0
      %vm398 = vcmp.ge.f32.partialorder %v334, 0.0
      %vm399 = vcmp.ge.f32.partialorder %v335, 0.0
      %vm400 = vcmp.ge.f32.partialorder %v336, 0.0
      %vm401 = vcmp.ge.f32.partialorder %v337, 0.0
      %vm402 = vcmp.ge.f32.partialorder %v338, 0.0
      %vm403 = vcmp.ge.f32.partialorder %v339, 0.0
      %vm404 = vcmp.ge.f32.partialorder %v340, 0.0
      %vm405 = vcmp.ge.f32.partialorder %v341, 0.0
      %vm406 = vcmp.ge.f32.partialorder %v342, 0.0
      %vm407 = vcmp.ge.f32.partialorder %v343, 0.0
      %vm408 = vcmp.ge.f32.partialorder %v344, 0.0
      %vm409 = vcmp.ge.f32.partialorder %v345, 0.0
      %vm410 = vcmp.ge.f32.partialorder %v346, 0.0
      %vm411 = vcmp.ge.f32.partialorder %v347, 0.0
      %vm412 = vcmp.ge.f32.partialorder %v348, 0.0
      %vm413 = vcmp.ge.f32.partialorder %v349, 0.0
      %vm414 = vcmp.ge.f32.partialorder %v350, 0.0
      %vm415 = vcmp.ge.f32.partialorder %v351, 0.0
      %vm416 = vcmp.ge.f32.partialorder %v352, 0.0
      %vm417 = vcmp.ge.f32.partialorder %v353, 0.0
      %vm418 = vcmp.ge.f32.partialorder %v354, 0.0
      %vm419 = vcmp.ge.f32.partialorder %v355, 0.0
      %vm420 = vcmp.ge.f32.partialorder %v356, 0.0
      %vm421 = vcmp.ge.f32.partialorder %v357, 0.0
      %vm422 = vcmp.ge.f32.partialorder %v358, 0.0
      %vm423 = vcmp.ge.f32.partialorder %v359, 0.0
      %vm424 = vcmp.ge.f32.partialorder %v360, 0.0
      %vm425 = vcmp.ge.f32.partialorder %v361, 0.0
      %vm426 = vcmp.ge.f32.partialorder %v362, 0.0
      %vm427 = vcmp.ge.f32.partialorder %v363, 0.0
      %vm428 = vcmp.ge.f32.partialorder %v364, 0.0
      %vm429 = vcmp.ge.f32.partialorder %v365, 0.0
      %vm430 = vcmp.ge.f32.partialorder %v366, 0.0
      %vm431 = vcmp.ge.f32.partialorder %v367, 0.0
      %vm432 = vcmp.ge.f32.partialorder %v368, 0.0
      %vm433 = vcmp.ge.f32.partialorder %v369, 0.0
      %vm434 = vcmp.ge.f32.partialorder %v370, 0.0
      %vm435 = vcmp.ge.f32.partialorder %v371, 0.0
      %vm436 = vcmp.ge.f32.partialorder %v372, 0.0
      %vm437 = vcmp.ge.f32.partialorder %v373, 0.0
      %v438 = vmul.f32 %v310, 0.2
      %v439 = vmul.f32 %v311, 0.2
      %v440 = vmul.f32 %v312, 0.2
      %v441 = vmul.f32 %v313, 0.2
      %v442 = vmul.f32 %v314, 0.2
      %v443 = vmul.f32 %v315, 0.2
      %v444 = vmul.f32 %v316, 0.2
      %v445 = vmul.f32 %v317, 0.2
      %v446 = vmul.f32 %v318, 0.2
      %v447 = vmul.f32 %v319, 0.2
      %v448 = vmul.f32 %v320, 0.2
      %v449 = vmul.f32 %v321, 0.2
      %v450 = vmul.f32 %v322, 0.2
      %v451 = vmul.f32 %v323, 0.2
      %v452 = vmul.f32 %v324, 0.2
      %v453 = vmul.f32 %v325, 0.2
      %v454 = vmul.f32 %v326, 0.2
      %v455 = vmul.f32 %v327, 0.2
      %v456 = vmul.f32 %v328, 0.2
      %v457 = vmul.f32 %v329, 0.2
      %v458 = vmul.f32 %v330, 0.2
      %v459 = vmul.f32 %v331, 0.2
      %v460 = vmul.f32 %v332, 0.2
      %v461 = vmul.f32 %v333, 0.2
      %v462 = vmul.f32 %v334, 0.2
      %v463 = vmul.f32 %v335, 0.2
      %v464 = vmul.f32 %v336, 0.2
      %v465 = vmul.f32 %v337, 0.2
      %v466 = vmul.f32 %v338, 0.2
      %v467 = vmul.f32 %v339, 0.2
      %v468 = vmul.f32 %v340, 0.2
      %v469 = vmul.f32 %v341, 0.2
      %v470 = vmul.f32 %v342, 0.2
      %v471 = vmul.f32 %v343, 0.2
      %v472 = vmul.f32 %v344, 0.2
      %v473 = vmul.f32 %v345, 0.2
      %v474 = vmul.f32 %v346, 0.2
      %v475 = vmul.f32 %v347, 0.2
      %v476 = vmul.f32 %v348, 0.2
      %v477 = vmul.f32 %v349, 0.2
      %v478 = vmul.f32 %v350, 0.2
      %v479 = vmul.f32 %v351, 0.2
      %v480 = vmul.f32 %v352, 0.2
      %v481 = vmul.f32 %v353, 0.2
      %v482 = vmul.f32 %v354, 0.2
      %v483 = vmul.f32 %v355, 0.2
      %v484 = vmul.f32 %v356, 0.2
      %v485 = vmul.f32 %v357, 0.2
      %v486 = vmul.f32 %v358, 0.2
      %v487 = vmul.f32 %v359, 0.2
      %v488 = vmul.f32 %v360, 0.2
      %v489 = vmul.f32 %v361, 0.2
      %v490 = vmul.f32 %v362, 0.2
      %v491 = vmul.f32 %v363, 0.2
      %v492 = vmul.f32 %v364, 0.2
      %v493 = vmul.f32 %v365, 0.2
      %v494 = vmul.f32 %v366, 0.2
      %v495 = vmul.f32 %v367, 0.2
      %v496 = vmul.f32 %v368, 0.2
      %v497 = vmul.f32 %v369, 0.2
      %v498 = vmul.f32 %v370, 0.2
      %v499 = vmul.f32 %v371, 0.2
      %v500 = vmul.f32 %v372, 0.2
      %v501 = vmul.f32 %v373, 0.2
      %v502 = vsel %vm374, %v310, %v438
      %v503 = vsel %vm375, %v311, %v439
      %v504 = vsel %vm376, %v312, %v440
      %v505 = vsel %vm377, %v313, %v441
      %v506 = vsel %vm378, %v314, %v442
      %v507 = vsel %vm379, %v315, %v443
      %v508 = vsel %vm380, %v316, %v444
      %v509 = vsel %vm381, %v317, %v445
      %v510 = vsel %vm382, %v318, %v446
      %v511 = vsel %vm383, %v319, %v447
      %v512 = vsel %vm384, %v320, %v448
      %v513 = vsel %vm385, %v321, %v449
      %v514 = vsel %vm386, %v322, %v450
      %v515 = vsel %vm387, %v323, %v451
      %v516 = vsel %vm388, %v324, %v452
      %v517 = vsel %vm389, %v325, %v453
      %v518 = vsel %vm390, %v326, %v454
      %v519 = vsel %vm391, %v327, %v455
      %v520 = vsel %vm392, %v328, %v456
      %v521 = vsel %vm393, %v329, %v457
      %v522 = vsel %vm394, %v330, %v458
      %v523 = vsel %vm395, %v331, %v459
      %v524 = vsel %vm396, %v332, %v460
      %v525 = vsel %vm397, %v333, %v461
      %v526 = vsel %vm398, %v334, %v462
      %v527 = vsel %vm399, %v335, %v463
      %v528 = vsel %vm400, %v336, %v464
      %v529 = vsel %vm401, %v337, %v465
      %v530 = vsel %vm402, %v338, %v466
      %v531 = vsel %vm403, %v339, %v467
      %v532 = vsel %vm404, %v340, %v468
      %v533 = vsel %vm405, %v341, %v469
      %v534 = vsel %vm406, %v342, %v470
      %v535 = vsel %vm407, %v343, %v471
      %v536 = vsel %vm408, %v344, %v472
      %v537 = vsel %vm409, %v345, %v473
      %v538 = vsel %vm410, %v346, %v474
      %v539 = vsel %vm411, %v347, %v475
      %v540 = vsel %vm412, %v348, %v476
      %v541 = vsel %vm413, %v349, %v477
      %v542 = vsel %vm414, %v350, %v478
      %v543 = vsel %vm415, %v351, %v479
      %v544 = vsel %vm416, %v352, %v480
      %v545 = vsel %vm417, %v353, %v481
      %v546 = vsel %vm418, %v354, %v482
      %v547 = vsel %vm419, %v355, %v483
      %v548 = vsel %vm420, %v356, %v484
      %v549 = vsel %vm421, %v357, %v485
      %v550 = vsel %vm422, %v358, %v486
      %v551 = vsel %vm423, %v359, %v487
      %v552 = vsel %vm424, %v360, %v488
      %v553 = vsel %vm425, %v361, %v489
      %v554 = vsel %vm426, %v362, %v490
      %v555 = vsel %vm427, %v363, %v491
      %v556 = vsel %vm428, %v364, %v492
      %v557 = vsel %vm429, %v365, %v493
      %v558 = vsel %vm430, %v366, %v494
      %v559 = vsel %vm431, %v367, %v495
      %v560 = vsel %vm432, %v368, %v496
      %v561 = vsel %vm433, %v369, %v497
      %v562 = vsel %vm434, %v370, %v498
      %v563 = vsel %vm435, %v371, %v499
      %v564 = vsel %vm436, %v372, %v500
      %v565 = vsel %vm437, %v373, %v501
      %vm566 = vcmask 64512
      %567 = vst.msk [vmem:[%s172] sm:$0xff] %vm566, %v502
      %568 = vst.msk [vmem:[%s172 + $0x8] sm:$0xff] %vm566, %v503
      %569 = vst.msk [vmem:[%s172 + $0x10] sm:$0xff] %vm566, %v504
      %570 = vst.msk [vmem:[%s172 + $0x18] sm:$0xff] %vm566, %v505
      %571 = vst.msk [vmem:[%s172 + $0x20] sm:$0xff] %vm566, %v506
      %572 = vst.msk [vmem:[%s172 + $0x28] sm:$0xff] %vm566, %v507
      %573 = vst.msk [vmem:[%s172 + $0x30] sm:$0xff] %vm566, %v508
      %574 = vst.msk [vmem:[%s172 + $0x38] sm:$0xff] %vm566, %v509
      %575 = vst.msk [vmem:[%s172 + $0x40] sm:$0xff] %vm566, %v510
      %576 = vst.msk [vmem:[%s172 + $0x48] sm:$0xff] %vm566, %v511
      %577 = vst.msk [vmem:[%s172 + $0x50] sm:$0xff] %vm566, %v512
      %578 = vst.msk [vmem:[%s172 + $0x58] sm:$0xff] %vm566, %v513
      %579 = vst.msk [vmem:[%s172 + $0x60] sm:$0xff] %vm566, %v514
      %580 = vst.msk [vmem:[%s172 + $0x68] sm:$0xff] %vm566, %v515
      %581 = vst.msk [vmem:[%s172 + $0x70] sm:$0xff] %vm566, %v516
      %582 = vst.msk [vmem:[%s172 + $0x78] sm:$0xff] %vm566, %v517
      %583 = vst.msk [vmem:[%s172 + $0x80] sm:$0xff] %vm566, %v518
      %584 = vst.msk [vmem:[%s172 + $0x88] sm:$0xff] %vm566, %v519
      %585 = vst.msk [vmem:[%s172 + $0x90] sm:$0xff] %vm566, %v520
      %586 = vst.msk [vmem:[%s172 + $0x98] sm:$0xff] %vm566, %v521
      %587 = vst.msk [vmem:[%s172 + $0xa0] sm:$0xff] %vm566, %v522
      %588 = vst.msk [vmem:[%s172 + $0xa8] sm:$0xff] %vm566, %v523
      %589 = vst.msk [vmem:[%s172 + $0xb0] sm:$0xff] %vm566, %v524
      %590 = vst.msk [vmem:[%s172 + $0xb8] sm:$0xff] %vm566, %v525
      %591 = vst.msk [vmem:[%s172 + $0xc0] sm:$0xff] %vm566, %v526
      %592 = vst.msk [vmem:[%s172 + $0xc8] sm:$0xff] %vm566, %v527
      %593 = vst.msk [vmem:[%s172 + $0xd0] sm:$0xff] %vm566, %v528
      %594 = vst.msk [vmem:[%s172 + $0xd8] sm:$0xff] %vm566, %v529
      %595 = vst.msk [vmem:[%s172 + $0xe0] sm:$0xff] %vm566, %v530
      %596 = vst.msk [vmem:[%s172 + $0xe8] sm:$0xff] %vm566, %v531
      %597 = vst.msk [vmem:[%s172 + $0xf0] sm:$0xff] %vm566, %v532
      %598 = vst.msk [vmem:[%s172 + $0xf8] sm:$0xff] %vm566, %v533
      %599 = vst.msk [vmem:[%s172 + $0x100] sm:$0xff] %vm566, %v534
      %600 = vst.msk [vmem:[%s172 + $0x108] sm:$0xff] %vm566, %v535
      %601 = vst.msk [vmem:[%s172 + $0x110] sm:$0xff] %vm566, %v536
      %602 = vst.msk [vmem:[%s172 + $0x118] sm:$0xff] %vm566, %v537
      %603 = vst.msk [vmem:[%s172 + $0x120] sm:$0xff] %vm566, %v538
      %604 = vst.msk [vmem:[%s172 + $0x128] sm:$0xff] %vm566, %v539
      %605 = vst.msk [vmem:[%s172 + $0x130] sm:$0xff] %vm566, %v540
      %606 = vst.msk [vmem:[%s172 + $0x138] sm:$0xff] %vm566, %v541
      %607 = vst.msk [vmem:[%s172 + $0x140] sm:$0xff] %vm566, %v542
      %608 = vst.msk [vmem:[%s172 + $0x148] sm:$0xff] %vm566, %v543
      %609 = vst.msk [vmem:[%s172 + $0x150] sm:$0xff] %vm566, %v544
      %610 = vst.msk [vmem:[%s172 + $0x158] sm:$0xff] %vm566, %v545
      %611 = vst.msk [vmem:[%s172 + $0x160] sm:$0xff] %vm566, %v546
      %612 = vst.msk [vmem:[%s172 + $0x168] sm:$0xff] %vm566, %v547
      %613 = vst.msk [vmem:[%s172 + $0x170] sm:$0xff] %vm566, %v548
      %614 = vst.msk [vmem:[%s172 + $0x178] sm:$0xff] %vm566, %v549
      %615 = vst.msk [vmem:[%s172 + $0x180] sm:$0xff] %vm566, %v550
      %616 = vst.msk [vmem:[%s172 + $0x188] sm:$0xff] %vm566, %v551
      %617 = vst.msk [vmem:[%s172 + $0x190] sm:$0xff] %vm566, %v552
      %618 = vst.msk [vmem:[%s172 + $0x198] sm:$0xff] %vm566, %v553
      %619 = vst.msk [vmem:[%s172 + $0x1a0] sm:$0xff] %vm566, %v554
      %620 = vst.msk [vmem:[%s172 + $0x1a8] sm:$0xff] %vm566, %v555
      %621 = vst.msk [vmem:[%s172 + $0x1b0] sm:$0xff] %vm566, %v556
      %622 = vst.msk [vmem:[%s172 + $0x1b8] sm:$0xff] %vm566, %v557
      %623 = vst.msk [vmem:[%s172 + $0x1c0] sm:$0xff] %vm566, %v558
      %624 = vst.msk [vmem:[%s172 + $0x1c8] sm:$0xff] %vm566, %v559
      %625 = vst.msk [vmem:[%s172 + $0x1d0] sm:$0xff] %vm566, %v560
      %626 = vst.msk [vmem:[%s172 + $0x1d8] sm:$0xff] %vm566, %v561
      %627 = vst.msk [vmem:[%s172 + $0x1e0] sm:$0xff] %vm566, %v562
      %628 = vst.msk [vmem:[%s172 + $0x1e8] sm:$0xff] %vm566, %v563
      %629 = vst.msk [vmem:[%s172 + $0x1f0] sm:$0xff] %vm566, %v564
      %630 = vst.msk [vmem:[%s172 + $0x1f8] sm:$0xff] %vm566, %v565
      %s631 = smul.u32 64, %s14
      %p632 = scmp.lt.s32.totalorder %s631, 255
      %s633 = scalar_select %p632, %s631, 255
      %s634 = smul.addr %s633, 8
      %s635 = scalar_lea.vmem %s3, %s634
      // Predicated region
      $region33: #{upsample_block_forward.7} parent=31 // pred_check
        %p636 = pneg %p100
      $region34: #{upsample_block_forward.7} parent=31 // pred_check_branch
        %638 = sbr.rel (%p636) target = $region36
      $region35: #{upsample_block_forward.7} parent=31 // pred_region
        %s639 = smul.u32 64, %s14
      $region36: #{upsample_block_forward.7} parent=31 // pred_fallthru
        _
    $region32: #{upsample_block_forward.7} parent=5 // pred_fallthru
      _
    %p640 = scmp.le.s32.totalorder 2, %s9
    // Predicated region
    $region37: #{upsample_block_forward.7} parent=5 // pred_check
      %p641 = pneg %p640
    $region38: #{upsample_block_forward.7} parent=5 // pred_check_branch
      %643 = sbr.rel (%p641) target = $region40
    $region39: #{upsample_block_forward.7} parent=5 // pred_region
      %s644 = ssub.s32 %s9, 2
      // Predicated region
      $region41: #{upsample_block_forward.7} parent=39 // pred_check
        %p645 = pneg %p106
      $region42: #{upsample_block_forward.7} parent=39 // pred_check_branch
        %647 = sbr.rel (%p645) target = $region44
      $region43: #{upsample_block_forward.7} parent=39 // pred_region
        %s648 = smul.u32 64, %s15
        %p649 = scmp.lt.s32.totalorder %s648, 255
        %s650 = scalar_select %p649, %s648, 255
        %s651 = smul.addr %s650, 8
        %s652 = scalar_lea.vmem %s3, %s651
      $region44: #{upsample_block_forward.7} parent=39 // pred_fallthru
        _
    $region40: #{upsample_block_forward.7} parent=5 // pred_fallthru
      _
  $region6: #{upsample_block_forward.7} parent=0 // loop_footer
    %s13 = sadd.s32 1, %s9
  $region7: #{upsample_block_forward.7} parent=0 // loop_footer_branch
    %8 = sbr.rel target = $region3
  $region8: #{upsample_block_forward.7} parent=0 // loop_exit
    _

// kernel: upsample_block_forward.5
$region0: #{upsample_block_forward.5}
  #allocation0 [shape = 'u32[]', space=smem, size = 0x4, offset = 0x4, fixed_abs, tag = 'smem constant byte address 0x4 - core index']
  #allocation1 [shape = 'u32[72,128]{1,0:T(1,128)}', space=vmem, size = 0x9000, scoped, tag = 'internal scratch']
  %s0 = inlined_call_operand.vmem [shape: f32[2,34,34,4], index: 0, kind: input, shape index: {}]
  %s1 = inlined_call_operand.vmem [shape: f32[9,4,8], index: 1, kind: input, shape index: {}]
  %s2 = inlined_call_operand.vmem [shape: f32[2,1024,8], index: 2, kind: output, shape index: {0}]
  %s3 = inlined_call_operand.vmem [shape: f32[2,1,8], index: 3, kind: output, shape index: {1}]
  %s4 = inlined_call_operand.vmem [shape: f32[2,1,8], index: 4, kind: output, shape index: {2}]
  %5 = xla_tuple %s2, %s3, %s4
  %s6 = sld [smem:[#allocation0]]
  $region57: #{upsample_block_forward.5} parent=0
    _
  %s8 = ssub.s32 1, %s6
  %s9 = scalar_select 0, %s8, %s6
  loop: start=0, step=1, limit=4
  $region2: #{upsample_block_forward.5} parent=0 // loop_pre_header
    _
  $region3: #{upsample_block_forward.5} parent=0 // loop_header
    %s11 = sphi 0, %s15
    %p12 = scmp.ge.s32.totalorder %s11, 4
    %s21 = sphi 0, %s23
    %s24 = sphi 0, %s21
    %s25 = sphi 0, %s24
    %s41 = sphi 0, %s25
    %s45 = sphi 0, %s45
    %s47 = sphi 0, %s45
    %s48 = sphi 0, %s47
    %s62 = sphi 0, %s48
    %s68 = sphi 0, %s70
    %s71 = sphi 0, %s68
    %s72 = sphi 0, %s71
    %s88 = sphi 0, %s72
    %s94 = sphi 0, %s96
    %s97 = sphi 0, %s94
    %s98 = sphi 0, %s97
    %s114 = sphi 0, %s98
    %s120 = sphi 0, %s122
    %s123 = sphi 0, %s120
    %s124 = sphi 0, %s123
    %s140 = sphi 0, %s124
  $region4: #{upsample_block_forward.5} parent=0 // loop_header_branch
    %14 = sbr.rel (%p12) target = $region8
  $region5: #{upsample_block_forward.5} parent=0 // loop_body
    %s16 = ssub.s32 %s11, 1
    %s17 = ssub.s32 %s11, 2
    %s18 = sadd.s32 %s11, 1
    %s19 = ssub.s32 %s11, %s18
    %p20 = scmp.eq.s32.totalorder %s19, 0
    %s22 = sadd.s32 %s21, 1
    %s23 = scalar_select %p20, %s21, %s22
    %p26 = pneg %p20
    %p27 = scmp.eq.s32.totalorder %s11, 1
    %p28 = por %p26, %p27
    %p29 = scmp.ne.s32.totalorder %s21, %s24
    %p30 = scmp.eq.s32.totalorder %s11, 0
    %p31 = por %p29, %p30
    %p32 = scmp.ne.s32.totalorder %s21, %s24
    %p33 = scmp.eq.s32.totalorder %s16, 1
    %p34 = por %p32, %p33
    %p35 = scmp.ne.s32.totalorder %s24, %s25
    %p36 = scmp.eq.s32.totalorder %s16, 0
    %p37 = por %p35, %p36
    %p38 = scmp.ne.s32.totalorder %s24, %s25
    %p39 = scmp.eq.s32.totalorder %s17, 1
    %p40 = por %p38, %p39
    %p42 = scmp.ne.s32.totalorder %s25, %s41
    %p43 = scmp.eq.s32.totalorder %s17, 0
    %p44 = por %p42, %p43
    %s46 = sadd.s32 %s45, 1
    %p49 = scmp.eq.s32.totalorder %s11, 1
    %p50 = scmp.ne.s32.totalorder %s45, %s47
    %p51 = scmp.eq.s32.totalorder %s11, 0
    %p52 = por %p50, %p51
    %p53 = scmp.ne.s32.totalorder %s45, %s47
    %p54 = scmp.eq.s32.totalorder %s16, 1
    %p55 = por %p53, %p54
    %p56 = scmp.ne.s32.totalorder %s47, %s48
    %p57 = scmp.eq.s32.totalorder %s16, 0
    %p58 = por %p56, %p57
    %p59 = scmp.ne.s32.totalorder %s47, %s48
    %p60 = scmp.eq.s32.totalorder %s17, 1
    %p61 = por %p59, %p60
    %p63 = scmp.ne.s32.totalorder %s48, %s62
    %p64 = scmp.eq.s32.totalorder %s17, 0
    %p65 = por %p63, %p64
    %s66 = ssub.s32 %s11, %s18
    %p67 = scmp.eq.s32.totalorder %s66, 0
    %s69 = sadd.s32 %s68, 1
    %s70 = scalar_select %p67, %s68, %s69
    %p73 = pneg %p67
    %p74 = scmp.eq.s32.totalorder %s11, 1
    %p75 = por %p73, %p74
    %p76 = scmp.ne.s32.totalorder %s68, %s71
    %p77 = scmp.eq.s32.totalorder %s11, 0
    %p78 = por %p76, %p77
    %p79 = scmp.ne.s32.totalorder %s68, %s71
    %p80 = scmp.eq.s32.totalorder %s16, 1
    %p81 = por %p79, %p80
    %p82 = scmp.ne.s32.totalorder %s71, %s72
    %p83 = scmp.eq.s32.totalorder %s16, 0
    %p84 = por %p82, %p83
    %p85 = scmp.ne.s32.totalorder %s71, %s72
    %p86 = scmp.eq.s32.totalorder %s17, 1
    %p87 = por %p85, %p86
    %p89 = scmp.ne.s32.totalorder %s72, %s88
    %p90 = scmp.eq.s32.totalorder %s17, 0
    %p91 = por %p89, %p90
    %s92 = ssub.s32 %s11, %s18
    %p93 = scmp.eq.s32.totalorder %s92, 0
    %s95 = sadd.s32 %s94, 1
    %s96 = scalar_select %p93, %s94, %s95
    %p99 = pneg %p93
    %p100 = scmp.eq.s32.totalorder %s11, 1
    %p101 = por %p99, %p100
    %p102 = scmp.ne.s32.totalorder %s94, %s97
    %p103 = scmp.eq.s32.totalorder %s11, 0
    %p104 = por %p102, %p103
    %p105 = scmp.ne.s32.totalorder %s94, %s97
    %p106 = scmp.eq.s32.totalorder %s16, 1
    %p107 = por %p105, %p106
    %p108 = scmp.ne.s32.totalorder %s97, %s98
    %p109 = scmp.eq.s32.totalorder %s16, 0
    %p110 = por %p108, %p109
    %p111 = scmp.ne.s32.totalorder %s97, %s98
    %p112 = scmp.eq.s32.totalorder %s17, 1
    %p113 = por %p111, %p112
    %p115 = scmp.ne.s32.totalorder %s98, %s114
    %p116 = scmp.eq.s32.totalorder %s17, 0
    %p117 = por %p115, %p116
    %s118 = ssub.s32 %s11, %s18
    %p119 = scmp.eq.s32.totalorder %s118, 0
    %s121 = sadd.s32 %s120, 1
    %s122 = scalar_select %p119, %s120, %s121
    %p125 = pneg %p119
    %p126 = scmp.eq.s32.totalorder %s11, 1
    %p127 = por %p125, %p126
    %p128 = scmp.ne.s32.totalorder %s120, %s123
    %p129 = scmp.eq.s32.totalorder %s11, 0
    %p130 = por %p128, %p129
    %p131 = scmp.ne.s32.totalorder %s120, %s123
    %p132 = scmp.eq.s32.totalorder %s16, 1
    %p133 = por %p131, %p132
    %p134 = scmp.ne.s32.totalorder %s123, %s124
    %p135 = scmp.eq.s32.totalorder %s16, 0
    %p136 = por %p134, %p135
    %p137 = scmp.ne.s32.totalorder %s123, %s124
    %p138 = scmp.eq.s32.totalorder %s17, 1
    %p139 = por %p137, %p138
    %p141 = scmp.ne.s32.totalorder %s124, %s140
    %p142 = scmp.eq.s32.totalorder %s17, 0
    %p143 = por %p141, %p142
    %p144 = scmp.le.s32.totalorder 1, %s11
    %p145 = scmp.lt.s32.totalorder %s11, 3
    %p146 = pnand %p144, %p145
    %p147 = pneg %p146
    // Predicated region
    $region9: #{upsample_block_forward.5} parent=5 // pred_check
      _
    $region10: #{upsample_block_forward.5} parent=5 // pred_check_branch
      %149 = sbr.rel (%p146) target = $region12
    $region11: #{upsample_block_forward.5} parent=5 // pred_region
      %s150 = ssub.s32 %s11, 1
      // Predicated region
      $region13: #{upsample_block_forward.5} parent=11 // pred_check
        %p151 = pneg %p58
      $region14: #{upsample_block_forward.5} parent=11 // pred_check_branch
        %153 = sbr.rel (%p151) target = $region16
      $region15: #{upsample_block_forward.5} parent=11 // pred_region
        _
      $region16: #{upsample_block_forward.5} parent=11 // pred_fallthru
        _
    $region12: #{upsample_block_forward.5} parent=5 // pred_fallthru
      _
    %p154 = scmp.lt.s32.totalorder %s11, 2
    // Predicated region
    $region17: #{upsample_block_forward.5} parent=5 // pred_check
      %p155 = pneg %p154
    $region18: #{upsample_block_forward.5} parent=5 // pred_check_branch
      %157 = sbr.rel (%p155) target = $region20
    $region19: #{upsample_block_forward.5} parent=5 // pred_region
      // Predicated region
      $region21: #{upsample_block_forward.5} parent=19 // pred_check
        %p158 = pneg %p31
      $region22: #{upsample_block_forward.5} parent=19 // pred_check_branch
        %160 = sbr.rel (%p158) target = $region24
      $region23: #{upsample_block_forward.5} parent=19 // pred_region
        %p161 = scmp.lt.s32.totalorder %s11, 1
        %s162 = scalar_select %p161, %s11, 1
        %s163 = smul.addr %s162, 170
        %s164 = smul.addr %s163, 8
        %s165 = scalar_lea.vmem %s0, %s164
      $region24: #{upsample_block_forward.5} parent=19 // pred_fallthru
        _
    $region20: #{upsample_block_forward.5} parent=5 // pred_fallthru
      _
    %p166 = scmp.le.s32.totalorder 1, %s11
    %p167 = scmp.lt.s32.totalorder %s11, 3
    %p168 = pnand %p166, %p167
    %p169 = pneg %p168
    // Predicated region
    $region25: #{upsample_block_forward.5} parent=5 // pred_check
      _
    $region26: #{upsample_block_forward.5} parent=5 // pred_check_branch
      %171 = sbr.rel (%p168) target = $region28
    $region27: #{upsample_block_forward.5} parent=5 // pred_region
      %s172 = ssub.s32 %s11, 1
      %p173 = scmp.lt.s32.totalorder %s16, 1
      %s174 = scalar_select %p173, %s16, 1
      %s175 = smul.addr %s174, 170
      %s176 = smul.addr %s175, 8
      %s177 = scalar_lea.vmem %s0, %s176
      %p178 = pneg %p37
      %p179 = pneg %p34
      %p180 = pneg %p58
      %p181 = pneg %p55
      %p182 = pneg %p84
      %p183 = pneg %p81
      %p184 = scmp.lt.s32.totalorder %s16, 1
      %s185 = scalar_select %p184, %s16, 1
      %s186 = smul.addr %s185, 128
      %s187 = smul.addr %s186, 8
      %s188 = scalar_lea.vmem %s2, %s187
      %p189 = pneg %p110
      %p190 = pneg %p107
      %p191 = scmp.lt.s32.totalorder %s16, 1
      %s192 = scalar_select %p191, %s16, 1
      %s193 = scalar_lea.vmem %s3, %s192
      %p194 = pneg %p136
      %p195 = pneg %p133
      %p196 = scmp.lt.s32.totalorder %s16, 1
      %s197 = scalar_select %p196, %s16, 1
      %s198 = scalar_lea.vmem %s4, %s197
      %p199 = scmp.lt.s32.totalorder %s16, 1
      %s200 = scalar_select %p199, %s16, 1
      %s201 = smul.addr %s200, 170
      %s202 = smul.addr %s201, 8
      %s203 = scalar_lea.vmem %s0, %s202
      %p204 = scmp.lt.s32.totalorder %s16, 1
      %s205 = scalar_select %p204, %s16, 1
      %s206 = smul.addr %s205, 128
      %s207 = smul.addr %s206, 8
      %s208 = scalar_lea.vmem %s2, %s207
      %p209 = scmp.lt.s32.totalorder %s16, 1
      %s210 = scalar_select %p209, %s16, 1
      %s211 = scalar_lea.vmem %s3, %s210
      %p212 = scmp.lt.s32.totalorder %s16, 1
      %s213 = scalar_select %p212, %s16, 1
      %s214 = scalar_lea.vmem %s4, %s213
      %v215 = vld [vmem:[%s203] sm:$0xff]
      %v216 = vld [vmem:[%s203 + $0x8] sm:$0xff]
      %v217 = vld [vmem:[%s203 + $0x10] sm:$0xff]
      %v218 = vld [vmem:[%s203 + $0x18] sm:$0xff]
      %v219 = vld [vmem:[%s203 + $0x28] sm:$0xff]
      %v220 = vld [vmem:[%s203 + $0x30] sm:$0xff]
      %v221 = vld [vmem:[%s203 + $0x38] sm:$0xff]
      %v222 = vld [vmem:[%s203 + $0x40] sm:$0xff]
      %v223 = vld [vmem:[%s203 + $0x50] sm:$0xff]
      %v224 = vld [vmem:[%s203 + $0x58] sm:$0xff]
      %v225 = vld [vmem:[%s203 + $0x60] sm:$0xff]
      %v226 = vld [vmem:[%s203 + $0x68] sm:$0xff]
      %v227 = vld [vmem:[%s203 + $0x78] sm:$0xff]
      %v228 = vld [vmem:[%s203 + $0x80] sm:$0xff]
      %v229 = vld [vmem:[%s203 + $0x88] sm:$0xff]
      %v230 = vld [vmem:[%s203 + $0x90] sm:$0xff]
      %v231 = vld [vmem:[%s203 + $0xa0] sm:$0xff]
      %v232 = vld [vmem:[%s203 + $0xa8] sm:$0xff]
      %v233 = vld [vmem:[%s203 + $0xb0] sm:$0xff]
      %v234 = vld [vmem:[%s203 + $0xb8] sm:$0xff]
      %v235 = vld [vmem:[%s203 + $0xc8] sm:$0xff]
      %v236 = vld [vmem:[%s203 + $0xd0] sm:$0xff]
      %v237 = vld [vmem:[%s203 + $0xd8] sm:$0xff]
      %v238 = vld [vmem:[%s203 + $0xe0] sm:$0xff]
      %v239 = vld [vmem:[%s203 + $0xf0] sm:$0xff]
      %v240 = vld [vmem:[%s203 + $0xf8] sm:$0xff]
      %v241 = vld [vmem:[%s203 + $0x100] sm:$0xff]
      %v242 = vld [vmem:[%s203 + $0x108] sm:$0xff]
      %v243 = vld [vmem:[%s203 + $0x118] sm:$0xff]
      %v244 = vld [vmem:[%s203 + $0x120] sm:$0xff]
      %v245 = vld [vmem:[%s203 + $0x128] sm:$0xff]
      %v246 = vld [vmem:[%s203 + $0x130] sm:$0xff]
      %v247 = vld [vmem:[%s203 + $0x140] sm:$0xff]
      %v248 = vld [vmem:[%s203 + $0x148] sm:$0xff]
      %v249 = vld [vmem:[%s203 + $0x150] sm:$0xff]
      %v250 = vld [vmem:[%s203 + $0x158] sm:$0xff]
      %v251 = vld [vmem:[%s203 + $0x168] sm:$0xff]
      %v252 = vld [vmem:[%s203 + $0x170] sm:$0xff]
      %v253 = vld [vmem:[%s203 + $0x178] sm:$0xff]
      %v254 = vld [vmem:[%s203 + $0x180] sm:$0xff]
      %v255 = vld [vmem:[%s203 + $0x190] sm:$0xff]
      %v256 = vld [vmem:[%s203 + $0x198] sm:$0xff]
      %v257 = vld [vmem:[%s203 + $0x1a0] sm:$0xff]
      %v258 = vld [vmem:[%s203 + $0x1a8] sm:$0xff]
      %v259 = vld [vmem:[%s203 + $0x1b8] sm:$0xff]
      %v260 = vld [vmem:[%s203 + $0x1c0] sm:$0xff]
      %v261 = vld [vmem:[%s203 + $0x1c8] sm:$0xff]
      %v262 = vld [vmem:[%s203 + $0x1d0] sm:$0xff]
      %v263 = vld [vmem:[%s203 + $0x1e0] sm:$0xff]
      %v264 = vld [vmem:[%s203 + $0x1e8] sm:$0xff]
      %v265 = vld [vmem:[%s203 + $0x1f0] sm:$0xff]
      %v266 = vld [vmem:[%s203 + $0x1f8] sm:$0xff]
      %v267 = vld [vmem:[%s203 + $0x208] sm:$0xff]
      %v268 = vld [vmem:[%s203 + $0x210] sm:$0xff]
      %v269 = vld [vmem:[%s203 + $0x218] sm:$0xff]
      %v270 = vld [vmem:[%s203 + $0x220] sm:$0xff]
      %v271 = vld [vmem:[%s203 + $0x230] sm:$0xff]
      %v272 = vld [vmem:[%s203 + $0x238] sm:$0xff]
      %v273 = vld [vmem:[%s203 + $0x240] sm:$0xff]
      %v274 = vld [vmem:[%s203 + $0x248] sm:$0xff]
      %v275 = vld [vmem:[%s203 + $0x258] sm:$0xff]
      %v276 = vld [vmem:[%s203 + $0x260] sm:$0xff]
      %v277 = vld [vmem:[%s203 + $0x268] sm:$0xff]
      %v278 = vld [vmem:[%s203 + $0x270] sm:$0xff]
      %v279 = vld [vmem:[%s203 + $0x280] sm:$0xff]
      %v280 = vld [vmem:[%s203 + $0x288] sm:$0xff]
      %v281 = vld [vmem:[%s203 + $0x290] sm:$0xff]
      %v282 = vld [vmem:[%s203 + $0x298] sm:$0xff]
      %v283 = vld [vmem:[%s203 + $0x2a8] sm:$0xff]
      %v284 = vld [vmem:[%s203 + $0x2b0] sm:$0xff]
      %v285 = vld [vmem:[%s203 + $0x2b8] sm:$0xff]
      %v286 = vld [vmem:[%s203 + $0x2c0] sm:$0xff]
      %v287 = vld [vmem:[%s203 + $0x2d0] sm:$0xff]
      %v288 = vld [vmem:[%s203 + $0x2d8] sm:$0xff]
      %v289 = vld [vmem:[%s203 + $0x2e0] sm:$0xff]
      %v290 = vld [vmem:[%s203 + $0x2e8] sm:$0xff]
      %v291 = vld [vmem:[%s203 + $0x2f8] sm:$0xff]
      %v292 = vld [vmem:[%s203 + $0x300] sm:$0xff]
      %v293 = vld [vmem:[%s203 + $0x308] sm:$0xff]
      %v294 = vld [vmem:[%s203 + $0x310] sm:$0xff]
      %v295 = vld [vmem:[%s203 + $0x320] sm:$0xff]
      %v296 = vld [vmem:[%s203 + $0x328] sm:$0xff]
      %v297 = vld [vmem:[%s203 + $0x330] sm:$0xff]
      %v298 = vld [vmem:[%s203 + $0x338] sm:$0xff]
      %v299 = vld [vmem:[%s203 + $0x348] sm:$0xff]
      %v300 = vld [vmem:[%s203 + $0x350] sm:$0xff]
      %v301 = vld [vmem:[%s203 + $0x358] sm:$0xff]
      %v302 = vld [vmem:[%s203 + $0x360] sm:$0xff]
      %v303 = vld [vmem:[%s203 + $0x370] sm:$0xff]
      %v304 = vld [vmem:[%s203 + $0x378] sm:$0xff]
      %v305 = vld [vmem:[%s203 + $0x380] sm:$0xff]
      %v306 = vld [vmem:[%s203 + $0x388] sm:$0xff]
      %v307 = vld [vmem:[%s203 + $0x398] sm:$0xff]
      %v308 = vld [vmem:[%s203 + $0x3a0] sm:$0xff]
      %v309 = vld [vmem:[%s203 + $0x3a8] sm:$0xff]
      %v310 = vld [vmem:[%s203 + $0x3b0] sm:$0xff]
      %v311 = vld [vmem:[%s203 + $0x3c0] sm:$0xff]
      %v312 = vld [vmem:[%s203 + $0x3c8] sm:$0xff]
      %v313 = vld [vmem:[%s203 + $0x3d0] sm:$0xff]
      %v314 = vld [vmem:[%s203 + $0x3d8] sm:$0xff]
      %v315 = vld [vmem:[%s203 + $0x3e8] sm:$0xff]
      %v316 = vld [vmem:[%s203 + $0x3f0] sm:$0xff]
      %v317 = vld [vmem:[%s203 + $0x3f8] sm:$0xff]
      %v318 = vld [vmem:[%s203 + $0x400] sm:$0xff]
      %v319 = vld [vmem:[%s203 + $0x410] sm:$0xff]
      %v320 = vld [vmem:[%s203 + $0x418] sm:$0xff]
      %v321 = vld [vmem:[%s203 + $0x420] sm:$0xff]
      %v322 = vld [vmem:[%s203 + $0x428] sm:$0xff]
      %v323 = vld [vmem:[%s203 + $0x438] sm:$0xff]
      %v324 = vld [vmem:[%s203 + $0x440] sm:$0xff]
      %v325 = vld [vmem:[%s203 + $0x448] sm:$0xff]
      %v326 = vld [vmem:[%s203 + $0x450] sm:$0xff]
      %v327 = vld [vmem:[%s203 + $0x460] sm:$0xff]
      %v328 = vld [vmem:[%s203 + $0x468] sm:$0xff]
      %v329 = vld [vmem:[%s203 + $0x470] sm:$0xff]
      %v330 = vld [vmem:[%s203 + $0x478] sm:$0xff]
      %v331 = vld [vmem:[%s203 + $0x488] sm:$0xff]
      %v332 = vld [vmem:[%s203 + $0x490] sm:$0xff]
      %v333 = vld [vmem:[%s203 + $0x498] sm:$0xff]
      %v334 = vld [vmem:[%s203 + $0x4a0] sm:$0xff]
      %v335 = vld [vmem:[%s203 + $0x4b0] sm:$0xff]
      %v336 = vld [vmem:[%s203 + $0x4b8] sm:$0xff]
      %v337 = vld [vmem:[%s203 + $0x4c0] sm:$0xff]
      %v338 = vld [vmem:[%s203 + $0x4c8] sm:$0xff]
      %v339 = vld [vmem:[%s203 + $0x4d8] sm:$0xff]
      %v340 = vld [vmem:[%s203 + $0x4e0] sm:$0xff]
      %v341 = vld [vmem:[%s203 + $0x4e8] sm:$0xff]
      %v342 = vld [vmem:[%s203 + $0x4f0] sm:$0xff]
      %v343 = vld [vmem:[%s1] sm:$0xf]
      %v344 = vld [vmem:[%s203 + $0x1] sm:$0xff]
      %v345 = vld [vmem:[%s203 + $0x9] sm:$0xff]
      %v346 = vld [vmem:[%s203 + $0x11] sm:$0xff]
      %v347 = vld [vmem:[%s203 + $0x19] sm:$0xff]
      %v348 = vld [vmem:[%s203 + $0x29] sm:$0xff]
      %v349 = vld [vmem:[%s203 + $0x31] sm:$0xff]
      %v350 = vld [vmem:[%s203 + $0x39] sm:$0xff]
      %v351 = vld [vmem:[%s203 + $0x41] sm:$0xff]
      %v352 = vld [vmem:[%s203 + $0x51] sm:$0xff]
      %v353 = vld [vmem:[%s203 + $0x59] sm:$0xff]
      %v354 = vld [vmem:[%s203 + $0x61] sm:$0xff]
      %v355 = vld [vmem:[%s203 + $0x69] sm:$0xff]
      %v356 = vld [vmem:[%s203 + $0x79] sm:$0xff]
      %v357 = vld [vmem:[%s203 + $0x81] sm:$0xff]
      %v358 = vld [vmem:[%s203 + $0x89] sm:$0xff]
      %v359 = vld [vmem:[%s203 + $0x91] sm:$0xff]
      %v360 = vld [vmem:[%s203 + $0xa1] sm:$0xff]
      %v361 = vld [vmem:[%s203 + $0xa9] sm:$0xff]
      %v362 = vld [vmem:[%s203 + $0xb1] sm:$0xff]
      %v363 = vld [vmem:[%s203 + $0xb9] sm:$0xff]
      %v364 = vld [vmem:[%s203 + $0xc9] sm:$0xff]
      %v365 = vld [vmem:[%s203 + $0xd1] sm:$0xff]
      %v366 = vld [vmem:[%s203 + $0xd9] sm:$0xff]
      %v367 = vld [vmem:[%s203 + $0xe1] sm:$0xff]
      %v368 = vld [vmem:[%s203 + $0xf1] sm:$0xff]
      %v369 = vld [vmem:[%s203 + $0xf9] sm:$0xff]
      %v370 = vld [vmem:[%s203 + $0x101] sm:$0xff]
      %v371 = vld [vmem:[%s203 + $0x109] sm:$0xff]
      %v372 = vld [vmem:[%s203 + $0x119] sm:$0xff]
      %v373 = vld [vmem:[%s203 + $0x121] sm:$0xff]
      %v374 = vld [vmem:[%s203 + $0x129] sm:$0xff]
      %v375 = vld [vmem:[%s203 + $0x131] sm:$0xff]
      %v376 = vld [vmem:[%s203 + $0x141] sm:$0xff]
      %v377 = vld [vmem:[%s203 + $0x149] sm:$0xff]
      %v378 = vld [vmem:[%s203 + $0x151] sm:$0xff]
      %v379 = vld [vmem:[%s203 + $0x159] sm:$0xff]
      %v380 = vld [vmem:[%s203 + $0x169] sm:$0xff]
      %v381 = vld [vmem:[%s203 + $0x171] sm:$0xff]
      %v382 = vld [vmem:[%s203 + $0x179] sm:$0xff]
      %v383 = vld [vmem:[%s203 + $0x181] sm:$0xff]
      %v384 = vld [vmem:[%s203 + $0x191] sm:$0xff]
      %v385 = vld [vmem:[%s203 + $0x199] sm:$0xff]
      %v386 = vld [vmem:[%s203 + $0x1a1] sm:$0xff]
      %v387 = vld [vmem:[%s203 + $0x1a9] sm:$0xff]
      %v388 = vld [vmem:[%s203 + $0x1b9] sm:$0xff]
      %v389 = vld [vmem:[%s203 + $0x1c1] sm:$0xff]
      %v390 = vld [vmem:[%s203 + $0x1c9] sm:$0xff]
      %v391 = vld [vmem:[%s203 + $0x1d1] sm:$0xff]
      %v392 = vld [vmem:[%s203 + $0x1e1] sm:$0xff]
      %v393 = vld [vmem:[%s203 + $0x1e9] sm:$0xff]
      %v394 = vld [vmem:[%s203 + $0x1f1] sm:$0xff]
      %v395 = vld [vmem:[%s203 + $0x1f9] sm:$0xff]
      %v396 = vld [vmem:[%s203 + $0x209] sm:$0xff]
      %v397 = vld [vmem:[%s203 + $0x211] sm:$0xff]
      %v398 = vld [vmem:[%s203 + $0x219] sm:$0xff]
      %v399 = vld [vmem:[%s203 + $0x221] sm:$0xff]
      %v400 = vld [vmem:[%s203 + $0x231] sm:$0xff]
      %v401 = vld [vmem:[%s203 + $0x239] sm:$0xff]
      %v402 = vld [vmem:[%s203 + $0x241] sm:$0xff]
      %v403 = vld [vmem:[%s203 + $0x249] sm:$0xff]
      %v404 = vld [vmem:[%s203 + $0x259] sm:$0xff]
      %v405 = vld [vmem:[%s203 + $0x261] sm:$0xff]
      %v406 = vld [vmem:[%s203 + $0x269] sm:$0xff]
      %v407 = vld [vmem:[%s203 + $0x271] sm:$0xff]
      %v408 = vld [vmem:[%s203 + $0x281] sm:$0xff]
      %v409 = vld [vmem:[%s203 + $0x289] sm:$0xff]
      %v410 = vld [vmem:[%s203 + $0x291] sm:$0xff]
      %v411 = vld [vmem:[%s203 + $0x299] sm:$0xff]
      %v412 = vld [vmem:[%s203 + $0x2a9] sm:$0xff]
      %v413 = vld [vmem:[%s203 + $0x2b1] sm:$0xff]
      %v414 = vld [vmem:[%s203 + $0x2b9] sm:$0xff]
      %v415 = vld [vmem:[%s203 + $0x2c1] sm:$0xff]
      %v416 = vld [vmem:[%s203 + $0x2d1] sm:$0xff]
      %v417 = vld [vmem:[%s203 + $0x2d9] sm:$0xff]
      %v418 = vld [vmem:[%s203 + $0x2e1] sm:$0xff]
      %v419 = vld [vmem:[%s203 + $0x2e9] sm:$0xff]
      %v420 = vld [vmem:[%s203 + $0x2f9] sm:$0xff]
      %v421 = vld [vmem:[%s203 + $0x301] sm:$0xff]
      %v422 = vld [vmem:[%s203 + $0x309] sm:$0xff]
      %v423 = vld [vmem:[%s203 + $0x311] sm:$0xff]
      %v424 = vld [vmem:[%s203 + $0x321] sm:$0xff]
      %v425 = vld [vmem:[%s203 + $0x329] sm:$0xff]
      %v426 = vld [vmem:[%s203 + $0x331] sm:$0xff]
      %v427 = vld [vmem:[%s203 + $0x339] sm:$0xff]
      %v428 = vld [vmem:[%s203 + $0x349] sm:$0xff]
      %v429 = vld [vmem:[%s203 + $0x351] sm:$0xff]
      %v430 = vld [vmem:[%s203 + $0x359] sm:$0xff]
      %v431 = vld [vmem:[%s203 + $0x361] sm:$0xff]
      %v432 = vld [vmem:[%s203 + $0x371] sm:$0xff]
      %v433 = vld [vmem:[%s203 + $0x379] sm:$0xff]
      %v434 = vld [vmem:[%s203 + $0x381] sm:$0xff]
      %v435 = vld [vmem:[%s203 + $0x389] sm:$0xff]
      %v436 = vld [vmem:[%s203 + $0x399] sm:$0xff]
      %v437 = vld [vmem:[%s203 + $0x3a1] sm:$0xff]
      %v438 = vld [vmem:[%s203 + $0x3a9] sm:$0xff]
      %v439 = vld [vmem:[%s203 + $0x3b1] sm:$0xff]
      %v440 = vld [vmem:[%s203 + $0x3c1] sm:$0xff]
      %v441 = vld [vmem:[%s203 + $0x3c9] sm:$0xff]
      %v442 = vld [vmem:[%s203 + $0x3d1] sm:$0xff]
      %v443 = vld [vmem:[%s203 + $0x3d9] sm:$0xff]
      %v444 = vld [vmem:[%s203 + $0x3e9] sm:$0xff]
      %v445 = vld [vmem:[%s203 + $0x3f1] sm:$0xff]
      %v446 = vld [vmem:[%s203 + $0x3f9] sm:$0xff]
      %v447 = vld [vmem:[%s203 + $0x401] sm:$0xff]
      %v448 = vld [vmem:[%s203 + $0x411] sm:$0xff]
      %v449 = vld [vmem:[%s203 + $0x419] sm:$0xff]
      %v450 = vld [vmem:[%s203 + $0x421] sm:$0xff]
      %v451 = vld [vmem:[%s203 + $0x429] sm:$0xff]
      %v452 = vld [vmem:[%s203 + $0x439] sm:$0xff]
      %v453 = vld [vmem:[%s203 + $0x441] sm:$0xff]
      %v454 = vld [vmem:[%s203 + $0x449] sm:$0xff]
      %v455 = vld [vmem:[%s203 + $0x451] sm:$0xff]
      %v456 = vld [vmem:[%s203 + $0x461] sm:$0xff]
      %v457 = vld [vmem:[%s203 + $0x469] sm:$0xff]
      %v458 = vld [vmem:[%s203 + $0x471] sm:$0xff]
      %v459 = vld [vmem:[%s203 + $0x479] sm:$0xff]
      %v460 = vld [vmem:[%s203 + $0x489] sm:$0xff]
      %v461 = vld [vmem:[%s203 + $0x491] sm:$0xff]
      %v462 = vld [vmem:[%s203 + $0x499] sm:$0xff]
      %v463 = vld [vmem:[%s203 + $0x4a1] sm:$0xff]
      %v464 = vld [vmem:[%s203 + $0x4b1] sm:$0xff]
      %v465 = vld [vmem:[%s203 + $0x4b9] sm:$0xff]
      %v466 = vld [vmem:[%s203 + $0x4c1] sm:$0xff]
      %v467 = vld [vmem:[%s203 + $0x4c9] sm:$0xff]
      %v468 = vld [vmem:[%s203 + $0x4d9] sm:$0xff]
      %v469 = vld [vmem:[%s203 + $0x4e1] sm:$0xff]
      %v470 = vld [vmem:[%s203 + $0x4e9] sm:$0xff]
      %v471 = vld [vmem:[%s203 + $0x4f1] sm:$0xff]
      %s472 = scalar_lea.vmem %s1, 4
      %v473 = vld [vmem:[%s472] sm:$0xf]
      %vm474 = vcmask 31744
      %v476 = vsel %vm474, %v344, 0
      %v479 = vsel %vm474, %v345, 0
      %v482 = vsel %vm474, %v346, 0
      %v485 = vsel %vm474, %v347, 0
      %v488 = vsel %vm474, %v348, 0
      %v491 = vsel %vm474, %v349, 0
      %v494 = vsel %vm474, %v350, 0
      %v497 = vsel %vm474, %v351, 0
      %v500 = vsel %vm474, %v352, 0
      %v503 = vsel %vm474, %v353, 0
      %v506 = vsel %vm474, %v354, 0
      %v509 = vsel %vm474, %v355, 0
      %v512 = vsel %vm474, %v356, 0
      %v515 = vsel %vm474, %v357, 0
      %v518 = vsel %vm474, %v358, 0
      %v521 = vsel %vm474, %v359, 0
      %v524 = vsel %vm474, %v360, 0
      %v527 = vsel %vm474, %v361, 0
      %v530 = vsel %vm474, %v362, 0
      %v533 = vsel %vm474, %v363, 0
      %v536 = vsel %vm474, %v364, 0
      %v539 = vsel %vm474, %v365, 0
      %v542 = vsel %vm474, %v366, 0
      %v545 = vsel %vm474, %v367, 0
      %v548 = vsel %vm474, %v368, 0
      %v551 = vsel %vm474, %v369, 0
      %v554 = vsel %vm474, %v370, 0
      %v557 = vsel %vm474, %v371, 0
      %v560 = vsel %vm474, %v372, 0
      %v563 = vsel %vm474, %v373, 0
      %v566 = vsel %vm474, %v374, 0
      %v569 = vsel %vm474, %v375, 0
      %v572 = vsel %vm474, %v376, 0
      %v575 = vsel %vm474, %v377, 0
      %v578 = vsel %vm474, %v378, 0
      %v581 = vsel %vm474, %v379, 0
      %v584 = vsel %vm474, %v380, 0
      %v587 = vsel %vm474, %v381, 0
      %v590 = vsel %vm474, %v382, 0
      %v593 = vsel %vm474, %v383, 0
      %v596 = vsel %vm474, %v384, 0
      %v599 = vsel %vm474, %v385, 0
      %v602 = vsel %vm474, %v386, 0
      %v605 = vsel %vm474, %v387, 0
      %v608 = vsel %vm474, %v388, 0
      %v611 = vsel %vm474, %v389, 0
      %v614 = vsel %vm474, %v390, 0
      %v617 = vsel %vm474, %v391, 0
      %v620 = vsel %vm474, %v392, 0
      %v623 = vsel %vm474, %v393, 0
      %v626 = vsel %vm474, %v394, 0
      %v629 = vsel %vm474, %v395, 0
      %v632 = vsel %vm474, %v396, 0
      %v635 = vsel %vm474, %v397, 0
      %v638 = vsel %vm474, %v398, 0
      %v641 = vsel %vm474, %v399, 0
      %v644 = vsel %vm474, %v400, 0
      %v647 = vsel %vm474, %v401, 0
      %v650 = vsel %vm474, %v402, 0
      %v653 = vsel %vm474, %v403, 0
      %v656 = vsel %vm474, %v404, 0
      %v659 = vsel %vm474, %v405, 0
      %v662 = vsel %vm474, %v406, 0
      %v665 = vsel %vm474, %v407, 0
      %v668 = vsel %vm474, %v408, 0
      %v671 = vsel %vm474, %v409, 0
      %v674 = vsel %vm474, %v410, 0
      %v677 = vsel %vm474, %v411, 0
      %v680 = vsel %vm474, %v412, 0
      %v683 = vsel %vm474, %v413, 0
      %v686 = vsel %vm474, %v414, 0
      %v689 = vsel %vm474, %v415, 0
      %v692 = vsel %vm474, %v416, 0
      %v695 = vsel %vm474, %v417, 0
      %v698 = vsel %vm474, %v418, 0
      %v701 = vsel %vm474, %v419, 0
      %v704 = vsel %vm474, %v420, 0
      %v707 = vsel %vm474, %v421, 0
      %v710 = vsel %vm474, %v422, 0
      %v713 = vsel %vm474, %v423, 0
      %v716 = vsel %vm474, %v424, 0
      %v719 = vsel %vm474, %v425, 0
      %v722 = vsel %vm474, %v426, 0
      %v725 = vsel %vm474, %v427, 0
      %v728 = vsel %vm474, %v428, 0
      %v731 = vsel %vm474, %v429, 0
      %v734 = vsel %vm474, %v430, 0
      %v737 = vsel %vm474, %v431, 0
      %v740 = vsel %vm474, %v432, 0
      %v743 = vsel %vm474, %v433, 0
      %v746 = vsel %vm474, %v434, 0
      %v749 = vsel %vm474, %v435, 0
      %v752 = vsel %vm474, %v436, 0
      %v755 = vsel %vm474, %v437, 0
      %v758 = vsel %vm474, %v438, 0
      %v761 = vsel %vm474, %v439, 0
      %v764 = vsel %vm474, %v440, 0
      %v767 = vsel %vm474, %v441, 0
      %v770 = vsel %vm474, %v442, 0
      %v773 = vsel %vm474, %v443, 0
      %v776 = vsel %vm474, %v444, 0
      %v779 = vsel %vm474, %v445, 0
      %v782 = vsel %vm474, %v446, 0
      %v785 = vsel %vm474, %v447, 0
      %v788 = vsel %vm474, %v448, 0
      %v791 = vsel %vm474, %v449, 0
      %v794 = vsel %vm474, %v450, 0
      %v797 = vsel %vm474, %v451, 0
      %v800 = vsel %vm474, %v452, 0
      %v803 = vsel %vm474, %v453, 0
      %v806 = vsel %vm474, %v454, 0
      %v809 = vsel %vm474, %v455, 0
      %v812 = vsel %vm474, %v456, 0
      %v815 = vsel %vm474, %v457, 0
      %v818 = vsel %vm474, %v458, 0
      %v821 = vsel %vm474, %v459, 0
      %v824 = vsel %vm474, %v460, 0
      %v827 = vsel %vm474, %v461, 0
      %v830 = vsel %vm474, %v462, 0
      %v833 = vsel %vm474, %v463, 0
      %v836 = vsel %vm474, %v464, 0
      %v839 = vsel %vm474, %v465, 0
      %v842 = vsel %vm474, %v466, 0
      %v845 = vsel %vm474, %v467, 0
      %v848 = vsel %vm474, %v468, 0
      %v851 = vsel %vm474, %v469, 0
      %v854 = vsel %vm474, %v470, 0
      %v857 = vsel %vm474, %v471, 0
      %vm859 = vcmask 1043456
      %v861 = vsel %vm859, %v473, 0
      %863 = vmatpush.msra.mxu0 0.0
      %864 = vmatpush.msra.mxu0 0.0
      %865 = vmatpush.msra.mxu0 0.0
      %866 = vmatpush.msra.mxu0 0.0
      %867 = vmatpush.msra.mxu0 0.0
      %868 = vmatpush.msra.mxu0 0.0
      %869 = vmatpush.msra.mxu0 0.0
      %870 = vmatpush.msra.mxu0 0.0
      %871 = vmatpush.msra.mxu0 0.0
      %872 = vmatpush.msra.mxu0 0.0
      %873 = vmatpush.msra.mxu0 0.0
      %874 = vmatpush.msra.mxu0 0.0
      %875 = vmatpush.msra.mxu0 0.0
      %876 = vmatpush.msra.mxu0 0.0
      %877 = vmatpush.msra.mxu0 0.0
      %878 = vmatpush.msra.mxu0 %v861
      %879 = vmatmul.f32.gmra.mxu0 %v476
      %v880 = vpop.f32.mrf.mxu0
      %v881 = vadd.f32 0.0, %v880
      %882 = vmatmul.f32.gmra.mxu0 %v479
      %v883 = vpop.f32.mrf.mxu0
      %v884 = vadd.f32 0.0, %v883
      %885 = vmatmul.f32.gmra.mxu0 %v482
      %v886 = vpop.f32.mrf.mxu0
      %v887 = vadd.f32 0.0, %v886
      %888 = vmatmul.f32.gmra.mxu0 %v485
      %v889 = vpop.f32.mrf.mxu0
      %v890 = vadd.f32 0.0, %v889
      %891 = vmatmul.f32.gmra.mxu0 %v488
      %v892 = vpop.f32.mrf.mxu0
      %v893 = vadd.f32 0.0, %v892
      %894 = vmatmul.f32.gmra.mxu0 %v491
      %v895 = vpop.f32.mrf.mxu0
      %v896 = vadd.f32 0.0, %v895
      %897 = vmatmul.f32.gmra.mxu0 %v494
      %v898 = vpop.f32.mrf.mxu0
      %v899 = vadd.f32 0.0, %v898
      %900 = vmatmul.f32.gmra.mxu0 %v497
      %v901 = vpop.f32.mrf.mxu0
      %v902 = vadd.f32 0.0, %v901
      %903 = vmatmul.f32.gmra.mxu0 %v500
      %v904 = vpop.f32.mrf.mxu0
      %v905 = vadd.f32 0.0, %v904
      %906 = vmatmul.f32.gmra.mxu0 %v503
      %v907 = vpop.f32.mrf.mxu0
      %v908 = vadd.f32 0.0, %v907
      %909 = vmatmul.f32.gmra.mxu0 %v506
      %v910 = vpop.f32.mrf.mxu0
      %v911 = vadd.f32 0.0, %v910
      %912 = vmatmul.f32.gmra.mxu0 %v509
      %v913 = vpop.f32.mrf.mxu0
      %v914 = vadd.f32 0.0, %v913
      %915 = vmatmul.f32.gmra.mxu0 %v512
      %v916 = vpop.f32.mrf.mxu0
      %v917 = vadd.f32 0.0, %v916
      %918 = vmatmul.f32.gmra.mxu0 %v515
      %v919 = vpop.f32.mrf.mxu0
      %v920 = vadd.f32 0.0, %v919
      %921 = vmatmul.f32.gmra.mxu0 %v518
      %v922 = vpop.f32.mrf.mxu0
      %v923 = vadd.f32 0.0, %v922
      %924 = vmatmul.f32.gmra.mxu0 %v521
      %v925 = vpop.f32.mrf.mxu0
      %v926 = vadd.f32 0.0, %v925
      %927 = vmatmul.f32.gmra.mxu0 %v524
      %v928 = vpop.f32.mrf.mxu0
      %v929 = vadd.f32 0.0, %v928
      %930 = vmatmul.f32.gmra.mxu0 %v527
      %v931 = vpop.f32.mrf.mxu0
      %v932 = vadd.f32 0.0, %v931
      %933 = vmatmul.f32.gmra.mxu0 %v530
      %v934 = vpop.f32.mrf.mxu0
      %v935 = vadd.f32 0.0, %v934
      %936 = vmatmul.f32.gmra.mxu0 %v533
      %v937 = vpop.f32.mrf.mxu0
      %v938 = vadd.f32 0.0, %v937
      %939 = vmatmul.f32.gmra.mxu0 %v536
      %v940 = vpop.f32.mrf.mxu0
      %v941 = vadd.f32 0.0, %v940
      %942 = vmatmul.f32.gmra.mxu0 %v539
      %v943 = vpop.f32.mrf.mxu0
      %v944 = vadd.f32 0.0, %v943
      %945 = vmatmul.f32.gmra.mxu0 %v542
      %v946 = vpop.f32.mrf.mxu0
      %v947 = vadd.f32 0.0, %v946
      %948 = vmatmul.f32.gmra.mxu0 %v545
      %v949 = vpop.f32.mrf.mxu0
      %v950 = vadd.f32 0.0, %v949
      %951 = vmatmul.f32.gmra.mxu0 %v548
      %v952 = vpop.f32.mrf.mxu0
      %v953 = vadd.f32 0.0, %v952
      %954 = vmatmul.f32.gmra.mxu0 %v551
      %v955 = vpop.f32.mrf.mxu0
      %v956 = vadd.f32 0.0, %v955
      %957 = vmatmul.f32.gmra.mxu0 %v554
      %v958 = vpop.f32.mrf.mxu0
      %v959 = vadd.f32 0.0, %v958
      %960 = vmatmul.f32.gmra.mxu0 %v557
      %v961 = vpop.f32.mrf.mxu0
      %v962 = vadd.f32 0.0, %v961
      %963 = vmatmul.f32.gmra.mxu0 %v560
      %v964 = vpop.f32.mrf.mxu0
      %v965 = vadd.f32 0.0, %v964
      %966 = vmatmul.f32.gmra.mxu0 %v563
      %v967 = vpop.f32.mrf.mxu0
      %v968 = vadd.f32 0.0, %v967
      %969 = vmatmul.f32.gmra.mxu0 %v566
      %v970 = vpop.f32.mrf.mxu0
      %v971 = vadd.f32 0.0, %v970
      %972 = vmatmul.f32.gmra.mxu0 %v569
      %v973 = vpop.f32.mrf.mxu0
      %v974 = vadd.f32 0.0, %v973
      %975 = vmatmul.f32.gmra.mxu0 %v572
      %v976 = vpop.f32.mrf.mxu0
      %v977 = vadd.f32 0.0, %v976
      %978 = vmatmul.f32.gmra.mxu0 %v575
      %v979 = vpop.f32.mrf.mxu0
      %v980 = vadd.f32 0.0, %v979
      %981 = vmatmul.f32.gmra.mxu0 %v578
      %v982 = vpop.f32.mrf.mxu0
      %v983 = vadd.f32 0.0, %v982
      %984 = vmatmul.f32.gmra.mxu0 %v581
      %v985 = vpop.f32.mrf.mxu0
      %v986 = vadd.f32 0.0, %v985
      %987 = vmatmul.f32.gmra.mxu0 %v584
      %v988 = vpop.f32.mrf.mxu0
      %v989 = vadd.f32 0.0, %v988
      %990 = vmatmul.f32.gmra.mxu0 %v587
      %v991 = vpop.f32.mrf.mxu0
      %v992 = vadd.f32 0.0, %v991
      %993 = vmatmul.f32.gmra.mxu0 %v590
      %v994 = vpop.f32.mrf.mxu0
      %v995 = vadd.f32 0.0, %v994
      %996 = vmatmul.f32.gmra.mxu0 %v593
      %v997 = vpop.f32.mrf.mxu0
      %v998 = vadd.f32 0.0, %v997
      %999 = vmatmul.f32.gmra.mxu0 %v596
      %v1000 = vpop.f32.mrf.mxu0
      %v1001 = vadd.f32 0.0, %v1000
      %1002 = vmatmul.f32.gmra.mxu0 %v599
      %v1003 = vpop.f32.mrf.mxu0
      %v1004 = vadd.f32 0.0, %v1003
      %1005 = vmatmul.f32.gmra.mxu0 %v602
      %v1006 = vpop.f32.mrf.mxu0
      %v1007 = vadd.f32 0.0, %v1006
      %1008 = vmatmul.f32.gmra.mxu0 %v605
      %v1009 = vpop.f32.mrf.mxu0
      %v1010 = vadd.f32 0.0, %v1009
      %1011 = vmatmul.f32.gmra.mxu0 %v608
      %v1012 = vpop.f32.mrf.mxu0
      %v1013 = vadd.f32 0.0, %v1012
      %1014 = vmatmul.f32.gmra.mxu0 %v611
      %v1015 = vpop.f32.mrf.mxu0
      %v1016 = vadd.f32 0.0, %v1015
      %1017 = vmatmul.f32.gmra.mxu0 %v614
      %v1018 = vpop.f32.mrf.mxu0
      %v1019 = vadd.f32 0.0, %v1018
      %1020 = vmatmul.f32.gmra.mxu0 %v617
      %v1021 = vpop.f32.mrf.mxu0
      %v1022 = vadd.f32 0.0, %v1021
      %1023 = vmatmul.f32.gmra.mxu0 %v620
      %v1024 = vpop.f32.mrf.mxu0
      %v1025 = vadd.f32 0.0, %v1024
      %1026 = vmatmul.f32.gmra.mxu0 %v623
      %v1027 = vpop.f32.mrf.mxu0
      %v1028 = vadd.f32 0.0, %v1027
      %1029 = vmatmul.f32.gmra.mxu0 %v626
      %v1030 = vpop.f32.mrf.mxu0
      %v1031 = vadd.f32 0.0, %v1030
      %1032 = vmatmul.f32.gmra.mxu0 %v629
      %v1033 = vpop.f32.mrf.mxu0
      %v1034 = vadd.f32 0.0, %v1033
      %1035 = vmatmul.f32.gmra.mxu0 %v632
      %v1036 = vpop.f32.mrf.mxu0
      %v1037 = vadd.f32 0.0, %v1036
      %1038 = vmatmul.f32.gmra.mxu0 %v635
      %v1039 = vpop.f32.mrf.mxu0
      %v1040 = vadd.f32 0.0, %v1039
      %1041 = vmatmul.f32.gmra.mxu0 %v638
      %v1042 = vpop.f32.mrf.mxu0
      %v1043 = vadd.f32 0.0, %v1042
      %1044 = vmatmul.f32.gmra.mxu0 %v641
      %v1045 = vpop.f32.mrf.mxu0
      %v1046 = vadd.f32 0.0, %v1045
      %1047 = vmatmul.f32.gmra.mxu0 %v644
      %v1048 = vpop.f32.mrf.mxu0
      %v1049 = vadd.f32 0.0, %v1048
      %1050 = vmatmul.f32.gmra.mxu0 %v647
      %v1051 = vpop.f32.mrf.mxu0
      %v1052 = vadd.f32 0.0, %v1051
      %1053 = vmatmul.f32.gmra.mxu0 %v650
      %v1054 = vpop.f32.mrf.mxu0
      %v1055 = vadd.f32 0.0, %v1054
      %1056 = vmatmul.f32.gmra.mxu0 %v653
      %v1057 = vpop.f32.mrf.mxu0
      %v1058 = vadd.f32 0.0, %v1057
      %1059 = vmatmul.f32.gmra.mxu0 %v656
      %v1060 = vpop.f32.mrf.mxu0
      %v1061 = vadd.f32 0.0, %v1060
      %1062 = vmatmul.f32.gmra.mxu0 %v659
      %v1063 = vpop.f32.mrf.mxu0
      %v1064 = vadd.f32 0.0, %v1063
      %1065 = vmatmul.f32.gmra.mxu0 %v662
      %v1066 = vpop.f32.mrf.mxu0
      %v1067 = vadd.f32 0.0, %v1066
      %1068 = vmatmul.f32.gmra.mxu0 %v665
      %v1069 = vpop.f32.mrf.mxu0
      %v1070 = vadd.f32 0.0, %v1069
      %1071 = vmatmul.f32.gmra.mxu0 %v668
      %v1072 = vpop.f32.mrf.mxu0
      %v1073 = vadd.f32 0.0, %v1072
      %1074 = vmatmul.f32.gmra.mxu0 %v671
      %v1075 = vpop.f32.mrf.mxu0
      %v1076 = vadd.f32 0.0, %v1075
      %1077 = vmatmul.f32.gmra.mxu0 %v674
      %v1078 = vpop.f32.mrf.mxu0
      %v1079 = vadd.f32 0.0, %v1078
      %1080 = vmatmul.f32.gmra.mxu0 %v677
      %v1081 = vpop.f32.mrf.mxu0
      %v1082 = vadd.f32 0.0, %v1081
      %1083 = vmatmul.f32.gmra.mxu0 %v680
      %v1084 = vpop.f32.mrf.mxu0
      %v1085 = vadd.f32 0.0, %v1084
      %1086 = vmatmul.f32.gmra.mxu0 %v683
      %v1087 = vpop.f32.mrf.mxu0
      %v1088 = vadd.f32 0.0, %v1087
      %1089 = vmatmul.f32.gmra.mxu0 %v686
      %v1090 = vpop.f32.mrf.mxu0
      %v1091 = vadd.f32 0.0, %v1090
      %1092 = vmatmul.f32.gmra.mxu0 %v689
      %v1093 = vpop.f32.mrf.mxu0
      %v1094 = vadd.f32 0.0, %v1093
      %1095 = vmatmul.f32.gmra.mxu0 %v692
      %v1096 = vpop.f32.mrf.mxu0
      %v1097 = vadd.f32 0.0, %v1096
      %1098 = vmatmul.f32.gmra.mxu0 %v695
      %v1099 = vpop.f32.mrf.mxu0
      %v1100 = vadd.f32 0.0, %v1099
      %1101 = vmatmul.f32.gmra.mxu0 %v698
      %v1102 = vpop.f32.mrf.mxu0
      %v1103 = vadd.f32 0.0, %v1102
      %1104 = vmatmul.f32.gmra.mxu0 %v701
      %v1105 = vpop.f32.mrf.mxu0
      %v1106 = vadd.f32 0.0, %v1105
      %1107 = vmatmul.f32.gmra.mxu0 %v704
      %v1108 = vpop.f32.mrf.mxu0
      %v1109 = vadd.f32 0.0, %v1108
      %1110 = vmatmul.f32.gmra.mxu0 %v707
      %v1111 = vpop.f32.mrf.mxu0
      %v1112 = vadd.f32 0.0, %v1111
      %1113 = vmatmul.f32.gmra.mxu0 %v710
      %v1114 = vpop.f32.mrf.mxu0
      %v1115 = vadd.f32 0.0, %v1114
      %1116 = vmatmul.f32.gmra.mxu0 %v713
      %v1117 = vpop.f32.mrf.mxu0
      %v1118 = vadd.f32 0.0, %v1117
      %1119 = vmatmul.f32.gmra.mxu0 %v716
      %v1120 = vpop.f32.mrf.mxu0
      %v1121 = vadd.f32 0.0, %v1120
      %1122 = vmatmul.f32.gmra.mxu0 %v719
      %v1123 = vpop.f32.mrf.mxu0
      %v1124 = vadd.f32 0.0, %v1123
      %1125 = vmatmul.f32.gmra.mxu0 %v722
      %v1126 = vpop.f32.mrf.mxu0
      %v1127 = vadd.f32 0.0, %v1126
      %1128 = vmatmul.f32.gmra.mxu0 %v725
      %v1129 = vpop.f32.mrf.mxu0
      %v1130 = vadd.f32 0.0, %v1129
      %1131 = vmatmul.f32.gmra.mxu0 %v728
      %v1132 = vpop.f32.mrf.mxu0
      %v1133 = vadd.f32 0.0, %v1132
      %1134 = vmatmul.f32.gmra.mxu0 %v731
      %v1135 = vpop.f32.mrf.mxu0
      %v1136 = vadd.f32 0.0, %v1135
      %1137 = vmatmul.f32.gmra.mxu0 %v734
      %v1138 = vpop.f32.mrf.mxu0
      %v1139 = vadd.f32 0.0, %v1138
      %1140 = vmatmul.f32.gmra.mxu0 %v737
      %v1141 = vpop.f32.mrf.mxu0
      %v1142 = vadd.f32 0.0, %v1141
      %1143 = vmatmul.f32.gmra.mxu0 %v740
      %v1144 = vpop.f32.mrf.mxu0
      %v1145 = vadd.f32 0.0, %v1144
      %1146 = vmatmul.f32.gmra.mxu0 %v743
      %v1147 = vpop.f32.mrf.mxu0
      %v1148 = vadd.f32 0.0, %v1147
      %1149 = vmatmul.f32.gmra.mxu0 %v746
      %v1150 = vpop.f32.mrf.mxu0
      %v1151 = vadd.f32 0.0, %v1150
      %1152 = vmatmul.f32.gmra.mxu0 %v749
      %v1153 = vpop.f32.mrf.mxu0
      %v1154 = vadd.f32 0.0, %v1153
      %1155 = vmatmul.f32.gmra.mxu0 %v752
      %v1156 = vpop.f32.mrf.mxu0
      %v1157 = vadd.f32 0.0, %v1156
      %1158 = vmatmul.f32.gmra.mxu0 %v755
      %v1159 = vpop.f32.mrf.mxu0
      %v1160 = vadd.f32 0.0, %v1159
      %1161 = vmatmul.f32.gmra.mxu0 %v758
      %v1162 = vpop.f32.mrf.mxu0
      %v1163 = vadd.f32 0.0, %v1162
      %1164 = vmatmul.f32.gmra.mxu0 %v761
      %v1165 = vpop.f32.mrf.mxu0
      %v1166 = vadd.f32 0.0, %v1165
      %1167 = vmatmul.f32.gmra.mxu0 %v764
      %v1168 = vpop.f32.mrf.mxu0
      %v1169 = vadd.f32 0.0, %v1168
      %1170 = vmatmul.f32.gmra.mxu0 %v767
      %v1171 = vpop.f32.mrf.mxu0
      %v1172 = vadd.f32 0.0, %v1171
      %1173 = vmatmul.f32.gmra.mxu0 %v770
      %v1174 = vpop.f32.mrf.mxu0
      %v1175 = vadd.f32 0.0, %v1174
      %1176 = vmatmul.f32.gmra.mxu0 %v773
      %v1177 = vpop.f32.mrf.mxu0
      %v1178 = vadd.f32 0.0, %v1177
      %1179 = vmatmul.f32.gmra.mxu0 %v776
      %v1180 = vpop.f32.mrf.mxu0
      %v1181 = vadd.f32 0.0, %v1180
      %1182 = vmatmul.f32.gmra.mxu0 %v779
      %v1183 = vpop.f32.mrf.mxu0
      %v1184 = vadd.f32 0.0, %v1183
      %1185 = vmatmul.f32.gmra.mxu0 %v782
      %v1186 = vpop.f32.mrf.mxu0
      %v1187 = vadd.f32 0.0, %v1186
      %1188 = vmatmul.f32.gmra.mxu0 %v785
      %v1189 = vpop.f32.mrf.mxu0
      %v1190 = vadd.f32 0.0, %v1189
      %1191 = vmatmul.f32.gmra.mxu0 %v788
      %v1192 = vpop.f32.mrf.mxu0
      %v1193 = vadd.f32 0.0, %v1192
      %1194 = vmatmul.f32.gmra.mxu0 %v791
      %v1195 = vpop.f32.mrf.mxu0
      %v1196 = vadd.f32 0.0, %v1195
      %1197 = vmatmul.f32.gmra.mxu0 %v794
      %v1198 = vpop.f32.mrf.mxu0
      %v1199 = vadd.f32 0.0, %v1198
      %1200 = vmatmul.f32.gmra.mxu0 %v797
      %v1201 = vpop.f32.mrf.mxu0
      %v1202 = vadd.f32 0.0, %v1201
      %1203 = vmatmul.f32.gmra.mxu0 %v800
      %v1204 = vpop.f32.mrf.mxu0
      %v1205 = vadd.f32 0.0, %v1204
      %1206 = vmatmul.f32.gmra.mxu0 %v803
      %v1207 = vpop.f32.mrf.mxu0
      %v1208 = vadd.f32 0.0, %v1207
      %1209 = vmatmul.f32.gmra.mxu0 %v806
      %v1210 = vpop.f32.mrf.mxu0
      %v1211 = vadd.f32 0.0, %v1210
      %1212 = vmatmul.f32.gmra.mxu0 %v809
      %v1213 = vpop.f32.mrf.mxu0
      %v1214 = vadd.f32 0.0, %v1213
      %1215 = vmatmul.f32.gmra.mxu0 %v812
      %v1216 = vpop.f32.mrf.mxu0
      %v1217 = vadd.f32 0.0, %v1216
      %1218 = vmatmul.f32.gmra.mxu0 %v815
      %v1219 = vpop.f32.mrf.mxu0
      %v1220 = vadd.f32 0.0, %v1219
      %1221 = vmatmul.f32.gmra.mxu0 %v818
      %v1222 = vpop.f32.mrf.mxu0
      %v1223 = vadd.f32 0.0, %v1222
      %1224 = vmatmul.f32.gmra.mxu0 %v821
      %v1225 = vpop.f32.mrf.mxu0
      %v1226 = vadd.f32 0.0, %v1225
      %1227 = vmatmul.f32.gmra.mxu0 %v824
      %v1228 = vpop.f32.mrf.mxu0
      %v1229 = vadd.f32 0.0, %v1228
      %1230 = vmatmul.f32.gmra.mxu0 %v827
      %v1231 = vpop.f32.mrf.mxu0
      %v1232 = vadd.f32 0.0, %v1231
      %1233 = vmatmul.f32.gmra.mxu0 %v830
      %v1234 = vpop.f32.mrf.mxu0
      %v1235 = vadd.f32 0.0, %v1234
      %1236 = vmatmul.f32.gmra.mxu0 %v833
      %v1237 = vpop.f32.mrf.mxu0
      %v1238 = vadd.f32 0.0, %v1237
      %1239 = vmatmul.f32.gmra.mxu0 %v836
      %v1240 = vpop.f32.mrf.mxu0
      %v1241 = vadd.f32 0.0, %v1240
      %1242 = vmatmul.f32.gmra.mxu0 %v839
      %v1243 = vpop.f32.mrf.mxu0
      %v1244 = vadd.f32 0.0, %v1243
      %1245 = vmatmul.f32.gmra.mxu0 %v842
      %v1246 = vpop.f32.mrf.mxu0
      %v1247 = vadd.f32 0.0, %v1246
      %1248 = vmatmul.f32.gmra.mxu0 %v845
      %v1249 = vpop.f32.mrf.mxu0
      %v1250 = vadd.f32 0.0, %v1249
      %1251 = vmatmul.f32.gmra.mxu0 %v848
      %v1252 = vpop.f32.mrf.mxu0
      %v1253 = vadd.f32 0.0, %v1252
      %1254 = vmatmul.f32.gmra.mxu0 %v851
      %v1255 = vpop.f32.mrf.mxu0
      %v1256 = vadd.f32 0.0, %v1255
      %1257 = vmatmul.f32.gmra.mxu0 %v854
      %v1258 = vpop.f32.mrf.mxu0
      %v1259 = vadd.f32 0.0, %v1258
      %1260 = vmatmul.f32.gmra.mxu0 %v857
      %v1261 = vpop.f32.mrf.mxu0
      %v1262 = vadd.f32 0.0, %v1261
      %1263 = vdwg.mxu0
      %v1265 = vsel %vm474, %v215, 0
      %v1268 = vsel %vm474, %v216, 0
      %v1271 = vsel %vm474, %v217, 0
      %v1274 = vsel %vm474, %v218, 0
      %v1277 = vsel %vm474, %v219, 0
      %v1280 = vsel %vm474, %v220, 0
      %v1283 = vsel %vm474, %v221, 0
      %v1286 = vsel %vm474, %v222, 0
      %v1289 = vsel %vm474, %v223, 0
      %v1292 = vsel %vm474, %v224, 0
      %v1295 = vsel %vm474, %v225, 0
      %v1298 = vsel %vm474, %v226, 0
      %v1301 = vsel %vm474, %v227, 0
      %v1304 = vsel %vm474, %v228, 0
      %v1307 = vsel %vm474, %v229, 0
      %v1310 = vsel %vm474, %v230, 0
      %v1313 = vsel %vm474, %v231, 0
      %v1316 = vsel %vm474, %v232, 0
      %v1319 = vsel %vm474, %v233, 0
      %v1322 = vsel %vm474, %v234, 0
      %v1325 = vsel %vm474, %v235, 0
      %v1328 = vsel %vm474, %v236, 0
      %v1331 = vsel %vm474, %v237, 0
      %v1334 = vsel %vm474, %v238, 0
      %v1337 = vsel %vm474, %v239, 0
      %v1340 = vsel %vm474, %v240, 0
      %v1343 = vsel %vm474, %v241, 0
      %v1346 = vsel %vm474, %v242, 0
      %v1349 = vsel %vm474, %v243, 0
      %v1352 = vsel %vm474, %v244, 0
      %v1355 = vsel %vm474, %v245, 0
      %v1358 = vsel %vm474, %v246, 0
      %v1361 = vsel %vm474, %v247, 0
      %v1364 = vsel %vm474, %v248, 0
      %v1367 = vsel %vm474, %v249, 0
      %v1370 = vsel %vm474, %v250, 0
      %v1373 = vsel %vm474, %v251, 0
      %v1376 = vsel %vm474, %v252, 0
      %v1379 = vsel %vm474, %v253, 0
      %v1382 = vsel %vm474, %v254, 0
      %v1385 = vsel %vm474, %v255, 0
      %v1388 = vsel %vm474, %v256, 0
      %v1391 = vsel %vm474, %v257, 0
      %v1394 = vsel %vm474, %v258, 0
      %v1397 = vsel %vm474, %v259, 0
      %v1400 = vsel %vm474, %v260, 0
      %v1403 = vsel %vm474, %v261, 0
      %v1406 = vsel %vm474, %v262, 0
      %v1409 = vsel %vm474, %v263, 0
      %v1412 = vsel %vm474, %v264, 0
      %v1415 = vsel %vm474, %v265, 0
      %v1418 = vsel %vm474, %v266, 0
      %v1421 = vsel %vm474, %v267, 0
      %v1424 = vsel %vm474, %v268, 0
      %v1427 = vsel %vm474, %v269, 0
      %v1430 = vsel %vm474, %v270, 0
      %v1433 = vsel %vm474, %v271, 0
      %v1436 = vsel %vm474, %v272, 0
      %v1439 = vsel %vm474, %v273, 0
      %v1442 = vsel %vm474, %v274, 0
      %v1445 = vsel %vm474, %v275, 0
      %v1448 = vsel %vm474, %v276, 0
      %v1451 = vsel %vm474, %v277, 0
      %v1454 = vsel %vm474, %v278, 0
      %v1457 = vsel %vm474, %v279, 0
      %v1460 = vsel %vm474, %v280, 0
      %v1463 = vsel %vm474, %v281, 0
      %v1466 = vsel %vm474, %v282, 0
      %v1469 = vsel %vm474, %v283, 0
      %v1472 = vsel %vm474, %v284, 0
      %v1475 = vsel %vm474, %v285, 0
      %v1478 = vsel %vm474, %v286, 0
      %v1481 = vsel %vm474, %v287, 0
      %v1484 = vsel %vm474, %v288, 0
      %v1487 = vsel %vm474, %v289, 0
      %v1490 = vsel %vm474, %v290, 0
      %v1493 = vsel %vm474, %v291, 0
      %v1496 = vsel %vm474, %v292, 0
      %v1499 = vsel %vm474, %v293, 0
      %v1502 = vsel %vm474, %v294, 0
      %v1505 = vsel %vm474, %v295, 0
      %v1508 = vsel %vm474, %v296, 0
      %v1511 = vsel %vm474, %v297, 0
      %v1514 = vsel %vm474, %v298, 0
      %v1517 = vsel %vm474, %v299, 0
      %v1520 = vsel %vm474, %v300, 0
      %v1523 = vsel %vm474, %v301, 0
      %v1526 = vsel %vm474, %v302, 0
      %v1529 = vsel %vm474, %v303, 0
      %v1532 = vsel %vm474, %v304, 0
      %v1535 = vsel %vm474, %v305, 0
      %v1538 = vsel %vm474, %v306, 0
      %v1541 = vsel %vm474, %v307, 0
      %v1544 = vsel %vm474, %v308, 0
      %v1547 = vsel %vm474, %v309, 0
      %v1550 = vsel %vm474, %v310, 0
      %v1553 = vsel %vm474, %v311, 0
      %v1556 = vsel %vm474, %v312, 0
      %v1559 = vsel %vm474, %v313, 0
      %v1562 = vsel %vm474, %v314, 0
      %v1565 = vsel %vm474, %v315, 0
      %v1568 = vsel %vm474, %v316, 0
      %v1571 = vsel %vm474, %v317, 0
      %v1574 = vsel %vm474, %v318, 0
      %v1577 = vsel %vm474, %v319, 0
      %v1580 = vsel %vm474, %v320, 0
      %v1583 = vsel %vm474, %v321, 0
      %v1586 = vsel %vm474, %v322, 0
      %v1589 = vsel %vm474, %v323, 0
      %v1592 = vsel %vm474, %v324, 0
      %v1595 = vsel %vm474, %v325, 0
      %v1598 = vsel %vm474, %v326, 0
      %v1601 = vsel %vm474, %v327, 0
      %v1604 = vsel %vm474, %v328, 0
      %v1607 = vsel %vm474, %v329, 0
      %v1610 = vsel %vm474, %v330, 0
      %v1613 = vsel %vm474, %v331, 0
      %v1616 = vsel %vm474, %v332, 0
      %v1619 = vsel %vm474, %v333, 0
      %v1622 = vsel %vm474, %v334, 0
      %v1625 = vsel %vm474, %v335, 0
      %v1628 = vsel %vm474, %v336, 0
      %v1631 = vsel %vm474, %v337, 0
      %v1634 = vsel %vm474, %v338, 0
      %v1637 = vsel %vm474, %v339, 0
      %v1640 = vsel %vm474, %v340, 0
      %v1643 = vsel %vm474, %v341, 0
      %v1646 = vsel %vm474, %v342, 0
      %v1649 = vsel %vm859, %v343, 0
      %1651 = vmatpush.msra.mxu0 0.0
      %1652 = vmatpush.msra.mxu0 0.0
      %1653 = vmatpush.msra.mxu0 0.0
      %1654 = vmatpush.msra.mxu0 0.0
      %1655 = vmatpush.msra.mxu0 0.0
      %1656 = vmatpush.msra.mxu0 0.0
      %1657 = vmatpush.msra.mxu0 0.0
      %1658 = vmatpush.msra.mxu0 0.0
      %1659 = vmatpush.msra.mxu0 0.0
      %1660 = vmatpush.msra.mxu0 0.0
      %1661 = vmatpush.msra.mxu0 0.0
      %1662 = vmatpush.msra.mxu0 0.0
      %1663 = vmatpush.msra.mxu0 0.0
      %1664 = vmatpush.msra.mxu0 0.0
      %1665 = vmatpush.msra.mxu0 0.0
      %1666 = vmatpush.msra.mxu0 %v1649
      %1667 = vmatmul.f32.gmra.mxu0 %v1265
      %v1668 = vpop.f32.mrf.mxu0
      %v1669 = vadd.f32 %v881, %v1668
      %1670 = vmatmul.f32.gmra.mxu0 %v1268
      %v1671 = vpop.f32.mrf.mxu0
      %v1672 = vadd.f32 %v884, %v1671
      %1673 = vmatmul.f32.gmra.mxu0 %v1271
      %v1674 = vpop.f32.mrf.mxu0
      %v1675 = vadd.f32 %v887, %v1674
      %1676 = vmatmul.f32.gmra.mxu0 %v1274
      %v1677 = vpop.f32.mrf.mxu0
      %v1678 = vadd.f32 %v890, %v1677
      %1679 = vmatmul.f32.gmra.mxu0 %v1277
      %v1680 = vpop.f32.mrf.mxu0
      %v1681 = vadd.f32 %v893, %v1680
      %1682 = vmatmul.f32.gmra.mxu0 %v1280
      %v1683 = vpop.f32.mrf.mxu0
      %v1684 = vadd.f32 %v896, %v1683
      %1685 = vmatmul.f32.gmra.mxu0 %v1283
      %v1686 = vpop.f32.mrf.mxu0
      %v1687 = vadd.f32 %v899, %v1686
      %1688 = vmatmul.f32.gmra.mxu0 %v1286
      %v1689 = vpop.f32.mrf.mxu0
      %v1690 = vadd.f32 %v902, %v1689
      %1691 = vmatmul.f32.gmra.mxu0 %v1289
      %v1692 = vpop.f32.mrf.mxu0
      %v1693 = vadd.f32 %v905, %v1692
      %1694 = vmatmul.f32.gmra.mxu0 %v1292
      %v1695 = vpop.f32.mrf.mxu0
      %v1696 = vadd.f32 %v908, %v1695
      %1697 = vmatmul.f32.gmra.mxu0 %v1295
      %v1698 = vpop.f32.mrf.mxu0
      %v1699 = vadd.f32 %v911, %v1698
      %1700 = vmatmul.f32.gmra.mxu0 %v1298
      %v1701 = vpop.f32.mrf.mxu0
      %v1702 = vadd.f32 %v914, %v1701
      %1703 = vmatmul.f32.gmra.mxu0 %v1301
      %v1704 = vpop.f32.mrf.mxu0
      %v1705 = vadd.f32 %v917, %v1704
      %1706 = vmatmul.f32.gmra.mxu0 %v1304
      %v1707 = vpop.f32.mrf.mxu0
      %v1708 = vadd.f32 %v920, %v1707
      %1709 = vmatmul.f32.gmra.mxu0 %v1307
      %v1710 = vpop.f32.mrf.mxu0
      %v1711 = vadd.f32 %v923, %v1710
      %1712 = vmatmul.f32.gmra.mxu0 %v1310
      %v1713 = vpop.f32.mrf.mxu0
      %v1714 = vadd.f32 %v926, %v1713
      %1715 = vmatmul.f32.gmra.mxu0 %v1313
      %v1716 = vpop.f32.mrf.mxu0
      %v1717 = vadd.f32 %v929, %v1716
      %1718 = vmatmul.f32.gmra.mxu0 %v1316
      %v1719 = vpop.f32.mrf.mxu0
      %v1720 = vadd.f32 %v932, %v1719
      %1721 = vmatmul.f32.gmra.mxu0 %v1319
      %v1722 = vpop.f32.mrf.mxu0
      %v1723 = vadd.f32 %v935, %v1722
      %1724 = vmatmul.f32.gmra.mxu0 %v1322
      %v1725 = vpop.f32.mrf.mxu0
      %v1726 = vadd.f32 %v938, %v1725
      %1727 = vmatmul.f32.gmra.mxu0 %v1325
      %v1728 = vpop.f32.mrf.mxu0
      %v1729 = vadd.f32 %v941, %v1728
      %1730 = vmatmul.f32.gmra.mxu0 %v1328
      %v1731 = vpop.f32.mrf.mxu0
      %v1732 = vadd.f32 %v944, %v1731
      %1733 = vmatmul.f32.gmra.mxu0 %v1331
      %v1734 = vpop.f32.mrf.mxu0
      %v1735 = vadd.f32 %v947, %v1734
      %1736 = vmatmul.f32.gmra.mxu0 %v1334
      %v1737 = vpop.f32.mrf.mxu0
      %v1738 = vadd.f32 %v950, %v1737
      %1739 = vmatmul.f32.gmra.mxu0 %v1337
      %v1740 = vpop.f32.mrf.mxu0
      %v1741 = vadd.f32 %v953, %v1740
      %1742 = vmatmul.f32.gmra.mxu0 %v1340
      %v1743 = vpop.f32.mrf.mxu0
      %v1744 = vadd.f32 %v956, %v1743
      %1745 = vmatmul.f32.gmra.mxu0 %v1343
      %v1746 = vpop.f32.mrf.mxu0
      %v1747 = vadd.f32 %v959, %v1746
      %1748 = vmatmul.f32.gmra.mxu0 %v1346
      %v1749 = vpop.f32.mrf.mxu0
      %v1750 = vadd.f32 %v962, %v1749
      %1751 = vmatmul.f32.gmra.mxu0 %v1349
      %v1752 = vpop.f32.mrf.mxu0
      %v1753 = vadd.f32 %v965, %v1752
      %1754 = vmatmul.f32.gmra.mxu0 %v1352
      %v1755 = vpop.f32.mrf.mxu0
      %v1756 = vadd.f32 %v968, %v1755
      %1757 = vmatmul.f32.gmra.mxu0 %v1355
      %v1758 = vpop.f32.mrf.mxu0
      %v1759 = vadd.f32 %v971, %v1758
      %1760 = vmatmul.f32.gmra.mxu0 %v1358
      %v1761 = vpop.f32.mrf.mxu0
      %v1762 = vadd.f32 %v974, %v1761
      %1763 = vmatmul.f32.gmra.mxu0 %v1361
      %v1764 = vpop.f32.mrf.mxu0
      %v1765 = vadd.f32 %v977, %v1764
      %1766 = vmatmul.f32.gmra.mxu0 %v1364
      %v1767 = vpop.f32.mrf.mxu0
      %v1768 = vadd.f32 %v980, %v1767
      %1769 = vmatmul.f32.gmra.mxu0 %v1367
      %v1770 = vpop.f32.mrf.mxu0
      %v1771 = vadd.f32 %v983, %v1770
      %1772 = vmatmul.f32.gmra.mxu0 %v1370
      %v1773 = vpop.f32.mrf.mxu0
      %v1774 = vadd.f32 %v986, %v1773
      %1775 = vmatmul.f32.gmra.mxu0 %v1373
      %v1776 = vpop.f32.mrf.mxu0
      %v1777 = vadd.f32 %v989, %v1776
      %1778 = vmatmul.f32.gmra.mxu0 %v1376
      %v1779 = vpop.f32.mrf.mxu0
      %v1780 = vadd.f32 %v992, %v1779
      %1781 = vmatmul.f32.gmra.mxu0 %v1379
      %v1782 = vpop.f32.mrf.mxu0
      %v1783 = vadd.f32 %v995, %v1782
      %1784 = vmatmul.f32.gmra.mxu0 %v1382
      %v1785 = vpop.f32.mrf.mxu0
      %v1786 = vadd.f32 %v998, %v1785
      %1787 = vmatmul.f32.gmra.mxu0 %v1385
      %v1788 = vpop.f32.mrf.mxu0
      %v1789 = vadd.f32 %v1001, %v1788
      %1790 = vmatmul.f32.gmra.mxu0 %v1388
      %v1791 = vpop.f32.mrf.mxu0
      %v1792 = vadd.f32 %v1004, %v1791
      %1793 = vmatmul.f32.gmra.mxu0 %v1391
      %v1794 = vpop.f32.mrf.mxu0
      %v1795 = vadd.f32 %v1007, %v1794
      %1796 = vmatmul.f32.gmra.mxu0 %v1394
      %v1797 = vpop.f32.mrf.mxu0
      %v1798 = vadd.f32 %v1010, %v1797
      %1799 = vmatmul.f32.gmra.mxu0 %v1397
      %v1800 = vpop.f32.mrf.mxu0
      %v1801 = vadd.f32 %v1013, %v1800
      %1802 = vmatmul.f32.gmra.mxu0 %v1400
      %v1803 = vpop.f32.mrf.mxu0
      %v1804 = vadd.f32 %v1016, %v1803
      %1805 = vmatmul.f32.gmra.mxu0 %v1403
      %v1806 = vpop.f32.mrf.mxu0
      %v1807 = vadd.f32 %v1019, %v1806
      %1808 = vmatmul.f32.gmra.mxu0 %v1406
      %v1809 = vpop.f32.mrf.mxu0
      %v1810 = vadd.f32 %v1022, %v1809
      %1811 = vmatmul.f32.gmra.mxu0 %v1409
      %v1812 = vpop.f32.mrf.mxu0
      %v1813 = vadd.f32 %v1025, %v1812
      %1814 = vmatmul.f32.gmra.mxu0 %v1412
      %v1815 = vpop.f32.mrf.mxu0
      %v1816 = vadd.f32 %v1028, %v1815
      %1817 = vmatmul.f32.gmra.mxu0 %v1415
      %v1818 = vpop.f32.mrf.mxu0
      %v1819 = vadd.f32 %v1031, %v1818
      %1820 = vmatmul.f32.gmra.mxu0 %v1418
      %v1821 = vpop.f32.mrf.mxu0
      %v1822 = vadd.f32 %v1034, %v1821
      %1823 = vmatmul.f32.gmra.mxu0 %v1421
      %v1824 = vpop.f32.mrf.mxu0
      %v1825 = vadd.f32 %v1037, %v1824
      %1826 = vmatmul.f32.gmra.mxu0 %v1424
      %v1827 = vpop.f32.mrf.mxu0
      %v1828 = vadd.f32 %v1040, %v1827
      %1829 = vmatmul.f32.gmra.mxu0 %v1427
      %v1830 = vpop.f32.mrf.mxu0
      %v1831 = vadd.f32 %v1043, %v1830
      %1832 = vmatmul.f32.gmra.mxu0 %v1430
      %v1833 = vpop.f32.mrf.mxu0
      %v1834 = vadd.f32 %v1046, %v1833
      %1835 = vmatmul.f32.gmra.mxu0 %v1433
      %v1836 = vpop.f32.mrf.mxu0
      %v1837 = vadd.f32 %v1049, %v1836
      %1838 = vmatmul.f32.gmra.mxu0 %v1436
      %v1839 = vpop.f32.mrf.mxu0
      %v1840 = vadd.f32 %v1052, %v1839
      %1841 = vmatmul.f32.gmra.mxu0 %v1439
      %v1842 = vpop.f32.mrf.mxu0
      %v1843 = vadd.f32 %v1055, %v1842
      %1844 = vmatmul.f32.gmra.mxu0 %v1442
      %v1845 = vpop.f32.mrf.mxu0
      %v1846 = vadd.f32 %v1058, %v1845
      %1847 = vmatmul.f32.gmra.mxu0 %v1445
      %v1848 = vpop.f32.mrf.mxu0
      %v1849 = vadd.f32 %v1061, %v1848
      %1850 = vmatmul.f32.gmra.mxu0 %v1448
      %v1851 = vpop.f32.mrf.mxu0
      %v1852 = vadd.f32 %v1064, %v1851
      %1853 = vmatmul.f32.gmra.mxu0 %v1451
      %v1854 = vpop.f32.mrf.mxu0
      %v1855 = vadd.f32 %v1067, %v1854
      %1856 = vmatmul.f32.gmra.mxu0 %v1454
      %v1857 = vpop.f32.mrf.mxu0
      %v1858 = vadd.f32 %v1070, %v1857
      %1859 = vmatmul.f32.gmra.mxu0 %v1457
      %v1860 = vpop.f32.mrf.mxu0
      %v1861 = vadd.f32 %v1073, %v1860
      %1862 = vmatmul.f32.gmra.mxu0 %v1460
      %v1863 = vpop.f32.mrf.mxu0
      %v1864 = vadd.f32 %v1076, %v1863
      %1865 = vmatmul.f32.gmra.mxu0 %v1463
      %v1866 = vpop.f32.mrf.mxu0
      %v1867 = vadd.f32 %v1079, %v1866
      %1868 = vmatmul.f32.gmra.mxu0 %v1466
      %v1869 = vpop.f32.mrf.mxu0
      %v1870 = vadd.f32 %v1082, %v1869
      %1871 = vmatmul.f32.gmra.mxu0 %v1469
      %v1872 = vpop.f32.mrf.mxu0
      %v1873 = vadd.f32 %v1085, %v1872
      %1874 = vmatmul.f32.gmra.mxu0 %v1472
      %v1875 = vpop.f32.mrf.mxu0
      %v1876 = vadd.f32 %v1088, %v1875
      %1877 = vmatmul.f32.gmra.mxu0 %v1475
      %v1878 = vpop.f32.mrf.mxu0
      %v1879 = vadd.f32 %v1091, %v1878
      %1880 = vmatmul.f32.gmra.mxu0 %v1478
      %v1881 = vpop.f32.mrf.mxu0
      %v1882 = vadd.f32 %v1094, %v1881
      %1883 = vmatmul.f32.gmra.mxu0 %v1481
      %v1884 = vpop.f32.mrf.mxu0
      %v1885 = vadd.f32 %v1097, %v1884
      %1886 = vmatmul.f32.gmra.mxu0 %v1484
      %v1887 = vpop.f32.mrf.mxu0
      %v1888 = vadd.f32 %v1100, %v1887
      %1889 = vmatmul.f32.gmra.mxu0 %v1487
      %v1890 = vpop.f32.mrf.mxu0
      %v1891 = vadd.f32 %v1103, %v1890
      %1892 = vmatmul.f32.gmra.mxu0 %v1490
      %v1893 = vpop.f32.mrf.mxu0
      %v1894 = vadd.f32 %v1106, %v1893
      %1895 = vmatmul.f32.gmra.mxu0 %v1493
      %v1896 = vpop.f32.mrf.mxu0
      %v1897 = vadd.f32 %v1109, %v1896
      %1898 = vmatmul.f32.gmra.mxu0 %v1496
      %v1899 = vpop.f32.mrf.mxu0
      %v1900 = vadd.f32 %v1112, %v1899
      %1901 = vmatmul.f32.gmra.mxu0 %v1499
      %v1902 = vpop.f32.mrf.mxu0
      %v1903 = vadd.f32 %v1115, %v1902
      %1904 = vmatmul.f32.gmra.mxu0 %v1502
      %v1905 = vpop.f32.mrf.mxu0
      %v1906 = vadd.f32 %v1118, %v1905
      %1907 = vmatmul.f32.gmra.mxu0 %v1505
      %v1908 = vpop.f32.mrf.mxu0
      %v1909 = vadd.f32 %v1121, %v1908
      %1910 = vmatmul.f32.gmra.mxu0 %v1508
      %v1911 = vpop.f32.mrf.mxu0
      %v1912 = vadd.f32 %v1124, %v1911
      %1913 = vmatmul.f32.gmra.mxu0 %v1511
      %v1914 = vpop.f32.mrf.mxu0
      %v1915 = vadd.f32 %v1127, %v1914
      %1916 = vmatmul.f32.gmra.mxu0 %v1514
      %v1917 = vpop.f32.mrf.mxu0
      %v1918 = vadd.f32 %v1130, %v1917
      %1919 = vmatmul.f32.gmra.mxu0 %v1517
      %v1920 = vpop.f32.mrf.mxu0
      %v1921 = vadd.f32 %v1133, %v1920
      %1922 = vmatmul.f32.gmra.mxu0 %v1520
      %v1923 = vpop.f32.mrf.mxu0
      %v1924 = vadd.f32 %v1136, %v1923
      %1925 = vmatmul.f32.gmra.mxu0 %v1523
      %v1926 = vpop.f32.mrf.mxu0
      %v1927 = vadd.f32 %v1139, %v1926
      %1928 = vmatmul.f32.gmra.mxu0 %v1526
      %v1929 = vpop.f32.mrf.mxu0
      %v1930 = vadd.f32 %v1142, %v1929
      %1931 = vmatmul.f32.gmra.mxu0 %v1529
      %v1932 = vpop.f32.mrf.mxu0
      %v1933 = vadd.f32 %v1145, %v1932
      %1934 = vmatmul.f32.gmra.mxu0 %v1532
      %v1935 = vpop.f32.mrf.mxu0
      %v1936 = vadd.f32 %v1148, %v1935
      %1937 = vmatmul.f32.gmra.mxu0 %v1535
      %v1938 = vpop.f32.mrf.mxu0
      %v1939 = vadd.f32 %v1151, %v1938
      %1940 = vmatmul.f32.gmra.mxu0 %v1538
      %v1941 = vpop.f32.mrf.mxu0
      %v1942 = vadd.f32 %v1154, %v1941
      %1943 = vmatmul.f32.gmra.mxu0 %v1541
      %v1944 = vpop.f32.mrf.mxu0
      %v1945 = vadd.f32 %v1157, %v1944
      %1946 = vmatmul.f32.gmra.mxu0 %v1544
      %v1947 = vpop.f32.mrf.mxu0
      %v1948 = vadd.f32 %v1160, %v1947
      %1949 = vmatmul.f32.gmra.mxu0 %v1547
      %v1950 = vpop.f32.mrf.mxu0
      %v1951 = vadd.f32 %v1163, %v1950
      %1952 = vmatmul.f32.gmra.mxu0 %v1550
      %v1953 = vpop.f32.mrf.mxu0
      %v1954 = vadd.f32 %v1166, %v1953
      %1955 = vmatmul.f32.gmra.mxu0 %v1553
      %v1956 = vpop.f32.mrf.mxu0
      %v1957 = vadd.f32 %v1169, %v1956
      %1958 = vmatmul.f32.gmra.mxu0 %v1556
      %v1959 = vpop.f32.mrf.mxu0
      %v1960 = vadd.f32 %v1172, %v1959
      %1961 = vmatmul.f32.gmra.mxu0 %v1559
      %v1962 = vpop.f32.mrf.mxu0
      %v1963 = vadd.f32 %v1175, %v1962
      %1964 = vmatmul.f32.gmra.mxu0 %v1562
      %v1965 = vpop.f32.mrf.mxu0
      %v1966 = vadd.f32 %v1178, %v1965
      %1967 = vmatmul.f32.gmra.mxu0 %v1565
      %v1968 = vpop.f32.mrf.mxu0
      %v1969 = vadd.f32 %v1181, %v1968
      %1970 = vmatmul.f32.gmra.mxu0 %v1568
      %v1971 = vpop.f32.mrf.mxu0
      %v1972 = vadd.f32 %v1184, %v1971
      %1973 = vmatmul.f32.gmra.mxu0 %v1571
      %v1974 = vpop.f32.mrf.mxu0
      %v1975 = vadd.f32 %v1187, %v1974
      %1976 = vmatmul.f32.gmra.mxu0 %v1574
      %v1977 = vpop.f32.mrf.mxu0
      %v1978 = vadd.f32 %v1190, %v1977
      %1979 = vmatmul.f32.gmra.mxu0 %v1577
      %v1980 = vpop.f32.mrf.mxu0
      %v1981 = vadd.f32 %v1193, %v1980
      %1982 = vmatmul.f32.gmra.mxu0 %v1580
      %v1983 = vpop.f32.mrf.mxu0
      %v1984 = vadd.f32 %v1196, %v1983
      %1985 = vmatmul.f32.gmra.mxu0 %v1583
      %v1986 = vpop.f32.mrf.mxu0
      %v1987 = vadd.f32 %v1199, %v1986
      %1988 = vmatmul.f32.gmra.mxu0 %v1586
      %v1989 = vpop.f32.mrf.mxu0
      %v1990 = vadd.f32 %v1202, %v1989
      %1991 = vmatmul.f32.gmra.mxu0 %v1589
      %v1992 = vpop.f32.mrf.mxu0
      %v1993 = vadd.f32 %v1205, %v1992
      %1994 = vmatmul.f32.gmra.mxu0 %v1592
      %v1995 = vpop.f32.mrf.mxu0
      %v1996 = vadd.f32 %v1208, %v1995
      %1997 = vmatmul.f32.gmra.mxu0 %v1595
      %v1998 = vpop.f32.mrf.mxu0
      %v1999 = vadd.f32 %v1211, %v1998
      %2000 = vmatmul.f32.gmra.mxu0 %v1598
      %v2001 = vpop.f32.mrf.mxu0
      %v2002 = vadd.f32 %v1214, %v2001
      %2003 = vmatmul.f32.gmra.mxu0 %v1601
      %v2004 = vpop.f32.mrf.mxu0
      %v2005 = vadd.f32 %v1217, %v2004
      %2006 = vmatmul.f32.gmra.mxu0 %v1604
      %v2007 = vpop.f32.mrf.mxu0
      %v2008 = vadd.f32 %v1220, %v2007
      %2009 = vmatmul.f32.gmra.mxu0 %v1607
      %v2010 = vpop.f32.mrf.mxu0
      %v2011 = vadd.f32 %v1223, %v2010
      %2012 = vmatmul.f32.gmra.mxu0 %v1610
      %v2013 = vpop.f32.mrf.mxu0
      %v2014 = vadd.f32 %v1226, %v2013
      %2015 = vmatmul.f32.gmra.mxu0 %v1613
      %v2016 = vpop.f32.mrf.mxu0
      %v2017 = vadd.f32 %v1229, %v2016
      %2018 = vmatmul.f32.gmra.mxu0 %v1616
      %v2019 = vpop.f32.mrf.mxu0
      %v2020 = vadd.f32 %v1232, %v2019
      %2021 = vmatmul.f32.gmra.mxu0 %v1619
      %v2022 = vpop.f32.mrf.mxu0
      %v2023 = vadd.f32 %v1235, %v2022
      %2024 = vmatmul.f32.gmra.mxu0 %v1622
      %v2025 = vpop.f32.mrf.mxu0
      %v2026 = vadd.f32 %v1238, %v2025
      %2027 = vmatmul.f32.gmra.mxu0 %v1625
      %v2028 = vpop.f32.mrf.mxu0
      %v2029 = vadd.f32 %v1241, %v2028
      %2030 = vmatmul.f32.gmra.mxu0 %v1628
      %v2031 = vpop.f32.mrf.mxu0
      %v2032 = vadd.f32 %v1244, %v2031
      %2033 = vmatmul.f32.gmra.mxu0 %v1631
      %v2034 = vpop.f32.mrf.mxu0
      %v2035 = vadd.f32 %v1247, %v2034
      %2036 = vmatmul.f32.gmra.mxu0 %v1634
      %v2037 = vpop.f32.mrf.mxu0
      %v2038 = vadd.f32 %v1250, %v2037
      %2039 = vmatmul.f32.gmra.mxu0 %v1637
      %v2040 = vpop.f32.mrf.mxu0
      %v2041 = vadd.f32 %v1253, %v2040
      %2042 = vmatmul.f32.gmra.mxu0 %v1640
      %v2043 = vpop.f32.mrf.mxu0
      %v2044 = vadd.f32 %v1256, %v2043
      %2045 = vmatmul.f32.gmra.mxu0 %v1643
      %v2046 = vpop.f32.mrf.mxu0
      %v2047 = vadd.f32 %v1259, %v2046
      %2048 = vmatmul.f32.gmra.mxu0 %v1646
      %v2049 = vpop.f32.mrf.mxu0
      %v2050 = vadd.f32 %v1262, %v2049
      %2051 = vdwg.mxu0
      %v2052 = vld [vmem:[%s203 + $0x2] sm:$0xff]
      %v2053 = vld [vmem:[%s203 + $0xa] sm:$0xff]
      %v2054 = vld [vmem:[%s203 + $0x12] sm:$0xff]
      %v2055 = vld [vmem:[%s203 + $0x1a] sm:$0xff]
      %v2056 = vld [vmem:[%s203 + $0x2a] sm:$0xff]
      %v2057 = vld [vmem:[%s203 + $0x32] sm:$0xff]
      %v2058 = vld [vmem:[%s203 + $0x3a] sm:$0xff]
      %v2059 = vld [vmem:[%s203 + $0x42] sm:$0xff]
      %v2060 = vld [vmem:[%s203 + $0x52] sm:$0xff]
      %v2061 = vld [vmem:[%s203 + $0x5a] sm:$0xff]
      %v2062 = vld [vmem:[%s203 + $0x62] sm:$0xff]
      %v2063 = vld [vmem:[%s203 + $0x6a] sm:$0xff]
      %v2064 = vld [vmem:[%s203 + $0x7a] sm:$0xff]
      %v2065 = vld [vmem:[%s203 + $0x82] sm:$0xff]
      %v2066 = vld [vmem:[%s203 + $0x8a] sm:$0xff]
      %v2067 = vld [vmem:[%s203 + $0x92] sm:$0xff]
      %v2068 = vld [vmem:[%s203 + $0xa2] sm:$0xff]
      %v2069 = vld [vmem:[%s203 + $0xaa] sm:$0xff]
      %v2070 = vld [vmem:[%s203 + $0xb2] sm:$0xff]
      %v2071 = vld [vmem:[%s203 + $0xba] sm:$0xff]
      %v2072 = vld [vmem:[%s203 + $0xca] sm:$0xff]
      %v2073 = vld [vmem:[%s203 + $0xd2] sm:$0xff]
      %v2074 = vld [vmem:[%s203 + $0xda] sm:$0xff]
      %v2075 = vld [vmem:[%s203 + $0xe2] sm:$0xff]
      %v2076 = vld [vmem:[%s203 + $0xf2] sm:$0xff]
      %v2077 = vld [vmem:[%s203 + $0xfa] sm:$0xff]
      %v2078 = vld [vmem:[%s203 + $0x102] sm:$0xff]
      %v2079 = vld [vmem:[%s203 + $0x10a] sm:$0xff]
      %v2080 = vld [vmem:[%s203 + $0x11a] sm:$0xff]
      %v2081 = vld [vmem:[%s203 + $0x122] sm:$0xff]
      %v2082 = vld [vmem:[%s203 + $0x12a] sm:$0xff]
      %v2083 = vld [vmem:[%s203 + $0x132] sm:$0xff]
      %v2084 = vld [vmem:[%s203 + $0x142] sm:$0xff]
      %v2085 = vld [vmem:[%s203 + $0x14a] sm:$0xff]
      %v2086 = vld [vmem:[%s203 + $0x152] sm:$0xff]
      %v2087 = vld [vmem:[%s203 + $0x15a] sm:$0xff]
      %v2088 = vld [vmem:[%s203 + $0x16a] sm:$0xff]
      %v2089 = vld [vmem:[%s203 + $0x172] sm:$0xff]
      %v2090 = vld [vmem:[%s203 + $0x17a] sm:$0xff]
      %v2091 = vld [vmem:[%s203 + $0x182] sm:$0xff]
      %v2092 = vld [vmem:[%s203 + $0x192] sm:$0xff]
      %v2093 = vld [vmem:[%s203 + $0x19a] sm:$0xff]
      %v2094 = vld [vmem:[%s203 + $0x1a2] sm:$0xff]
      %v2095 = vld [vmem:[%s203 + $0x1aa] sm:$0xff]
      %v2096 = vld [vmem:[%s203 + $0x1ba] sm:$0xff]
      %v2097 = vld [vmem:[%s203 + $0x1c2] sm:$0xff]
      %v2098 = vld [vmem:[%s203 + $0x1ca] sm:$0xff]
      %v2099 = vld [vmem:[%s203 + $0x1d2] sm:$0xff]
      %v2100 = vld [vmem:[%s203 + $0x1e2] sm:$0xff]
      %v2101 = vld [vmem:[%s203 + $0x1ea] sm:$0xff]
      %v2102 = vld [vmem:[%s203 + $0x1f2] sm:$0xff]
      %v2103 = vld [vmem:[%s203 + $0x1fa] sm:$0xff]
      %v2104 = vld [vmem:[%s203 + $0x20a] sm:$0xff]
      %v2105 = vld [vmem:[%s203 + $0x212] sm:$0xff]
      %v2106 = vld [vmem:[%s203 + $0x21a] sm:$0xff]
      %v2107 = vld [vmem:[%s203 + $0x222] sm:$0xff]
      %v2108 = vld [vmem:[%s203 + $0x232] sm:$0xff]
      %v2109 = vld [vmem:[%s203 + $0x23a] sm:$0xff]
      %v2110 = vld [vmem:[%s203 + $0x242] sm:$0xff]
      %v2111 = vld [vmem:[%s203 + $0x24a] sm:$0xff]
      %v2112 = vld [vmem:[%s203 + $0x25a] sm:$0xff]
      %v2113 = vld [vmem:[%s203 + $0x262] sm:$0xff]
      %v2114 = vld [vmem:[%s203 + $0x26a] sm:$0xff]
      %v2115 = vld [vmem:[%s203 + $0x272] sm:$0xff]
      %v2116 = vld [vmem:[%s203 + $0x282] sm:$0xff]
      %v2117 = vld [vmem:[%s203 + $0x28a] sm:$0xff]
      %v2118 = vld [vmem:[%s203 + $0x292] sm:$0xff]
      %v2119 = vld [vmem:[%s203 + $0x29a] sm:$0xff]
      %v2120 = vld [vmem:[%s203 + $0x2aa] sm:$0xff]
      %v2121 = vld [vmem:[%s203 + $0x2b2] sm:$0xff]
      %v2122 = vld [vmem:[%s203 + $0x2ba] sm:$0xff]
      %v2123 = vld [vmem:[%s203 + $0x2c2] sm:$0xff]
      %v2124 = vld [vmem:[%s203 + $0x2d2] sm:$0xff]
      %v2125 = vld [vmem:[%s203 + $0x2da] sm:$0xff]
      %v2126 = vld [vmem:[%s203 + $0x2e2] sm:$0xff]
      %v2127 = vld [vmem:[%s203 + $0x2ea] sm:$0xff]
      %v2128 = vld [vmem:[%s203 + $0x2fa] sm:$0xff]
      %v2129 = vld [vmem:[%s203 + $0x302] sm:$0xff]
      %v2130 = vld [vmem:[%s203 + $0x30a] sm:$0xff]
      %v2131 = vld [vmem:[%s203 + $0x312] sm:$0xff]
      %v2132 = vld [vmem:[%s203 + $0x322] sm:$0xff]
      %v2133 = vld [vmem:[%s203 + $0x32a] sm:$0xff]
      %v2134 = vld [vmem:[%s203 + $0x332] sm:$0xff]
      %v2135 = vld [vmem:[%s203 + $0x33a] sm:$0xff]
      %v2136 = vld [vmem:[%s203 + $0x34a] sm:$0xff]
      %v2137 = vld [vmem:[%s203 + $0x352] sm:$0xff]
      %v2138 = vld [vmem:[%s203 + $0x35a] sm:$0xff]
      %v2139 = vld [vmem:[%s203 + $0x362] sm:$0xff]
      %v2140 = vld [vmem:[%s203 + $0x372] sm:$0xff]
      %v2141 = vld [vmem:[%s203 + $0x37a] sm:$0xff]
      %v2142 = vld [vmem:[%s203 + $0x382] sm:$0xff]
      %v2143 = vld [vmem:[%s203 + $0x38a] sm:$0xff]
      %v2144 = vld [vmem:[%s203 + $0x39a] sm:$0xff]
      %v2145 = vld [vmem:[%s203 + $0x3a2] sm:$0xff]
      %v2146 = vld [vmem:[%s203 + $0x3aa] sm:$0xff]
      %v2147 = vld [vmem:[%s203 + $0x3b2] sm:$0xff]
      %v2148 = vld [vmem:[%s203 + $0x3c2] sm:$0xff]
      %v2149 = vld [vmem:[%s203 + $0x3ca] sm:$0xff]
      %v2150 = vld [vmem:[%s203 + $0x3d2] sm:$0xff]
      %v2151 = vld [vmem:[%s203 + $0x3da] sm:$0xff]
      %v2152 = vld [vmem:[%s203 + $0x3ea] sm:$0xff]
      %v2153 = vld [vmem:[%s203 + $0x3f2] sm:$0xff]
      %v2154 = vld [vmem:[%s203 + $0x3fa] sm:$0xff]
      %v2155 = vld [vmem:[%s203 + $0x402] sm:$0xff]
      %v2156 = vld [vmem:[%s203 + $0x412] sm:$0xff]
      %v2157 = vld [vmem:[%s203 + $0x41a] sm:$0xff]
      %v2158 = vld [vmem:[%s203 + $0x422] sm:$0xff]
      %v2159 = vld [vmem:[%s203 + $0x42a] sm:$0xff]
      %v2160 = vld [vmem:[%s203 + $0x43a] sm:$0xff]
      %v2161 = vld [vmem:[%s203 + $0x442] sm:$0xff]
      %v2162 = vld [vmem:[%s203 + $0x44a] sm:$0xff]
      %v2163 = vld [vmem:[%s203 + $0x452] sm:$0xff]
      %v2164 = vld [vmem:[%s203 + $0x462] sm:$0xff]
      %v2165 = vld [vmem:[%s203 + $0x46a] sm:$0xff]
      %v2166 = vld [vmem:[%s203 + $0x472] sm:$0xff]
      %v2167 = vld [vmem:[%s203 + $0x47a] sm:$0xff]
      %v2168 = vld [vmem:[%s203 + $0x48a] sm:$0xff]
      %v2169 = vld [vmem:[%s203 + $0x492] sm:$0xff]
      %v2170 = vld [vmem:[%s203 + $0x49a] sm:$0xff]
      %v2171 = vld [vmem:[%s203 + $0x4a2] sm:$0xff]
      %v2172 = vld [vmem:[%s203 + $0x4b2] sm:$0xff]
      %v2173 = vld [vmem:[%s203 + $0x4ba] sm:$0xff]
      %v2174 = vld [vmem:[%s203 + $0x4c2] sm:$0xff]
      %v2175 = vld [vmem:[%s203 + $0x4ca] sm:$0xff]
      %v2176 = vld [vmem:[%s203 + $0x4da] sm:$0xff]
      %v2177 = vld [vmem:[%s203 + $0x4e2] sm:$0xff]
      %v2178 = vld [vmem:[%s203 + $0x4ea] sm:$0xff]
      %v2179 = vld [vmem:[%s203 + $0x4f2] sm:$0xff]
      %s2180 = scalar_lea.vmem %s1, 8
      %v2181 = vld [vmem:[%s2180] sm:$0xf]
      %v2183 = vsel %vm474, %v2052, 0
      %v2186 = vsel %vm474, %v2053, 0
      %v2189 = vsel %vm474, %v2054, 0
      %v2192 = vsel %vm474, %v2055, 0
      %v2195 = vsel %vm474, %v2056, 0
      %v2198 = vsel %vm474, %v2057, 0
      %v2201 = vsel %vm474, %v2058, 0
      %v2204 = vsel %vm474, %v2059, 0
      %v2207 = vsel %vm474, %v2060, 0
      %v2210 = vsel %vm474, %v2061, 0
      %v2213 = vsel %vm474, %v2062, 0
      %v2216 = vsel %vm474, %v2063, 0
      %v2219 = vsel %vm474, %v2064, 0
      %v2222 = vsel %vm474, %v2065, 0
      %v2225 = vsel %vm474, %v2066, 0
      %v2228 = vsel %vm474, %v2067, 0
      %v2231 = vsel %vm474, %v2068, 0
      %v2234 = vsel %vm474, %v2069, 0
      %v2237 = vsel %vm474, %v2070, 0
      %v2240 = vsel %vm474, %v2071, 0
      %v2243 = vsel %vm474, %v2072, 0
      %v2246 = vsel %vm474, %v2073, 0
      %v2249 = vsel %vm474, %v2074, 0
      %v2252 = vsel %vm474, %v2075, 0
      %v2255 = vsel %vm474, %v2076, 0
      %v2258 = vsel %vm474, %v2077, 0
      %v2261 = vsel %vm474, %v2078, 0
      %v2264 = vsel %vm474, %v2079, 0
      %v2267 = vsel %vm474, %v2080, 0
      %v2270 = vsel %vm474, %v2081, 0
      %v2273 = vsel %vm474, %v2082, 0
      %v2276 = vsel %vm474, %v2083, 0
      %v2279 = vsel %vm474, %v2084, 0
      %v2282 = vsel %vm474, %v2085, 0
      %v2285 = vsel %vm474, %v2086, 0
      %v2288 = vsel %vm474, %v2087, 0
      %v2291 = vsel %vm474, %v2088, 0
      %v2294 = vsel %vm474, %v2089, 0
      %v2297 = vsel %vm474, %v2090, 0
      %v2300 = vsel %vm474, %v2091, 0
      %v2303 = vsel %vm474, %v2092, 0
      %v2306 = vsel %vm474, %v2093, 0
      %v2309 = vsel %vm474, %v2094, 0
      %v2312 = vsel %vm474, %v2095, 0
      %v2315 = vsel %vm474, %v2096, 0
      %v2318 = vsel %vm474, %v2097, 0
      %v2321 = vsel %vm474, %v2098, 0
      %v2324 = vsel %vm474, %v2099, 0
      %v2327 = vsel %vm474, %v2100, 0
      %v2330 = vsel %vm474, %v2101, 0
      %v2333 = vsel %vm474, %v2102, 0
      %v2336 = vsel %vm474, %v2103, 0
      %v2339 = vsel %vm474, %v2104, 0
      %v2342 = vsel %vm474, %v2105, 0
      %v2345 = vsel %vm474, %v2106, 0
      %v2348 = vsel %vm474, %v2107, 0
      %v2351 = vsel %vm474, %v2108, 0
      %v2354 = vsel %vm474, %v2109, 0
      %v2357 = vsel %vm474, %v2110, 0
      %v2360 = vsel %vm474, %v2111, 0
      %v2363 = vsel %vm474, %v2112, 0
      %v2366 = vsel %vm474, %v2113, 0
      %v2369 = vsel %vm474, %v2114, 0
      %v2372 = vsel %vm474, %v2115, 0
      %v2375 = vsel %vm474, %v2116, 0
      %v2378 = vsel %vm474, %v2117, 0
      %v2381 = vsel %vm474, %v2118, 0
      %v2384 = vsel %vm474, %v2119, 0
      %v2387 = vsel %vm474, %v2120, 0
      %v2390 = vsel %vm474, %v2121, 0
      %v2393 = vsel %vm474, %v2122, 0
      %v2396 = vsel %vm474, %v2123, 0
      %v2399 = vsel %vm474, %v2124, 0
      %v2402 = vsel %vm474, %v2125, 0
      %v2405 = vsel %vm474, %v2126, 0
      %v2408 = vsel %vm474, %v2127, 0
      %v2411 = vsel %vm474, %v2128, 0
      %v2414 = vsel %vm474, %v2129, 0
      %v2417 = vsel %vm474, %v2130, 0
      %v2420 = vsel %vm474, %v2131, 0
      %v2423 = vsel %vm474, %v2132, 0
      %v2426 = vsel %vm474, %v2133, 0
      %v2429 = vsel %vm474, %v2134, 0
      %v2432 = vsel %vm474, %v2135, 0
      %v2435 = vsel %vm474, %v2136, 0
      %v2438 = vsel %vm474, %v2137, 0
      %v2441 = vsel %vm474, %v2138, 0
      %v2444 = vsel %vm474, %v2139, 0
      %v2447 = vsel %vm474, %v2140, 0
      %v2450 = vsel %vm474, %v2141, 0
      %v2453 = vsel %vm474, %v2142, 0
      %v2456 = vsel %vm474, %v2143, 0
      %v2459 = vsel %vm474, %v2144, 0
      %v2462 = vsel %vm474, %v2145, 0
      %v2465 = vsel %vm474, %v2146, 0
      %v2468 = vsel %vm474, %v2147, 0
      %v2471 = vsel %vm474, %v2148, 0
      %v2474 = vsel %vm474, %v2149, 0
      %v2477 = vsel %vm474, %v2150, 0
      %v2480 = vsel %vm474, %v2151, 0
      %v2483 = vsel %vm474, %v2152, 0
      %v2486 = vsel %vm474, %v2153, 0
      %v2489 = vsel %vm474, %v2154, 0
      %v2492 = vsel %vm474, %v2155, 0
      %v2495 = vsel %vm474, %v2156, 0
      %v2498 = vsel %vm474, %v2157, 0
      %v2501 = vsel %vm474, %v2158, 0
      %v2504 = vsel %vm474, %v2159, 0
      %v2507 = vsel %vm474, %v2160, 0
      %v2510 = vsel %vm474, %v2161, 0
      %v2513 = vsel %vm474, %v2162, 0
      %v2516 = vsel %vm474, %v2163, 0
      %v2519 = vsel %vm474, %v2164, 0
      %v2522 = vsel %vm474, %v2165, 0
      %v2525 = vsel %vm474, %v2166, 0
      %v2528 = vsel %vm474, %v2167, 0
      %v2531 = vsel %vm474, %v2168, 0
      %v2534 = vsel %vm474, %v2169, 0
      %v2537 = vsel %vm474, %v2170, 0
      %v2540 = vsel %vm474, %v2171, 0
      %v2543 = vsel %vm474, %v2172, 0
      %v2546 = vsel %vm474, %v2173, 0
      %v2549 = vsel %vm474, %v2174, 0
      %v2552 = vsel %vm474, %v2175, 0
      %v2555 = vsel %vm474, %v2176, 0
      %v2558 = vsel %vm474, %v2177, 0
      %v2561 = vsel %vm474, %v2178, 0
      %v2564 = vsel %vm474, %v2179, 0
      %v2567 = vsel %vm859, %v2181, 0
      %2569 = vmatpush.msra.mxu0 0.0
      %2570 = vmatpush.msra.mxu0 0.0
      %2571 = vmatpush.msra.mxu0 0.0
      %2572 = vmatpush.msra.mxu0 0.0
      %2573 = vmatpush.msra.mxu0 0.0
      %2574 = vmatpush.msra.mxu0 0.0
      %2575 = vmatpush.msra.mxu0 0.0
      %2576 = vmatpush.msra.mxu0 0.0
      %2577 = vmatpush.msra.mxu0 0.0
      %2578 = vmatpush.msra.mxu0 0.0
      %2579 = vmatpush.msra.mxu0 0.0
      %2580 = vmatpush.msra.mxu0 0.0
      %2581 = vmatpush.msra.mxu0 0.0
      %2582 = vmatpush.msra.mxu0 0.0
      %2583 = vmatpush.msra.mxu0 0.0
      %2584 = vmatpush.msra.mxu0 %v2567
      %2585 = vmatmul.f32.gmra.mxu0 %v2183
      %v2586 = vpop.f32.mrf.mxu0
      %v2587 = vadd.f32 0.0, %v2586
      %2588 = vmatmul.f32.gmra.mxu0 %v2186
      %v2589 = vpop.f32.mrf.mxu0
      %v2590 = vadd.f32 0.0, %v2589
      %2591 = vmatmul.f32.gmra.mxu0 %v2189
      %v2592 = vpop.f32.mrf.mxu0
      %v2593 = vadd.f32 0.0, %v2592
      %2594 = vmatmul.f32.gmra.mxu0 %v2192
      %v2595 = vpop.f32.mrf.mxu0
      %v2596 = vadd.f32 0.0, %v2595
      %2597 = vmatmul.f32.gmra.mxu0 %v2195
      %v2598 = vpop.f32.mrf.mxu0
      %v2599 = vadd.f32 0.0, %v2598
      %2600 = vmatmul.f32.gmra.mxu0 %v2198
      %v2601 = vpop.f32.mrf.mxu0
      %v2602 = vadd.f32 0.0, %v2601
      %2603 = vmatmul.f32.gmra.mxu0 %v2201
      %v2604 = vpop.f32.mrf.mxu0
      %v2605 = vadd.f32 0.0, %v2604
      %2606 = vmatmul.f32.gmra.mxu0 %v2204
      %v2607 = vpop.f32.mrf.mxu0
      %v2608 = vadd.f32 0.0, %v2607
      %2609 = vmatmul.f32.gmra.mxu0 %v2207
      %v2610 = vpop.f32.mrf.mxu0
      %v2611 = vadd.f32 0.0, %v2610
      %2612 = vmatmul.f32.gmra.mxu0 %v2210
      %v2613 = vpop.f32.mrf.mxu0
      %v2614 = vadd.f32 0.0, %v2613
      %2615 = vmatmul.f32.gmra.mxu0 %v2213
      %v2616 = vpop.f32.mrf.mxu0
      %v2617 = vadd.f32 0.0, %v2616
      %2618 = vmatmul.f32.gmra.mxu0 %v2216
      %v2619 = vpop.f32.mrf.mxu0
      %v2620 = vadd.f32 0.0, %v2619
      %2621 = vmatmul.f32.gmra.mxu0 %v2219
      %v2622 = vpop.f32.mrf.mxu0
      %v2623 = vadd.f32 0.0, %v2622
      %2624 = vmatmul.f32.gmra.mxu0 %v2222
      %v2625 = vpop.f32.mrf.mxu0
      %v2626 = vadd.f32 0.0, %v2625
      %2627 = vmatmul.f32.gmra.mxu0 %v2225
      %v2628 = vpop.f32.mrf.mxu0
      %v2629 = vadd.f32 0.0, %v2628
      %2630 = vmatmul.f32.gmra.mxu0 %v2228
      %v2631 = vpop.f32.mrf.mxu0
      %v2632 = vadd.f32 0.0, %v2631
      %2633 = vmatmul.f32.gmra.mxu0 %v2231
      %v2634 = vpop.f32.mrf.mxu0
      %v2635 = vadd.f32 0.0, %v2634
      %2636 = vmatmul.f32.gmra.mxu0 %v2234
      %v2637 = vpop.f32.mrf.mxu0
      %v2638 = vadd.f32 0.0, %v2637
      %2639 = vmatmul.f32.gmra.mxu0 %v2237
      %v2640 = vpop.f32.mrf.mxu0
      %v2641 = vadd.f32 0.0, %v2640
      %2642 = vmatmul.f32.gmra.mxu0 %v2240
      %v2643 = vpop.f32.mrf.mxu0
      %v2644 = vadd.f32 0.0, %v2643
      %2645 = vmatmul.f32.gmra.mxu0 %v2243
      %v2646 = vpop.f32.mrf.mxu0
      %v2647 = vadd.f32 0.0, %v2646
      %2648 = vmatmul.f32.gmra.mxu0 %v2246
      %v2649 = vpop.f32.mrf.mxu0
      %v2650 = vadd.f32 0.0, %v2649
      %2651 = vmatmul.f32.gmra.mxu0 %v2249
      %v2652 = vpop.f32.mrf.mxu0
      %v2653 = vadd.f32 0.0, %v2652
      %2654 = vmatmul.f32.gmra.mxu0 %v2252
      %v2655 = vpop.f32.mrf.mxu0
      %v2656 = vadd.f32 0.0, %v2655
      %2657 = vmatmul.f32.gmra.mxu0 %v2255
      %v2658 = vpop.f32.mrf.mxu0
      %v2659 = vadd.f32 0.0, %v2658
      %2660 = vmatmul.f32.gmra.mxu0 %v2258
      %v2661 = vpop.f32.mrf.mxu0
      %v2662 = vadd.f32 0.0, %v2661
      %2663 = vmatmul.f32.gmra.mxu0 %v2261
      %v2664 = vpop.f32.mrf.mxu0
      %v2665 = vadd.f32 0.0, %v2664
      %2666 = vmatmul.f32.gmra.mxu0 %v2264
      %v2667 = vpop.f32.mrf.mxu0
      %v2668 = vadd.f32 0.0, %v2667
      %2669 = vmatmul.f32.gmra.mxu0 %v2267
      %v2670 = vpop.f32.mrf.mxu0
      %v2671 = vadd.f32 0.0, %v2670
      %2672 = vmatmul.f32.gmra.mxu0 %v2270
      %v2673 = vpop.f32.mrf.mxu0
      %v2674 = vadd.f32 0.0, %v2673
      %2675 = vmatmul.f32.gmra.mxu0 %v2273
      %v2676 = vpop.f32.mrf.mxu0
      %v2677 = vadd.f32 0.0, %v2676
      %2678 = vmatmul.f32.gmra.mxu0 %v2276
      %v2679 = vpop.f32.mrf.mxu0
      %v2680 = vadd.f32 0.0, %v2679
      %2681 = vmatmul.f32.gmra.mxu0 %v2279
      %v2682 = vpop.f32.mrf.mxu0
      %v2683 = vadd.f32 0.0, %v2682
      %2684 = vmatmul.f32.gmra.mxu0 %v2282
      %v2685 = vpop.f32.mrf.mxu0
      %v2686 = vadd.f32 0.0, %v2685
      %2687 = vmatmul.f32.gmra.mxu0 %v2285
      %v2688 = vpop.f32.mrf.mxu0
      %v2689 = vadd.f32 0.0, %v2688
      %2690 = vmatmul.f32.gmra.mxu0 %v2288
      %v2691 = vpop.f32.mrf.mxu0
      %v2692 = vadd.f32 0.0, %v2691
      %2693 = vmatmul.f32.gmra.mxu0 %v2291
      %v2694 = vpop.f32.mrf.mxu0
      %v2695 = vadd.f32 0.0, %v2694
      %2696 = vmatmul.f32.gmra.mxu0 %v2294
      %v2697 = vpop.f32.mrf.mxu0
      %v2698 = vadd.f32 0.0, %v2697
      %2699 = vmatmul.f32.gmra.mxu0 %v2297
      %v2700 = vpop.f32.mrf.mxu0
      %v2701 = vadd.f32 0.0, %v2700
      %2702 = vmatmul.f32.gmra.mxu0 %v2300
      %v2703 = vpop.f32.mrf.mxu0
      %v2704 = vadd.f32 0.0, %v2703
      %2705 = vmatmul.f32.gmra.mxu0 %v2303
      %v2706 = vpop.f32.mrf.mxu0
      %v2707 = vadd.f32 0.0, %v2706
      %2708 = vmatmul.f32.gmra.mxu0 %v2306
      %v2709 = vpop.f32.mrf.mxu0
      %v2710 = vadd.f32 0.0, %v2709
      %2711 = vmatmul.f32.gmra.mxu0 %v2309
      %v2712 = vpop.f32.mrf.mxu0
      %v2713 = vadd.f32 0.0, %v2712
      %2714 = vmatmul.f32.gmra.mxu0 %v2312
      %v2715 = vpop.f32.mrf.mxu0
      %v2716 = vadd.f32 0.0, %v2715
      %2717 = vmatmul.f32.gmra.mxu0 %v2315
      %v2718 = vpop.f32.mrf.mxu0
      %v2719 = vadd.f32 0.0, %v2718
      %2720 = vmatmul.f32.gmra.mxu0 %v2318
      %v2721 = vpop.f32.mrf.mxu0
      %v2722 = vadd.f32 0.0, %v2721
      %2723 = vmatmul.f32.gmra.mxu0 %v2321
      %v2724 = vpop.f32.mrf.mxu0
      %v2725 = vadd.f32 0.0, %v2724
      %2726 = vmatmul.f32.gmra.mxu0 %v2324
      %v2727 = vpop.f32.mrf.mxu0
      %v2728 = vadd.f32 0.0, %v2727
      %2729 = vmatmul.f32.gmra.mxu0 %v2327
      %v2730 = vpop.f32.mrf.mxu0
      %v2731 = vadd.f32 0.0, %v2730
      %2732 = vmatmul.f32.gmra.mxu0 %v2330
      %v2733 = vpop.f32.mrf.mxu0
      %v2734 = vadd.f32 0.0, %v2733
      %2735 = vmatmul.f32.gmra.mxu0 %v2333
      %v2736 = vpop.f32.mrf.mxu0
      %v2737 = vadd.f32 0.0, %v2736
      %2738 = vmatmul.f32.gmra.mxu0 %v2336
      %v2739 = vpop.f32.mrf.mxu0
      %v2740 = vadd.f32 0.0, %v2739
      %2741 = vmatmul.f32.gmra.mxu0 %v2339
      %v2742 = vpop.f32.mrf.mxu0
      %v2743 = vadd.f32 0.0, %v2742
      %2744 = vmatmul.f32.gmra.mxu0 %v2342
      %v2745 = vpop.f32.mrf.mxu0
      %v2746 = vadd.f32 0.0, %v2745
      %2747 = vmatmul.f32.gmra.mxu0 %v2345
      %v2748 = vpop.f32.mrf.mxu0
      %v2749 = vadd.f32 0.0, %v2748
      %2750 = vmatmul.f32.gmra.mxu0 %v2348
      %v2751 = vpop.f32.mrf.mxu0
      %v2752 = vadd.f32 0.0, %v2751
      %2753 = vmatmul.f32.gmra.mxu0 %v2351
      %v2754 = vpop.f32.mrf.mxu0
      %v2755 = vadd.f32 0.0, %v2754
      %2756 = vmatmul.f32.gmra.mxu0 %v2354
      %v2757 = vpop.f32.mrf.mxu0
      %v2758 = vadd.f32 0.0, %v2757
      %2759 = vmatmul.f32.gmra.mxu0 %v2357
      %v2760 = vpop.f32.mrf.mxu0
      %v2761 = vadd.f32 0.0, %v2760
      %2762 = vmatmul.f32.gmra.mxu0 %v2360
      %v2763 = vpop.f32.mrf.mxu0
      %v2764 = vadd.f32 0.0, %v2763
      %2765 = vmatmul.f32.gmra.mxu0 %v2363
      %v2766 = vpop.f32.mrf.mxu0
      %v2767 = vadd.f32 0.0, %v2766
      %2768 = vmatmul.f32.gmra.mxu0 %v2366
      %v2769 = vpop.f32.mrf.mxu0
      %v2770 = vadd.f32 0.0, %v2769
      %2771 = vmatmul.f32.gmra.mxu0 %v2369
      %v2772 = vpop.f32.mrf.mxu0
      %v2773 = vadd.f32 0.0, %v2772
      %2774 = vmatmul.f32.gmra.mxu0 %v2372
      %v2775 = vpop.f32.mrf.mxu0
      %v2776 = vadd.f32 0.0, %v2775
      %2777 = vmatmul.f32.gmra.mxu0 %v2375
      %v2778 = vpop.f32.mrf.mxu0
      %v2779 = vadd.f32 0.0, %v2778
      %2780 = vmatmul.f32.gmra.mxu0 %v2378
      %v2781 = vpop.f32.mrf.mxu0
      %v2782 = vadd.f32 0.0, %v2781
      %2783 = vmatmul.f32.gmra.mxu0 %v2381
      %v2784 = vpop.f32.mrf.mxu0
      %v2785 = vadd.f32 0.0, %v2784
      %2786 = vmatmul.f32.gmra.mxu0 %v2384
      %v2787 = vpop.f32.mrf.mxu0
      %v2788 = vadd.f32 0.0, %v2787
      %2789 = vmatmul.f32.gmra.mxu0 %v2387
      %v2790 = vpop.f32.mrf.mxu0
      %v2791 = vadd.f32 0.0, %v2790
      %2792 = vmatmul.f32.gmra.mxu0 %v2390
      %v2793 = vpop.f32.mrf.mxu0
      %v2794 = vadd.f32 0.0, %v2793
      %2795 = vmatmul.f32.gmra.mxu0 %v2393
      %v2796 = vpop.f32.mrf.mxu0
      %v2797 = vadd.f32 0.0, %v2796
      %2798 = vmatmul.f32.gmra.mxu0 %v2396
      %v2799 = vpop.f32.mrf.mxu0
      %v2800 = vadd.f32 0.0, %v2799
      %2801 = vmatmul.f32.gmra.mxu0 %v2399
      %v2802 = vpop.f32.mrf.mxu0
      %v2803 = vadd.f32 0.0, %v2802
      %2804 = vmatmul.f32.gmra.mxu0 %v2402
      %v2805 = vpop.f32.mrf.mxu0
      %v2806 = vadd.f32 0.0, %v2805
      %2807 = vmatmul.f32.gmra.mxu0 %v2405
      %v2808 = vpop.f32.mrf.mxu0
      %v2809 = vadd.f32 0.0, %v2808
      %2810 = vmatmul.f32.gmra.mxu0 %v2408
      %v2811 = vpop.f32.mrf.mxu0
      %v2812 = vadd.f32 0.0, %v2811
      %2813 = vmatmul.f32.gmra.mxu0 %v2411
      %v2814 = vpop.f32.mrf.mxu0
      %v2815 = vadd.f32 0.0, %v2814
      %2816 = vmatmul.f32.gmra.mxu0 %v2414
      %v2817 = vpop.f32.mrf.mxu0
      %v2818 = vadd.f32 0.0, %v2817
      %2819 = vmatmul.f32.gmra.mxu0 %v2417
      %v2820 = vpop.f32.mrf.mxu0
      %v2821 = vadd.f32 0.0, %v2820
      %2822 = vmatmul.f32.gmra.mxu0 %v2420
      %v2823 = vpop.f32.mrf.mxu0
      %v2824 = vadd.f32 0.0, %v2823
      %2825 = vmatmul.f32.gmra.mxu0 %v2423
      %v2826 = vpop.f32.mrf.mxu0
      %v2827 = vadd.f32 0.0, %v2826
      %2828 = vmatmul.f32.gmra.mxu0 %v2426
      %v2829 = vpop.f32.mrf.mxu0
      %v2830 = vadd.f32 0.0, %v2829
      %2831 = vmatmul.f32.gmra.mxu0 %v2429
      %v2832 = vpop.f32.mrf.mxu0
      %v2833 = vadd.f32 0.0, %v2832
      %2834 = vmatmul.f32.gmra.mxu0 %v2432
      %v2835 = vpop.f32.mrf.mxu0
      %v2836 = vadd.f32 0.0, %v2835
      %2837 = vmatmul.f32.gmra.mxu0 %v2435
      %v2838 = vpop.f32.mrf.mxu0
      %v2839 = vadd.f32 0.0, %v2838
      %2840 = vmatmul.f32.gmra.mxu0 %v2438
      %v2841 = vpop.f32.mrf.mxu0
      %v2842 = vadd.f32 0.0, %v2841
      %2843 = vmatmul.f32.gmra.mxu0 %v2441
      %v2844 = vpop.f32.mrf.mxu0
      %v2845 = vadd.f32 0.0, %v2844
      %2846 = vmatmul.f32.gmra.mxu0 %v2444
      %v2847 = vpop.f32.mrf.mxu0
      %v2848 = vadd.f32 0.0, %v2847
      %2849 = vmatmul.f32.gmra.mxu0 %v2447
      %v2850 = vpop.f32.mrf.mxu0
      %v2851 = vadd.f32 0.0, %v2850
      %2852 = vmatmul.f32.gmra.mxu0 %v2450
      %v2853 = vpop.f32.mrf.mxu0
      %v2854 = vadd.f32 0.0, %v2853
      %2855 = vmatmul.f32.gmra.mxu0 %v2453
      %v2856 = vpop.f32.mrf.mxu0
      %v2857 = vadd.f32 0.0, %v2856
      %2858 = vmatmul.f32.gmra.mxu0 %v2456
      %v2859 = vpop.f32.mrf.mxu0
      %v2860 = vadd.f32 0.0, %v2859
      %2861 = vmatmul.f32.gmra.mxu0 %v2459
      %v2862 = vpop.f32.mrf.mxu0
      %v2863 = vadd.f32 0.0, %v2862
      %2864 = vmatmul.f32.gmra.mxu0 %v2462
      %v2865 = vpop.f32.mrf.mxu0
      %v2866 = vadd.f32 0.0, %v2865
      %2867 = vmatmul.f32.gmra.mxu0 %v2465
      %v2868 = vpop.f32.mrf.mxu0
      %v2869 = vadd.f32 0.0, %v2868
      %2870 = vmatmul.f32.gmra.mxu0 %v2468
      %v2871 = vpop.f32.mrf.mxu0
      %v2872 = vadd.f32 0.0, %v2871
      %2873 = vmatmul.f32.gmra.mxu0 %v2471
      %v2874 = vpop.f32.mrf.mxu0
      %v2875 = vadd.f32 0.0, %v2874
      %2876 = vmatmul.f32.gmra.mxu0 %v2474
      %v2877 = vpop.f32.mrf.mxu0
      %v2878 = vadd.f32 0.0, %v2877
      %2879 = vmatmul.f32.gmra.mxu0 %v2477
      %v2880 = vpop.f32.mrf.mxu0
      %v2881 = vadd.f32 0.0, %v2880
      %2882 = vmatmul.f32.gmra.mxu0 %v2480
      %v2883 = vpop.f32.mrf.mxu0
      %v2884 = vadd.f32 0.0, %v2883
      %2885 = vmatmul.f32.gmra.mxu0 %v2483
      %v2886 = vpop.f32.mrf.mxu0
      %v2887 = vadd.f32 0.0, %v2886
      %2888 = vmatmul.f32.gmra.mxu0 %v2486
      %v2889 = vpop.f32.mrf.mxu0
      %v2890 = vadd.f32 0.0, %v2889
      %2891 = vmatmul.f32.gmra.mxu0 %v2489
      %v2892 = vpop.f32.mrf.mxu0
      %v2893 = vadd.f32 0.0, %v2892
      %2894 = vmatmul.f32.gmra.mxu0 %v2492
      %v2895 = vpop.f32.mrf.mxu0
      %v2896 = vadd.f32 0.0, %v2895
      %2897 = vmatmul.f32.gmra.mxu0 %v2495
      %v2898 = vpop.f32.mrf.mxu0
      %v2899 = vadd.f32 0.0, %v2898
      %2900 = vmatmul.f32.gmra.mxu0 %v2498
      %v2901 = vpop.f32.mrf.mxu0
      %v2902 = vadd.f32 0.0, %v2901
      %2903 = vmatmul.f32.gmra.mxu0 %v2501
      %v2904 = vpop.f32.mrf.mxu0
      %v2905 = vadd.f32 0.0, %v2904
      %2906 = vmatmul.f32.gmra.mxu0 %v2504
      %v2907 = vpop.f32.mrf.mxu0
      %v2908 = vadd.f32 0.0, %v2907
      %2909 = vmatmul.f32.gmra.mxu0 %v2507
      %v2910 = vpop.f32.mrf.mxu0
      %v2911 = vadd.f32 0.0, %v2910
      %2912 = vmatmul.f32.gmra.mxu0 %v2510
      %v2913 = vpop.f32.mrf.mxu0
      %v2914 = vadd.f32 0.0, %v2913
      %2915 = vmatmul.f32.gmra.mxu0 %v2513
      %v2916 = vpop.f32.mrf.mxu0
      %v2917 = vadd.f32 0.0, %v2916
      %2918 = vmatmul.f32.gmra.mxu0 %v2516
      %v2919 = vpop.f32.mrf.mxu0
      %v2920 = vadd.f32 0.0, %v2919
      %2921 = vmatmul.f32.gmra.mxu0 %v2519
      %v2922 = vpop.f32.mrf.mxu0
      %v2923 = vadd.f32 0.0, %v2922
      %2924 = vmatmul.f32.gmra.mxu0 %v2522
      %v2925 = vpop.f32.mrf.mxu0
      %v2926 = vadd.f32 0.0, %v2925
      %2927 = vmatmul.f32.gmra.mxu0 %v2525
      %v2928 = vpop.f32.mrf.mxu0
      %v2929 = vadd.f32 0.0, %v2928
      %2930 = vmatmul.f32.gmra.mxu0 %v2528
      %v2931 = vpop.f32.mrf.mxu0
      %v2932 = vadd.f32 0.0, %v2931
      %2933 = vmatmul.f32.gmra.mxu0 %v2531
      %v2934 = vpop.f32.mrf.mxu0
      %v2935 = vadd.f32 0.0, %v2934
      %2936 = vmatmul.f32.gmra.mxu0 %v2534
      %v2937 = vpop.f32.mrf.mxu0
      %v2938 = vadd.f32 0.0, %v2937
      %2939 = vmatmul.f32.gmra.mxu0 %v2537
      %v2940 = vpop.f32.mrf.mxu0
      %v2941 = vadd.f32 0.0, %v2940
      %2942 = vmatmul.f32.gmra.mxu0 %v2540
      %v2943 = vpop.f32.mrf.mxu0
      %v2944 = vadd.f32 0.0, %v2943
      %2945 = vmatmul.f32.gmra.mxu0 %v2543
      %v2946 = vpop.f32.mrf.mxu0
      %v2947 = vadd.f32 0.0, %v2946
      %2948 = vmatmul.f32.gmra.mxu0 %v2546
      %v2949 = vpop.f32.mrf.mxu0
      %v2950 = vadd.f32 0.0, %v2949
      %2951 = vmatmul.f32.gmra.mxu0 %v2549
      %v2952 = vpop.f32.mrf.mxu0
      %v2953 = vadd.f32 0.0, %v2952
      %2954 = vmatmul.f32.gmra.mxu0 %v2552
      %v2955 = vpop.f32.mrf.mxu0
      %v2956 = vadd.f32 0.0, %v2955
      %2957 = vmatmul.f32.gmra.mxu0 %v2555
      %v2958 = vpop.f32.mrf.mxu0
      %v2959 = vadd.f32 0.0, %v2958
      %2960 = vmatmul.f32.gmra.mxu0 %v2558
      %v2961 = vpop.f32.mrf.mxu0
      %v2962 = vadd.f32 0.0, %v2961
      %2963 = vmatmul.f32.gmra.mxu0 %v2561
      %v2964 = vpop.f32.mrf.mxu0
      %v2965 = vadd.f32 0.0, %v2964
      %2966 = vmatmul.f32.gmra.mxu0 %v2564
      %v2967 = vpop.f32.mrf.mxu0
      %v2968 = vadd.f32 0.0, %v2967
      %2969 = vdwg.mxu0
      %v2970 = vadd.f32 %v1669, %v2587
      %v2971 = vadd.f32 %v1672, %v2590
      %v2972 = vadd.f32 %v1675, %v2593
      %v2973 = vadd.f32 %v1678, %v2596
      %v2974 = vadd.f32 %v1681, %v2599
      %v2975 = vadd.f32 %v1684, %v2602
      %v2976 = vadd.f32 %v1687, %v2605
      %v2977 = vadd.f32 %v1690, %v2608
      %v2978 = vadd.f32 %v1693, %v2611
      %v2979 = vadd.f32 %v1696, %v2614
      %v2980 = vadd.f32 %v1699, %v2617
      %v2981 = vadd.f32 %v1702, %v2620
      %v2982 = vadd.f32 %v1705, %v2623
      %v2983 = vadd.f32 %v1708, %v2626
      %v2984 = vadd.f32 %v1711, %v2629
      %v2985 = vadd.f32 %v1714, %v2632
      %v2986 = vadd.f32 %v1717, %v2635
      %v2987 = vadd.f32 %v1720, %v2638
      %v2988 = vadd.f32 %v1723, %v2641
      %v2989 = vadd.f32 %v1726, %v2644
      %v2990 = vadd.f32 %v1729, %v2647
      %v2991 = vadd.f32 %v1732, %v2650
      %v2992 = vadd.f32 %v1735, %v2653
      %v2993 = vadd.f32 %v1738, %v2656
      %v2994 = vadd.f32 %v1741, %v2659
      %v2995 = vadd.f32 %v1744, %v2662
      %v2996 = vadd.f32 %v1747, %v2665
      %v2997 = vadd.f32 %v1750, %v2668
      %v2998 = vadd.f32 %v1753, %v2671
      %v2999 = vadd.f32 %v1756, %v2674
      %v3000 = vadd.f32 %v1759, %v2677
      %v3001 = vadd.f32 %v1762, %v2680
      %v3002 = vadd.f32 %v1765, %v2683
      %v3003 = vadd.f32 %v1768, %v2686
      %v3004 = vadd.f32 %v1771, %v2689
      %v3005 = vadd.f32 %v1774, %v2692
      %v3006 = vadd.f32 %v1777, %v2695
      %v3007 = vadd.f32 %v1780, %v2698
      %v3008 = vadd.f32 %v1783, %v2701
      %v3009 = vadd.f32 %v1786, %v2704
      %v3010 = vadd.f32 %v1789, %v2707
      %v3011 = vadd.f32 %v1792, %v2710
      %v3012 = vadd.f32 %v1795, %v2713
      %v3013 = vadd.f32 %v1798, %v2716
      %v3014 = vadd.f32 %v1801, %v2719
      %v3015 = vadd.f32 %v1804, %v2722
      %v3016 = vadd.f32 %v1807, %v2725
      %v3017 = vadd.f32 %v1810, %v2728
      %v3018 = vadd.f32 %v1813, %v2731
      %v3019 = vadd.f32 %v1816, %v2734
      %v3020 = vadd.f32 %v1819, %v2737
      %v3021 = vadd.f32 %v1822, %v2740
      %v3022 = vadd.f32 %v1825, %v2743
      %v3023 = vadd.f32 %v1828, %v2746
      %v3024 = vadd.f32 %v1831, %v2749
      %v3025 = vadd.f32 %v1834, %v2752
      %v3026 = vadd.f32 %v1837, %v2755
      %v3027 = vadd.f32 %v1840, %v2758
      %v3028 = vadd.f32 %v1843, %v2761
      %v3029 = vadd.f32 %v1846, %v2764
      %v3030 = vadd.f32 %v1849, %v2767
      %v3031 = vadd.f32 %v1852, %v2770
      %v3032 = vadd.f32 %v1855, %v2773
      %v3033 = vadd.f32 %v1858, %v2776
      %v3034 = vadd.f32 %v1861, %v2779
      %v3035 = vadd.f32 %v1864, %v2782
      %v3036 = vadd.f32 %v1867, %v2785
      %v3037 = vadd.f32 %v1870, %v2788
      %v3038 = vadd.f32 %v1873, %v2791
      %v3039 = vadd.f32 %v1876, %v2794
      %v3040 = vadd.f32 %v1879, %v2797
      %v3041 = vadd.f32 %v1882, %v2800
      %v3042 = vadd.f32 %v1885, %v2803
      %v3043 = vadd.f32 %v1888, %v2806
      %v3044 = vadd.f32 %v1891, %v2809
      %v3045 = vadd.f32 %v1894, %v2812
      %v3046 = vadd.f32 %v1897, %v2815
      %v3047 = vadd.f32 %v1900, %v2818
      %v3048 = vadd.f32 %v1903, %v2821
      %v3049 = vadd.f32 %v1906, %v2824
      %v3050 = vadd.f32 %v1909, %v2827
      %v3051 = vadd.f32 %v1912, %v2830
      %v3052 = vadd.f32 %v1915, %v2833
      %v3053 = vadd.f32 %v1918, %v2836
      %v3054 = vadd.f32 %v1921, %v2839
      %v3055 = vadd.f32 %v1924, %v2842
      %v3056 = vadd.f32 %v1927, %v2845
      %v3057 = vadd.f32 %v1930, %v2848
      %v3058 = vadd.f32 %v1933, %v2851
      %v3059 = vadd.f32 %v1936, %v2854
      %v3060 = vadd.f32 %v1939, %v2857
      %v3061 = vadd.f32 %v1942, %v2860
      %v3062 = vadd.f32 %v1945, %v2863
      %v3063 = vadd.f32 %v1948, %v2866
      %v3064 = vadd.f32 %v1951, %v2869
      %v3065 = vadd.f32 %v1954, %v2872
      %v3066 = vadd.f32 %v1957, %v2875
      %v3067 = vadd.f32 %v1960, %v2878
      %v3068 = vadd.f32 %v1963, %v2881
      %v3069 = vadd.f32 %v1966, %v2884
      %v3070 = vadd.f32 %v1969, %v2887
      %v3071 = vadd.f32 %v1972, %v2890
      %v3072 = vadd.f32 %v1975, %v2893
      %v3073 = vadd.f32 %v1978, %v2896
      %v3074 = vadd.f32 %v1981, %v2899
      %v3075 = vadd.f32 %v1984, %v2902
      %v3076 = vadd.f32 %v1987, %v2905
      %v3077 = vadd.f32 %v1990, %v2908
      %v3078 = vadd.f32 %v1993, %v2911
      %v3079 = vadd.f32 %v1996, %v2914
      %v3080 = vadd.f32 %v1999, %v2917
      %v3081 = vadd.f32 %v2002, %v2920
      %v3082 = vadd.f32 %v2005, %v2923
      %v3083 = vadd.f32 %v2008, %v2926
      %v3084 = vadd.f32 %v2011, %v2929
      %v3085 = vadd.f32 %v2014, %v2932
      %v3086 = vadd.f32 %v2017, %v2935
      %v3087 = vadd.f32 %v2020, %v2938
      %v3088 = vadd.f32 %v2023, %v2941
      %v3089 = vadd.f32 %v2026, %v2944
      %v3090 = vadd.f32 %v2029, %v2947
      %v3091 = vadd.f32 %v2032, %v2950
      %v3092 = vadd.f32 %v2035, %v2953
      %v3093 = vadd.f32 %v2038, %v2956
      %v3094 = vadd.f32 %v2041, %v2959
      %v3095 = vadd.f32 %v2044, %v2962
      %v3096 = vadd.f32 %v2047, %v2965
      %v3097 = vadd.f32 %v2050, %v2968
      %s3098 = scalar_lea.vmem %s203, 40
      %v3099 = vld [vmem:[%s3098] sm:$0xff]
      %v3100 = vld [vmem:[%s3098 + $0x8] sm:$0xff]
      %v3101 = vld [vmem:[%s3098 + $0x10] sm:$0xff]
      %v3102 = vld [vmem:[%s3098 + $0x18] sm:$0xff]
      %v3103 = vld [vmem:[%s3098 + $0x28] sm:$0xff]
      %v3104 = vld [vmem:[%s3098 + $0x30] sm:$0xff]
      %v3105 = vld [vmem:[%s3098 + $0x38] sm:$0xff]
      %v3106 = vld [vmem:[%s3098 + $0x40] sm:$0xff]
      %v3107 = vld [vmem:[%s3098 + $0x50] sm:$0xff]
      %v3108 = vld [vmem:[%s3098 + $0x58] sm:$0xff]
      %v3109 = vld [vmem:[%s3098 + $0x60] sm:$0xff]
      %v3110 = vld [vmem:[%s3098 + $0x68] sm:$0xff]
      %v3111 = vld [vmem:[%s3098 + $0x78] sm:$0xff]
      %v3112 = vld [vmem:[%s3098 + $0x80] sm:$0xff]
      %v3113 = vld [vmem:[%s3098 + $0x88] sm:$0xff]
      %v3114 = vld [vmem:[%s3098 + $0x90] sm:$0xff]
      %v3115 = vld [vmem:[%s3098 + $0xa0] sm:$0xff]
      %v3116 = vld [vmem:[%s3098 + $0xa8] sm:$0xff]
      %v3117 = vld [vmem:[%s3098 + $0xb0] sm:$0xff]
      %v3118 = vld [vmem:[%s3098 + $0xb8] sm:$0xff]
      %v3119 = vld [vmem:[%s3098 + $0xc8] sm:$0xff]
      %v3120 = vld [vmem:[%s3098 + $0xd0] sm:$0xff]
      %v3121 = vld [vmem:[%s3098 + $0xd8] sm:$0xff]
      %v3122 = vld [vmem:[%s3098 + $0xe0] sm:$0xff]
      %v3123 = vld [vmem:[%s3098 + $0xf0] sm:$0xff]
      %v3124 = vld [vmem:[%s3098 + $0xf8] sm:$0xff]
      %v3125 = vld [vmem:[%s3098 + $0x100] sm:$0xff]
      %v3126 = vld [vmem:[%s3098 + $0x108] sm:$0xff]
      %v3127 = vld [vmem:[%s3098 + $0x118] sm:$0xff]
      %v3128 = vld [vmem:[%s3098 + $0x120] sm:$0xff]
      %v3129 = vld [vmem:[%s3098 + $0x128] sm:$0xff]
      %v3130 = vld [vmem:[%s3098 + $0x130] sm:$0xff]
      %v3131 = vld [vmem:[%s3098 + $0x140] sm:$0xff]
      %v3132 = vld [vmem:[%s3098 + $0x148] sm:$0xff]
      %v3133 = vld [vmem:[%s3098 + $0x150] sm:$0xff]
      %v3134 = vld [vmem:[%s3098 + $0x158] sm:$0xff]
      %v3135 = vld [vmem:[%s3098 + $0x168] sm:$0xff]
      %v3136 = vld [vmem:[%s3098 + $0x170] sm:$0xff]
      %v3137 = vld [vmem:[%s3098 + $0x178] sm:$0xff]
      %v3138 = vld [vmem:[%s3098 + $0x180] sm:$0xff]
      %v3139 = vld [vmem:[%s3098 + $0x190] sm:$0xff]
      %v3140 = vld [vmem:[%s3098 + $0x198] sm:$0xff]
      %v3141 = vld [vmem:[%s3098 + $0x1a0] sm:$0xff]
      %v3142 = vld [vmem:[%s3098 + $0x1a8] sm:$0xff]
      %v3143 = vld [vmem:[%s3098 + $0x1b8] sm:$0xff]
      %v3144 = vld [vmem:[%s3098 + $0x1c0] sm:$0xff]
      %v3145 = vld [vmem:[%s3098 + $0x1c8] sm:$0xff]
      %v3146 = vld [vmem:[%s3098 + $0x1d0] sm:$0xff]
      %v3147 = vld [vmem:[%s3098 + $0x1e0] sm:$0xff]
      %v3148 = vld [vmem:[%s3098 + $0x1e8] sm:$0xff]
      %v3149 = vld [vmem:[%s3098 + $0x1f0] sm:$0xff]
      %v3150 = vld [vmem:[%s3098 + $0x1f8] sm:$0xff]
      %v3151 = vld [vmem:[%s3098 + $0x208] sm:$0xff]
      %v3152 = vld [vmem:[%s3098 + $0x210] sm:$0xff]
      %v3153 = vld [vmem:[%s3098 + $0x218] sm:$0xff]
      %v3154 = vld [vmem:[%s3098 + $0x220] sm:$0xff]
      %v3155 = vld [vmem:[%s3098 + $0x230] sm:$0xff]
      %v3156 = vld [vmem:[%s3098 + $0x238] sm:$0xff]
      %v3157 = vld [vmem:[%s3098 + $0x240] sm:$0xff]
      %v3158 = vld [vmem:[%s3098 + $0x248] sm:$0xff]
      %v3159 = vld [vmem:[%s3098 + $0x258] sm:$0xff]
      %v3160 = vld [vmem:[%s3098 + $0x260] sm:$0xff]
      %v3161 = vld [vmem:[%s3098 + $0x268] sm:$0xff]
      %v3162 = vld [vmem:[%s3098 + $0x270] sm:$0xff]
      %v3163 = vld [vmem:[%s3098 + $0x280] sm:$0xff]
      %v3164 = vld [vmem:[%s3098 + $0x288] sm:$0xff]
      %v3165 = vld [vmem:[%s3098 + $0x290] sm:$0xff]
      %v3166 = vld [vmem:[%s3098 + $0x298] sm:$0xff]
      %v3167 = vld [vmem:[%s3098 + $0x2a8] sm:$0xff]
      %v3168 = vld [vmem:[%s3098 + $0x2b0] sm:$0xff]
      %v3169 = vld [vmem:[%s3098 + $0x2b8] sm:$0xff]
      %v3170 = vld [vmem:[%s3098 + $0x2c0] sm:$0xff]
      %v3171 = vld [vmem:[%s3098 + $0x2d0] sm:$0xff]
      %v3172 = vld [vmem:[%s3098 + $0x2d8] sm:$0xff]
      %v3173 = vld [vmem:[%s3098 + $0x2e0] sm:$0xff]
      %v3174 = vld [vmem:[%s3098 + $0x2e8] sm:$0xff]
      %v3175 = vld [vmem:[%s3098 + $0x2f8] sm:$0xff]
      %v3176 = vld [vmem:[%s3098 + $0x300] sm:$0xff]
      %v3177 = vld [vmem:[%s3098 + $0x308] sm:$0xff]
      %v3178 = vld [vmem:[%s3098 + $0x310] sm:$0xff]
      %v3179 = vld [vmem:[%s3098 + $0x320] sm:$0xff]
      %v3180 = vld [vmem:[%s3098 + $0x328] sm:$0xff]
      %v3181 = vld [vmem:[%s3098 + $0x330] sm:$0xff]
      %v3182 = vld [vmem:[%s3098 + $0x338] sm:$0xff]
      %v3183 = vld [vmem:[%s3098 + $0x348] sm:$0xff]
      %v3184 = vld [vmem:[%s3098 + $0x350] sm:$0xff]
      %v3185 = vld [vmem:[%s3098 + $0x358] sm:$0xff]
      %v3186 = vld [vmem:[%s3098 + $0x360] sm:$0xff]
      %v3187 = vld [vmem:[%s3098 + $0x370] sm:$0xff]
      %v3188 = vld [vmem:[%s3098 + $0x378] sm:$0xff]
      %v3189 = vld [vmem:[%s3098 + $0x380] sm:$0xff]
      %v3190 = vld [vmem:[%s3098 + $0x388] sm:$0xff]
      %v3191 = vld [vmem:[%s3098 + $0x398] sm:$0xff]
      %v3192 = vld [vmem:[%s3098 + $0x3a0] sm:$0xff]
      %v3193 = vld [vmem:[%s3098 + $0x3a8] sm:$0xff]
      %v3194 = vld [vmem:[%s3098 + $0x3b0] sm:$0xff]
      %v3195 = vld [vmem:[%s3098 + $0x3c0] sm:$0xff]
      %v3196 = vld [vmem:[%s3098 + $0x3c8] sm:$0xff]
      %v3197 = vld [vmem:[%s3098 + $0x3d0] sm:$0xff]
      %v3198 = vld [vmem:[%s3098 + $0x3d8] sm:$0xff]
      %v3199 = vld [vmem:[%s3098 + $0x3e8] sm:$0xff]
      %v3200 = vld [vmem:[%s3098 + $0x3f0] sm:$0xff]
      %v3201 = vld [vmem:[%s3098 + $0x3f8] sm:$0xff]
      %v3202 = vld [vmem:[%s3098 + $0x400] sm:$0xff]
      %v3203 = vld [vmem:[%s3098 + $0x410] sm:$0xff]
      %v3204 = vld [vmem:[%s3098 + $0x418] sm:$0xff]
      %v3205 = vld [vmem:[%s3098 + $0x420] sm:$0xff]
      %v3206 = vld [vmem:[%s3098 + $0x428] sm:$0xff]
      %v3207 = vld [vmem:[%s3098 + $0x438] sm:$0xff]
      %v3208 = vld [vmem:[%s3098 + $0x440] sm:$0xff]
      %v3209 = vld [vmem:[%s3098 + $0x448] sm:$0xff]
      %v3210 = vld [vmem:[%s3098 + $0x450] sm:$0xff]
      %v3211 = vld [vmem:[%s3098 + $0x460] sm:$0xff]
      %v3212 = vld [vmem:[%s3098 + $0x468] sm:$0xff]
      %v3213 = vld [vmem:[%s3098 + $0x470] sm:$0xff]
      %v3214 = vld [vmem:[%s3098 + $0x478] sm:$0xff]
      %v3215 = vld [vmem:[%s3098 + $0x488] sm:$0xff]
      %v3216 = vld [vmem:[%s3098 + $0x490] sm:$0xff]
      %v3217 = vld [vmem:[%s3098 + $0x498] sm:$0xff]
      %v3218 = vld [vmem:[%s3098 + $0x4a0] sm:$0xff]
      %v3219 = vld [vmem:[%s3098 + $0x4b0] sm:$0xff]
      %v3220 = vld [vmem:[%s3098 + $0x4b8] sm:$0xff]
      %v3221 = vld [vmem:[%s3098 + $0x4c0] sm:$0xff]
      %v3222 = vld [vmem:[%s3098 + $0x4c8] sm:$0xff]
      %v3223 = vld [vmem:[%s3098 + $0x4d8] sm:$0xff]
      %v3224 = vld [vmem:[%s3098 + $0x4e0] sm:$0xff]
      %v3225 = vld [vmem:[%s3098 + $0x4e8] sm:$0xff]
      %v3226 = vld [vmem:[%s3098 + $0x4f0] sm:$0xff]
      %s3227 = scalar_lea.vmem %s1, 12
      %v3228 = vld [vmem:[%s3227] sm:$0xf]
      %v3230 = vsel %vm474, %v3099, 0
      %v3233 = vsel %vm474, %v3100, 0
      %v3236 = vsel %vm474, %v3101, 0
      %v3239 = vsel %vm474, %v3102, 0
      %v3242 = vsel %vm474, %v3103, 0
      %v3245 = vsel %vm474, %v3104, 0
      %v3248 = vsel %vm474, %v3105, 0
      %v3251 = vsel %vm474, %v3106, 0
      %v3254 = vsel %vm474, %v3107, 0
      %v3257 = vsel %vm474, %v3108, 0
      %v3260 = vsel %vm474, %v3109, 0
      %v3263 = vsel %vm474, %v3110, 0
      %v3266 = vsel %vm474, %v3111, 0
      %v3269 = vsel %vm474, %v3112, 0
      %v3272 = vsel %vm474, %v3113, 0
      %v3275 = vsel %vm474, %v3114, 0
      %v3278 = vsel %vm474, %v3115, 0
      %v3281 = vsel %vm474, %v3116, 0
      %v3284 = vsel %vm474, %v3117, 0
      %v3287 = vsel %vm474, %v3118, 0
      %v3290 = vsel %vm474, %v3119, 0
      %v3293 = vsel %vm474, %v3120, 0
      %v3296 = vsel %vm474, %v3121, 0
      %v3299 = vsel %vm474, %v3122, 0
      %v3302 = vsel %vm474, %v3123, 0
      %v3305 = vsel %vm474, %v3124, 0
      %v3308 = vsel %vm474, %v3125, 0
      %v3311 = vsel %vm474, %v3126, 0
      %v3314 = vsel %vm474, %v3127, 0
      %v3317 = vsel %vm474, %v3128, 0
      %v3320 = vsel %vm474, %v3129, 0
      %v3323 = vsel %vm474, %v3130, 0
      %v3326 = vsel %vm474, %v3131, 0
      %v3329 = vsel %vm474, %v3132, 0
      %v3332 = vsel %vm474, %v3133, 0
      %v3335 = vsel %vm474, %v3134, 0
      %v3338 = vsel %vm474, %v3135, 0
      %v3341 = vsel %vm474, %v3136, 0
      %v3344 = vsel %vm474, %v3137, 0
      %v3347 = vsel %vm474, %v3138, 0
      %v3350 = vsel %vm474, %v3139, 0
      %v3353 = vsel %vm474, %v3140, 0
      %v3356 = vsel %vm474, %v3141, 0
      %v3359 = vsel %vm474, %v3142, 0
      %v3362 = vsel %vm474, %v3143, 0
      %v3365 = vsel %vm474, %v3144, 0
      %v3368 = vsel %vm474, %v3145, 0
      %v3371 = vsel %vm474, %v3146, 0
      %v3374 = vsel %vm474, %v3147, 0
      %v3377 = vsel %vm474, %v3148, 0
      %v3380 = vsel %vm474, %v3149, 0
      %v3383 = vsel %vm474, %v3150, 0
      %v3386 = vsel %vm474, %v3151, 0
      %v3389 = vsel %vm474, %v3152, 0
      %v3392 = vsel %vm474, %v3153, 0
      %v3395 = vsel %vm474, %v3154, 0
      %v3398 = vsel %vm474, %v3155, 0
      %v3401 = vsel %vm474, %v3156, 0
      %v3404 = vsel %vm474, %v3157, 0
      %v3407 = vsel %vm474, %v3158, 0
      %v3410 = vsel %vm474, %v3159, 0
      %v3413 = vsel %vm474, %v3160, 0
      %v3416 = vsel %vm474, %v3161, 0
      %v3419 = vsel %vm474, %v3162, 0
      %v3422 = vsel %vm474, %v3163, 0
      %v3425 = vsel %vm474, %v3164, 0
      %v3428 = vsel %vm474, %v3165, 0
      %v3431 = vsel %vm474, %v3166, 0
      %v3434 = vsel %vm474, %v3167, 0
      %v3437 = vsel %vm474, %v3168, 0
      %v3440 = vsel %vm474, %v3169, 0
      %v3443 = vsel %vm474, %v3170, 0
      %v3446 = vsel %vm474, %v3171, 0
      %v3449 = vsel %vm474, %v3172, 0
      %v3452 = vsel %vm474, %v3173, 0
      %v3455 = vsel %vm474, %v3174, 0
      %v3458 = vsel %vm474, %v3175, 0
      %v3461 = vsel %vm474, %v3176, 0
      %v3464 = vsel %vm474, %v3177, 0
      %v3467 = vsel %vm474, %v3178, 0
      %v3470 = vsel %vm474, %v3179, 0
      %v3473 = vsel %vm474, %v3180, 0
      %v3476 = vsel %vm474, %v3181, 0
      %v3479 = vsel %vm474, %v3182, 0
      %v3482 = vsel %vm474, %v3183, 0
      %v3485 = vsel %vm474, %v3184, 0
      %v3488 = vsel %vm474, %v3185, 0
      %v3491 = vsel %vm474, %v3186, 0
      %v3494 = vsel %vm474, %v3187, 0
      %v3497 = vsel %vm474, %v3188, 0
      %v3500 = vsel %vm474, %v3189, 0
      %v3503 = vsel %vm474, %v3190, 0
      %v3506 = vsel %vm474, %v3191, 0
      %v3509 = vsel %vm474, %v3192, 0
      %v3512 = vsel %vm474, %v3193, 0
      %v3515 = vsel %vm474, %v3194, 0
      %v3518 = vsel %vm474, %v3195, 0
      %v3521 = vsel %vm474, %v3196, 0
      %v3524 = vsel %vm474, %v3197, 0
      %v3527 = vsel %vm474, %v3198, 0
      %v3530 = vsel %vm474, %v3199, 0
      %v3533 = vsel %vm474, %v3200, 0
      %v3536 = vsel %vm474, %v3201, 0
      %v3539 = vsel %vm474, %v3202, 0
      %v3542 = vsel %vm474, %v3203, 0
      %v3545 = vsel %vm474, %v3204, 0
      %v3548 = vsel %vm474, %v3205, 0
      %v3551 = vsel %vm474, %v3206, 0
      %v3554 = vsel %vm474, %v3207, 0
      %v3557 = vsel %vm474, %v3208, 0
      %v3560 = vsel %vm474, %v3209, 0
      %v3563 = vsel %vm474, %v3210, 0
      %v3566 = vsel %vm474, %v3211, 0
      %v3569 = vsel %vm474, %v3212, 0
      %v3572 = vsel %vm474, %v3213, 0
      %v3575 = vsel %vm474, %v3214, 0
      %v3578 = vsel %vm474, %v3215, 0
      %v3581 = vsel %vm474, %v3216, 0
      %v3584 = vsel %vm474, %v3217, 0
      %v3587 = vsel %vm474, %v3218, 0
      %v3590 = vsel %vm474, %v3219, 0
      %v3593 = vsel %vm474, %v3220, 0
      %v3596 = vsel %vm474, %v3221, 0
      %v3599 = vsel %vm474, %v3222, 0
      %v3602 = vsel %vm474, %v3223, 0
      %v3605 = vsel %vm474, %v3224, 0
      %v3608 = vsel %vm474, %v3225, 0
      %v3611 = vsel %vm474, %v3226, 0
      %v3614 = vsel %vm859, %v3228, 0
      %3616 = vmatpush.msra.mxu0 0.0
      %3617 = vmatpush.msra.mxu0 0.0
      %3618 = vmatpush.msra.mxu0 0.0
      %3619 = vmatpush.msra.mxu0 0.0
      %3620 = vmatpush.msra.mxu0 0.0
      %3621 = vmatpush.msra.mxu0 0.0
      %3622 = vmatpush.msra.mxu0 0.0
      %3623 = vmatpush.msra.mxu0 0.0
      %3624 = vmatpush.msra.mxu0 0.0
      %3625 = vmatpush.msra.mxu0 0.0
      %3626 = vmatpush.msra.mxu0 0.0
      %3627 = vmatpush.msra.mxu0 0.0
      %3628 = vmatpush.msra.mxu0 0.0
      %3629 = vmatpush.msra.mxu0 0.0
      %3630 = vmatpush.msra.mxu0 0.0
      %3631 = vmatpush.msra.mxu0 %v3614
      %3632 = vmatmul.f32.gmra.mxu0 %v3230
      %v3633 = vpop.f32.mrf.mxu0
      %v3634 = vadd.f32 0.0, %v3633
      %3635 = vmatmul.f32.gmra.mxu0 %v3233
      %v3636 = vpop.f32.mrf.mxu0
      %v3637 = vadd.f32 0.0, %v3636
      %3638 = vmatmul.f32.gmra.mxu0 %v3236
      %v3639 = vpop.f32.mrf.mxu0
      %v3640 = vadd.f32 0.0, %v3639
      %3641 = vmatmul.f32.gmra.mxu0 %v3239
      %v3642 = vpop.f32.mrf.mxu0
      %v3643 = vadd.f32 0.0, %v3642
      %3644 = vmatmul.f32.gmra.mxu0 %v3242
      %v3645 = vpop.f32.mrf.mxu0
      %v3646 = vadd.f32 0.0, %v3645
      %3647 = vmatmul.f32.gmra.mxu0 %v3245
      %v3648 = vpop.f32.mrf.mxu0
      %v3649 = vadd.f32 0.0, %v3648
      %3650 = vmatmul.f32.gmra.mxu0 %v3248
      %v3651 = vpop.f32.mrf.mxu0
      %v3652 = vadd.f32 0.0, %v3651
      %3653 = vmatmul.f32.gmra.mxu0 %v3251
      %v3654 = vpop.f32.mrf.mxu0
      %v3655 = vadd.f32 0.0, %v3654
      %3656 = vmatmul.f32.gmra.mxu0 %v3254
      %v3657 = vpop.f32.mrf.mxu0
      %v3658 = vadd.f32 0.0, %v3657
      %3659 = vmatmul.f32.gmra.mxu0 %v3257
      %v3660 = vpop.f32.mrf.mxu0
      %v3661 = vadd.f32 0.0, %v3660
      %3662 = vmatmul.f32.gmra.mxu0 %v3260
      %v3663 = vpop.f32.mrf.mxu0
      %v3664 = vadd.f32 0.0, %v3663
      %3665 = vmatmul.f32.gmra.mxu0 %v3263
      %v3666 = vpop.f32.mrf.mxu0
      %v3667 = vadd.f32 0.0, %v3666
      %3668 = vmatmul.f32.gmra.mxu0 %v3266
      %v3669 = vpop.f32.mrf.mxu0
      %v3670 = vadd.f32 0.0, %v3669
      %3671 = vmatmul.f32.gmra.mxu0 %v3269
      %v3672 = vpop.f32.mrf.mxu0
      %v3673 = vadd.f32 0.0, %v3672
      %3674 = vmatmul.f32.gmra.mxu0 %v3272
      %v3675 = vpop.f32.mrf.mxu0
      %v3676 = vadd.f32 0.0, %v3675
      %3677 = vmatmul.f32.gmra.mxu0 %v3275
      %v3678 = vpop.f32.mrf.mxu0
      %v3679 = vadd.f32 0.0, %v3678
      %3680 = vmatmul.f32.gmra.mxu0 %v3278
      %v3681 = vpop.f32.mrf.mxu0
      %v3682 = vadd.f32 0.0, %v3681
      %3683 = vmatmul.f32.gmra.mxu0 %v3281
      %v3684 = vpop.f32.mrf.mxu0
      %v3685 = vadd.f32 0.0, %v3684
      %3686 = vmatmul.f32.gmra.mxu0 %v3284
      %v3687 = vpop.f32.mrf.mxu0
      %v3688 = vadd.f32 0.0, %v3687
      %3689 = vmatmul.f32.gmra.mxu0 %v3287
      %v3690 = vpop.f32.mrf.mxu0
      %v3691 = vadd.f32 0.0, %v3690
      %3692 = vmatmul.f32.gmra.mxu0 %v3290
      %v3693 = vpop.f32.mrf.mxu0
      %v3694 = vadd.f32 0.0, %v3693
      %3695 = vmatmul.f32.gmra.mxu0 %v3293
      %v3696 = vpop.f32.mrf.mxu0
      %v3697 = vadd.f32 0.0, %v3696
      %3698 = vmatmul.f32.gmra.mxu0 %v3296
      %v3699 = vpop.f32.mrf.mxu0
      %v3700 = vadd.f32 0.0, %v3699
      %3701 = vmatmul.f32.gmra.mxu0 %v3299
      %v3702 = vpop.f32.mrf.mxu0
      %v3703 = vadd.f32 0.0, %v3702
      %3704 = vmatmul.f32.gmra.mxu0 %v3302
      %v3705 = vpop.f32.mrf.mxu0
      %v3706 = vadd.f32 0.0, %v3705
      %3707 = vmatmul.f32.gmra.mxu0 %v3305
      %v3708 = vpop.f32.mrf.mxu0
      %v3709 = vadd.f32 0.0, %v3708
      %3710 = vmatmul.f32.gmra.mxu0 %v3308
      %v3711 = vpop.f32.mrf.mxu0
      %v3712 = vadd.f32 0.0, %v3711
      %3713 = vmatmul.f32.gmra.mxu0 %v3311
      %v3714 = vpop.f32.mrf.mxu0
      %v3715 = vadd.f32 0.0, %v3714
      %3716 = vmatmul.f32.gmra.mxu0 %v3314
      %v3717 = vpop.f32.mrf.mxu0
      %v3718 = vadd.f32 0.0, %v3717
      %3719 = vmatmul.f32.gmra.mxu0 %v3317
      %v3720 = vpop.f32.mrf.mxu0
      %v3721 = vadd.f32 0.0, %v3720
      %3722 = vmatmul.f32.gmra.mxu0 %v3320
      %v3723 = vpop.f32.mrf.mxu0
      %v3724 = vadd.f32 0.0, %v3723
      %3725 = vmatmul.f32.gmra.mxu0 %v3323
      %v3726 = vpop.f32.mrf.mxu0
      %v3727 = vadd.f32 0.0, %v3726
      %3728 = vmatmul.f32.gmra.mxu0 %v3326
      %v3729 = vpop.f32.mrf.mxu0
      %v3730 = vadd.f32 0.0, %v3729
      %3731 = vmatmul.f32.gmra.mxu0 %v3329
      %v3732 = vpop.f32.mrf.mxu0
      %v3733 = vadd.f32 0.0, %v3732
      %3734 = vmatmul.f32.gmra.mxu0 %v3332
      %v3735 = vpop.f32.mrf.mxu0
      %v3736 = vadd.f32 0.0, %v3735
      %3737 = vmatmul.f32.gmra.mxu0 %v3335
      %v3738 = vpop.f32.mrf.mxu0
      %v3739 = vadd.f32 0.0, %v3738
      %3740 = vmatmul.f32.gmra.mxu0 %v3338
      %v3741 = vpop.f32.mrf.mxu0
      %v3742 = vadd.f32 0.0, %v3741
      %3743 = vmatmul.f32.gmra.mxu0 %v3341
      %v3744 = vpop.f32.mrf.mxu0
      %v3745 = vadd.f32 0.0, %v3744
      %3746 = vmatmul.f32.gmra.mxu0 %v3344
      %v3747 = vpop.f32.mrf.mxu0
      %v3748 = vadd.f32 0.0, %v3747
      %3749 = vmatmul.f32.gmra.mxu0 %v3347
      %v3750 = vpop.f32.mrf.mxu0
      %v3751 = vadd.f32 0.0, %v3750
      %3752 = vmatmul.f32.gmra.mxu0 %v3350
      %v3753 = vpop.f32.mrf.mxu0
      %v3754 = vadd.f32 0.0, %v3753
      %3755 = vmatmul.f32.gmra.mxu0 %v3353
      %v3756 = vpop.f32.mrf.mxu0
      %v3757 = vadd.f32 0.0, %v3756
      %3758 = vmatmul.f32.gmra.mxu0 %v3356
      %v3759 = vpop.f32.mrf.mxu0
      %v3760 = vadd.f32 0.0, %v3759
      %3761 = vmatmul.f32.gmra.mxu0 %v3359
      %v3762 = vpop.f32.mrf.mxu0
      %v3763 = vadd.f32 0.0, %v3762
      %3764 = vmatmul.f32.gmra.mxu0 %v3362
      %v3765 = vpop.f32.mrf.mxu0
      %v3766 = vadd.f32 0.0, %v3765
      %3767 = vmatmul.f32.gmra.mxu0 %v3365
      %v3768 = vpop.f32.mrf.mxu0
      %v3769 = vadd.f32 0.0, %v3768
      %3770 = vmatmul.f32.gmra.mxu0 %v3368
      %v3771 = vpop.f32.mrf.mxu0
      %v3772 = vadd.f32 0.0, %v3771
      %3773 = vmatmul.f32.gmra.mxu0 %v3371
      %v3774 = vpop.f32.mrf.mxu0
      %v3775 = vadd.f32 0.0, %v3774
      %3776 = vmatmul.f32.gmra.mxu0 %v3374
      %v3777 = vpop.f32.mrf.mxu0
      %v3778 = vadd.f32 0.0, %v3777
      %3779 = vmatmul.f32.gmra.mxu0 %v3377
      %v3780 = vpop.f32.mrf.mxu0
      %v3781 = vadd.f32 0.0, %v3780
      %3782 = vmatmul.f32.gmra.mxu0 %v3380
      %v3783 = vpop.f32.mrf.mxu0
      %v3784 = vadd.f32 0.0, %v3783
      %3785 = vmatmul.f32.gmra.mxu0 %v3383
      %v3786 = vpop.f32.mrf.mxu0
      %v3787 = vadd.f32 0.0, %v3786
      %3788 = vmatmul.f32.gmra.mxu0 %v3386
      %v3789 = vpop.f32.mrf.mxu0
      %v3790 = vadd.f32 0.0, %v3789
      %3791 = vmatmul.f32.gmra.mxu0 %v3389
      %v3792 = vpop.f32.mrf.mxu0
      %v3793 = vadd.f32 0.0, %v3792
      %3794 = vmatmul.f32.gmra.mxu0 %v3392
      %v3795 = vpop.f32.mrf.mxu0
      %v3796 = vadd.f32 0.0, %v3795
      %3797 = vmatmul.f32.gmra.mxu0 %v3395
      %v3798 = vpop.f32.mrf.mxu0
      %v3799 = vadd.f32 0.0, %v3798
      %3800 = vmatmul.f32.gmra.mxu0 %v3398
      %v3801 = vpop.f32.mrf.mxu0
      %v3802 = vadd.f32 0.0, %v3801
      %3803 = vmatmul.f32.gmra.mxu0 %v3401
      %v3804 = vpop.f32.mrf.mxu0
      %v3805 = vadd.f32 0.0, %v3804
      %3806 = vmatmul.f32.gmra.mxu0 %v3404
      %v3807 = vpop.f32.mrf.mxu0
      %v3808 = vadd.f32 0.0, %v3807
      %3809 = vmatmul.f32.gmra.mxu0 %v3407
      %v3810 = vpop.f32.mrf.mxu0
      %v3811 = vadd.f32 0.0, %v3810
      %3812 = vmatmul.f32.gmra.mxu0 %v3410
      %v3813 = vpop.f32.mrf.mxu0
      %v3814 = vadd.f32 0.0, %v3813
      %3815 = vmatmul.f32.gmra.mxu0 %v3413
      %v3816 = vpop.f32.mrf.mxu0
      %v3817 = vadd.f32 0.0, %v3816
      %3818 = vmatmul.f32.gmra.mxu0 %v3416
      %v3819 = vpop.f32.mrf.mxu0
      %v3820 = vadd.f32 0.0, %v3819
      %3821 = vmatmul.f32.gmra.mxu0 %v3419
      %v3822 = vpop.f32.mrf.mxu0
      %v3823 = vadd.f32 0.0, %v3822
      %3824 = vmatmul.f32.gmra.mxu0 %v3422
      %v3825 = vpop.f32.mrf.mxu0
      %v3826 = vadd.f32 0.0, %v3825
      %3827 = vmatmul.f32.gmra.mxu0 %v3425
      %v3828 = vpop.f32.mrf.mxu0
      %v3829 = vadd.f32 0.0, %v3828
      %3830 = vmatmul.f32.gmra.mxu0 %v3428
      %v3831 = vpop.f32.mrf.mxu0
      %v3832 = vadd.f32 0.0, %v3831
      %3833 = vmatmul.f32.gmra.mxu0 %v3431
      %v3834 = vpop.f32.mrf.mxu0
      %v3835 = vadd.f32 0.0, %v3834
      %3836 = vmatmul.f32.gmra.mxu0 %v3434
      %v3837 = vpop.f32.mrf.mxu0
      %v3838 = vadd.f32 0.0, %v3837
      %3839 = vmatmul.f32.gmra.mxu0 %v3437
      %v3840 = vpop.f32.mrf.mxu0
      %v3841 = vadd.f32 0.0, %v3840
      %3842 = vmatmul.f32.gmra.mxu0 %v3440
      %v3843 = vpop.f32.mrf.mxu0
      %v3844 = vadd.f32 0.0, %v3843
      %3845 = vmatmul.f32.gmra.mxu0 %v3443
      %v3846 = vpop.f32.mrf.mxu0
      %v3847 = vadd.f32 0.0, %v3846
      %3848 = vmatmul.f32.gmra.mxu0 %v3446
      %v3849 = vpop.f32.mrf.mxu0
      %v3850 = vadd.f32 0.0, %v3849
      %3851 = vmatmul.f32.gmra.mxu0 %v3449
      %v3852 = vpop.f32.mrf.mxu0
      %v3853 = vadd.f32 0.0, %v3852
      %3854 = vmatmul.f32.gmra.mxu0 %v3452
      %v3855 = vpop.f32.mrf.mxu0
      %v3856 = vadd.f32 0.0, %v3855
      %3857 = vmatmul.f32.gmra.mxu0 %v3455
      %v3858 = vpop.f32.mrf.mxu0
      %v3859 = vadd.f32 0.0, %v3858
      %3860 = vmatmul.f32.gmra.mxu0 %v3458
      %v3861 = vpop.f32.mrf.mxu0
      %v3862 = vadd.f32 0.0, %v3861
      %3863 = vmatmul.f32.gmra.mxu0 %v3461
      %v3864 = vpop.f32.mrf.mxu0
      %v3865 = vadd.f32 0.0, %v3864
      %3866 = vmatmul.f32.gmra.mxu0 %v3464
      %v3867 = vpop.f32.mrf.mxu0
      %v3868 = vadd.f32 0.0, %v3867
      %3869 = vmatmul.f32.gmra.mxu0 %v3467
      %v3870 = vpop.f32.mrf.mxu0
      %v3871 = vadd.f32 0.0, %v3870
      %3872 = vmatmul.f32.gmra.mxu0 %v3470
      %v3873 = vpop.f32.mrf.mxu0
      %v3874 = vadd.f32 0.0, %v3873
      %3875 = vmatmul.f32.gmra.mxu0 %v3473
      %v3876 = vpop.f32.mrf.mxu0
      %v3877 = vadd.f32 0.0, %v3876
      %3878 = vmatmul.f32.gmra.mxu0 %v3476
      %v3879 = vpop.f32.mrf.mxu0
      %v3880 = vadd.f32 0.0, %v3879
      %3881 = vmatmul.f32.gmra.mxu0 %v3479
      %v3882 = vpop.f32.mrf.mxu0
      %v3883 = vadd.f32 0.0, %v3882
      %3884 = vmatmul.f32.gmra.mxu0 %v3482
      %v3885 = vpop.f32.mrf.mxu0
      %v3886 = vadd.f32 0.0, %v3885
      %3887 = vmatmul.f32.gmra.mxu0 %v3485
      %v3888 = vpop.f32.mrf.mxu0
      %v3889 = vadd.f32 0.0, %v3888
      %3890 = vmatmul.f32.gmra.mxu0 %v3488
      %v3891 = vpop.f32.mrf.mxu0
      %v3892 = vadd.f32 0.0, %v3891
      %3893 = vmatmul.f32.gmra.mxu0 %v3491
      %v3894 = vpop.f32.mrf.mxu0
      %v3895 = vadd.f32 0.0, %v3894
      %3896 = vmatmul.f32.gmra.mxu0 %v3494
      %v3897 = vpop.f32.mrf.mxu0
      %v3898 = vadd.f32 0.0, %v3897
      %3899 = vmatmul.f32.gmra.mxu0 %v3497
      %v3900 = vpop.f32.mrf.mxu0
      %v3901 = vadd.f32 0.0, %v3900
      %3902 = vmatmul.f32.gmra.mxu0 %v3500
      %v3903 = vpop.f32.mrf.mxu0
      %v3904 = vadd.f32 0.0, %v3903
      %3905 = vmatmul.f32.gmra.mxu0 %v3503
      %v3906 = vpop.f32.mrf.mxu0
      %v3907 = vadd.f32 0.0, %v3906
      %3908 = vmatmul.f32.gmra.mxu0 %v3506
      %v3909 = vpop.f32.mrf.mxu0
      %v3910 = vadd.f32 0.0, %v3909
      %3911 = vmatmul.f32.gmra.mxu0 %v3509
      %v3912 = vpop.f32.mrf.mxu0
      %v3913 = vadd.f32 0.0, %v3912
      %3914 = vmatmul.f32.gmra.mxu0 %v3512
      %v3915 = vpop.f32.mrf.mxu0
      %v3916 = vadd.f32 0.0, %v3915
      %3917 = vmatmul.f32.gmra.mxu0 %v3515
      %v3918 = vpop.f32.mrf.mxu0
      %v3919 = vadd.f32 0.0, %v3918
      %3920 = vmatmul.f32.gmra.mxu0 %v3518
      %v3921 = vpop.f32.mrf.mxu0
      %v3922 = vadd.f32 0.0, %v3921
      %3923 = vmatmul.f32.gmra.mxu0 %v3521
      %v3924 = vpop.f32.mrf.mxu0
      %v3925 = vadd.f32 0.0, %v3924
      %3926 = vmatmul.f32.gmra.mxu0 %v3524
      %v3927 = vpop.f32.mrf.mxu0
      %v3928 = vadd.f32 0.0, %v3927
      %3929 = vmatmul.f32.gmra.mxu0 %v3527
      %v3930 = vpop.f32.mrf.mxu0
      %v3931 = vadd.f32 0.0, %v3930
      %3932 = vmatmul.f32.gmra.mxu0 %v3530
      %v3933 = vpop.f32.mrf.mxu0
      %v3934 = vadd.f32 0.0, %v3933
      %3935 = vmatmul.f32.gmra.mxu0 %v3533
      %v3936 = vpop.f32.mrf.mxu0
      %v3937 = vadd.f32 0.0, %v3936
      %3938 = vmatmul.f32.gmra.mxu0 %v3536
      %v3939 = vpop.f32.mrf.mxu0
      %v3940 = vadd.f32 0.0, %v3939
      %3941 = vmatmul.f32.gmra.mxu0 %v3539
      %v3942 = vpop.f32.mrf.mxu0
      %v3943 = vadd.f32 0.0, %v3942
      %3944 = vmatmul.f32.gmra.mxu0 %v3542
      %v3945 = vpop.f32.mrf.mxu0
      %v3946 = vadd.f32 0.0, %v3945
      %3947 = vmatmul.f32.gmra.mxu0 %v3545
      %v3948 = vpop.f32.mrf.mxu0
      %v3949 = vadd.f32 0.0, %v3948
      %3950 = vmatmul.f32.gmra.mxu0 %v3548
      %v3951 = vpop.f32.mrf.mxu0
      %v3952 = vadd.f32 0.0, %v3951
      %3953 = vmatmul.f32.gmra.mxu0 %v3551
      %v3954 = vpop.f32.mrf.mxu0
      %v3955 = vadd.f32 0.0, %v3954
      %3956 = vmatmul.f32.gmra.mxu0 %v3554
      %v3957 = vpop.f32.mrf.mxu0
      %v3958 = vadd.f32 0.0, %v3957
      %3959 = vmatmul.f32.gmra.mxu0 %v3557
      %v3960 = vpop.f32.mrf.mxu0
      %v3961 = vadd.f32 0.0, %v3960
      %3962 = vmatmul.f32.gmra.mxu0 %v3560
      %v3963 = vpop.f32.mrf.mxu0
      %v3964 = vadd.f32 0.0, %v3963
      %3965 = vmatmul.f32.gmra.mxu0 %v3563
      %v3966 = vpop.f32.mrf.mxu0
      %v3967 = vadd.f32 0.0, %v3966
      %3968 = vmatmul.f32.gmra.mxu0 %v3566
      %v3969 = vpop.f32.mrf.mxu0
      %v3970 = vadd.f32 0.0, %v3969
      %3971 = vmatmul.f32.gmra.mxu0 %v3569
      %v3972 = vpop.f32.mrf.mxu0
      %v3973 = vadd.f32 0.0, %v3972
      %3974 = vmatmul.f32.gmra.mxu0 %v3572
      %v3975 = vpop.f32.mrf.mxu0
      %v3976 = vadd.f32 0.0, %v3975
      %3977 = vmatmul.f32.gmra.mxu0 %v3575
      %v3978 = vpop.f32.mrf.mxu0
      %v3979 = vadd.f32 0.0, %v3978
      %3980 = vmatmul.f32.gmra.mxu0 %v3578
      %v3981 = vpop.f32.mrf.mxu0
      %v3982 = vadd.f32 0.0, %v3981
      %3983 = vmatmul.f32.gmra.mxu0 %v3581
      %v3984 = vpop.f32.mrf.mxu0
      %v3985 = vadd.f32 0.0, %v3984
      %3986 = vmatmul.f32.gmra.mxu0 %v3584
      %v3987 = vpop.f32.mrf.mxu0
      %v3988 = vadd.f32 0.0, %v3987
      %3989 = vmatmul.f32.gmra.mxu0 %v3587
      %v3990 = vpop.f32.mrf.mxu0
      %v3991 = vadd.f32 0.0, %v3990
      %3992 = vmatmul.f32.gmra.mxu0 %v3590
      %v3993 = vpop.f32.mrf.mxu0
      %v3994 = vadd.f32 0.0, %v3993
      %3995 = vmatmul.f32.gmra.mxu0 %v3593
      %v3996 = vpop.f32.mrf.mxu0
      %v3997 = vadd.f32 0.0, %v3996
      %3998 = vmatmul.f32.gmra.mxu0 %v3596
      %v3999 = vpop.f32.mrf.mxu0
      %v4000 = vadd.f32 0.0, %v3999
      %4001 = vmatmul.f32.gmra.mxu0 %v3599
      %v4002 = vpop.f32.mrf.mxu0
      %v4003 = vadd.f32 0.0, %v4002
      %4004 = vmatmul.f32.gmra.mxu0 %v3602
      %v4005 = vpop.f32.mrf.mxu0
      %v4006 = vadd.f32 0.0, %v4005
      %4007 = vmatmul.f32.gmra.mxu0 %v3605
      %v4008 = vpop.f32.mrf.mxu0
      %v4009 = vadd.f32 0.0, %v4008
      %4010 = vmatmul.f32.gmra.mxu0 %v3608
      %v4011 = vpop.f32.mrf.mxu0
      %v4012 = vadd.f32 0.0, %v4011
      %4013 = vmatmul.f32.gmra.mxu0 %v3611
      %v4014 = vpop.f32.mrf.mxu0
      %v4015 = vadd.f32 0.0, %v4014
      %4016 = vdwg.mxu0
      %v4017 = vadd.f32 %v2970, %v3634
      %v4018 = vadd.f32 %v2971, %v3637
      %v4019 = vadd.f32 %v2972, %v3640
      %v4020 = vadd.f32 %v2973, %v3643
      %v4021 = vadd.f32 %v2974, %v3646
      %v4022 = vadd.f32 %v2975, %v3649
      %v4023 = vadd.f32 %v2976, %v3652
      %v4024 = vadd.f32 %v2977, %v3655
      %v4025 = vadd.f32 %v2978, %v3658
      %v4026 = vadd.f32 %v2979, %v3661
      %v4027 = vadd.f32 %v2980, %v3664
      %v4028 = vadd.f32 %v2981, %v3667
      %v4029 = vadd.f32 %v2982, %v3670
      %v4030 = vadd.f32 %v2983, %v3673
      %v4031 = vadd.f32 %v2984, %v3676
      %v4032 = vadd.f32 %v2985, %v3679
      %v4033 = vadd.f32 %v2986, %v3682
      %v4034 = vadd.f32 %v2987, %v3685
      %v4035 = vadd.f32 %v2988, %v3688
      %v4036 = vadd.f32 %v2989, %v3691
      %v4037 = vadd.f32 %v2990, %v3694
      %v4038 = vadd.f32 %v2991, %v3697
      %v4039 = vadd.f32 %v2992, %v3700
      %v4040 = vadd.f32 %v2993, %v3703
      %v4041 = vadd.f32 %v2994, %v3706
      %v4042 = vadd.f32 %v2995, %v3709
      %v4043 = vadd.f32 %v2996, %v3712
      %v4044 = vadd.f32 %v2997, %v3715
      %v4045 = vadd.f32 %v2998, %v3718
      %v4046 = vadd.f32 %v2999, %v3721
      %v4047 = vadd.f32 %v3000, %v3724
      %v4048 = vadd.f32 %v3001, %v3727
      %v4049 = vadd.f32 %v3002, %v3730
      %v4050 = vadd.f32 %v3003, %v3733
      %v4051 = vadd.f32 %v3004, %v3736
      %v4052 = vadd.f32 %v3005, %v3739
      %v4053 = vadd.f32 %v3006, %v3742
      %v4054 = vadd.f32 %v3007, %v3745
      %v4055 = vadd.f32 %v3008, %v3748
      %v4056 = vadd.f32 %v3009, %v3751
      %v4057 = vadd.f32 %v3010, %v3754
      %v4058 = vadd.f32 %v3011, %v3757
      %v4059 = vadd.f32 %v3012, %v3760
      %v4060 = vadd.f32 %v3013, %v3763
      %v4061 = vadd.f32 %v3014, %v3766
      %v4062 = vadd.f32 %v3015, %v3769
      %v4063 = vadd.f32 %v3016, %v3772
      %v4064 = vadd.f32 %v3017, %v3775
      %v4065 = vadd.f32 %v3018, %v3778
      %v4066 = vadd.f32 %v3019, %v3781
      %v4067 = vadd.f32 %v3020, %v3784
      %v4068 = vadd.f32 %v3021, %v3787
      %v4069 = vadd.f32 %v3022, %v3790
      %v4070 = vadd.f32 %v3023, %v3793
      %v4071 = vadd.f32 %v3024, %v3796
      %v4072 = vadd.f32 %v3025, %v3799
      %v4073 = vadd.f32 %v3026, %v3802
      %v4074 = vadd.f32 %v3027, %v3805
      %v4075 = vadd.f32 %v3028, %v3808
      %v4076 = vadd.f32 %v3029, %v3811
      %v4077 = vadd.f32 %v3030, %v3814
      %v4078 = vadd.f32 %v3031, %v3817
      %v4079 = vadd.f32 %v3032, %v3820
      %v4080 = vadd.f32 %v3033, %v3823
      %v4081 = vadd.f32 %v3034, %v3826
      %v4082 = vadd.f32 %v3035, %v3829
      %v4083 = vadd.f32 %v3036, %v3832
      %v4084 = vadd.f32 %v3037, %v3835
      %v4085 = vadd.f32 %v3038, %v3838
      %v4086 = vadd.f32 %v3039, %v3841
      %v4087 = vadd.f32 %v3040, %v3844
      %v4088 = vadd.f32 %v3041, %v3847
      %v4089 = vadd.f32 %v3042, %v3850
      %v4090 = vadd.f32 %v3043, %v3853
      %v4091 = vadd.f32 %v3044, %v3856
      %v4092 = vadd.f32 %v3045, %v3859
      %v4093 = vadd.f32 %v3046, %v3862
      %v4094 = vadd.f32 %v3047, %v3865
      %v4095 = vadd.f32 %v3048, %v3868
      %v4096 = vadd.f32 %v3049, %v3871
      %v4097 = vadd.f32 %v3050, %v3874
      %v4098 = vadd.f32 %v3051, %v3877
      %v4099 = vadd.f32 %v3052, %v3880
      %v4100 = vadd.f32 %v3053, %v3883
      %v4101 = vadd.f32 %v3054, %v3886
      %v4102 = vadd.f32 %v3055, %v3889
      %v4103 = vadd.f32 %v3056, %v3892
      %v4104 = vadd.f32 %v3057, %v3895
      %v4105 = vadd.f32 %v3058, %v3898
      %v4106 = vadd.f32 %v3059, %v3901
      %v4107 = vadd.f32 %v3060, %v3904
      %v4108 = vadd.f32 %v3061, %v3907
      %v4109 = vadd.f32 %v3062, %v3910
      %v4110 = vadd.f32 %v3063, %v3913
      %v4111 = vadd.f32 %v3064, %v3916
      %v4112 = vadd.f32 %v3065, %v3919
      %v4113 = vadd.f32 %v3066, %v3922
      %v4114 = vadd.f32 %v3067, %v3925
      %v4115 = vadd.f32 %v3068, %v3928
      %v4116 = vadd.f32 %v3069, %v3931
      %v4117 = vadd.f32 %v3070, %v3934
      %v4118 = vadd.f32 %v3071, %v3937
      %v4119 = vadd.f32 %v3072, %v3940
      %v4120 = vadd.f32 %v3073, %v3943
      %v4121 = vadd.f32 %v3074, %v3946
      %v4122 = vadd.f32 %v3075, %v3949
      %v4123 = vadd.f32 %v3076, %v3952
      %v4124 = vadd.f32 %v3077, %v3955
      %v4125 = vadd.f32 %v3078, %v3958
      %v4126 = vadd.f32 %v3079, %v3961
      %v4127 = vadd.f32 %v3080, %v3964
      %v4128 = vadd.f32 %v3081, %v3967
      %v4129 = vadd.f32 %v3082, %v3970
      %v4130 = vadd.f32 %v3083, %v3973
      %v4131 = vadd.f32 %v3084, %v3976
      %v4132 = vadd.f32 %v3085, %v3979
      %v4133 = vadd.f32 %v3086, %v3982
      %v4134 = vadd.f32 %v3087, %v3985
      %v4135 = vadd.f32 %v3088, %v3988
      %v4136 = vadd.f32 %v3089, %v3991
      %v4137 = vadd.f32 %v3090, %v3994
      %v4138 = vadd.f32 %v3091, %v3997
      %v4139 = vadd.f32 %v3092, %v4000
      %v4140 = vadd.f32 %v3093, %v4003
      %v4141 = vadd.f32 %v3094, %v4006
      %v4142 = vadd.f32 %v3095, %v4009
      %v4143 = vadd.f32 %v3096, %v4012
      %v4144 = vadd.f32 %v3097, %v4015
      %v4145 = vld [vmem:[%s3098 + $0x1] sm:$0xff]
      %v4146 = vld [vmem:[%s3098 + $0x9] sm:$0xff]
      %v4147 = vld [vmem:[%s3098 + $0x11] sm:$0xff]
      %v4148 = vld [vmem:[%s3098 + $0x19] sm:$0xff]
      %v4149 = vld [vmem:[%s3098 + $0x29] sm:$0xff]
      %v4150 = vld [vmem:[%s3098 + $0x31] sm:$0xff]
      %v4151 = vld [vmem:[%s3098 + $0x39] sm:$0xff]
      %v4152 = vld [vmem:[%s3098 + $0x41] sm:$0xff]
      %v4153 = vld [vmem:[%s3098 + $0x51] sm:$0xff]
      %v4154 = vld [vmem:[%s3098 + $0x59] sm:$0xff]
      %v4155 = vld [vmem:[%s3098 + $0x61] sm:$0xff]
      %v4156 = vld [vmem:[%s3098 + $0x69] sm:$0xff]
      %v4157 = vld [vmem:[%s3098 + $0x79] sm:$0xff]
      %v4158 = vld [vmem:[%s3098 + $0x81] sm:$0xff]
      %v4159 = vld [vmem:[%s3098 + $0x89] sm:$0xff]
      %v4160 = vld [vmem:[%s3098 + $0x91] sm:$0xff]
      %v4161 = vld [vmem:[%s3098 + $0xa1] sm:$0xff]
      %v4162 = vld [vmem:[%s3098 + $0xa9] sm:$0xff]
      %v4163 = vld [vmem:[%s3098 + $0xb1] sm:$0xff]
      %v4164 = vld [vmem:[%s3098 + $0xb9] sm:$0xff]
      %v4165 = vld [vmem:[%s3098 + $0xc9] sm:$0xff]
      %v4166 = vld [vmem:[%s3098 + $0xd1] sm:$0xff]
      %v4167 = vld [vmem:[%s3098 + $0xd9] sm:$0xff]
      %v4168 = vld [vmem:[%s3098 + $0xe1] sm:$0xff]
      %v4169 = vld [vmem:[%s3098 + $0xf1] sm:$0xff]
      %v4170 = vld [vmem:[%s3098 + $0xf9] sm:$0xff]
      %v4171 = vld [vmem:[%s3098 + $0x101] sm:$0xff]
      %v4172 = vld [vmem:[%s3098 + $0x109] sm:$0xff]
      %v4173 = vld [vmem:[%s3098 + $0x119] sm:$0xff]
      %v4174 = vld [vmem:[%s3098 + $0x121] sm:$0xff]
      %v4175 = vld [vmem:[%s3098 + $0x129] sm:$0xff]
      %v4176 = vld [vmem:[%s3098 + $0x131] sm:$0xff]
      %v4177 = vld [vmem:[%s3098 + $0x141] sm:$0xff]
      %v4178 = vld [vmem:[%s3098 + $0x149] sm:$0xff]
      %v4179 = vld [vmem:[%s3098 + $0x151] sm:$0xff]
      %v4180 = vld [vmem:[%s3098 + $0x159] sm:$0xff]
      %v4181 = vld [vmem:[%s3098 + $0x169] sm:$0xff]
      %v4182 = vld [vmem:[%s3098 + $0x171] sm:$0xff]
      %v4183 = vld [vmem:[%s3098 + $0x179] sm:$0xff]
      %v4184 = vld [vmem:[%s3098 + $0x181] sm:$0xff]
      %v4185 = vld [vmem:[%s3098 + $0x191] sm:$0xff]
      %v4186 = vld [vmem:[%s3098 + $0x199] sm:$0xff]
      %v4187 = vld [vmem:[%s3098 + $0x1a1] sm:$0xff]
      %v4188 = vld [vmem:[%s3098 + $0x1a9] sm:$0xff]
      %v4189 = vld [vmem:[%s3098 + $0x1b9] sm:$0xff]
      %v4190 = vld [vmem:[%s3098 + $0x1c1] sm:$0xff]
      %v4191 = vld [vmem:[%s3098 + $0x1c9] sm:$0xff]
      %v4192 = vld [vmem:[%s3098 + $0x1d1] sm:$0xff]
      %v4193 = vld [vmem:[%s3098 + $0x1e1] sm:$0xff]
      %v4194 = vld [vmem:[%s3098 + $0x1e9] sm:$0xff]
      %v4195 = vld [vmem:[%s3098 + $0x1f1] sm:$0xff]
      %v4196 = vld [vmem:[%s3098 + $0x1f9] sm:$0xff]
      %v4197 = vld [vmem:[%s3098 + $0x209] sm:$0xff]
      %v4198 = vld [vmem:[%s3098 + $0x211] sm:$0xff]
      %v4199 = vld [vmem:[%s3098 + $0x219] sm:$0xff]
      %v4200 = vld [vmem:[%s3098 + $0x221] sm:$0xff]
      %v4201 = vld [vmem:[%s3098 + $0x231] sm:$0xff]
      %v4202 = vld [vmem:[%s3098 + $0x239] sm:$0xff]
      %v4203 = vld [vmem:[%s3098 + $0x241] sm:$0xff]
      %v4204 = vld [vmem:[%s3098 + $0x249] sm:$0xff]
      %v4205 = vld [vmem:[%s3098 + $0x259] sm:$0xff]
      %v4206 = vld [vmem:[%s3098 + $0x261] sm:$0xff]
      %v4207 = vld [vmem:[%s3098 + $0x269] sm:$0xff]
      %v4208 = vld [vmem:[%s3098 + $0x271] sm:$0xff]
      %v4209 = vld [vmem:[%s3098 + $0x281] sm:$0xff]
      %v4210 = vld [vmem:[%s3098 + $0x289] sm:$0xff]
      %v4211 = vld [vmem:[%s3098 + $0x291] sm:$0xff]
      %v4212 = vld [vmem:[%s3098 + $0x299] sm:$0xff]
      %v4213 = vld [vmem:[%s3098 + $0x2a9] sm:$0xff]
      %v4214 = vld [vmem:[%s3098 + $0x2b1] sm:$0xff]
      %v4215 = vld [vmem:[%s3098 + $0x2b9] sm:$0xff]
      %v4216 = vld [vmem:[%s3098 + $0x2c1] sm:$0xff]
      %v4217 = vld [vmem:[%s3098 + $0x2d1] sm:$0xff]
      %v4218 = vld [vmem:[%s3098 + $0x2d9] sm:$0xff]
      %v4219 = vld [vmem:[%s3098 + $0x2e1] sm:$0xff]
      %v4220 = vld [vmem:[%s3098 + $0x2e9] sm:$0xff]
      %v4221 = vld [vmem:[%s3098 + $0x2f9] sm:$0xff]
      %v4222 = vld [vmem:[%s3098 + $0x301] sm:$0xff]
      %v4223 = vld [vmem:[%s3098 + $0x309] sm:$0xff]
      %v4224 = vld [vmem:[%s3098 + $0x311] sm:$0xff]
      %v4225 = vld [vmem:[%s3098 + $0x321] sm:$0xff]
      %v4226 = vld [vmem:[%s3098 + $0x329] sm:$0xff]
      %v4227 = vld [vmem:[%s3098 + $0x331] sm:$0xff]
      %v4228 = vld [vmem:[%s3098 + $0x339] sm:$0xff]
      %v4229 = vld [vmem:[%s3098 + $0x349] sm:$0xff]
      %v4230 = vld [vmem:[%s3098 + $0x351] sm:$0xff]
      %v4231 = vld [vmem:[%s3098 + $0x359] sm:$0xff]
      %v4232 = vld [vmem:[%s3098 + $0x361] sm:$0xff]
      %v4233 = vld [vmem:[%s3098 + $0x371] sm:$0xff]
      %v4234 = vld [vmem:[%s3098 + $0x379] sm:$0xff]
      %v4235 = vld [vmem:[%s3098 + $0x381] sm:$0xff]
      %v4236 = vld [vmem:[%s3098 + $0x389] sm:$0xff]
      %v4237 = vld [vmem:[%s3098 + $0x399] sm:$0xff]
      %v4238 = vld [vmem:[%s3098 + $0x3a1] sm:$0xff]
      %v4239 = vld [vmem:[%s3098 + $0x3a9] sm:$0xff]
      %v4240 = vld [vmem:[%s3098 + $0x3b1] sm:$0xff]
      %v4241 = vld [vmem:[%s3098 + $0x3c1] sm:$0xff]
      %v4242 = vld [vmem:[%s3098 + $0x3c9] sm:$0xff]
      %v4243 = vld [vmem:[%s3098 + $0x3d1] sm:$0xff]
      %v4244 = vld [vmem:[%s3098 + $0x3d9] sm:$0xff]
      %v4245 = vld [vmem:[%s3098 + $0x3e9] sm:$0xff]
      %v4246 = vld [vmem:[%s3098 + $0x3f1] sm:$0xff]
      %v4247 = vld [vmem:[%s3098 + $0x3f9] sm:$0xff]
      %v4248 = vld [vmem:[%s3098 + $0x401] sm:$0xff]
      %v4249 = vld [vmem:[%s3098 + $0x411] sm:$0xff]
      %v4250 = vld [vmem:[%s3098 + $0x419] sm:$0xff]
      %v4251 = vld [vmem:[%s3098 + $0x421] sm:$0xff]
      %v4252 = vld [vmem:[%s3098 + $0x429] sm:$0xff]
      %v4253 = vld [vmem:[%s3098 + $0x439] sm:$0xff]
      %v4254 = vld [vmem:[%s3098 + $0x441] sm:$0xff]
      %v4255 = vld [vmem:[%s3098 + $0x449] sm:$0xff]
      %v4256 = vld [vmem:[%s3098 + $0x451] sm:$0xff]
      %v4257 = vld [vmem:[%s3098 + $0x461] sm:$0xff]
      %v4258 = vld [vmem:[%s3098 + $0x469] sm:$0xff]
      %v4259 = vld [vmem:[%s3098 + $0x471] sm:$0xff]
      %v4260 = vld [vmem:[%s3098 + $0x479] sm:$0xff]
      %v4261 = vld [vmem:[%s3098 + $0x489] sm:$0xff]
      %v4262 = vld [vmem:[%s3098 + $0x491] sm:$0xff]
      %v4263 = vld [vmem:[%s3098 + $0x499] sm:$0xff]
      %v4264 = vld [vmem:[%s3098 + $0x4a1] sm:$0xff]
      %v4265 = vld [vmem:[%s3098 + $0x4b1] sm:$0xff]
      %v4266 = vld [vmem:[%s3098 + $0x4b9] sm:$0xff]
      %v4267 = vld [vmem:[%s3098 + $0x4c1] sm:$0xff]
      %v4268 = vld [vmem:[%s3098 + $0x4c9] sm:$0xff]
      %v4269 = vld [vmem:[%s3098 + $0x4d9] sm:$0xff]
      %v4270 = vld [vmem:[%s3098 + $0x4e1] sm:$0xff]
      %v4271 = vld [vmem:[%s3098 + $0x4e9] sm:$0xff]
      %v4272 = vld [vmem:[%s3098 + $0x4f1] sm:$0xff]
      %s4273 = scalar_lea.vmem %s1, 16
      %v4274 = vld [vmem:[%s4273] sm:$0xf]
      %v4276 = vsel %vm474, %v4145, 0
      %v4279 = vsel %vm474, %v4146, 0
      %v4282 = vsel %vm474, %v4147, 0
      %v4285 = vsel %vm474, %v4148, 0
      %v4288 = vsel %vm474, %v4149, 0
      %v4291 = vsel %vm474, %v4150, 0
      %v4294 = vsel %vm474, %v4151, 0
      %v4297 = vsel %vm474, %v4152, 0
      %v4300 = vsel %vm474, %v4153, 0
      %v4303 = vsel %vm474, %v4154, 0
      %v4306 = vsel %vm474, %v4155, 0
      %v4309 = vsel %vm474, %v4156, 0
      %v4312 = vsel %vm474, %v4157, 0
      %v4315 = vsel %vm474, %v4158, 0
      %v4318 = vsel %vm474, %v4159, 0
      %v4321 = vsel %vm474, %v4160, 0
      %v4324 = vsel %vm474, %v4161, 0
      %v4327 = vsel %vm474, %v4162, 0
      %v4330 = vsel %vm474, %v4163, 0
      %v4333 = vsel %vm474, %v4164, 0
      %v4336 = vsel %vm474, %v4165, 0
      %v4339 = vsel %vm474, %v4166, 0
      %v4342 = vsel %vm474, %v4167, 0
      %v4345 = vsel %vm474, %v4168, 0
      %v4348 = vsel %vm474, %v4169, 0
      %v4351 = vsel %vm474, %v4170, 0
      %v4354 = vsel %vm474, %v4171, 0
      %v4357 = vsel %vm474, %v4172, 0
      %v4360 = vsel %vm474, %v4173, 0
      %v4363 = vsel %vm474, %v4174, 0
      %v4366 = vsel %vm474, %v4175, 0
      %v4369 = vsel %vm474, %v4176, 0
      %v4372 = vsel %vm474, %v4177, 0
      %v4375 = vsel %vm474, %v4178, 0
      %v4378 = vsel %vm474, %v4179, 0
      %v4381 = vsel %vm474, %v4180, 0
      %v4384 = vsel %vm474, %v4181, 0
      %v4387 = vsel %vm474, %v4182, 0
      %v4390 = vsel %vm474, %v4183, 0
      %v4393 = vsel %vm474, %v4184, 0
      %v4396 = vsel %vm474, %v4185, 0
      %v4399 = vsel %vm474, %v4186, 0
      %v4402 = vsel %vm474, %v4187, 0
      %v4405 = vsel %vm474, %v4188, 0
      %v4408 = vsel %vm474, %v4189, 0
      %v4411 = vsel %vm474, %v4190, 0
      %v4414 = vsel %vm474, %v4191, 0
      %v4417 = vsel %vm474, %v4192, 0
      %v4420 = vsel %vm474, %v4193, 0
      %v4423 = vsel %vm474, %v4194, 0
      %v4426 = vsel %vm474, %v4195, 0
      %v4429 = vsel %vm474, %v4196, 0
      %v4432 = vsel %vm474, %v4197, 0
      %v4435 = vsel %vm474, %v4198, 0
      %v4438 = vsel %vm474, %v4199, 0
      %v4441 = vsel %vm474, %v4200, 0
      %v4444 = vsel %vm474, %v4201, 0
      %v4447 = vsel %vm474, %v4202, 0
      %v4450 = vsel %vm474, %v4203, 0
      %v4453 = vsel %vm474, %v4204, 0
      %v4456 = vsel %vm474, %v4205, 0
      %v4459 = vsel %vm474, %v4206, 0
      %v4462 = vsel %vm474, %v4207, 0
      %v4465 = vsel %vm474, %v4208, 0
      %v4468 = vsel %vm474, %v4209, 0
      %v4471 = vsel %vm474, %v4210, 0
      %v4474 = vsel %vm474, %v4211, 0
      %v4477 = vsel %vm474, %v4212, 0
      %v4480 = vsel %vm474, %v4213, 0
      %v4483 = vsel %vm474, %v4214, 0
      %v4486 = vsel %vm474, %v4215, 0
      %v4489 = vsel %vm474, %v4216, 0
      %v4492 = vsel %vm474, %v4217, 0
      %v4495 = vsel %vm474, %v4218, 0
      %v4498 = vsel %vm474, %v4219, 0
      %v4501 = vsel %vm474, %v4220, 0
      %v4504 = vsel %vm474, %v4221, 0
      %v4507 = vsel %vm474, %v4222, 0
      %v4510 = vsel %vm474, %v4223, 0
      %v4513 = vsel %vm474, %v4224, 0
      %v4516 = vsel %vm474, %v4225, 0
      %v4519 = vsel %vm474, %v4226, 0
      %v4522 = vsel %vm474, %v4227, 0
      %v4525 = vsel %vm474, %v4228, 0
      %v4528 = vsel %vm474, %v4229, 0
      %v4531 = vsel %vm474, %v4230, 0
      %v4534 = vsel %vm474, %v4231, 0
      %v4537 = vsel %vm474, %v4232, 0
      %v4540 = vsel %vm474, %v4233, 0
      %v4543 = vsel %vm474, %v4234, 0
      %v4546 = vsel %vm474, %v4235, 0
      %v4549 = vsel %vm474, %v4236, 0
      %v4552 = vsel %vm474, %v4237, 0
      %v4555 = vsel %vm474, %v4238, 0
      %v4558 = vsel %vm474, %v4239, 0
      %v4561 = vsel %vm474, %v4240, 0
      %v4564 = vsel %vm474, %v4241, 0
      %v4567 = vsel %vm474, %v4242, 0
      %v4570 = vsel %vm474, %v4243, 0
      %v4573 = vsel %vm474, %v4244, 0
      %v4576 = vsel %vm474, %v4245, 0
      %v4579 = vsel %vm474, %v4246, 0
      %v4582 = vsel %vm474, %v4247, 0
      %v4585 = vsel %vm474, %v4248, 0
      %v4588 = vsel %vm474, %v4249, 0
      %v4591 = vsel %vm474, %v4250, 0
      %v4594 = vsel %vm474, %v4251, 0
      %v4597 = vsel %vm474, %v4252, 0
      %v4600 = vsel %vm474, %v4253, 0
      %v4603 = vsel %vm474, %v4254, 0
      %v4606 = vsel %vm474, %v4255, 0
      %v4609 = vsel %vm474, %v4256, 0
      %v4612 = vsel %vm474, %v4257, 0
      %v4615 = vsel %vm474, %v4258, 0
      %v4618 = vsel %vm474, %v4259, 0
      %v4621 = vsel %vm474, %v4260, 0
      %v4624 = vsel %vm474, %v4261, 0
      %v4627 = vsel %vm474, %v4262, 0
      %v4630 = vsel %vm474, %v4263, 0
      %v4633 = vsel %vm474, %v4264, 0
      %v4636 = vsel %vm474, %v4265, 0
      %v4639 = vsel %vm474, %v4266, 0
      %v4642 = vsel %vm474, %v4267, 0
      %v4645 = vsel %vm474, %v4268, 0
      %v4648 = vsel %vm474, %v4269, 0
      %v4651 = vsel %vm474, %v4270, 0
      %v4654 = vsel %vm474, %v4271, 0
      %v4657 = vsel %vm474, %v4272, 0
      %v4660 = vsel %vm859, %v4274, 0
      %4662 = vmatpush.msra.mxu0 0.0
      %4663 = vmatpush.msra.mxu0 0.0
      %4664 = vmatpush.msra.mxu0 0.0
      %4665 = vmatpush.msra.mxu0 0.0
      %4666 = vmatpush.msra.mxu0 0.0
      %4667 = vmatpush.msra.mxu0 0.0
      %4668 = vmatpush.msra.mxu0 0.0
      %4669 = vmatpush.msra.mxu0 0.0
      %4670 = vmatpush.msra.mxu0 0.0
      %4671 = vmatpush.msra.mxu0 0.0
      %4672 = vmatpush.msra.mxu0 0.0
      %4673 = vmatpush.msra.mxu0 0.0
      %4674 = vmatpush.msra.mxu0 0.0
      %4675 = vmatpush.msra.mxu0 0.0
      %4676 = vmatpush.msra.mxu0 0.0
      %4677 = vmatpush.msra.mxu0 %v4660
      %4678 = vmatmul.f32.gmra.mxu0 %v4276
      %v4679 = vpop.f32.mrf.mxu0
      %v4680 = vadd.f32 0.0, %v4679
      %4681 = vmatmul.f32.gmra.mxu0 %v4279
      %v4682 = vpop.f32.mrf.mxu0
      %v4683 = vadd.f32 0.0, %v4682
      %4684 = vmatmul.f32.gmra.mxu0 %v4282
      %v4685 = vpop.f32.mrf.mxu0
      %v4686 = vadd.f32 0.0, %v4685
      %4687 = vmatmul.f32.gmra.mxu0 %v4285
      %v4688 = vpop.f32.mrf.mxu0
      %v4689 = vadd.f32 0.0, %v4688
      %4690 = vmatmul.f32.gmra.mxu0 %v4288
      %v4691 = vpop.f32.mrf.mxu0
      %v4692 = vadd.f32 0.0, %v4691
      %4693 = vmatmul.f32.gmra.mxu0 %v4291
      %v4694 = vpop.f32.mrf.mxu0
      %v4695 = vadd.f32 0.0, %v4694
      %4696 = vmatmul.f32.gmra.mxu0 %v4294
      %v4697 = vpop.f32.mrf.mxu0
      %v4698 = vadd.f32 0.0, %v4697
      %4699 = vmatmul.f32.gmra.mxu0 %v4297
      %v4700 = vpop.f32.mrf.mxu0
      %v4701 = vadd.f32 0.0, %v4700
      %4702 = vmatmul.f32.gmra.mxu0 %v4300
      %v4703 = vpop.f32.mrf.mxu0
      %v4704 = vadd.f32 0.0, %v4703
      %4705 = vmatmul.f32.gmra.mxu0 %v4303
      %v4706 = vpop.f32.mrf.mxu0
      %v4707 = vadd.f32 0.0, %v4706
      %4708 = vmatmul.f32.gmra.mxu0 %v4306
      %v4709 = vpop.f32.mrf.mxu0
      %v4710 = vadd.f32 0.0, %v4709
      %4711 = vmatmul.f32.gmra.mxu0 %v4309
      %v4712 = vpop.f32.mrf.mxu0
      %v4713 = vadd.f32 0.0, %v4712
      %4714 = vmatmul.f32.gmra.mxu0 %v4312
      %v4715 = vpop.f32.mrf.mxu0
      %v4716 = vadd.f32 0.0, %v4715
      %4717 = vmatmul.f32.gmra.mxu0 %v4315
      %v4718 = vpop.f32.mrf.mxu0
      %v4719 = vadd.f32 0.0, %v4718
      %4720 = vmatmul.f32.gmra.mxu0 %v4318
      %v4721 = vpop.f32.mrf.mxu0
      %v4722 = vadd.f32 0.0, %v4721
      %4723 = vmatmul.f32.gmra.mxu0 %v4321
      %v4724 = vpop.f32.mrf.mxu0
      %v4725 = vadd.f32 0.0, %v4724
      %4726 = vmatmul.f32.gmra.mxu0 %v4324
      %v4727 = vpop.f32.mrf.mxu0
      %v4728 = vadd.f32 0.0, %v4727
      %4729 = vmatmul.f32.gmra.mxu0 %v4327
      %v4730 = vpop.f32.mrf.mxu0
      %v4731 = vadd.f32 0.0, %v4730
      %4732 = vmatmul.f32.gmra.mxu0 %v4330
      %v4733 = vpop.f32.mrf.mxu0
      %v4734 = vadd.f32 0.0, %v4733
      %4735 = vmatmul.f32.gmra.mxu0 %v4333
      %v4736 = vpop.f32.mrf.mxu0
      %v4737 = vadd.f32 0.0, %v4736
      %4738 = vmatmul.f32.gmra.mxu0 %v4336
      %v4739 = vpop.f32.mrf.mxu0
      %v4740 = vadd.f32 0.0, %v4739
      %4741 = vmatmul.f32.gmra.mxu0 %v4339
      %v4742 = vpop.f32.mrf.mxu0
      %v4743 = vadd.f32 0.0, %v4742
      %4744 = vmatmul.f32.gmra.mxu0 %v4342
      %v4745 = vpop.f32.mrf.mxu0
      %v4746 = vadd.f32 0.0, %v4745
      %4747 = vmatmul.f32.gmra.mxu0 %v4345
      %v4748 = vpop.f32.mrf.mxu0
      %v4749 = vadd.f32 0.0, %v4748
      %4750 = vmatmul.f32.gmra.mxu0 %v4348
      %v4751 = vpop.f32.mrf.mxu0
      %v4752 = vadd.f32 0.0, %v4751
      %4753 = vmatmul.f32.gmra.mxu0 %v4351
      %v4754 = vpop.f32.mrf.mxu0
      %v4755 = vadd.f32 0.0, %v4754
      %4756 = vmatmul.f32.gmra.mxu0 %v4354
      %v4757 = vpop.f32.mrf.mxu0
      %v4758 = vadd.f32 0.0, %v4757
      %4759 = vmatmul.f32.gmra.mxu0 %v4357
      %v4760 = vpop.f32.mrf.mxu0
      %v4761 = vadd.f32 0.0, %v4760
      %4762 = vmatmul.f32.gmra.mxu0 %v4360
      %v4763 = vpop.f32.mrf.mxu0
      %v4764 = vadd.f32 0.0, %v4763
      %4765 = vmatmul.f32.gmra.mxu0 %v4363
      %v4766 = vpop.f32.mrf.mxu0
      %v4767 = vadd.f32 0.0, %v4766
      %4768 = vmatmul.f32.gmra.mxu0 %v4366
      %v4769 = vpop.f32.mrf.mxu0
      %v4770 = vadd.f32 0.0, %v4769
      %4771 = vmatmul.f32.gmra.mxu0 %v4369
      %v4772 = vpop.f32.mrf.mxu0
      %v4773 = vadd.f32 0.0, %v4772
      %4774 = vmatmul.f32.gmra.mxu0 %v4372
      %v4775 = vpop.f32.mrf.mxu0
      %v4776 = vadd.f32 0.0, %v4775
      %4777 = vmatmul.f32.gmra.mxu0 %v4375
      %v4778 = vpop.f32.mrf.mxu0
      %v4779 = vadd.f32 0.0, %v4778
      %4780 = vmatmul.f32.gmra.mxu0 %v4378
      %v4781 = vpop.f32.mrf.mxu0
      %v4782 = vadd.f32 0.0, %v4781
      %4783 = vmatmul.f32.gmra.mxu0 %v4381
      %v4784 = vpop.f32.mrf.mxu0
      %v4785 = vadd.f32 0.0, %v4784
      %4786 = vmatmul.f32.gmra.mxu0 %v4384
      %v4787 = vpop.f32.mrf.mxu0
      %v4788 = vadd.f32 0.0, %v4787
      %4789 = vmatmul.f32.gmra.mxu0 %v4387
      %v4790 = vpop.f32.mrf.mxu0
      %v4791 = vadd.f32 0.0, %v4790
      %4792 = vmatmul.f32.gmra.mxu0 %v4390
      %v4793 = vpop.f32.mrf.mxu0
      %v4794 = vadd.f32 0.0, %v4793
      %4795 = vmatmul.f32.gmra.mxu0 %v4393
      %v4796 = vpop.f32.mrf.mxu0
      %v4797 = vadd.f32 0.0, %v4796
      %4798 = vmatmul.f32.gmra.mxu0 %v4396
      %v4799 = vpop.f32.mrf.mxu0
      %v4800 = vadd.f32 0.0, %v4799
      %4801 = vmatmul.f32.gmra.mxu0 %v4399
      %v4802 = vpop.f32.mrf.mxu0
      %v4803 = vadd.f32 0.0, %v4802
      %4804 = vmatmul.f32.gmra.mxu0 %v4402
      %v4805 = vpop.f32.mrf.mxu0
      %v4806 = vadd.f32 0.0, %v4805
      %4807 = vmatmul.f32.gmra.mxu0 %v4405
      %v4808 = vpop.f32.mrf.mxu0
      %v4809 = vadd.f32 0.0, %v4808
      %4810 = vmatmul.f32.gmra.mxu0 %v4408
      %v4811 = vpop.f32.mrf.mxu0
      %v4812 = vadd.f32 0.0, %v4811
      %4813 = vmatmul.f32.gmra.mxu0 %v4411
      %v4814 = vpop.f32.mrf.mxu0
      %v4815 = vadd.f32 0.0, %v4814
      %4816 = vmatmul.f32.gmra.mxu0 %v4414
      %v4817 = vpop.f32.mrf.mxu0
      %v4818 = vadd.f32 0.0, %v4817
      %4819 = vmatmul.f32.gmra.mxu0 %v4417
      %v4820 = vpop.f32.mrf.mxu0
      %v4821 = vadd.f32 0.0, %v4820
      %4822 = vmatmul.f32.gmra.mxu0 %v4420
      %v4823 = vpop.f32.mrf.mxu0
      %v4824 = vadd.f32 0.0, %v4823
      %4825 = vmatmul.f32.gmra.mxu0 %v4423
      %v4826 = vpop.f32.mrf.mxu0
      %v4827 = vadd.f32 0.0, %v4826
      %4828 = vmatmul.f32.gmra.mxu0 %v4426
      %v4829 = vpop.f32.mrf.mxu0
      %v4830 = vadd.f32 0.0, %v4829
      %4831 = vmatmul.f32.gmra.mxu0 %v4429
      %v4832 = vpop.f32.mrf.mxu0
      %v4833 = vadd.f32 0.0, %v4832
      %4834 = vmatmul.f32.gmra.mxu0 %v4432
      %v4835 = vpop.f32.mrf.mxu0
      %v4836 = vadd.f32 0.0, %v4835
      %4837 = vmatmul.f32.gmra.mxu0 %v4435
      %v4838 = vpop.f32.mrf.mxu0
      %v4839 = vadd.f32 0.0, %v4838
      %4840 = vmatmul.f32.gmra.mxu0 %v4438
      %v4841 = vpop.f32.mrf.mxu0
      %v4842 = vadd.f32 0.0, %v4841
      %4843 = vmatmul.f32.gmra.mxu0 %v4441
      %v4844 = vpop.f32.mrf.mxu0
      %v4845 = vadd.f32 0.0, %v4844
      %4846 = vmatmul.f32.gmra.mxu0 %v4444
      %v4847 = vpop.f32.mrf.mxu0
      %v4848 = vadd.f32 0.0, %v4847
      %4849 = vmatmul.f32.gmra.mxu0 %v4447
      %v4850 = vpop.f32.mrf.mxu0
      %v4851 = vadd.f32 0.0, %v4850
      %4852 = vmatmul.f32.gmra.mxu0 %v4450
      %v4853 = vpop.f32.mrf.mxu0
      %v4854 = vadd.f32 0.0, %v4853
      %4855 = vmatmul.f32.gmra.mxu0 %v4453
      %v4856 = vpop.f32.mrf.mxu0
      %v4857 = vadd.f32 0.0, %v4856
      %4858 = vmatmul.f32.gmra.mxu0 %v4456
      %v4859 = vpop.f32.mrf.mxu0
      %v4860 = vadd.f32 0.0, %v4859
      %4861 = vmatmul.f32.gmra.mxu0 %v4459
      %v4862 = vpop.f32.mrf.mxu0
      %v4863 = vadd.f32 0.0, %v4862
      %4864 = vmatmul.f32.gmra.mxu0 %v4462
      %v4865 = vpop.f32.mrf.mxu0
      %v4866 = vadd.f32 0.0, %v4865
      %4867 = vmatmul.f32.gmra.mxu0 %v4465
      %v4868 = vpop.f32.mrf.mxu0
      %v4869 = vadd.f32 0.0, %v4868
      %4870 = vmatmul.f32.gmra.mxu0 %v4468
      %v4871 = vpop.f32.mrf.mxu0
      %v4872 = vadd.f32 0.0, %v4871
      %4873 = vmatmul.f32.gmra.mxu0 %v4471
      %v4874 = vpop.f32.mrf.mxu0
      %v4875 = vadd.f32 0.0, %v4874
      %4876 = vmatmul.f32.gmra.mxu0 %v4474
      %v4877 = vpop.f32.mrf.mxu0
      %v4878 = vadd.f32 0.0, %v4877
      %4879 = vmatmul.f32.gmra.mxu0 %v4477
      %v4880 = vpop.f32.mrf.mxu0
      %v4881 = vadd.f32 0.0, %v4880
      %4882 = vmatmul.f32.gmra.mxu0 %v4480
      %v4883 = vpop.f32.mrf.mxu0
      %v4884 = vadd.f32 0.0, %v4883
      %4885 = vmatmul.f32.gmra.mxu0 %v4483
      %v4886 = vpop.f32.mrf.mxu0
      %v4887 = vadd.f32 0.0, %v4886
      %4888 = vmatmul.f32.gmra.mxu0 %v4486
      %v4889 = vpop.f32.mrf.mxu0
      %v4890 = vadd.f32 0.0, %v4889
      %4891 = vmatmul.f32.gmra.mxu0 %v4489
      %v4892 = vpop.f32.mrf.mxu0
      %v4893 = vadd.f32 0.0, %v4892
      %4894 = vmatmul.f32.gmra.mxu0 %v4492
      %v4895 = vpop.f32.mrf.mxu0
      %v4896 = vadd.f32 0.0, %v4895
      %4897 = vmatmul.f32.gmra.mxu0 %v4495
      %v4898 = vpop.f32.mrf.mxu0
      %v4899 = vadd.f32 0.0, %v4898
      %4900 = vmatmul.f32.gmra.mxu0 %v4498
      %v4901 = vpop.f32.mrf.mxu0
      %v4902 = vadd.f32 0.0, %v4901
      %4903 = vmatmul.f32.gmra.mxu0 %v4501
      %v4904 = vpop.f32.mrf.mxu0
      %v4905 = vadd.f32 0.0, %v4904
      %4906 = vmatmul.f32.gmra.mxu0 %v4504
      %v4907 = vpop.f32.mrf.mxu0
      %v4908 = vadd.f32 0.0, %v4907
      %4909 = vmatmul.f32.gmra.mxu0 %v4507
      %v4910 = vpop.f32.mrf.mxu0
      %v4911 = vadd.f32 0.0, %v4910
      %4912 = vmatmul.f32.gmra.mxu0 %v4510
      %v4913 = vpop.f32.mrf.mxu0
      %v4914 = vadd.f32 0.0, %v4913
      %4915 = vmatmul.f32.gmra.mxu0 %v4513
      %v4916 = vpop.f32.mrf.mxu0
      %v4917 = vadd.f32 0.0, %v4916
      %4918 = vmatmul.f32.gmra.mxu0 %v4516
      %v4919 = vpop.f32.mrf.mxu0
      %v4920 = vadd.f32 0.0, %v4919
      %4921 = vmatmul.f32.gmra.mxu0 %v4519
      %v4922 = vpop.f32.mrf.mxu0
      %v4923 = vadd.f32 0.0, %v4922
      %4924 = vmatmul.f32.gmra.mxu0 %v4522
      %v4925 = vpop.f32.mrf.mxu0
      %v4926 = vadd.f32 0.0, %v4925
      %4927 = vmatmul.f32.gmra.mxu0 %v4525
      %v4928 = vpop.f32.mrf.mxu0
      %v4929 = vadd.f32 0.0, %v4928
      %4930 = vmatmul.f32.gmra.mxu0 %v4528
      %v4931 = vpop.f32.mrf.mxu0
      %v4932 = vadd.f32 0.0, %v4931
      %4933 = vmatmul.f32.gmra.mxu0 %v4531
      %v4934 = vpop.f32.mrf.mxu0
      %v4935 = vadd.f32 0.0, %v4934
      %4936 = vmatmul.f32.gmra.mxu0 %v4534
      %v4937 = vpop.f32.mrf.mxu0
      %v4938 = vadd.f32 0.0, %v4937
      %4939 = vmatmul.f32.gmra.mxu0 %v4537
      %v4940 = vpop.f32.mrf.mxu0
      %v4941 = vadd.f32 0.0, %v4940
      %4942 = vmatmul.f32.gmra.mxu0 %v4540
      %v4943 = vpop.f32.mrf.mxu0
      %v4944 = vadd.f32 0.0, %v4943
      %4945 = vmatmul.f32.gmra.mxu0 %v4543
      %v4946 = vpop.f32.mrf.mxu0
      %v4947 = vadd.f32 0.0, %v4946
      %4948 = vmatmul.f32.gmra.mxu0 %v4546
      %v4949 = vpop.f32.mrf.mxu0
      %v4950 = vadd.f32 0.0, %v4949
      %4951 = vmatmul.f32.gmra.mxu0 %v4549
      %v4952 = vpop.f32.mrf.mxu0
      %v4953 = vadd.f32 0.0, %v4952
      %4954 = vmatmul.f32.gmra.mxu0 %v4552
      %v4955 = vpop.f32.mrf.mxu0
      %v4956 = vadd.f32 0.0, %v4955
      %4957 = vmatmul.f32.gmra.mxu0 %v4555
      %v4958 = vpop.f32.mrf.mxu0
      %v4959 = vadd.f32 0.0, %v4958
      %4960 = vmatmul.f32.gmra.mxu0 %v4558
      %v4961 = vpop.f32.mrf.mxu0
      %v4962 = vadd.f32 0.0, %v4961
      %4963 = vmatmul.f32.gmra.mxu0 %v4561
      %v4964 = vpop.f32.mrf.mxu0
      %v4965 = vadd.f32 0.0, %v4964
      %4966 = vmatmul.f32.gmra.mxu0 %v4564
      %v4967 = vpop.f32.mrf.mxu0
      %v4968 = vadd.f32 0.0, %v4967
      %4969 = vmatmul.f32.gmra.mxu0 %v4567
      %v4970 = vpop.f32.mrf.mxu0
      %v4971 = vadd.f32 0.0, %v4970
      %4972 = vmatmul.f32.gmra.mxu0 %v4570
      %v4973 = vpop.f32.mrf.mxu0
      %v4974 = vadd.f32 0.0, %v4973
      %4975 = vmatmul.f32.gmra.mxu0 %v4573
      %v4976 = vpop.f32.mrf.mxu0
      %v4977 = vadd.f32 0.0, %v4976
      %4978 = vmatmul.f32.gmra.mxu0 %v4576
      %v4979 = vpop.f32.mrf.mxu0
      %v4980 = vadd.f32 0.0, %v4979
      %4981 = vmatmul.f32.gmra.mxu0 %v4579
      %v4982 = vpop.f32.mrf.mxu0
      %v4983 = vadd.f32 0.0, %v4982
      %4984 = vmatmul.f32.gmra.mxu0 %v4582
      %v4985 = vpop.f32.mrf.mxu0
      %v4986 = vadd.f32 0.0, %v4985
      %4987 = vmatmul.f32.gmra.mxu0 %v4585
      %v4988 = vpop.f32.mrf.mxu0
      %v4989 = vadd.f32 0.0, %v4988
      %4990 = vmatmul.f32.gmra.mxu0 %v4588
      %v4991 = vpop.f32.mrf.mxu0
      %v4992 = vadd.f32 0.0, %v4991
      %4993 = vmatmul.f32.gmra.mxu0 %v4591
      %v4994 = vpop.f32.mrf.mxu0
      %v4995 = vadd.f32 0.0, %v4994
      %4996 = vmatmul.f32.gmra.mxu0 %v4594
      %v4997 = vpop.f32.mrf.mxu0
      %v4998 = vadd.f32 0.0, %v4997
      %4999 = vmatmul.f32.gmra.mxu0 %v4597
      %v5000 = vpop.f32.mrf.mxu0
      %v5001 = vadd.f32 0.0, %v5000
      %5002 = vmatmul.f32.gmra.mxu0 %v4600
      %v5003 = vpop.f32.mrf.mxu0
      %v5004 = vadd.f32 0.0, %v5003
      %5005 = vmatmul.f32.gmra.mxu0 %v4603
      %v5006 = vpop.f32.mrf.mxu0
      %v5007 = vadd.f32 0.0, %v5006
      %5008 = vmatmul.f32.gmra.mxu0 %v4606
      %v5009 = vpop.f32.mrf.mxu0
      %v5010 = vadd.f32 0.0, %v5009
      %5011 = vmatmul.f32.gmra.mxu0 %v4609
      %v5012 = vpop.f32.mrf.mxu0
      %v5013 = vadd.f32 0.0, %v5012
      %5014 = vmatmul.f32.gmra.mxu0 %v4612
      %v5015 = vpop.f32.mrf.mxu0
      %v5016 = vadd.f32 0.0, %v5015
      %5017 = vmatmul.f32.gmra.mxu0 %v4615
      %v5018 = vpop.f32.mrf.mxu0
      %v5019 = vadd.f32 0.0, %v5018
      %5020 = vmatmul.f32.gmra.mxu0 %v4618
      %v5021 = vpop.f32.mrf.mxu0
      %v5022 = vadd.f32 0.0, %v5021
      %5023 = vmatmul.f32.gmra.mxu0 %v4621
      %v5024 = vpop.f32.mrf.mxu0
      %v5025 = vadd.f32 0.0, %v5024
      %5026 = vmatmul.f32.gmra.mxu0 %v4624
      %v5027 = vpop.f32.mrf.mxu0
      %v5028 = vadd.f32 0.0, %v5027
      %5029 = vmatmul.f32.gmra.mxu0 %v4627
      %v5030 = vpop.f32.mrf.mxu0
      %v5031 = vadd.f32 0.0, %v5030
      %5032 = vmatmul.f32.gmra.mxu0 %v4630
      %v5033 = vpop.f32.mrf.mxu0
      %v5034 = vadd.f32 0.0, %v5033
      %5035 = vmatmul.f32.gmra.mxu0 %v4633
      %v5036 = vpop.f32.mrf.mxu0
      %v5037 = vadd.f32 0.0, %v5036
      %5038 = vmatmul.f32.gmra.mxu0 %v4636
      %v5039 = vpop.f32.mrf.mxu0
      %v5040 = vadd.f32 0.0, %v5039
      %5041 = vmatmul.f32.gmra.mxu0 %v4639
      %v5042 = vpop.f32.mrf.mxu0
      %v5043 = vadd.f32 0.0, %v5042
      %5044 = vmatmul.f32.gmra.mxu0 %v4642
      %v5045 = vpop.f32.mrf.mxu0
      %v5046 = vadd.f32 0.0, %v5045
      %5047 = vmatmul.f32.gmra.mxu0 %v4645
      %v5048 = vpop.f32.mrf.mxu0
      %v5049 = vadd.f32 0.0, %v5048
      %5050 = vmatmul.f32.gmra.mxu0 %v4648
      %v5051 = vpop.f32.mrf.mxu0
      %v5052 = vadd.f32 0.0, %v5051
      %5053 = vmatmul.f32.gmra.mxu0 %v4651
      %v5054 = vpop.f32.mrf.mxu0
      %v5055 = vadd.f32 0.0, %v5054
      %5056 = vmatmul.f32.gmra.mxu0 %v4654
      %v5057 = vpop.f32.mrf.mxu0
      %v5058 = vadd.f32 0.0, %v5057
      %5059 = vmatmul.f32.gmra.mxu0 %v4657
      %v5060 = vpop.f32.mrf.mxu0
      %v5061 = vadd.f32 0.0, %v5060
      %5062 = vdwg.mxu0
      %v5063 = vadd.f32 %v4017, %v4680
      %v5064 = vadd.f32 %v4018, %v4683
      %v5065 = vadd.f32 %v4019, %v4686
      %v5066 = vadd.f32 %v4020, %v4689
      %v5067 = vadd.f32 %v4021, %v4692
      %v5068 = vadd.f32 %v4022, %v4695
      %v5069 = vadd.f32 %v4023, %v4698
      %v5070 = vadd.f32 %v4024, %v4701
      %v5071 = vadd.f32 %v4025, %v4704
      %v5072 = vadd.f32 %v4026, %v4707
      %v5073 = vadd.f32 %v4027, %v4710
      %v5074 = vadd.f32 %v4028, %v4713
      %v5075 = vadd.f32 %v4029, %v4716
      %v5076 = vadd.f32 %v4030, %v4719
      %v5077 = vadd.f32 %v4031, %v4722
      %v5078 = vadd.f32 %v4032, %v4725
      %v5079 = vadd.f32 %v4033, %v4728
      %v5080 = vadd.f32 %v4034, %v4731
      %v5081 = vadd.f32 %v4035, %v4734
      %v5082 = vadd.f32 %v4036, %v4737
      %v5083 = vadd.f32 %v4037, %v4740
      %v5084 = vadd.f32 %v4038, %v4743
      %v5085 = vadd.f32 %v4039, %v4746
      %v5086 = vadd.f32 %v4040, %v4749
      %v5087 = vadd.f32 %v4041, %v4752
      %v5088 = vadd.f32 %v4042, %v4755
      %v5089 = vadd.f32 %v4043, %v4758
      %v5090 = vadd.f32 %v4044, %v4761
      %v5091 = vadd.f32 %v4045, %v4764
      %v5092 = vadd.f32 %v4046, %v4767
      %v5093 = vadd.f32 %v4047, %v4770
      %v5094 = vadd.f32 %v4048, %v4773
      %v5095 = vadd.f32 %v4049, %v4776
      %v5096 = vadd.f32 %v4050, %v4779
      %v5097 = vadd.f32 %v4051, %v4782
      %v5098 = vadd.f32 %v4052, %v4785
      %v5099 = vadd.f32 %v4053, %v4788
      %v5100 = vadd.f32 %v4054, %v4791
      %v5101 = vadd.f32 %v4055, %v4794
      %v5102 = vadd.f32 %v4056, %v4797
      %v5103 = vadd.f32 %v4057, %v4800
      %v5104 = vadd.f32 %v4058, %v4803
      %v5105 = vadd.f32 %v4059, %v4806
      %v5106 = vadd.f32 %v4060, %v4809
      %v5107 = vadd.f32 %v4061, %v4812
      %v5108 = vadd.f32 %v4062, %v4815
      %v5109 = vadd.f32 %v4063, %v4818
      %v5110 = vadd.f32 %v4064, %v4821
      %v5111 = vadd.f32 %v4065, %v4824
      %v5112 = vadd.f32 %v4066, %v4827
      %v5113 = vadd.f32 %v4067, %v4830
      %v5114 = vadd.f32 %v4068, %v4833
      %v5115 = vadd.f32 %v4069, %v4836
      %v5116 = vadd.f32 %v4070, %v4839
      %v5117 = vadd.f32 %v4071, %v4842
      %v5118 = vadd.f32 %v4072, %v4845
      %v5119 = vadd.f32 %v4073, %v4848
      %v5120 = vadd.f32 %v4074, %v4851
      %v5121 = vadd.f32 %v4075, %v4854
      %v5122 = vadd.f32 %v4076, %v4857
      %v5123 = vadd.f32 %v4077, %v4860
      %v5124 = vadd.f32 %v4078, %v4863
      %v5125 = vadd.f32 %v4079, %v4866
      %v5126 = vadd.f32 %v4080, %v4869
      %v5127 = vadd.f32 %v4081, %v4872
      %v5128 = vadd.f32 %v4082, %v4875
      %v5129 = vadd.f32 %v4083, %v4878
      %v5130 = vadd.f32 %v4084, %v4881
      %v5131 = vadd.f32 %v4085, %v4884
      %v5132 = vadd.f32 %v4086, %v4887
      %v5133 = vadd.f32 %v4087, %v4890
      %v5134 = vadd.f32 %v4088, %v4893
      %v5135 = vadd.f32 %v4089, %v4896
      %v5136 = vadd.f32 %v4090, %v4899
      %v5137 = vadd.f32 %v4091, %v4902
      %v5138 = vadd.f32 %v4092, %v4905
      %v5139 = vadd.f32 %v4093, %v4908
      %v5140 = vadd.f32 %v4094, %v4911
      %v5141 = vadd.f32 %v4095, %v4914
      %v5142 = vadd.f32 %v4096, %v4917
      %v5143 = vadd.f32 %v4097, %v4920
      %v5144 = vadd.f32 %v4098, %v4923
      %v5145 = vadd.f32 %v4099, %v4926
      %v5146 = vadd.f32 %v4100, %v4929
      %v5147 = vadd.f32 %v4101, %v4932
      %v5148 = vadd.f32 %v4102, %v4935
      %v5149 = vadd.f32 %v4103, %v4938
      %v5150 = vadd.f32 %v4104, %v4941
      %v5151 = vadd.f32 %v4105, %v4944
      %v5152 = vadd.f32 %v4106, %v4947
      %v5153 = vadd.f32 %v4107, %v4950
      %v5154 = vadd.f32 %v4108, %v4953
      %v5155 = vadd.f32 %v4109, %v4956
      %v5156 = vadd.f32 %v4110, %v4959
      %v5157 = vadd.f32 %v4111, %v4962
      %v5158 = vadd.f32 %v4112, %v4965
      %v5159 = vadd.f32 %v4113, %v4968
      %v5160 = vadd.f32 %v4114, %v4971
      %v5161 = vadd.f32 %v4115, %v4974
      %v5162 = vadd.f32 %v4116, %v4977
      %v5163 = vadd.f32 %v4117, %v4980
      %v5164 = vadd.f32 %v4118, %v4983
      %v5165 = vadd.f32 %v4119, %v4986
      %v5166 = vadd.f32 %v4120, %v4989
      %v5167 = vadd.f32 %v4121, %v4992
      %v5168 = vadd.f32 %v4122, %v4995
      %v5169 = vadd.f32 %v4123, %v4998
      %v5170 = vadd.f32 %v4124, %v5001
      %v5171 = vadd.f32 %v4125, %v5004
      %v5172 = vadd.f32 %v4126, %v5007
      %v5173 = vadd.f32 %v4127, %v5010
      %v5174 = vadd.f32 %v4128, %v5013
      %v5175 = vadd.f32 %v4129, %v5016
      %v5176 = vadd.f32 %v4130, %v5019
      %v5177 = vadd.f32 %v4131, %v5022
      %v5178 = vadd.f32 %v4132, %v5025
      %v5179 = vadd.f32 %v4133, %v5028
      %v5180 = vadd.f32 %v4134, %v5031
      %v5181 = vadd.f32 %v4135, %v5034
      %v5182 = vadd.f32 %v4136, %v5037
      %v5183 = vadd.f32 %v4137, %v5040
      %v5184 = vadd.f32 %v4138, %v5043
      %v5185 = vadd.f32 %v4139, %v5046
      %v5186 = vadd.f32 %v4140, %v5049
      %v5187 = vadd.f32 %v4141, %v5052
      %v5188 = vadd.f32 %v4142, %v5055
      %v5189 = vadd.f32 %v4143, %v5058
      %v5190 = vadd.f32 %v4144, %v5061
      %v5191 = vld [vmem:[%s3098 + $0x2] sm:$0xff]
      %v5192 = vld [vmem:[%s3098 + $0xa] sm:$0xff]
      %v5193 = vld [vmem:[%s3098 + $0x12] sm:$0xff]
      %v5194 = vld [vmem:[%s3098 + $0x1a] sm:$0xff]
      %v5195 = vld [vmem:[%s3098 + $0x2a] sm:$0xff]
      %v5196 = vld [vmem:[%s3098 + $0x32] sm:$0xff]
      %v5197 = vld [vmem:[%s3098 + $0x3a] sm:$0xff]
      %v5198 = vld [vmem:[%s3098 + $0x42] sm:$0xff]
      %v5199 = vld [vmem:[%s3098 + $0x52] sm:$0xff]
      %v5200 = vld [vmem:[%s3098 + $0x5a] sm:$0xff]
      %v5201 = vld [vmem:[%s3098 + $0x62] sm:$0xff]
      %v5202 = vld [vmem:[%s3098 + $0x6a] sm:$0xff]
      %v5203 = vld [vmem:[%s3098 + $0x7a] sm:$0xff]
      %v5204 = vld [vmem:[%s3098 + $0x82] sm:$0xff]
      %v5205 = vld [vmem:[%s3098 + $0x8a] sm:$0xff]
      %v5206 = vld [vmem:[%s3098 + $0x92] sm:$0xff]
      %v5207 = vld [vmem:[%s3098 + $0xa2] sm:$0xff]
      %v5208 = vld [vmem:[%s3098 + $0xaa] sm:$0xff]
      %v5209 = vld [vmem:[%s3098 + $0xb2] sm:$0xff]
      %v5210 = vld [vmem:[%s3098 + $0xba] sm:$0xff]
      %v5211 = vld [vmem:[%s3098 + $0xca] sm:$0xff]
      %v5212 = vld [vmem:[%s3098 + $0xd2] sm:$0xff]
      %v5213 = vld [vmem:[%s3098 + $0xda] sm:$0xff]
      %v5214 = vld [vmem:[%s3098 + $0xe2] sm:$0xff]
      %v5215 = vld [vmem:[%s3098 + $0xf2] sm:$0xff]
      %v5216 = vld [vmem:[%s3098 + $0xfa] sm:$0xff]
      %v5217 = vld [vmem:[%s3098 + $0x102] sm:$0xff]
      %v5218 = vld [vmem:[%s3098 + $0x10a] sm:$0xff]
      %v5219 = vld [vmem:[%s3098 + $0x11a] sm:$0xff]
      %v5220 = vld [vmem:[%s3098 + $0x122] sm:$0xff]
      %v5221 = vld [vmem:[%s3098 + $0x12a] sm:$0xff]
      %v5222 = vld [vmem:[%s3098 + $0x132] sm:$0xff]
      %v5223 = vld [vmem:[%s3098 + $0x142] sm:$0xff]
      %v5224 = vld [vmem:[%s3098 + $0x14a] sm:$0xff]
      %v5225 = vld [vmem:[%s3098 + $0x152] sm:$0xff]
      %v5226 = vld [vmem:[%s3098 + $0x15a] sm:$0xff]
      %v5227 = vld [vmem:[%s3098 + $0x16a] sm:$0xff]
      %v5228 = vld [vmem:[%s3098 + $0x172] sm:$0xff]
      %v5229 = vld [vmem:[%s3098 + $0x17a] sm:$0xff]
      %v5230 = vld [vmem:[%s3098 + $0x182] sm:$0xff]
      %v5231 = vld [vmem:[%s3098 + $0x192] sm:$0xff]
      %v5232 = vld [vmem:[%s3098 + $0x19a] sm:$0xff]
      %v5233 = vld [vmem:[%s3098 + $0x1a2] sm:$0xff]
      %v5234 = vld [vmem:[%s3098 + $0x1aa] sm:$0xff]
      %v5235 = vld [vmem:[%s3098 + $0x1ba] sm:$0xff]
      %v5236 = vld [vmem:[%s3098 + $0x1c2] sm:$0xff]
      %v5237 = vld [vmem:[%s3098 + $0x1ca] sm:$0xff]
      %v5238 = vld [vmem:[%s3098 + $0x1d2] sm:$0xff]
      %v5239 = vld [vmem:[%s3098 + $0x1e2] sm:$0xff]
      %v5240 = vld [vmem:[%s3098 + $0x1ea] sm:$0xff]
      %v5241 = vld [vmem:[%s3098 + $0x1f2] sm:$0xff]
      %v5242 = vld [vmem:[%s3098 + $0x1fa] sm:$0xff]
      %v5243 = vld [vmem:[%s3098 + $0x20a] sm:$0xff]
      %v5244 = vld [vmem:[%s3098 + $0x212] sm:$0xff]
      %v5245 = vld [vmem:[%s3098 + $0x21a] sm:$0xff]
      %v5246 = vld [vmem:[%s3098 + $0x222] sm:$0xff]
      %v5247 = vld [vmem:[%s3098 + $0x232] sm:$0xff]
      %v5248 = vld [vmem:[%s3098 + $0x23a] sm:$0xff]
      %v5249 = vld [vmem:[%s3098 + $0x242] sm:$0xff]
      %v5250 = vld [vmem:[%s3098 + $0x24a] sm:$0xff]
      %v5251 = vld [vmem:[%s3098 + $0x25a] sm:$0xff]
      %v5252 = vld [vmem:[%s3098 + $0x262] sm:$0xff]
      %v5253 = vld [vmem:[%s3098 + $0x26a] sm:$0xff]
      %v5254 = vld [vmem:[%s3098 + $0x272] sm:$0xff]
      %v5255 = vld [vmem:[%s3098 + $0x282] sm:$0xff]
      %v5256 = vld [vmem:[%s3098 + $0x28a] sm:$0xff]
      %v5257 = vld [vmem:[%s3098 + $0x292] sm:$0xff]
      %v5258 = vld [vmem:[%s3098 + $0x29a] sm:$0xff]
      %v5259 = vld [vmem:[%s3098 + $0x2aa] sm:$0xff]
      %v5260 = vld [vmem:[%s3098 + $0x2b2] sm:$0xff]
      %v5261 = vld [vmem:[%s3098 + $0x2ba] sm:$0xff]
      %v5262 = vld [vmem:[%s3098 + $0x2c2] sm:$0xff]
      %v5263 = vld [vmem:[%s3098 + $0x2d2] sm:$0xff]
      %v5264 = vld [vmem:[%s3098 + $0x2da] sm:$0xff]
      %v5265 = vld [vmem:[%s3098 + $0x2e2] sm:$0xff]
      %v5266 = vld [vmem:[%s3098 + $0x2ea] sm:$0xff]
      %v5267 = vld [vmem:[%s3098 + $0x2fa] sm:$0xff]
      %v5268 = vld [vmem:[%s3098 + $0x302] sm:$0xff]
      %v5269 = vld [vmem:[%s3098 + $0x30a] sm:$0xff]
      %v5270 = vld [vmem:[%s3098 + $0x312] sm:$0xff]
      %v5271 = vld [vmem:[%s3098 + $0x322] sm:$0xff]
      %v5272 = vld [vmem:[%s3098 + $0x32a] sm:$0xff]
      %v5273 = vld [vmem:[%s3098 + $0x332] sm:$0xff]
      %v5274 = vld [vmem:[%s3098 + $0x33a] sm:$0xff]
      %v5275 = vld [vmem:[%s3098 + $0x34a] sm:$0xff]
      %v5276 = vld [vmem:[%s3098 + $0x352] sm:$0xff]
      %v5277 = vld [vmem:[%s3098 + $0x35a] sm:$0xff]
      %v5278 = vld [vmem:[%s3098 + $0x362] sm:$0xff]
      %v5279 = vld [vmem:[%s3098 + $0x372] sm:$0xff]
      %v5280 = vld [vmem:[%s3098 + $0x37a] sm:$0xff]
      %v5281 = vld [vmem:[%s3098 + $0x382] sm:$0xff]
      %v5282 = vld [vmem:[%s3098 + $0x38a] sm:$0xff]
      %v5283 = vld [vmem:[%s3098 + $0x39a] sm:$0xff]
      %v5284 = vld [vmem:[%s3098 + $0x3a2] sm:$0xff]
      %v5285 = vld [vmem:[%s3098 + $0x3aa] sm:$0xff]
      %v5286 = vld [vmem:[%s3098 + $0x3b2] sm:$0xff]
      %v5287 = vld [vmem:[%s3098 + $0x3c2] sm:$0xff]
      %v5288 = vld [vmem:[%s3098 + $0x3ca] sm:$0xff]
      %v5289 = vld [vmem:[%s3098 + $0x3d2] sm:$0xff]
      %v5290 = vld [vmem:[%s3098 + $0x3da] sm:$0xff]
      %v5291 = vld [vmem:[%s3098 + $0x3ea] sm:$0xff]
      %v5292 = vld [vmem:[%s3098 + $0x3f2] sm:$0xff]
      %v5293 = vld [vmem:[%s3098 + $0x3fa] sm:$0xff]
      %v5294 = vld [vmem:[%s3098 + $0x402] sm:$0xff]
      %v5295 = vld [vmem:[%s3098 + $0x412] sm:$0xff]
      %v5296 = vld [vmem:[%s3098 + $0x41a] sm:$0xff]
      %v5297 = vld [vmem:[%s3098 + $0x422] sm:$0xff]
      %v5298 = vld [vmem:[%s3098 + $0x42a] sm:$0xff]
      %v5299 = vld [vmem:[%s3098 + $0x43a] sm:$0xff]
      %v5300 = vld [vmem:[%s3098 + $0x442] sm:$0xff]
      %v5301 = vld [vmem:[%s3098 + $0x44a] sm:$0xff]
      %v5302 = vld [vmem:[%s3098 + $0x452] sm:$0xff]
      %v5303 = vld [vmem:[%s3098 + $0x462] sm:$0xff]
      %v5304 = vld [vmem:[%s3098 + $0x46a] sm:$0xff]
      %v5305 = vld [vmem:[%s3098 + $0x472] sm:$0xff]
      %v5306 = vld [vmem:[%s3098 + $0x47a] sm:$0xff]
      %v5307 = vld [vmem:[%s3098 + $0x48a] sm:$0xff]
      %v5308 = vld [vmem:[%s3098 + $0x492] sm:$0xff]
      %v5309 = vld [vmem:[%s3098 + $0x49a] sm:$0xff]
      %v5310 = vld [vmem:[%s3098 + $0x4a2] sm:$0xff]
      %v5311 = vld [vmem:[%s3098 + $0x4b2] sm:$0xff]
      %v5312 = vld [vmem:[%s3098 + $0x4ba] sm:$0xff]
      %v5313 = vld [vmem:[%s3098 + $0x4c2] sm:$0xff]
      %v5314 = vld [vmem:[%s3098 + $0x4ca] sm:$0xff]
      %v5315 = vld [vmem:[%s3098 + $0x4da] sm:$0xff]
      %v5316 = vld [vmem:[%s3098 + $0x4e2] sm:$0xff]
      %v5317 = vld [vmem:[%s3098 + $0x4ea] sm:$0xff]
      %v5318 = vld [vmem:[%s3098 + $0x4f2] sm:$0xff]
      %s5319 = scalar_lea.vmem %s1, 20
      %v5320 = vld [vmem:[%s5319] sm:$0xf]
      %v5322 = vsel %vm474, %v5191, 0
      %v5325 = vsel %vm474, %v5192, 0
      %v5328 = vsel %vm474, %v5193, 0
      %v5331 = vsel %vm474, %v5194, 0
      %v5334 = vsel %vm474, %v5195, 0
      %v5337 = vsel %vm474, %v5196, 0
      %v5340 = vsel %vm474, %v5197, 0
      %v5343 = vsel %vm474, %v5198, 0
      %v5346 = vsel %vm474, %v5199, 0
      %v5349 = vsel %vm474, %v5200, 0
      %v5352 = vsel %vm474, %v5201, 0
      %v5355 = vsel %vm474, %v5202, 0
      %v5358 = vsel %vm474, %v5203, 0
      %v5361 = vsel %vm474, %v5204, 0
      %v5364 = vsel %vm474, %v5205, 0
      %v5367 = vsel %vm474, %v5206, 0
      %v5370 = vsel %vm474, %v5207, 0
      %v5373 = vsel %vm474, %v5208, 0
      %v5376 = vsel %vm474, %v5209, 0
      %v5379 = vsel %vm474, %v5210, 0
      %v5382 = vsel %vm474, %v5211, 0
      %v5385 = vsel %vm474, %v5212, 0
      %v5388 = vsel %vm474, %v5213, 0
      %v5391 = vsel %vm474, %v5214, 0
      %v5394 = vsel %vm474, %v5215, 0
      %v5397 = vsel %vm474, %v5216, 0
      %v5400 = vsel %vm474, %v5217, 0
      %v5403 = vsel %vm474, %v5218, 0
      %v5406 = vsel %vm474, %v5219, 0
      %v5409 = vsel %vm474, %v5220, 0
      %v5412 = vsel %vm474, %v5221, 0
      %v5415 = vsel %vm474, %v5222, 0
      %v5418 = vsel %vm474, %v5223, 0
      %v5421 = vsel %vm474, %v5224, 0
      %v5424 = vsel %vm474, %v5225, 0
      %v5427 = vsel %vm474, %v5226, 0
      %v5430 = vsel %vm474, %v5227, 0
      %v5433 = vsel %vm474, %v5228, 0
      %v5436 = vsel %vm474, %v5229, 0
      %v5439 = vsel %vm474, %v5230, 0
      %v5442 = vsel %vm474, %v5231, 0
      %v5445 = vsel %vm474, %v5232, 0
      %v5448 = vsel %vm474, %v5233, 0
      %v5451 = vsel %vm474, %v5234, 0
      %v5454 = vsel %vm474, %v5235, 0
      %v5457 = vsel %vm474, %v5236, 0
      %v5460 = vsel %vm474, %v5237, 0
      %v5463 = vsel %vm474, %v5238, 0
      %v5466 = vsel %vm474, %v5239, 0
      %v5469 = vsel %vm474, %v5240, 0
      %v5472 = vsel %vm474, %v5241, 0
      %v5475 = vsel %vm474, %v5242, 0
      %v5478 = vsel %vm474, %v5243, 0
      %v5481 = vsel %vm474, %v5244, 0
      %v5484 = vsel %vm474, %v5245, 0
      %v5487 = vsel %vm474, %v5246, 0
      %v5490 = vsel %vm474, %v5247, 0
      %v5493 = vsel %vm474, %v5248, 0
      %v5496 = vsel %vm474, %v5249, 0
      %v5499 = vsel %vm474, %v5250, 0
      %v5502 = vsel %vm474, %v5251, 0
      %v5505 = vsel %vm474, %v5252, 0
      %v5508 = vsel %vm474, %v5253, 0
      %v5511 = vsel %vm474, %v5254, 0
      %v5514 = vsel %vm474, %v5255, 0
      %v5517 = vsel %vm474, %v5256, 0
      %v5520 = vsel %vm474, %v5257, 0
      %v5523 = vsel %vm474, %v5258, 0
      %v5526 = vsel %vm474, %v5259, 0
      %v5529 = vsel %vm474, %v5260, 0
      %v5532 = vsel %vm474, %v5261, 0
      %v5535 = vsel %vm474, %v5262, 0
      %v5538 = vsel %vm474, %v5263, 0
      %v5541 = vsel %vm474, %v5264, 0
      %v5544 = vsel %vm474, %v5265, 0
      %v5547 = vsel %vm474, %v5266, 0
      %v5550 = vsel %vm474, %v5267, 0
      %v5553 = vsel %vm474, %v5268, 0
      %v5556 = vsel %vm474, %v5269, 0
      %v5559 = vsel %vm474, %v5270, 0
      %v5562 = vsel %vm474, %v5271, 0
      %v5565 = vsel %vm474, %v5272, 0
      %v5568 = vsel %vm474, %v5273, 0
      %v5571 = vsel %vm474, %v5274, 0
      %v5574 = vsel %vm474, %v5275, 0
      %v5577 = vsel %vm474, %v5276, 0
      %v5580 = vsel %vm474, %v5277, 0
      %v5583 = vsel %vm474, %v5278, 0
      %v5586 = vsel %vm474, %v5279, 0
      %v5589 = vsel %vm474, %v5280, 0
      %v5592 = vsel %vm474, %v5281, 0
      %v5595 = vsel %vm474, %v5282, 0
      %v5598 = vsel %vm474, %v5283, 0
      %v5601 = vsel %vm474, %v5284, 0
      %v5604 = vsel %vm474, %v5285, 0
      %v5607 = vsel %vm474, %v5286, 0
      %v5610 = vsel %vm474, %v5287, 0
      %v5613 = vsel %vm474, %v5288, 0
      %v5616 = vsel %vm474, %v5289, 0
      %v5619 = vsel %vm474, %v5290, 0
      %v5622 = vsel %vm474, %v5291, 0
      %v5625 = vsel %vm474, %v5292, 0
      %v5628 = vsel %vm474, %v5293, 0
      %v5631 = vsel %vm474, %v5294, 0
      %v5634 = vsel %vm474, %v5295, 0
      %v5637 = vsel %vm474, %v5296, 0
      %v5640 = vsel %vm474, %v5297, 0
      %v5643 = vsel %vm474, %v5298, 0
      %v5646 = vsel %vm474, %v5299, 0
      %v5649 = vsel %vm474, %v5300, 0
      %v5652 = vsel %vm474, %v5301, 0
      %v5655 = vsel %vm474, %v5302, 0
      %v5658 = vsel %vm474, %v5303, 0
      %v5661 = vsel %vm474, %v5304, 0
      %v5664 = vsel %vm474, %v5305, 0
      %v5667 = vsel %vm474, %v5306, 0
      %v5670 = vsel %vm474, %v5307, 0
      %v5673 = vsel %vm474, %v5308, 0
      %v5676 = vsel %vm474, %v5309, 0
      %v5679 = vsel %vm474, %v5310, 0
      %v5682 = vsel %vm474, %v5311, 0
      %v5685 = vsel %vm474, %v5312, 0
      %v5688 = vsel %vm474, %v5313, 0
      %v5691 = vsel %vm474, %v5314, 0
      %v5694 = vsel %vm474, %v5315, 0
      %v5697 = vsel %vm474, %v5316, 0
      %v5700 = vsel %vm474, %v5317, 0
      %v5703 = vsel %vm474, %v5318, 0
      %v5706 = vsel %vm859, %v5320, 0
      %5708 = vmatpush.msra.mxu0 0.0
      %5709 = vmatpush.msra.mxu0 0.0
      %5710 = vmatpush.msra.mxu0 0.0
      %5711 = vmatpush.msra.mxu0 0.0
      %5712 = vmatpush.msra.mxu0 0.0
      %5713 = vmatpush.msra.mxu0 0.0
      %5714 = vmatpush.msra.mxu0 0.0
      %5715 = vmatpush.msra.mxu0 0.0
      %5716 = vmatpush.msra.mxu0 0.0
      %5717 = vmatpush.msra.mxu0 0.0
      %5718 = vmatpush.msra.mxu0 0.0
      %5719 = vmatpush.msra.mxu0 0.0
      %5720 = vmatpush.msra.mxu0 0.0
      %5721 = vmatpush.msra.mxu0 0.0
      %5722 = vmatpush.msra.mxu0 0.0
      %5723 = vmatpush.msra.mxu0 %v5706
      %5724 = vmatmul.f32.gmra.mxu0 %v5322
      %v5725 = vpop.f32.mrf.mxu0
      %v5726 = vadd.f32 0.0, %v5725
      %5727 = vmatmul.f32.gmra.mxu0 %v5325
      %v5728 = vpop.f32.mrf.mxu0
      %v5729 = vadd.f32 0.0, %v5728
      %5730 = vmatmul.f32.gmra.mxu0 %v5328
      %v5731 = vpop.f32.mrf.mxu0
      %v5732 = vadd.f32 0.0, %v5731
      %5733 = vmatmul.f32.gmra.mxu0 %v5331
      %v5734 = vpop.f32.mrf.mxu0
      %v5735 = vadd.f32 0.0, %v5734
      %5736 = vmatmul.f32.gmra.mxu0 %v5334
      %v5737 = vpop.f32.mrf.mxu0
      %v5738 = vadd.f32 0.0, %v5737
      %5739 = vmatmul.f32.gmra.mxu0 %v5337
      %v5740 = vpop.f32.mrf.mxu0
      %v5741 = vadd.f32 0.0, %v5740
      %5742 = vmatmul.f32.gmra.mxu0 %v5340
      %v5743 = vpop.f32.mrf.mxu0
      %v5744 = vadd.f32 0.0, %v5743
      %5745 = vmatmul.f32.gmra.mxu0 %v5343
      %v5746 = vpop.f32.mrf.mxu0
      %v5747 = vadd.f32 0.0, %v5746
      %5748 = vmatmul.f32.gmra.mxu0 %v5346
      %v5749 = vpop.f32.mrf.mxu0
      %v5750 = vadd.f32 0.0, %v5749
      %5751 = vmatmul.f32.gmra.mxu0 %v5349
      %v5752 = vpop.f32.mrf.mxu0
      %v5753 = vadd.f32 0.0, %v5752
      %5754 = vmatmul.f32.gmra.mxu0 %v5352
      %v5755 = vpop.f32.mrf.mxu0
      %v5756 = vadd.f32 0.0, %v5755
      %5757 = vmatmul.f32.gmra.mxu0 %v5355
      %v5758 = vpop.f32.mrf.mxu0
      %v5759 = vadd.f32 0.0, %v5758
      %5760 = vmatmul.f32.gmra.mxu0 %v5358
      %v5761 = vpop.f32.mrf.mxu0
      %v5762 = vadd.f32 0.0, %v5761
      %5763 = vmatmul.f32.gmra.mxu0 %v5361
      %v5764 = vpop.f32.mrf.mxu0
      %v5765 = vadd.f32 0.0, %v5764
      %5766 = vmatmul.f32.gmra.mxu0 %v5364
      %v5767 = vpop.f32.mrf.mxu0
      %v5768 = vadd.f32 0.0, %v5767
      %5769 = vmatmul.f32.gmra.mxu0 %v5367
      %v5770 = vpop.f32.mrf.mxu0
      %v5771 = vadd.f32 0.0, %v5770
      %5772 = vmatmul.f32.gmra.mxu0 %v5370
      %v5773 = vpop.f32.mrf.mxu0
      %v5774 = vadd.f32 0.0, %v5773
      %5775 = vmatmul.f32.gmra.mxu0 %v5373
      %v5776 = vpop.f32.mrf.mxu0
      %v5777 = vadd.f32 0.0, %v5776
      %5778 = vmatmul.f32.gmra.mxu0 %v5376
      %v5779 = vpop.f32.mrf.mxu0
      %v5780 = vadd.f32 0.0, %v5779
      %5781 = vmatmul.f32.gmra.mxu0 %v5379
      %v5782 = vpop.f32.mrf.mxu0
      %v5783 = vadd.f32 0.0, %v5782
      %5784 = vmatmul.f32.gmra.mxu0 %v5382
      %v5785 = vpop.f32.mrf.mxu0
      %v5786 = vadd.f32 0.0, %v5785
      %5787 = vmatmul.f32.gmra.mxu0 %v5385
      %v5788 = vpop.f32.mrf.mxu0
      %v5789 = vadd.f32 0.0, %v5788
      %5790 = vmatmul.f32.gmra.mxu0 %v5388
      %v5791 = vpop.f32.mrf.mxu0
      %v5792 = vadd.f32 0.0, %v5791
      %5793 = vmatmul.f32.gmra.mxu0 %v5391
      %v5794 = vpop.f32.mrf.mxu0
      %v5795 = vadd.f32 0.0, %v5794
      %5796 = vmatmul.f32.gmra.mxu0 %v5394
      %v5797 = vpop.f32.mrf.mxu0
      %v5798 = vadd.f32 0.0, %v5797
      %5799 = vmatmul.f32.gmra.mxu0 %v5397
      %v5800 = vpop.f32.mrf.mxu0
      %v5801 = vadd.f32 0.0, %v5800
      %5802 = vmatmul.f32.gmra.mxu0 %v5400
      %v5803 = vpop.f32.mrf.mxu0
      %v5804 = vadd.f32 0.0, %v5803
      %5805 = vmatmul.f32.gmra.mxu0 %v5403
      %v5806 = vpop.f32.mrf.mxu0
      %v5807 = vadd.f32 0.0, %v5806
      %5808 = vmatmul.f32.gmra.mxu0 %v5406
      %v5809 = vpop.f32.mrf.mxu0
      %v5810 = vadd.f32 0.0, %v5809
      %5811 = vmatmul.f32.gmra.mxu0 %v5409
      %v5812 = vpop.f32.mrf.mxu0
      %v5813 = vadd.f32 0.0, %v5812
      %5814 = vmatmul.f32.gmra.mxu0 %v5412
      %v5815 = vpop.f32.mrf.mxu0
      %v5816 = vadd.f32 0.0, %v5815
      %5817 = vmatmul.f32.gmra.mxu0 %v5415
      %v5818 = vpop.f32.mrf.mxu0
      %v5819 = vadd.f32 0.0, %v5818
      %5820 = vmatmul.f32.gmra.mxu0 %v5418
      %v5821 = vpop.f32.mrf.mxu0
      %v5822 = vadd.f32 0.0, %v5821
      %5823 = vmatmul.f32.gmra.mxu0 %v5421
      %v5824 = vpop.f32.mrf.mxu0
      %v5825 = vadd.f32 0.0, %v5824
      %5826 = vmatmul.f32.gmra.mxu0 %v5424
      %v5827 = vpop.f32.mrf.mxu0
      %v5828 = vadd.f32 0.0, %v5827
      %5829 = vmatmul.f32.gmra.mxu0 %v5427
      %v5830 = vpop.f32.mrf.mxu0
      %v5831 = vadd.f32 0.0, %v5830
      %5832 = vmatmul.f32.gmra.mxu0 %v5430
      %v5833 = vpop.f32.mrf.mxu0
      %v5834 = vadd.f32 0.0, %v5833
      %5835 = vmatmul.f32.gmra.mxu0 %v5433
      %v5836 = vpop.f32.mrf.mxu0
      %v5837 = vadd.f32 0.0, %v5836
      %5838 = vmatmul.f32.gmra.mxu0 %v5436
      %v5839 = vpop.f32.mrf.mxu0
      %v5840 = vadd.f32 0.0, %v5839
      %5841 = vmatmul.f32.gmra.mxu0 %v5439
      %v5842 = vpop.f32.mrf.mxu0
      %v5843 = vadd.f32 0.0, %v5842
      %5844 = vmatmul.f32.gmra.mxu0 %v5442
      %v5845 = vpop.f32.mrf.mxu0
      %v5846 = vadd.f32 0.0, %v5845
      %5847 = vmatmul.f32.gmra.mxu0 %v5445
      %v5848 = vpop.f32.mrf.mxu0
      %v5849 = vadd.f32 0.0, %v5848
      %5850 = vmatmul.f32.gmra.mxu0 %v5448
      %v5851 = vpop.f32.mrf.mxu0
      %v5852 = vadd.f32 0.0, %v5851
      %5853 = vmatmul.f32.gmra.mxu0 %v5451
      %v5854 = vpop.f32.mrf.mxu0
      %v5855 = vadd.f32 0.0, %v5854
      %5856 = vmatmul.f32.gmra.mxu0 %v5454
      %v5857 = vpop.f32.mrf.mxu0
      %v5858 = vadd.f32 0.0, %v5857
      %5859 = vmatmul.f32.gmra.mxu0 %v5457
      %v5860 = vpop.f32.mrf.mxu0
      %v5861 = vadd.f32 0.0, %v5860
      %5862 = vmatmul.f32.gmra.mxu0 %v5460
      %v5863 = vpop.f32.mrf.mxu0
      %v5864 = vadd.f32 0.0, %v5863
      %5865 = vmatmul.f32.gmra.mxu0 %v5463
      %v5866 = vpop.f32.mrf.mxu0
      %v5867 = vadd.f32 0.0, %v5866
      %5868 = vmatmul.f32.gmra.mxu0 %v5466
      %v5869 = vpop.f32.mrf.mxu0
      %v5870 = vadd.f32 0.0, %v5869
      %5871 = vmatmul.f32.gmra.mxu0 %v5469
      %v5872 = vpop.f32.mrf.mxu0
      %v5873 = vadd.f32 0.0, %v5872
      %5874 = vmatmul.f32.gmra.mxu0 %v5472
      %v5875 = vpop.f32.mrf.mxu0
      %v5876 = vadd.f32 0.0, %v5875
      %5877 = vmatmul.f32.gmra.mxu0 %v5475
      %v5878 = vpop.f32.mrf.mxu0
      %v5879 = vadd.f32 0.0, %v5878
      %5880 = vmatmul.f32.gmra.mxu0 %v5478
      %v5881 = vpop.f32.mrf.mxu0
      %v5882 = vadd.f32 0.0, %v5881
      %5883 = vmatmul.f32.gmra.mxu0 %v5481
      %v5884 = vpop.f32.mrf.mxu0
      %v5885 = vadd.f32 0.0, %v5884
      %5886 = vmatmul.f32.gmra.mxu0 %v5484
      %v5887 = vpop.f32.mrf.mxu0
      %v5888 = vadd.f32 0.0, %v5887
      %5889 = vmatmul.f32.gmra.mxu0 %v5487
      %v5890 = vpop.f32.mrf.mxu0
      %v5891 = vadd.f32 0.0, %v5890
      %5892 = vmatmul.f32.gmra.mxu0 %v5490
      %v5893 = vpop.f32.mrf.mxu0
      %v5894 = vadd.f32 0.0, %v5893
      %5895 = vmatmul.f32.gmra.mxu0 %v5493
      %v5896 = vpop.f32.mrf.mxu0
      %v5897 = vadd.f32 0.0, %v5896
      %5898 = vmatmul.f32.gmra.mxu0 %v5496
      %v5899 = vpop.f32.mrf.mxu0
      %v5900 = vadd.f32 0.0, %v5899
      %5901 = vmatmul.f32.gmra.mxu0 %v5499
      %v5902 = vpop.f32.mrf.mxu0
      %v5903 = vadd.f32 0.0, %v5902
      %5904 = vmatmul.f32.gmra.mxu0 %v5502
      %v5905 = vpop.f32.mrf.mxu0
      %v5906 = vadd.f32 0.0, %v5905
      %5907 = vmatmul.f32.gmra.mxu0 %v5505
      %v5908 = vpop.f32.mrf.mxu0
      %v5909 = vadd.f32 0.0, %v5908
      %5910 = vmatmul.f32.gmra.mxu0 %v5508
      %v5911 = vpop.f32.mrf.mxu0
      %v5912 = vadd.f32 0.0, %v5911
      %5913 = vmatmul.f32.gmra.mxu0 %v5511
      %v5914 = vpop.f32.mrf.mxu0
      %v5915 = vadd.f32 0.0, %v5914
      %5916 = vmatmul.f32.gmra.mxu0 %v5514
      %v5917 = vpop.f32.mrf.mxu0
      %v5918 = vadd.f32 0.0, %v5917
      %5919 = vmatmul.f32.gmra.mxu0 %v5517
      %v5920 = vpop.f32.mrf.mxu0
      %v5921 = vadd.f32 0.0, %v5920
      %5922 = vmatmul.f32.gmra.mxu0 %v5520
      %v5923 = vpop.f32.mrf.mxu0
      %v5924 = vadd.f32 0.0, %v5923
      %5925 = vmatmul.f32.gmra.mxu0 %v5523
      %v5926 = vpop.f32.mrf.mxu0
      %v5927 = vadd.f32 0.0, %v5926
      %5928 = vmatmul.f32.gmra.mxu0 %v5526
      %v5929 = vpop.f32.mrf.mxu0
      %v5930 = vadd.f32 0.0, %v5929
      %5931 = vmatmul.f32.gmra.mxu0 %v5529
      %v5932 = vpop.f32.mrf.mxu0
      %v5933 = vadd.f32 0.0, %v5932
      %5934 = vmatmul.f32.gmra.mxu0 %v5532
      %v5935 = vpop.f32.mrf.mxu0
      %v5936 = vadd.f32 0.0, %v5935
      %5937 = vmatmul.f32.gmra.mxu0 %v5535
      %v5938 = vpop.f32.mrf.mxu0
      %v5939 = vadd.f32 0.0, %v5938
      %5940 = vmatmul.f32.gmra.mxu0 %v5538
      %v5941 = vpop.f32.mrf.mxu0
      %v5942 = vadd.f32 0.0, %v5941
      %5943 = vmatmul.f32.gmra.mxu0 %v5541
      %v5944 = vpop.f32.mrf.mxu0
      %v5945 = vadd.f32 0.0, %v5944
      %5946 = vmatmul.f32.gmra.mxu0 %v5544
      %v5947 = vpop.f32.mrf.mxu0
      %v5948 = vadd.f32 0.0, %v5947
      %5949 = vmatmul.f32.gmra.mxu0 %v5547
      %v5950 = vpop.f32.mrf.mxu0
      %v5951 = vadd.f32 0.0, %v5950
      %5952 = vmatmul.f32.gmra.mxu0 %v5550
      %v5953 = vpop.f32.mrf.mxu0
      %v5954 = vadd.f32 0.0, %v5953
      %5955 = vmatmul.f32.gmra.mxu0 %v5553
      %v5956 = vpop.f32.mrf.mxu0
      %v5957 = vadd.f32 0.0, %v5956
      %5958 = vmatmul.f32.gmra.mxu0 %v5556
      %v5959 = vpop.f32.mrf.mxu0
      %v5960 = vadd.f32 0.0, %v5959
      %5961 = vmatmul.f32.gmra.mxu0 %v5559
      %v5962 = vpop.f32.mrf.mxu0
      %v5963 = vadd.f32 0.0, %v5962
      %5964 = vmatmul.f32.gmra.mxu0 %v5562
      %v5965 = vpop.f32.mrf.mxu0
      %v5966 = vadd.f32 0.0, %v5965
      %5967 = vmatmul.f32.gmra.mxu0 %v5565
      %v5968 = vpop.f32.mrf.mxu0
      %v5969 = vadd.f32 0.0, %v5968
      %5970 = vmatmul.f32.gmra.mxu0 %v5568
      %v5971 = vpop.f32.mrf.mxu0
      %v5972 = vadd.f32 0.0, %v5971
      %5973 = vmatmul.f32.gmra.mxu0 %v5571
      %v5974 = vpop.f32.mrf.mxu0
      %v5975 = vadd.f32 0.0, %v5974
      %5976 = vmatmul.f32.gmra.mxu0 %v5574
      %v5977 = vpop.f32.mrf.mxu0
      %v5978 = vadd.f32 0.0, %v5977
      %5979 = vmatmul.f32.gmra.mxu0 %v5577
      %v5980 = vpop.f32.mrf.mxu0
      %v5981 = vadd.f32 0.0, %v5980
      %5982 = vmatmul.f32.gmra.mxu0 %v5580
      %v5983 = vpop.f32.mrf.mxu0
      %v5984 = vadd.f32 0.0, %v5983
      %5985 = vmatmul.f32.gmra.mxu0 %v5583
      %v5986 = vpop.f32.mrf.mxu0
      %v5987 = vadd.f32 0.0, %v5986
      %5988 = vmatmul.f32.gmra.mxu0 %v5586
      %v5989 = vpop.f32.mrf.mxu0
      %v5990 = vadd.f32 0.0, %v5989
      %5991 = vmatmul.f32.gmra.mxu0 %v5589
      %v5992 = vpop.f32.mrf.mxu0
      %v5993 = vadd.f32 0.0, %v5992
      %5994 = vmatmul.f32.gmra.mxu0 %v5592
      %v5995 = vpop.f32.mrf.mxu0
      %v5996 = vadd.f32 0.0, %v5995
      %5997 = vmatmul.f32.gmra.mxu0 %v5595
      %v5998 = vpop.f32.mrf.mxu0
      %v5999 = vadd.f32 0.0, %v5998
      %6000 = vmatmul.f32.gmra.mxu0 %v5598
      %v6001 = vpop.f32.mrf.mxu0
      %v6002 = vadd.f32 0.0, %v6001
      %6003 = vmatmul.f32.gmra.mxu0 %v5601
      %v6004 = vpop.f32.mrf.mxu0
      %v6005 = vadd.f32 0.0, %v6004
      %6006 = vmatmul.f32.gmra.mxu0 %v5604
      %v6007 = vpop.f32.mrf.mxu0
      %v6008 = vadd.f32 0.0, %v6007
      %6009 = vmatmul.f32.gmra.mxu0 %v5607
      %v6010 = vpop.f32.mrf.mxu0
      %v6011 = vadd.f32 0.0, %v6010
      %6012 = vmatmul.f32.gmra.mxu0 %v5610
      %v6013 = vpop.f32.mrf.mxu0
      %v6014 = vadd.f32 0.0, %v6013
      %6015 = vmatmul.f32.gmra.mxu0 %v5613
      %v6016 = vpop.f32.mrf.mxu0
      %v6017 = vadd.f32 0.0, %v6016
      %6018 = vmatmul.f32.gmra.mxu0 %v5616
      %v6019 = vpop.f32.mrf.mxu0
      %v6020 = vadd.f32 0.0, %v6019
      %6021 = vmatmul.f32.gmra.mxu0 %v5619
      %v6022 = vpop.f32.mrf.mxu0
      %v6023 = vadd.f32 0.0, %v6022
      %6024 = vmatmul.f32.gmra.mxu0 %v5622
      %v6025 = vpop.f32.mrf.mxu0
      %v6026 = vadd.f32 0.0, %v6025
      %6027 = vmatmul.f32.gmra.mxu0 %v5625
      %v6028 = vpop.f32.mrf.mxu0
      %v6029 = vadd.f32 0.0, %v6028
      %6030 = vmatmul.f32.gmra.mxu0 %v5628
      %v6031 = vpop.f32.mrf.mxu0
      %v6032 = vadd.f32 0.0, %v6031
      %6033 = vmatmul.f32.gmra.mxu0 %v5631
      %v6034 = vpop.f32.mrf.mxu0
      %v6035 = vadd.f32 0.0, %v6034
      %6036 = vmatmul.f32.gmra.mxu0 %v5634
      %v6037 = vpop.f32.mrf.mxu0
      %v6038 = vadd.f32 0.0, %v6037
      %6039 = vmatmul.f32.gmra.mxu0 %v5637
      %v6040 = vpop.f32.mrf.mxu0
      %v6041 = vadd.f32 0.0, %v6040
      %6042 = vmatmul.f32.gmra.mxu0 %v5640
      %v6043 = vpop.f32.mrf.mxu0
      %v6044 = vadd.f32 0.0, %v6043
      %6045 = vmatmul.f32.gmra.mxu0 %v5643
      %v6046 = vpop.f32.mrf.mxu0
      %v6047 = vadd.f32 0.0, %v6046
      %6048 = vmatmul.f32.gmra.mxu0 %v5646
      %v6049 = vpop.f32.mrf.mxu0
      %v6050 = vadd.f32 0.0, %v6049
      %6051 = vmatmul.f32.gmra.mxu0 %v5649
      %v6052 = vpop.f32.mrf.mxu0
      %v6053 = vadd.f32 0.0, %v6052
      %6054 = vmatmul.f32.gmra.mxu0 %v5652
      %v6055 = vpop.f32.mrf.mxu0
      %v6056 = vadd.f32 0.0, %v6055
      %6057 = vmatmul.f32.gmra.mxu0 %v5655
      %v6058 = vpop.f32.mrf.mxu0
      %v6059 = vadd.f32 0.0, %v6058
      %6060 = vmatmul.f32.gmra.mxu0 %v5658
      %v6061 = vpop.f32.mrf.mxu0
      %v6062 = vadd.f32 0.0, %v6061
      %6063 = vmatmul.f32.gmra.mxu0 %v5661
      %v6064 = vpop.f32.mrf.mxu0
      %v6065 = vadd.f32 0.0, %v6064
      %6066 = vmatmul.f32.gmra.mxu0 %v5664
      %v6067 = vpop.f32.mrf.mxu0
      %v6068 = vadd.f32 0.0, %v6067
      %6069 = vmatmul.f32.gmra.mxu0 %v5667
      %v6070 = vpop.f32.mrf.mxu0
      %v6071 = vadd.f32 0.0, %v6070
      %6072 = vmatmul.f32.gmra.mxu0 %v5670
      %v6073 = vpop.f32.mrf.mxu0
      %v6074 = vadd.f32 0.0, %v6073
      %6075 = vmatmul.f32.gmra.mxu0 %v5673
      %v6076 = vpop.f32.mrf.mxu0
      %v6077 = vadd.f32 0.0, %v6076
      %6078 = vmatmul.f32.gmra.mxu0 %v5676
      %v6079 = vpop.f32.mrf.mxu0
      %v6080 = vadd.f32 0.0, %v6079
      %6081 = vmatmul.f32.gmra.mxu0 %v5679
      %v6082 = vpop.f32.mrf.mxu0
      %v6083 = vadd.f32 0.0, %v6082
      %6084 = vmatmul.f32.gmra.mxu0 %v5682
      %v6085 = vpop.f32.mrf.mxu0
      %v6086 = vadd.f32 0.0, %v6085
      %6087 = vmatmul.f32.gmra.mxu0 %v5685
      %v6088 = vpop.f32.mrf.mxu0
      %v6089 = vadd.f32 0.0, %v6088
      %6090 = vmatmul.f32.gmra.mxu0 %v5688
      %v6091 = vpop.f32.mrf.mxu0
      %v6092 = vadd.f32 0.0, %v6091
      %6093 = vmatmul.f32.gmra.mxu0 %v5691
      %v6094 = vpop.f32.mrf.mxu0
      %v6095 = vadd.f32 0.0, %v6094
      %6096 = vmatmul.f32.gmra.mxu0 %v5694
      %v6097 = vpop.f32.mrf.mxu0
      %v6098 = vadd.f32 0.0, %v6097
      %6099 = vmatmul.f32.gmra.mxu0 %v5697
      %v6100 = vpop.f32.mrf.mxu0
      %v6101 = vadd.f32 0.0, %v6100
      %6102 = vmatmul.f32.gmra.mxu0 %v5700
      %v6103 = vpop.f32.mrf.mxu0
      %v6104 = vadd.f32 0.0, %v6103
      %6105 = vmatmul.f32.gmra.mxu0 %v5703
      %v6106 = vpop.f32.mrf.mxu0
      %v6107 = vadd.f32 0.0, %v6106
      %6108 = vdwg.mxu0
      %v6109 = vadd.f32 %v5063, %v5726
      %v6110 = vadd.f32 %v5064, %v5729
      %v6111 = vadd.f32 %v5065, %v5732
      %v6112 = vadd.f32 %v5066, %v5735
      %v6113 = vadd.f32 %v5067, %v5738
      %v6114 = vadd.f32 %v5068, %v5741
      %v6115 = vadd.f32 %v5069, %v5744
      %v6116 = vadd.f32 %v5070, %v5747
      %v6117 = vadd.f32 %v5071, %v5750
      %v6118 = vadd.f32 %v5072, %v5753
      %v6119 = vadd.f32 %v5073, %v5756
      %v6120 = vadd.f32 %v5074, %v5759
      %v6121 = vadd.f32 %v5075, %v5762
      %v6122 = vadd.f32 %v5076, %v5765
      %v6123 = vadd.f32 %v5077, %v5768
      %v6124 = vadd.f32 %v5078, %v5771
      %v6125 = vadd.f32 %v5079, %v5774
      %v6126 = vadd.f32 %v5080, %v5777
      %v6127 = vadd.f32 %v5081, %v5780
      %v6128 = vadd.f32 %v5082, %v5783
      %v6129 = vadd.f32 %v5083, %v5786
      %v6130 = vadd.f32 %v5084, %v5789
      %v6131 = vadd.f32 %v5085, %v5792
      %v6132 = vadd.f32 %v5086, %v5795
      %v6133 = vadd.f32 %v5087, %v5798
      %v6134 = vadd.f32 %v5088, %v5801
      %v6135 = vadd.f32 %v5089, %v5804
      %v6136 = vadd.f32 %v5090, %v5807
      %v6137 = vadd.f32 %v5091, %v5810
      %v6138 = vadd.f32 %v5092, %v5813
      %v6139 = vadd.f32 %v5093, %v5816
      %v6140 = vadd.f32 %v5094, %v5819
      %v6141 = vadd.f32 %v5095, %v5822
      %v6142 = vadd.f32 %v5096, %v5825
      %v6143 = vadd.f32 %v5097, %v5828
      %v6144 = vadd.f32 %v5098, %v5831
      %v6145 = vadd.f32 %v5099, %v5834
      %v6146 = vadd.f32 %v5100, %v5837
      %v6147 = vadd.f32 %v5101, %v5840
      %v6148 = vadd.f32 %v5102, %v5843
      %v6149 = vadd.f32 %v5103, %v5846
      %v6150 = vadd.f32 %v5104, %v5849
      %v6151 = vadd.f32 %v5105, %v5852
      %v6152 = vadd.f32 %v5106, %v5855
      %v6153 = vadd.f32 %v5107, %v5858
      %v6154 = vadd.f32 %v5108, %v5861
      %v6155 = vadd.f32 %v5109, %v5864
      %v6156 = vadd.f32 %v5110, %v5867
      %v6157 = vadd.f32 %v5111, %v5870
      %v6158 = vadd.f32 %v5112, %v5873
      %v6159 = vadd.f32 %v5113, %v5876
      %v6160 = vadd.f32 %v5114, %v5879
      %v6161 = vadd.f32 %v5115, %v5882
      %v6162 = vadd.f32 %v5116, %v5885
      %v6163 = vadd.f32 %v5117, %v5888
      %v6164 = vadd.f32 %v5118, %v5891
      %v6165 = vadd.f32 %v5119, %v5894
      %v6166 = vadd.f32 %v5120, %v5897
      %v6167 = vadd.f32 %v5121, %v5900
      %v6168 = vadd.f32 %v5122, %v5903
      %v6169 = vadd.f32 %v5123, %v5906
      %v6170 = vadd.f32 %v5124, %v5909
      %v6171 = vadd.f32 %v5125, %v5912
      %v6172 = vadd.f32 %v5126, %v5915
      %v6173 = vadd.f32 %v5127, %v5918
      %v6174 = vadd.f32 %v5128, %v5921
      %v6175 = vadd.f32 %v5129, %v5924
      %v6176 = vadd.f32 %v5130, %v5927
      %v6177 = vadd.f32 %v5131, %v5930
      %v6178 = vadd.f32 %v5132, %v5933
      %v6179 = vadd.f32 %v5133, %v5936
      %v6180 = vadd.f32 %v5134, %v5939
      %v6181 = vadd.f32 %v5135, %v5942
      %v6182 = vadd.f32 %v5136, %v5945
      %v6183 = vadd.f32 %v5137, %v5948
      %v6184 = vadd.f32 %v5138, %v5951
      %v6185 = vadd.f32 %v5139, %v5954
      %v6186 = vadd.f32 %v5140, %v5957
      %v6187 = vadd.f32 %v5141, %v5960
      %v6188 = vadd.f32 %v5142, %v5963
      %v6189 = vadd.f32 %v5143, %v5966
      %v6190 = vadd.f32 %v5144, %v5969
      %v6191 = vadd.f32 %v5145, %v5972
      %v6192 = vadd.f32 %v5146, %v5975
      %v6193 = vadd.f32 %v5147, %v5978
      %v6194 = vadd.f32 %v5148, %v5981
      %v6195 = vadd.f32 %v5149, %v5984
      %v6196 = vadd.f32 %v5150, %v5987
      %v6197 = vadd.f32 %v5151, %v5990
      %v6198 = vadd.f32 %v5152, %v5993
      %v6199 = vadd.f32 %v5153, %v5996
      %v6200 = vadd.f32 %v5154, %v5999
      %v6201 = vadd.f32 %v5155, %v6002
      %v6202 = vadd.f32 %v5156, %v6005
      %v6203 = vadd.f32 %v5157, %v6008
      %v6204 = vadd.f32 %v5158, %v6011
      %v6205 = vadd.f32 %v5159, %v6014
      %v6206 = vadd.f32 %v5160, %v6017
      %v6207 = vadd.f32 %v5161, %v6020
      %v6208 = vadd.f32 %v5162, %v6023
      %v6209 = vadd.f32 %v5163, %v6026
      %v6210 = vadd.f32 %v5164, %v6029
      %v6211 = vadd.f32 %v5165, %v6032
      %v6212 = vadd.f32 %v5166, %v6035
      %v6213 = vadd.f32 %v5167, %v6038
      %v6214 = vadd.f32 %v5168, %v6041
      %v6215 = vadd.f32 %v5169, %v6044
      %v6216 = vadd.f32 %v5170, %v6047
      %v6217 = vadd.f32 %v5171, %v6050
      %v6218 = vadd.f32 %v5172, %v6053
      %v6219 = vadd.f32 %v5173, %v6056
      %v6220 = vadd.f32 %v5174, %v6059
      %v6221 = vadd.f32 %v5175, %v6062
      %v6222 = vadd.f32 %v5176, %v6065
      %v6223 = vadd.f32 %v5177, %v6068
      %v6224 = vadd.f32 %v5178, %v6071
      %v6225 = vadd.f32 %v5179, %v6074
      %v6226 = vadd.f32 %v5180, %v6077
      %v6227 = vadd.f32 %v5181, %v6080
      %v6228 = vadd.f32 %v5182, %v6083
      %v6229 = vadd.f32 %v5183, %v6086
      %v6230 = vadd.f32 %v5184, %v6089
      %v6231 = vadd.f32 %v5185, %v6092
      %v6232 = vadd.f32 %v5186, %v6095
      %v6233 = vadd.f32 %v5187, %v6098
      %v6234 = vadd.f32 %v5188, %v6101
      %v6235 = vadd.f32 %v5189, %v6104
      %v6236 = vadd.f32 %v5190, %v6107
      %s6237 = scalar_lea.vmem %s203, 80
      %v6238 = vld [vmem:[%s6237] sm:$0xff]
      %v6239 = vld [vmem:[%s6237 + $0x8] sm:$0xff]
      %v6240 = vld [vmem:[%s6237 + $0x10] sm:$0xff]
      %v6241 = vld [vmem:[%s6237 + $0x18] sm:$0xff]
      %v6242 = vld [vmem:[%s6237 + $0x28] sm:$0xff]
      %v6243 = vld [vmem:[%s6237 + $0x30] sm:$0xff]
      %v6244 = vld [vmem:[%s6237 + $0x38] sm:$0xff]
      %v6245 = vld [vmem:[%s6237 + $0x40] sm:$0xff]
      %v6246 = vld [vmem:[%s6237 + $0x50] sm:$0xff]
      %v6247 = vld [vmem:[%s6237 + $0x58] sm:$0xff]
      %v6248 = vld [vmem:[%s6237 + $0x60] sm:$0xff]
      %v6249 = vld [vmem:[%s6237 + $0x68] sm:$0xff]
      %v6250 = vld [vmem:[%s6237 + $0x78] sm:$0xff]
      %v6251 = vld [vmem:[%s6237 + $0x80] sm:$0xff]
      %v6252 = vld [vmem:[%s6237 + $0x88] sm:$0xff]
      %v6253 = vld [vmem:[%s6237 + $0x90] sm:$0xff]
      %v6254 = vld [vmem:[%s6237 + $0xa0] sm:$0xff]
      %v6255 = vld [vmem:[%s6237 + $0xa8] sm:$0xff]
      %v6256 = vld [vmem:[%s6237 + $0xb0] sm:$0xff]
      %v6257 = vld [vmem:[%s6237 + $0xb8] sm:$0xff]
      %v6258 = vld [vmem:[%s6237 + $0xc8] sm:$0xff]
      %v6259 = vld [vmem:[%s6237 + $0xd0] sm:$0xff]
      %v6260 = vld [vmem:[%s6237 + $0xd8] sm:$0xff]
      %v6261 = vld [vmem:[%s6237 + $0xe0] sm:$0xff]
      %v6262 = vld [vmem:[%s6237 + $0xf0] sm:$0xff]
      %v6263 = vld [vmem:[%s6237 + $0xf8] sm:$0xff]
      %v6264 = vld [vmem:[%s6237 + $0x100] sm:$0xff]
      %v6265 = vld [vmem:[%s6237 + $0x108] sm:$0xff]
      %v6266 = vld [vmem:[%s6237 + $0x118] sm:$0xff]
      %v6267 = vld [vmem:[%s6237 + $0x120] sm:$0xff]
      %v6268 = vld [vmem:[%s6237 + $0x128] sm:$0xff]
      %v6269 = vld [vmem:[%s6237 + $0x130] sm:$0xff]
      %v6270 = vld [vmem:[%s6237 + $0x140] sm:$0xff]
      %v6271 = vld [vmem:[%s6237 + $0x148] sm:$0xff]
      %v6272 = vld [vmem:[%s6237 + $0x150] sm:$0xff]
      %v6273 = vld [vmem:[%s6237 + $0x158] sm:$0xff]
      %v6274 = vld [vmem:[%s6237 + $0x168] sm:$0xff]
      %v6275 = vld [vmem:[%s6237 + $0x170] sm:$0xff]
      %v6276 = vld [vmem:[%s6237 + $0x178] sm:$0xff]
      %v6277 = vld [vmem:[%s6237 + $0x180] sm:$0xff]
      %v6278 = vld [vmem:[%s6237 + $0x190] sm:$0xff]
      %v6279 = vld [vmem:[%s6237 + $0x198] sm:$0xff]
      %v6280 = vld [vmem:[%s6237 + $0x1a0] sm:$0xff]
      %v6281 = vld [vmem:[%s6237 + $0x1a8] sm:$0xff]
      %v6282 = vld [vmem:[%s6237 + $0x1b8] sm:$0xff]
      %v6283 = vld [vmem:[%s6237 + $0x1c0] sm:$0xff]
      %v6284 = vld [vmem:[%s6237 + $0x1c8] sm:$0xff]
      %v6285 = vld [vmem:[%s6237 + $0x1d0] sm:$0xff]
      %v6286 = vld [vmem:[%s6237 + $0x1e0] sm:$0xff]
      %v6287 = vld [vmem:[%s6237 + $0x1e8] sm:$0xff]
      %v6288 = vld [vmem:[%s6237 + $0x1f0] sm:$0xff]
      %v6289 = vld [vmem:[%s6237 + $0x1f8] sm:$0xff]
      %v6290 = vld [vmem:[%s6237 + $0x208] sm:$0xff]
      %v6291 = vld [vmem:[%s6237 + $0x210] sm:$0xff]
      %v6292 = vld [vmem:[%s6237 + $0x218] sm:$0xff]
      %v6293 = vld [vmem:[%s6237 + $0x220] sm:$0xff]
      %v6294 = vld [vmem:[%s6237 + $0x230] sm:$0xff]
      %v6295 = vld [vmem:[%s6237 + $0x238] sm:$0xff]
      %v6296 = vld [vmem:[%s6237 + $0x240] sm:$0xff]
      %v6297 = vld [vmem:[%s6237 + $0x248] sm:$0xff]
      %v6298 = vld [vmem:[%s6237 + $0x258] sm:$0xff]
      %v6299 = vld [vmem:[%s6237 + $0x260] sm:$0xff]
      %v6300 = vld [vmem:[%s6237 + $0x268] sm:$0xff]
      %v6301 = vld [vmem:[%s6237 + $0x270] sm:$0xff]
      %v6302 = vld [vmem:[%s6237 + $0x280] sm:$0xff]
      %v6303 = vld [vmem:[%s6237 + $0x288] sm:$0xff]
      %v6304 = vld [vmem:[%s6237 + $0x290] sm:$0xff]
      %v6305 = vld [vmem:[%s6237 + $0x298] sm:$0xff]
      %v6306 = vld [vmem:[%s6237 + $0x2a8] sm:$0xff]
      %v6307 = vld [vmem:[%s6237 + $0x2b0] sm:$0xff]
      %v6308 = vld [vmem:[%s6237 + $0x2b8] sm:$0xff]
      %v6309 = vld [vmem:[%s6237 + $0x2c0] sm:$0xff]
      %v6310 = vld [vmem:[%s6237 + $0x2d0] sm:$0xff]
      %v6311 = vld [vmem:[%s6237 + $0x2d8] sm:$0xff]
      %v6312 = vld [vmem:[%s6237 + $0x2e0] sm:$0xff]
      %v6313 = vld [vmem:[%s6237 + $0x2e8] sm:$0xff]
      %v6314 = vld [vmem:[%s6237 + $0x2f8] sm:$0xff]
      %v6315 = vld [vmem:[%s6237 + $0x300] sm:$0xff]
      %v6316 = vld [vmem:[%s6237 + $0x308] sm:$0xff]
      %v6317 = vld [vmem:[%s6237 + $0x310] sm:$0xff]
      %v6318 = vld [vmem:[%s6237 + $0x320] sm:$0xff]
      %v6319 = vld [vmem:[%s6237 + $0x328] sm:$0xff]
      %v6320 = vld [vmem:[%s6237 + $0x330] sm:$0xff]
      %v6321 = vld [vmem:[%s6237 + $0x338] sm:$0xff]
      %v6322 = vld [vmem:[%s6237 + $0x348] sm:$0xff]
      %v6323 = vld [vmem:[%s6237 + $0x350] sm:$0xff]
      %v6324 = vld [vmem:[%s6237 + $0x358] sm:$0xff]
      %v6325 = vld [vmem:[%s6237 + $0x360] sm:$0xff]
      %v6326 = vld [vmem:[%s6237 + $0x370] sm:$0xff]
      %v6327 = vld [vmem:[%s6237 + $0x378] sm:$0xff]
      %v6328 = vld [vmem:[%s6237 + $0x380] sm:$0xff]
      %v6329 = vld [vmem:[%s6237 + $0x388] sm:$0xff]
      %v6330 = vld [vmem:[%s6237 + $0x398] sm:$0xff]
      %v6331 = vld [vmem:[%s6237 + $0x3a0] sm:$0xff]
      %v6332 = vld [vmem:[%s6237 + $0x3a8] sm:$0xff]
      %v6333 = vld [vmem:[%s6237 + $0x3b0] sm:$0xff]
      %v6334 = vld [vmem:[%s6237 + $0x3c0] sm:$0xff]
      %v6335 = vld [vmem:[%s6237 + $0x3c8] sm:$0xff]
      %v6336 = vld [vmem:[%s6237 + $0x3d0] sm:$0xff]
      %v6337 = vld [vmem:[%s6237 + $0x3d8] sm:$0xff]
      %v6338 = vld [vmem:[%s6237 + $0x3e8] sm:$0xff]
      %v6339 = vld [vmem:[%s6237 + $0x3f0] sm:$0xff]
      %v6340 = vld [vmem:[%s6237 + $0x3f8] sm:$0xff]
      %v6341 = vld [vmem:[%s6237 + $0x400] sm:$0xff]
      %v6342 = vld [vmem:[%s6237 + $0x410] sm:$0xff]
      %v6343 = vld [vmem:[%s6237 + $0x418] sm:$0xff]
      %v6344 = vld [vmem:[%s6237 + $0x420] sm:$0xff]
      %v6345 = vld [vmem:[%s6237 + $0x428] sm:$0xff]
      %v6346 = vld [vmem:[%s6237 + $0x438] sm:$0xff]
      %v6347 = vld [vmem:[%s6237 + $0x440] sm:$0xff]
      %v6348 = vld [vmem:[%s6237 + $0x448] sm:$0xff]
      %v6349 = vld [vmem:[%s6237 + $0x450] sm:$0xff]
      %v6350 = vld [vmem:[%s6237 + $0x460] sm:$0xff]
      %v6351 = vld [vmem:[%s6237 + $0x468] sm:$0xff]
      %v6352 = vld [vmem:[%s6237 + $0x470] sm:$0xff]
      %v6353 = vld [vmem:[%s6237 + $0x478] sm:$0xff]
      %v6354 = vld [vmem:[%s6237 + $0x488] sm:$0xff]
      %v6355 = vld [vmem:[%s6237 + $0x490] sm:$0xff]
      %v6356 = vld [vmem:[%s6237 + $0x498] sm:$0xff]
      %v6357 = vld [vmem:[%s6237 + $0x4a0] sm:$0xff]
      %v6358 = vld [vmem:[%s6237 + $0x4b0] sm:$0xff]
      %v6359 = vld [vmem:[%s6237 + $0x4b8] sm:$0xff]
      %v6360 = vld [vmem:[%s6237 + $0x4c0] sm:$0xff]
      %v6361 = vld [vmem:[%s6237 + $0x4c8] sm:$0xff]
      %v6362 = vld [vmem:[%s6237 + $0x4d8] sm:$0xff]
      %v6363 = vld [vmem:[%s6237 + $0x4e0] sm:$0xff]
      %v6364 = vld [vmem:[%s6237 + $0x4e8] sm:$0xff]
      %v6365 = vld [vmem:[%s6237 + $0x4f0] sm:$0xff]
      %s6366 = scalar_lea.vmem %s1, 24
      %v6367 = vld [vmem:[%s6366] sm:$0xf]
      %v6369 = vsel %vm474, %v6238, 0
      %v6372 = vsel %vm474, %v6239, 0
      %v6375 = vsel %vm474, %v6240, 0
      %v6378 = vsel %vm474, %v6241, 0
      %v6381 = vsel %vm474, %v6242, 0
      %v6384 = vsel %vm474, %v6243, 0
      %v6387 = vsel %vm474, %v6244, 0
      %v6390 = vsel %vm474, %v6245, 0
      %v6393 = vsel %vm474, %v6246, 0
      %v6396 = vsel %vm474, %v6247, 0
      %v6399 = vsel %vm474, %v6248, 0
      %v6402 = vsel %vm474, %v6249, 0
      %v6405 = vsel %vm474, %v6250, 0
      %v6408 = vsel %vm474, %v6251, 0
      %v6411 = vsel %vm474, %v6252, 0
      %v6414 = vsel %vm474, %v6253, 0
      %v6417 = vsel %vm474, %v6254, 0
      %v6420 = vsel %vm474, %v6255, 0
      %v6423 = vsel %vm474, %v6256, 0
      %v6426 = vsel %vm474, %v6257, 0
      %v6429 = vsel %vm474, %v6258, 0
      %v6432 = vsel %vm474, %v6259, 0
      %v6435 = vsel %vm474, %v6260, 0
      %v6438 = vsel %vm474, %v6261, 0
      %v6441 = vsel %vm474, %v6262, 0
      %v6444 = vsel %vm474, %v6263, 0
      %v6447 = vsel %vm474, %v6264, 0
      %v6450 = vsel %vm474, %v6265, 0
      %v6453 = vsel %vm474, %v6266, 0
      %v6456 = vsel %vm474, %v6267, 0
      %v6459 = vsel %vm474, %v6268, 0
      %v6462 = vsel %vm474, %v6269, 0
      %v6465 = vsel %vm474, %v6270, 0
      %v6468 = vsel %vm474, %v6271, 0
      %v6471 = vsel %vm474, %v6272, 0
      %v6474 = vsel %vm474, %v6273, 0
      %v6477 = vsel %vm474, %v6274, 0
      %v6480 = vsel %vm474, %v6275, 0
      %v6483 = vsel %vm474, %v6276, 0
      %v6486 = vsel %vm474, %v6277, 0
      %v6489 = vsel %vm474, %v6278, 0
      %v6492 = vsel %vm474, %v6279, 0
      %v6495 = vsel %vm474, %v6280, 0
      %v6498 = vsel %vm474, %v6281, 0
      %v6501 = vsel %vm474, %v6282, 0
      %v6504 = vsel %vm474, %v6283, 0
      %v6507 = vsel %vm474, %v6284, 0
      %v6510 = vsel %vm474, %v6285, 0
      %v6513 = vsel %vm474, %v6286, 0
      %v6516 = vsel %vm474, %v6287, 0
      %v6519 = vsel %vm474, %v6288, 0
      %v6522 = vsel %vm474, %v6289, 0
      %v6525 = vsel %vm474, %v6290, 0
      %v6528 = vsel %vm474, %v6291, 0
      %v6531 = vsel %vm474, %v6292, 0
      %v6534 = vsel %vm474, %v6293, 0
      %v6537 = vsel %vm474, %v6294, 0
      %v6540 = vsel %vm474, %v6295, 0
      %v6543 = vsel %vm474, %v6296, 0
      %v6546 = vsel %vm474, %v6297, 0
      %v6549 = vsel %vm474, %v6298, 0
      %v6552 = vsel %vm474, %v6299, 0
      %v6555 = vsel %vm474, %v6300, 0
      %v6558 = vsel %vm474, %v6301, 0
      %v6561 = vsel %vm474, %v6302, 0
      %v6564 = vsel %vm474, %v6303, 0
      %v6567 = vsel %vm474, %v6304, 0
      %v6570 = vsel %vm474, %v6305, 0
      %v6573 = vsel %vm474, %v6306, 0
      %v6576 = vsel %vm474, %v6307, 0
      %v6579 = vsel %vm474, %v6308, 0
      %v6582 = vsel %vm474, %v6309, 0
      %v6585 = vsel %vm474, %v6310, 0
      %v6588 = vsel %vm474, %v6311, 0
      %v6591 = vsel %vm474, %v6312, 0
      %v6594 = vsel %vm474, %v6313, 0
      %v6597 = vsel %vm474, %v6314, 0
      %v6600 = vsel %vm474, %v6315, 0
      %v6603 = vsel %vm474, %v6316, 0
      %v6606 = vsel %vm474, %v6317, 0
      %v6609 = vsel %vm474, %v6318, 0
      %v6612 = vsel %vm474, %v6319, 0
      %v6615 = vsel %vm474, %v6320, 0
      %v6618 = vsel %vm474, %v6321, 0
      %v6621 = vsel %vm474, %v6322, 0
      %v6624 = vsel %vm474, %v6323, 0
      %v6627 = vsel %vm474, %v6324, 0
      %v6630 = vsel %vm474, %v6325, 0
      %v6633 = vsel %vm474, %v6326, 0
      %v6636 = vsel %vm474, %v6327, 0
      %v6639 = vsel %vm474, %v6328, 0
      %v6642 = vsel %vm474, %v6329, 0
      %v6645 = vsel %vm474, %v6330, 0
      %v6648 = vsel %vm474, %v6331, 0
      %v6651 = vsel %vm474, %v6332, 0
      %v6654 = vsel %vm474, %v6333, 0
      %v6657 = vsel %vm474, %v6334, 0
      %v6660 = vsel %vm474, %v6335, 0
      %v6663 = vsel %vm474, %v6336, 0
      %v6666 = vsel %vm474, %v6337, 0
      %v6669 = vsel %vm474, %v6338, 0
      %v6672 = vsel %vm474, %v6339, 0
      %v6675 = vsel %vm474, %v6340, 0
      %v6678 = vsel %vm474, %v6341, 0
      %v6681 = vsel %vm474, %v6342, 0
      %v6684 = vsel %vm474, %v6343, 0
      %v6687 = vsel %vm474, %v6344, 0
      %v6690 = vsel %vm474, %v6345, 0
      %v6693 = vsel %vm474, %v6346, 0
      %v6696 = vsel %vm474, %v6347, 0
      %v6699 = vsel %vm474, %v6348, 0
      %v6702 = vsel %vm474, %v6349, 0
      %v6705 = vsel %vm474, %v6350, 0
      %v6708 = vsel %vm474, %v6351, 0
      %v6711 = vsel %vm474, %v6352, 0
      %v6714 = vsel %vm474, %v6353, 0
      %v6717 = vsel %vm474, %v6354, 0
      %v6720 = vsel %vm474, %v6355, 0
      %v6723 = vsel %vm474, %v6356, 0
      %v6726 = vsel %vm474, %v6357, 0
      %v6729 = vsel %vm474, %v6358, 0
      %v6732 = vsel %vm474, %v6359, 0
      %v6735 = vsel %vm474, %v6360, 0
      %v6738 = vsel %vm474, %v6361, 0
      %v6741 = vsel %vm474, %v6362, 0
      %v6744 = vsel %vm474, %v6363, 0
      %v6747 = vsel %vm474, %v6364, 0
      %v6750 = vsel %vm474, %v6365, 0
      %v6753 = vsel %vm859, %v6367, 0
      %6755 = vmatpush.msra.mxu0 0.0
      %6756 = vmatpush.msra.mxu0 0.0
      %6757 = vmatpush.msra.mxu0 0.0
      %6758 = vmatpush.msra.mxu0 0.0
      %6759 = vmatpush.msra.mxu0 0.0
      %6760 = vmatpush.msra.mxu0 0.0
      %6761 = vmatpush.msra.mxu0 0.0
      %6762 = vmatpush.msra.mxu0 0.0
      %6763 = vmatpush.msra.mxu0 0.0
      %6764 = vmatpush.msra.mxu0 0.0
      %6765 = vmatpush.msra.mxu0 0.0
      %6766 = vmatpush.msra.mxu0 0.0
      %6767 = vmatpush.msra.mxu0 0.0
      %6768 = vmatpush.msra.mxu0 0.0
      %6769 = vmatpush.msra.mxu0 0.0
      %6770 = vmatpush.msra.mxu0 %v6753
      %6771 = vmatmul.f32.gmra.mxu0 %v6369
      %v6772 = vpop.f32.mrf.mxu0
      %v6773 = vadd.f32 0.0, %v6772
      %6774 = vmatmul.f32.gmra.mxu0 %v6372
      %v6775 = vpop.f32.mrf.mxu0
      %v6776 = vadd.f32 0.0, %v6775
      %6777 = vmatmul.f32.gmra.mxu0 %v6375
      %v6778 = vpop.f32.mrf.mxu0
      %v6779 = vadd.f32 0.0, %v6778
      %6780 = vmatmul.f32.gmra.mxu0 %v6378
      %v6781 = vpop.f32.mrf.mxu0
      %v6782 = vadd.f32 0.0, %v6781
      %6783 = vmatmul.f32.gmra.mxu0 %v6381
      %v6784 = vpop.f32.mrf.mxu0
      %v6785 = vadd.f32 0.0, %v6784
      %6786 = vmatmul.f32.gmra.mxu0 %v6384
      %v6787 = vpop.f32.mrf.mxu0
      %v6788 = vadd.f32 0.0, %v6787
      %6789 = vmatmul.f32.gmra.mxu0 %v6387
      %v6790 = vpop.f32.mrf.mxu0
      %v6791 = vadd.f32 0.0, %v6790
      %6792 = vmatmul.f32.gmra.mxu0 %v6390
      %v6793 = vpop.f32.mrf.mxu0
      %v6794 = vadd.f32 0.0, %v6793
      %6795 = vmatmul.f32.gmra.mxu0 %v6393
      %v6796 = vpop.f32.mrf.mxu0
      %v6797 = vadd.f32 0.0, %v6796
      %6798 = vmatmul.f32.gmra.mxu0 %v6396
      %v6799 = vpop.f32.mrf.mxu0
      %v6800 = vadd.f32 0.0, %v6799
      %6801 = vmatmul.f32.gmra.mxu0 %v6399
      %v6802 = vpop.f32.mrf.mxu0
      %v6803 = vadd.f32 0.0, %v6802
      %6804 = vmatmul.f32.gmra.mxu0 %v6402
      %v6805 = vpop.f32.mrf.mxu0
      %v6806 = vadd.f32 0.0, %v6805
      %6807 = vmatmul.f32.gmra.mxu0 %v6405
      %v6808 = vpop.f32.mrf.mxu0
      %v6809 = vadd.f32 0.0, %v6808
      %6810 = vmatmul.f32.gmra.mxu0 %v6408
      %v6811 = vpop.f32.mrf.mxu0
      %v6812 = vadd.f32 0.0, %v6811
      %6813 = vmatmul.f32.gmra.mxu0 %v6411
      %v6814 = vpop.f32.mrf.mxu0
      %v6815 = vadd.f32 0.0, %v6814
      %6816 = vmatmul.f32.gmra.mxu0 %v6414
      %v6817 = vpop.f32.mrf.mxu0
      %v6818 = vadd.f32 0.0, %v6817
      %6819 = vmatmul.f32.gmra.mxu0 %v6417
      %v6820 = vpop.f32.mrf.mxu0
      %v6821 = vadd.f32 0.0, %v6820
      %6822 = vmatmul.f32.gmra.mxu0 %v6420
      %v6823 = vpop.f32.mrf.mxu0
      %v6824 = vadd.f32 0.0, %v6823
      %6825 = vmatmul.f32.gmra.mxu0 %v6423
      %v6826 = vpop.f32.mrf.mxu0
      %v6827 = vadd.f32 0.0, %v6826
      %6828 = vmatmul.f32.gmra.mxu0 %v6426
      %v6829 = vpop.f32.mrf.mxu0
      %v6830 = vadd.f32 0.0, %v6829
      %6831 = vmatmul.f32.gmra.mxu0 %v6429
      %v6832 = vpop.f32.mrf.mxu0
      %v6833 = vadd.f32 0.0, %v6832
      %6834 = vmatmul.f32.gmra.mxu0 %v6432
      %v6835 = vpop.f32.mrf.mxu0
      %v6836 = vadd.f32 0.0, %v6835
      %6837 = vmatmul.f32.gmra.mxu0 %v6435
      %v6838 = vpop.f32.mrf.mxu0
      %v6839 = vadd.f32 0.0, %v6838
      %6840 = vmatmul.f32.gmra.mxu0 %v6438
      %v6841 = vpop.f32.mrf.mxu0
      %v6842 = vadd.f32 0.0, %v6841
      %6843 = vmatmul.f32.gmra.mxu0 %v6441
      %v6844 = vpop.f32.mrf.mxu0
      %v6845 = vadd.f32 0.0, %v6844
      %6846 = vmatmul.f32.gmra.mxu0 %v6444
      %v6847 = vpop.f32.mrf.mxu0
      %v6848 = vadd.f32 0.0, %v6847
      %6849 = vmatmul.f32.gmra.mxu0 %v6447
      %v6850 = vpop.f32.mrf.mxu0
      %v6851 = vadd.f32 0.0, %v6850
      %6852 = vmatmul.f32.gmra.mxu0 %v6450
      %v6853 = vpop.f32.mrf.mxu0
      %v6854 = vadd.f32 0.0, %v6853
      %6855 = vmatmul.f32.gmra.mxu0 %v6453
      %v6856 = vpop.f32.mrf.mxu0
      %v6857 = vadd.f32 0.0, %v6856
      %6858 = vmatmul.f32.gmra.mxu0 %v6456
      %v6859 = vpop.f32.mrf.mxu0
      %v6860 = vadd.f32 0.0, %v6859
      %6861 = vmatmul.f32.gmra.mxu0 %v6459
      %v6862 = vpop.f32.mrf.mxu0
      %v6863 = vadd.f32 0.0, %v6862
      %6864 = vmatmul.f32.gmra.mxu0 %v6462
      %v6865 = vpop.f32.mrf.mxu0
      %v6866 = vadd.f32 0.0, %v6865
      %6867 = vmatmul.f32.gmra.mxu0 %v6465
      %v6868 = vpop.f32.mrf.mxu0
      %v6869 = vadd.f32 0.0, %v6868
      %6870 = vmatmul.f32.gmra.mxu0 %v6468
      %v6871 = vpop.f32.mrf.mxu0
      %v6872 = vadd.f32 0.0, %v6871
      %6873 = vmatmul.f32.gmra.mxu0 %v6471
      %v6874 = vpop.f32.mrf.mxu0
      %v6875 = vadd.f32 0.0, %v6874
      %6876 = vmatmul.f32.gmra.mxu0 %v6474
      %v6877 = vpop.f32.mrf.mxu0
      %v6878 = vadd.f32 0.0, %v6877
      %6879 = vmatmul.f32.gmra.mxu0 %v6477
      %v6880 = vpop.f32.mrf.mxu0
      %v6881 = vadd.f32 0.0, %v6880
      %6882 = vmatmul.f32.gmra.mxu0 %v6480
      %v6883 = vpop.f32.mrf.mxu0
      %v6884 = vadd.f32 0.0, %v6883
      %6885 = vmatmul.f32.gmra.mxu0 %v6483
      %v6886 = vpop.f32.mrf.mxu0
      %v6887 = vadd.f32 0.0, %v6886
      %6888 = vmatmul.f32.gmra.mxu0 %v6486
      %v6889 = vpop.f32.mrf.mxu0
      %v6890 = vadd.f32 0.0, %v6889
      %6891 = vmatmul.f32.gmra.mxu0 %v6489
      %v6892 = vpop.f32.mrf.mxu0
      %v6893 = vadd.f32 0.0, %v6892
      %6894 = vmatmul.f32.gmra.mxu0 %v6492
      %v6895 = vpop.f32.mrf.mxu0
      %v6896 = vadd.f32 0.0, %v6895
      %6897 = vmatmul.f32.gmra.mxu0 %v6495
      %v6898 = vpop.f32.mrf.mxu0
      %v6899 = vadd.f32 0.0, %v6898
      %6900 = vmatmul.f32.gmra.mxu0 %v6498
      %v6901 = vpop.f32.mrf.mxu0
      %v6902 = vadd.f32 0.0, %v6901
      %6903 = vmatmul.f32.gmra.mxu0 %v6501
      %v6904 = vpop.f32.mrf.mxu0
      %v6905 = vadd.f32 0.0, %v6904
      %6906 = vmatmul.f32.gmra.mxu0 %v6504
      %v6907 = vpop.f32.mrf.mxu0
      %v6908 = vadd.f32 0.0, %v6907
      %6909 = vmatmul.f32.gmra.mxu0 %v6507
      %v6910 = vpop.f32.mrf.mxu0
      %v6911 = vadd.f32 0.0, %v6910
      %6912 = vmatmul.f32.gmra.mxu0 %v6510
      %v6913 = vpop.f32.mrf.mxu0
      %v6914 = vadd.f32 0.0, %v6913
      %6915 = vmatmul.f32.gmra.mxu0 %v6513
      %v6916 = vpop.f32.mrf.mxu0
      %v6917 = vadd.f32 0.0, %v6916
      %6918 = vmatmul.f32.gmra.mxu0 %v6516
      %v6919 = vpop.f32.mrf.mxu0
      %v6920 = vadd.f32 0.0, %v6919
      %6921 = vmatmul.f32.gmra.mxu0 %v6519
      %v6922 = vpop.f32.mrf.mxu0
      %v6923 = vadd.f32 0.0, %v6922
      %6924 = vmatmul.f32.gmra.mxu0 %v6522
      %v6925 = vpop.f32.mrf.mxu0
      %v6926 = vadd.f32 0.0, %v6925
      %6927 = vmatmul.f32.gmra.mxu0 %v6525
      %v6928 = vpop.f32.mrf.mxu0
      %v6929 = vadd.f32 0.0, %v6928
      %6930 = vmatmul.f32.gmra.mxu0 %v6528
      %v6931 = vpop.f32.mrf.mxu0
      %v6932 = vadd.f32 0.0, %v6931
      %6933 = vmatmul.f32.gmra.mxu0 %v6531
      %v6934 = vpop.f32.mrf.mxu0
      %v6935 = vadd.f32 0.0, %v6934
      %6936 = vmatmul.f32.gmra.mxu0 %v6534
      %v6937 = vpop.f32.mrf.mxu0
      %v6938 = vadd.f32 0.0, %v6937
      %6939 = vmatmul.f32.gmra.mxu0 %v6537
      %v6940 = vpop.f32.mrf.mxu0
      %v6941 = vadd.f32 0.0, %v6940
      %6942 = vmatmul.f32.gmra.mxu0 %v6540
      %v6943 = vpop.f32.mrf.mxu0
      %v6944 = vadd.f32 0.0, %v6943
      %6945 = vmatmul.f32.gmra.mxu0 %v6543
      %v6946 = vpop.f32.mrf.mxu0
      %v6947 = vadd.f32 0.0, %v6946
      %6948 = vmatmul.f32.gmra.mxu0 %v6546
      %v6949 = vpop.f32.mrf.mxu0
      %v6950 = vadd.f32 0.0, %v6949
      %6951 = vmatmul.f32.gmra.mxu0 %v6549
      %v6952 = vpop.f32.mrf.mxu0
      %v6953 = vadd.f32 0.0, %v6952
      %6954 = vmatmul.f32.gmra.mxu0 %v6552
      %v6955 = vpop.f32.mrf.mxu0
      %v6956 = vadd.f32 0.0, %v6955
      %6957 = vmatmul.f32.gmra.mxu0 %v6555
      %v6958 = vpop.f32.mrf.mxu0
      %v6959 = vadd.f32 0.0, %v6958
      %6960 = vmatmul.f32.gmra.mxu0 %v6558
      %v6961 = vpop.f32.mrf.mxu0
      %v6962 = vadd.f32 0.0, %v6961
      %6963 = vmatmul.f32.gmra.mxu0 %v6561
      %v6964 = vpop.f32.mrf.mxu0
      %v6965 = vadd.f32 0.0, %v6964
      %6966 = vmatmul.f32.gmra.mxu0 %v6564
      %v6967 = vpop.f32.mrf.mxu0
      %v6968 = vadd.f32 0.0, %v6967
      %6969 = vmatmul.f32.gmra.mxu0 %v6567
      %v6970 = vpop.f32.mrf.mxu0
      %v6971 = vadd.f32 0.0, %v6970
      %6972 = vmatmul.f32.gmra.mxu0 %v6570
      %v6973 = vpop.f32.mrf.mxu0
      %v6974 = vadd.f32 0.0, %v6973
      %6975 = vmatmul.f32.gmra.mxu0 %v6573
      %v6976 = vpop.f32.mrf.mxu0
      %v6977 = vadd.f32 0.0, %v6976
      %6978 = vmatmul.f32.gmra.mxu0 %v6576
      %v6979 = vpop.f32.mrf.mxu0
      %v6980 = vadd.f32 0.0, %v6979
      %6981 = vmatmul.f32.gmra.mxu0 %v6579
      %v6982 = vpop.f32.mrf.mxu0
      %v6983 = vadd.f32 0.0, %v6982
      %6984 = vmatmul.f32.gmra.mxu0 %v6582
      %v6985 = vpop.f32.mrf.mxu0
      %v6986 = vadd.f32 0.0, %v6985
      %6987 = vmatmul.f32.gmra.mxu0 %v6585
      %v6988 = vpop.f32.mrf.mxu0
      %v6989 = vadd.f32 0.0, %v6988
      %6990 = vmatmul.f32.gmra.mxu0 %v6588
      %v6991 = vpop.f32.mrf.mxu0
      %v6992 = vadd.f32 0.0, %v6991
      %6993 = vmatmul.f32.gmra.mxu0 %v6591
      %v6994 = vpop.f32.mrf.mxu0
      %v6995 = vadd.f32 0.0, %v6994
      %6996 = vmatmul.f32.gmra.mxu0 %v6594
      %v6997 = vpop.f32.mrf.mxu0
      %v6998 = vadd.f32 0.0, %v6997
      %6999 = vmatmul.f32.gmra.mxu0 %v6597
      %v7000 = vpop.f32.mrf.mxu0
      %v7001 = vadd.f32 0.0, %v7000
      %7002 = vmatmul.f32.gmra.mxu0 %v6600
      %v7003 = vpop.f32.mrf.mxu0
      %v7004 = vadd.f32 0.0, %v7003
      %7005 = vmatmul.f32.gmra.mxu0 %v6603
      %v7006 = vpop.f32.mrf.mxu0
      %v7007 = vadd.f32 0.0, %v7006
      %7008 = vmatmul.f32.gmra.mxu0 %v6606
      %v7009 = vpop.f32.mrf.mxu0
      %v7010 = vadd.f32 0.0, %v7009
      %7011 = vmatmul.f32.gmra.mxu0 %v6609
      %v7012 = vpop.f32.mrf.mxu0
      %v7013 = vadd.f32 0.0, %v7012
      %7014 = vmatmul.f32.gmra.mxu0 %v6612
      %v7015 = vpop.f32.mrf.mxu0
      %v7016 = vadd.f32 0.0, %v7015
      %7017 = vmatmul.f32.gmra.mxu0 %v6615
      %v7018 = vpop.f32.mrf.mxu0
      %v7019 = vadd.f32 0.0, %v7018
      %7020 = vmatmul.f32.gmra.mxu0 %v6618
      %v7021 = vpop.f32.mrf.mxu0
      %v7022 = vadd.f32 0.0, %v7021
      %7023 = vmatmul.f32.gmra.mxu0 %v6621
      %v7024 = vpop.f32.mrf.mxu0
      %v7025 = vadd.f32 0.0, %v7024
      %7026 = vmatmul.f32.gmra.mxu0 %v6624
      %v7027 = vpop.f32.mrf.mxu0
      %v7028 = vadd.f32 0.0, %v7027
      %7029 = vmatmul.f32.gmra.mxu0 %v6627
      %v7030 = vpop.f32.mrf.mxu0
      %v7031 = vadd.f32 0.0, %v7030
      %7032 = vmatmul.f32.gmra.mxu0 %v6630
      %v7033 = vpop.f32.mrf.mxu0
      %v7034 = vadd.f32 0.0, %v7033
      %7035 = vmatmul.f32.gmra.mxu0 %v6633
      %v7036 = vpop.f32.mrf.mxu0
      %v7037 = vadd.f32 0.0, %v7036
      %7038 = vmatmul.f32.gmra.mxu0 %v6636
      %v7039 = vpop.f32.mrf.mxu0
      %v7040 = vadd.f32 0.0, %v7039
      %7041 = vmatmul.f32.gmra.mxu0 %v6639
      %v7042 = vpop.f32.mrf.mxu0
      %v7043 = vadd.f32 0.0, %v7042
      %7044 = vmatmul.f32.gmra.mxu0 %v6642
      %v7045 = vpop.f32.mrf.mxu0
      %v7046 = vadd.f32 0.0, %v7045
      %7047 = vmatmul.f32.gmra.mxu0 %v6645
      %v7048 = vpop.f32.mrf.mxu0
      %v7049 = vadd.f32 0.0, %v7048
      %7050 = vmatmul.f32.gmra.mxu0 %v6648
      %v7051 = vpop.f32.mrf.mxu0
      %v7052 = vadd.f32 0.0, %v7051
      %7053 = vmatmul.f32.gmra.mxu0 %v6651
      %v7054 = vpop.f32.mrf.mxu0
      %v7055 = vadd.f32 0.0, %v7054
      %7056 = vmatmul.f32.gmra.mxu0 %v6654
      %v7057 = vpop.f32.mrf.mxu0
      %v7058 = vadd.f32 0.0, %v7057
      %7059 = vmatmul.f32.gmra.mxu0 %v6657
      %v7060 = vpop.f32.mrf.mxu0
      %v7061 = vadd.f32 0.0, %v7060
      %7062 = vmatmul.f32.gmra.mxu0 %v6660
      %v7063 = vpop.f32.mrf.mxu0
      %v7064 = vadd.f32 0.0, %v7063
      %7065 = vmatmul.f32.gmra.mxu0 %v6663
      %v7066 = vpop.f32.mrf.mxu0
      %v7067 = vadd.f32 0.0, %v7066
      %7068 = vmatmul.f32.gmra.mxu0 %v6666
      %v7069 = vpop.f32.mrf.mxu0
      %v7070 = vadd.f32 0.0, %v7069
      %7071 = vmatmul.f32.gmra.mxu0 %v6669
      %v7072 = vpop.f32.mrf.mxu0
      %v7073 = vadd.f32 0.0, %v7072
      %7074 = vmatmul.f32.gmra.mxu0 %v6672
      %v7075 = vpop.f32.mrf.mxu0
      %v7076 = vadd.f32 0.0, %v7075
      %7077 = vmatmul.f32.gmra.mxu0 %v6675
      %v7078 = vpop.f32.mrf.mxu0
      %v7079 = vadd.f32 0.0, %v7078
      %7080 = vmatmul.f32.gmra.mxu0 %v6678
      %v7081 = vpop.f32.mrf.mxu0
      %v7082 = vadd.f32 0.0, %v7081
      %7083 = vmatmul.f32.gmra.mxu0 %v6681
      %v7084 = vpop.f32.mrf.mxu0
      %v7085 = vadd.f32 0.0, %v7084
      %7086 = vmatmul.f32.gmra.mxu0 %v6684
      %v7087 = vpop.f32.mrf.mxu0
      %v7088 = vadd.f32 0.0, %v7087
      %7089 = vmatmul.f32.gmra.mxu0 %v6687
      %v7090 = vpop.f32.mrf.mxu0
      %v7091 = vadd.f32 0.0, %v7090
      %7092 = vmatmul.f32.gmra.mxu0 %v6690
      %v7093 = vpop.f32.mrf.mxu0
      %v7094 = vadd.f32 0.0, %v7093
      %7095 = vmatmul.f32.gmra.mxu0 %v6693
      %v7096 = vpop.f32.mrf.mxu0
      %v7097 = vadd.f32 0.0, %v7096
      %7098 = vmatmul.f32.gmra.mxu0 %v6696
      %v7099 = vpop.f32.mrf.mxu0
      %v7100 = vadd.f32 0.0, %v7099
      %7101 = vmatmul.f32.gmra.mxu0 %v6699
      %v7102 = vpop.f32.mrf.mxu0
      %v7103 = vadd.f32 0.0, %v7102
      %7104 = vmatmul.f32.gmra.mxu0 %v6702
      %v7105 = vpop.f32.mrf.mxu0
      %v7106 = vadd.f32 0.0, %v7105
      %7107 = vmatmul.f32.gmra.mxu0 %v6705
      %v7108 = vpop.f32.mrf.mxu0
      %v7109 = vadd.f32 0.0, %v7108
      %7110 = vmatmul.f32.gmra.mxu0 %v6708
      %v7111 = vpop.f32.mrf.mxu0
      %v7112 = vadd.f32 0.0, %v7111
      %7113 = vmatmul.f32.gmra.mxu0 %v6711
      %v7114 = vpop.f32.mrf.mxu0
      %v7115 = vadd.f32 0.0, %v7114
      %7116 = vmatmul.f32.gmra.mxu0 %v6714
      %v7117 = vpop.f32.mrf.mxu0
      %v7118 = vadd.f32 0.0, %v7117
      %7119 = vmatmul.f32.gmra.mxu0 %v6717
      %v7120 = vpop.f32.mrf.mxu0
      %v7121 = vadd.f32 0.0, %v7120
      %7122 = vmatmul.f32.gmra.mxu0 %v6720
      %v7123 = vpop.f32.mrf.mxu0
      %v7124 = vadd.f32 0.0, %v7123
      %7125 = vmatmul.f32.gmra.mxu0 %v6723
      %v7126 = vpop.f32.mrf.mxu0
      %v7127 = vadd.f32 0.0, %v7126
      %7128 = vmatmul.f32.gmra.mxu0 %v6726
      %v7129 = vpop.f32.mrf.mxu0
      %v7130 = vadd.f32 0.0, %v7129
      %7131 = vmatmul.f32.gmra.mxu0 %v6729
      %v7132 = vpop.f32.mrf.mxu0
      %v7133 = vadd.f32 0.0, %v7132
      %7134 = vmatmul.f32.gmra.mxu0 %v6732
      %v7135 = vpop.f32.mrf.mxu0
      %v7136 = vadd.f32 0.0, %v7135
      %7137 = vmatmul.f32.gmra.mxu0 %v6735
      %v7138 = vpop.f32.mrf.mxu0
      %v7139 = vadd.f32 0.0, %v7138
      %7140 = vmatmul.f32.gmra.mxu0 %v6738
      %v7141 = vpop.f32.mrf.mxu0
      %v7142 = vadd.f32 0.0, %v7141
      %7143 = vmatmul.f32.gmra.mxu0 %v6741
      %v7144 = vpop.f32.mrf.mxu0
      %v7145 = vadd.f32 0.0, %v7144
      %7146 = vmatmul.f32.gmra.mxu0 %v6744
      %v7147 = vpop.f32.mrf.mxu0
      %v7148 = vadd.f32 0.0, %v7147
      %7149 = vmatmul.f32.gmra.mxu0 %v6747
      %v7150 = vpop.f32.mrf.mxu0
      %v7151 = vadd.f32 0.0, %v7150
      %7152 = vmatmul.f32.gmra.mxu0 %v6750
      %v7153 = vpop.f32.mrf.mxu0
      %v7154 = vadd.f32 0.0, %v7153
      %7155 = vdwg.mxu0
      %v7156 = vadd.f32 %v6109, %v6773
      %v7157 = vadd.f32 %v6110, %v6776
      %v7158 = vadd.f32 %v6111, %v6779
      %v7159 = vadd.f32 %v6112, %v6782
      %v7160 = vadd.f32 %v6113, %v6785
      %v7161 = vadd.f32 %v6114, %v6788
      %v7162 = vadd.f32 %v6115, %v6791
      %v7163 = vadd.f32 %v6116, %v6794
      %v7164 = vadd.f32 %v6117, %v6797
      %v7165 = vadd.f32 %v6118, %v6800
      %v7166 = vadd.f32 %v6119, %v6803
      %v7167 = vadd.f32 %v6120, %v6806
      %v7168 = vadd.f32 %v6121, %v6809
      %v7169 = vadd.f32 %v6122, %v6812
      %v7170 = vadd.f32 %v6123, %v6815
      %v7171 = vadd.f32 %v6124, %v6818
      %v7172 = vadd.f32 %v6125, %v6821
      %v7173 = vadd.f32 %v6126, %v6824
      %v7174 = vadd.f32 %v6127, %v6827
      %v7175 = vadd.f32 %v6128, %v6830
      %v7176 = vadd.f32 %v6129, %v6833
      %v7177 = vadd.f32 %v6130, %v6836
      %v7178 = vadd.f32 %v6131, %v6839
      %v7179 = vadd.f32 %v6132, %v6842
      %v7180 = vadd.f32 %v6133, %v6845
      %v7181 = vadd.f32 %v6134, %v6848
      %v7182 = vadd.f32 %v6135, %v6851
      %v7183 = vadd.f32 %v6136, %v6854
      %v7184 = vadd.f32 %v6137, %v6857
      %v7185 = vadd.f32 %v6138, %v6860
      %v7186 = vadd.f32 %v6139, %v6863
      %v7187 = vadd.f32 %v6140, %v6866
      %v7188 = vadd.f32 %v6141, %v6869
      %v7189 = vadd.f32 %v6142, %v6872
      %v7190 = vadd.f32 %v6143, %v6875
      %v7191 = vadd.f32 %v6144, %v6878
      %v7192 = vadd.f32 %v6145, %v6881
      %v7193 = vadd.f32 %v6146, %v6884
      %v7194 = vadd.f32 %v6147, %v6887
      %v7195 = vadd.f32 %v6148, %v6890
      %v7196 = vadd.f32 %v6149, %v6893
      %v7197 = vadd.f32 %v6150, %v6896
      %v7198 = vadd.f32 %v6151, %v6899
      %v7199 = vadd.f32 %v6152, %v6902
      %v7200 = vadd.f32 %v6153, %v6905
      %v7201 = vadd.f32 %v6154, %v6908
      %v7202 = vadd.f32 %v6155, %v6911
      %v7203 = vadd.f32 %v6156, %v6914
      %v7204 = vadd.f32 %v6157, %v6917
      %v7205 = vadd.f32 %v6158, %v6920
      %v7206 = vadd.f32 %v6159, %v6923
      %v7207 = vadd.f32 %v6160, %v6926
      %v7208 = vadd.f32 %v6161, %v6929
      %v7209 = vadd.f32 %v6162, %v6932
      %v7210 = vadd.f32 %v6163, %v6935
      %v7211 = vadd.f32 %v6164, %v6938
      %v7212 = vadd.f32 %v6165, %v6941
      %v7213 = vadd.f32 %v6166, %v6944
      %v7214 = vadd.f32 %v6167, %v6947
      %v7215 = vadd.f32 %v6168, %v6950
      %v7216 = vadd.f32 %v6169, %v6953
      %v7217 = vadd.f32 %v6170, %v6956
      %v7218 = vadd.f32 %v6171, %v6959
      %v7219 = vadd.f32 %v6172, %v6962
      %v7220 = vadd.f32 %v6173, %v6965
      %v7221 = vadd.f32 %v6174, %v6968
      %v7222 = vadd.f32 %v6175, %v6971
      %v7223 = vadd.f32 %v6176, %v6974
      %v7224 = vadd.f32 %v6177, %v6977
      %v7225 = vadd.f32 %v6178, %v6980
      %v7226 = vadd.f32 %v6179, %v6983
      %v7227 = vadd.f32 %v6180, %v6986
      %v7228 = vadd.f32 %v6181, %v6989
      %v7229 = vadd.f32 %v6182, %v6992
      %v7230 = vadd.f32 %v6183, %v6995
      %v7231 = vadd.f32 %v6184, %v6998
      %v7232 = vadd.f32 %v6185, %v7001
      %v7233 = vadd.f32 %v6186, %v7004
      %v7234 = vadd.f32 %v6187, %v7007
      %v7235 = vadd.f32 %v6188, %v7010
      %v7236 = vadd.f32 %v6189, %v7013
      %v7237 = vadd.f32 %v6190, %v7016
      %v7238 = vadd.f32 %v6191, %v7019
      %v7239 = vadd.f32 %v6192, %v7022
      %v7240 = vadd.f32 %v6193, %v7025
      %v7241 = vadd.f32 %v6194, %v7028
      %v7242 = vadd.f32 %v6195, %v7031
      %v7243 = vadd.f32 %v6196, %v7034
      %v7244 = vadd.f32 %v6197, %v7037
      %v7245 = vadd.f32 %v6198, %v7040
      %v7246 = vadd.f32 %v6199, %v7043
      %v7247 = vadd.f32 %v6200, %v7046
      %v7248 = vadd.f32 %v6201, %v7049
      %v7249 = vadd.f32 %v6202, %v7052
      %v7250 = vadd.f32 %v6203, %v7055
      %v7251 = vadd.f32 %v6204, %v7058
      %v7252 = vadd.f32 %v6205, %v7061
      %v7253 = vadd.f32 %v6206, %v7064
      %v7254 = vadd.f32 %v6207, %v7067
      %v7255 = vadd.f32 %v6208, %v7070
      %v7256 = vadd.f32 %v6209, %v7073
      %v7257 = vadd.f32 %v6210, %v7076
      %v7258 = vadd.f32 %v6211, %v7079
      %v7259 = vadd.f32 %v6212, %v7082
      %v7260 = vadd.f32 %v6213, %v7085
      %v7261 = vadd.f32 %v6214, %v7088
      %v7262 = vadd.f32 %v6215, %v7091
      %v7263 = vadd.f32 %v6216, %v7094
      %v7264 = vadd.f32 %v6217, %v7097
      %v7265 = vadd.f32 %v6218, %v7100
      %v7266 = vadd.f32 %v6219, %v7103
      %v7267 = vadd.f32 %v6220, %v7106
      %v7268 = vadd.f32 %v6221, %v7109
      %v7269 = vadd.f32 %v6222, %v7112
      %v7270 = vadd.f32 %v6223, %v7115
      %v7271 = vadd.f32 %v6224, %v7118
      %v7272 = vadd.f32 %v6225, %v7121
      %v7273 = vadd.f32 %v6226, %v7124
      %v7274 = vadd.f32 %v6227, %v7127
      %v7275 = vadd.f32 %v6228, %v7130
      %v7276 = vadd.f32 %v6229, %v7133
      %v7277 = vadd.f32 %v6230, %v7136
      %v7278 = vadd.f32 %v6231, %v7139
      %v7279 = vadd.f32 %v6232, %v7142
      %v7280 = vadd.f32 %v6233, %v7145
      %v7281 = vadd.f32 %v6234, %v7148
      %v7282 = vadd.f32 %v6235, %v7151
      %v7283 = vadd.f32 %v6236, %v7154
      %v7284 = vld [vmem:[%s6237 + $0x1] sm:$0xff]
      %v7285 = vld [vmem:[%s6237 + $0x9] sm:$0xff]
      %v7286 = vld [vmem:[%s6237 + $0x11] sm:$0xff]
      %v7287 = vld [vmem:[%s6237 + $0x19] sm:$0xff]
      %v7288 = vld [vmem:[%s6237 + $0x29] sm:$0xff]
      %v7289 = vld [vmem:[%s6237 + $0x31] sm:$0xff]
      %v7290 = vld [vmem:[%s6237 + $0x39] sm:$0xff]
      %v7291 = vld [vmem:[%s6237 + $0x41] sm:$0xff]
      %v7292 = vld [vmem:[%s6237 + $0x51] sm:$0xff]
      %v7293 = vld [vmem:[%s6237 + $0x59] sm:$0xff]
      %v7294 = vld [vmem:[%s6237 + $0x61] sm:$0xff]
      %v7295 = vld [vmem:[%s6237 + $0x69] sm:$0xff]
      %v7296 = vld [vmem:[%s6237 + $0x79] sm:$0xff]
      %v7297 = vld [vmem:[%s6237 + $0x81] sm:$0xff]
      %v7298 = vld [vmem:[%s6237 + $0x89] sm:$0xff]
      %v7299 = vld [vmem:[%s6237 + $0x91] sm:$0xff]
      %v7300 = vld [vmem:[%s6237 + $0xa1] sm:$0xff]
      %v7301 = vld [vmem:[%s6237 + $0xa9] sm:$0xff]
      %v7302 = vld [vmem:[%s6237 + $0xb1] sm:$0xff]
      %v7303 = vld [vmem:[%s6237 + $0xb9] sm:$0xff]
      %v7304 = vld [vmem:[%s6237 + $0xc9] sm:$0xff]
      %v7305 = vld [vmem:[%s6237 + $0xd1] sm:$0xff]
      %v7306 = vld [vmem:[%s6237 + $0xd9] sm:$0xff]
      %v7307 = vld [vmem:[%s6237 + $0xe1] sm:$0xff]
      %v7308 = vld [vmem:[%s6237 + $0xf1] sm:$0xff]
      %v7309 = vld [vmem:[%s6237 + $0xf9] sm:$0xff]
      %v7310 = vld [vmem:[%s6237 + $0x101] sm:$0xff]
      %v7311 = vld [vmem:[%s6237 + $0x109] sm:$0xff]
      %v7312 = vld [vmem:[%s6237 + $0x119] sm:$0xff]
      %v7313 = vld [vmem:[%s6237 + $0x121] sm:$0xff]
      %v7314 = vld [vmem:[%s6237 + $0x129] sm:$0xff]
      %v7315 = vld [vmem:[%s6237 + $0x131] sm:$0xff]
      %v7316 = vld [vmem:[%s6237 + $0x141] sm:$0xff]
      %v7317 = vld [vmem:[%s6237 + $0x149] sm:$0xff]
      %v7318 = vld [vmem:[%s6237 + $0x151] sm:$0xff]
      %v7319 = vld [vmem:[%s6237 + $0x159] sm:$0xff]
      %v7320 = vld [vmem:[%s6237 + $0x169] sm:$0xff]
      %v7321 = vld [vmem:[%s6237 + $0x171] sm:$0xff]
      %v7322 = vld [vmem:[%s6237 + $0x179] sm:$0xff]
      %v7323 = vld [vmem:[%s6237 + $0x181] sm:$0xff]
      %v7324 = vld [vmem:[%s6237 + $0x191] sm:$0xff]
      %v7325 = vld [vmem:[%s6237 + $0x199] sm:$0xff]
      %v7326 = vld [vmem:[%s6237 + $0x1a1] sm:$0xff]
      %v7327 = vld [vmem:[%s6237 + $0x1a9] sm:$0xff]
      %v7328 = vld [vmem:[%s6237 + $0x1b9] sm:$0xff]
      %v7329 = vld [vmem:[%s6237 + $0x1c1] sm:$0xff]
      %v7330 = vld [vmem:[%s6237 + $0x1c9] sm:$0xff]
      %v7331 = vld [vmem:[%s6237 + $0x1d1] sm:$0xff]
      %v7332 = vld [vmem:[%s6237 + $0x1e1] sm:$0xff]
      %v7333 = vld [vmem:[%s6237 + $0x1e9] sm:$0xff]
      %v7334 = vld [vmem:[%s6237 + $0x1f1] sm:$0xff]
      %v7335 = vld [vmem:[%s6237 + $0x1f9] sm:$0xff]
      %v7336 = vld [vmem:[%s6237 + $0x209] sm:$0xff]
      %v7337 = vld [vmem:[%s6237 + $0x211] sm:$0xff]
      %v7338 = vld [vmem:[%s6237 + $0x219] sm:$0xff]
      %v7339 = vld [vmem:[%s6237 + $0x221] sm:$0xff]
      %v7340 = vld [vmem:[%s6237 + $0x231] sm:$0xff]
      %v7341 = vld [vmem:[%s6237 + $0x239] sm:$0xff]
      %v7342 = vld [vmem:[%s6237 + $0x241] sm:$0xff]
      %v7343 = vld [vmem:[%s6237 + $0x249] sm:$0xff]
      %v7344 = vld [vmem:[%s6237 + $0x259] sm:$0xff]
      %v7345 = vld [vmem:[%s6237 + $0x261] sm:$0xff]
      %v7346 = vld [vmem:[%s6237 + $0x269] sm:$0xff]
      %v7347 = vld [vmem:[%s6237 + $0x271] sm:$0xff]
      %v7348 = vld [vmem:[%s6237 + $0x281] sm:$0xff]
      %v7349 = vld [vmem:[%s6237 + $0x289] sm:$0xff]
      %v7350 = vld [vmem:[%s6237 + $0x291] sm:$0xff]
      %v7351 = vld [vmem:[%s6237 + $0x299] sm:$0xff]
      %v7352 = vld [vmem:[%s6237 + $0x2a9] sm:$0xff]
      %v7353 = vld [vmem:[%s6237 + $0x2b1] sm:$0xff]
      %v7354 = vld [vmem:[%s6237 + $0x2b9] sm:$0xff]
      %v7355 = vld [vmem:[%s6237 + $0x2c1] sm:$0xff]
      %v7356 = vld [vmem:[%s6237 + $0x2d1] sm:$0xff]
      %v7357 = vld [vmem:[%s6237 + $0x2d9] sm:$0xff]
      %v7358 = vld [vmem:[%s6237 + $0x2e1] sm:$0xff]
      %v7359 = vld [vmem:[%s6237 + $0x2e9] sm:$0xff]
      %v7360 = vld [vmem:[%s6237 + $0x2f9] sm:$0xff]
      %v7361 = vld [vmem:[%s6237 + $0x301] sm:$0xff]
      %v7362 = vld [vmem:[%s6237 + $0x309] sm:$0xff]
      %v7363 = vld [vmem:[%s6237 + $0x311] sm:$0xff]
      %v7364 = vld [vmem:[%s6237 + $0x321] sm:$0xff]
      %v7365 = vld [vmem:[%s6237 + $0x329] sm:$0xff]
      %v7366 = vld [vmem:[%s6237 + $0x331] sm:$0xff]
      %v7367 = vld [vmem:[%s6237 + $0x339] sm:$0xff]
      %v7368 = vld [vmem:[%s6237 + $0x349] sm:$0xff]
      %v7369 = vld [vmem:[%s6237 + $0x351] sm:$0xff]
      %v7370 = vld [vmem:[%s6237 + $0x359] sm:$0xff]
      %v7371 = vld [vmem:[%s6237 + $0x361] sm:$0xff]
      %v7372 = vld [vmem:[%s6237 + $0x371] sm:$0xff]
      %v7373 = vld [vmem:[%s6237 + $0x379] sm:$0xff]
      %v7374 = vld [vmem:[%s6237 + $0x381] sm:$0xff]
      %v7375 = vld [vmem:[%s6237 + $0x389] sm:$0xff]
      %v7376 = vld [vmem:[%s6237 + $0x399] sm:$0xff]
      %v7377 = vld [vmem:[%s6237 + $0x3a1] sm:$0xff]
      %v7378 = vld [vmem:[%s6237 + $0x3a9] sm:$0xff]
      %v7379 = vld [vmem:[%s6237 + $0x3b1] sm:$0xff]
      %v7380 = vld [vmem:[%s6237 + $0x3c1] sm:$0xff]
      %v7381 = vld [vmem:[%s6237 + $0x3c9] sm:$0xff]
      %v7382 = vld [vmem:[%s6237 + $0x3d1] sm:$0xff]
      %v7383 = vld [vmem:[%s6237 + $0x3d9] sm:$0xff]
      %v7384 = vld [vmem:[%s6237 + $0x3e9] sm:$0xff]
      %v7385 = vld [vmem:[%s6237 + $0x3f1] sm:$0xff]
      %v7386 = vld [vmem:[%s6237 + $0x3f9] sm:$0xff]
      %v7387 = vld [vmem:[%s6237 + $0x401] sm:$0xff]
      %v7388 = vld [vmem:[%s6237 + $0x411] sm:$0xff]
      %v7389 = vld [vmem:[%s6237 + $0x419] sm:$0xff]
      %v7390 = vld [vmem:[%s6237 + $0x421] sm:$0xff]
      %v7391 = vld [vmem:[%s6237 + $0x429] sm:$0xff]
      %v7392 = vld [vmem:[%s6237 + $0x439] sm:$0xff]
      %v7393 = vld [vmem:[%s6237 + $0x441] sm:$0xff]
      %v7394 = vld [vmem:[%s6237 + $0x449] sm:$0xff]
      %v7395 = vld [vmem:[%s6237 + $0x451] sm:$0xff]
      %v7396 = vld [vmem:[%s6237 + $0x461] sm:$0xff]
      %v7397 = vld [vmem:[%s6237 + $0x469] sm:$0xff]
      %v7398 = vld [vmem:[%s6237 + $0x471] sm:$0xff]
      %v7399 = vld [vmem:[%s6237 + $0x479] sm:$0xff]
      %v7400 = vld [vmem:[%s6237 + $0x489] sm:$0xff]
      %v7401 = vld [vmem:[%s6237 + $0x491] sm:$0xff]
      %v7402 = vld [vmem:[%s6237 + $0x499] sm:$0xff]
      %v7403 = vld [vmem:[%s6237 + $0x4a1] sm:$0xff]
      %v7404 = vld [vmem:[%s6237 + $0x4b1] sm:$0xff]
      %v7405 = vld [vmem:[%s6237 + $0x4b9] sm:$0xff]
      %v7406 = vld [vmem:[%s6237 + $0x4c1] sm:$0xff]
      %v7407 = vld [vmem:[%s6237 + $0x4c9] sm:$0xff]
      %v7408 = vld [vmem:[%s6237 + $0x4d9] sm:$0xff]
      %v7409 = vld [vmem:[%s6237 + $0x4e1] sm:$0xff]
      %v7410 = vld [vmem:[%s6237 + $0x4e9] sm:$0xff]
      %v7411 = vld [vmem:[%s6237 + $0x4f1] sm:$0xff]
      %s7412 = scalar_lea.vmem %s1, 28
      %v7413 = vld [vmem:[%s7412] sm:$0xf]
      %v7415 = vsel %vm474, %v7284, 0
      %v7418 = vsel %vm474, %v7285, 0
      %v7421 = vsel %vm474, %v7286, 0
      %v7424 = vsel %vm474, %v7287, 0
      %v7427 = vsel %vm474, %v7288, 0
      %v7430 = vsel %vm474, %v7289, 0
      %v7433 = vsel %vm474, %v7290, 0
      %v7436 = vsel %vm474, %v7291, 0
      %v7439 = vsel %vm474, %v7292, 0
      %v7442 = vsel %vm474, %v7293, 0
      %v7445 = vsel %vm474, %v7294, 0
      %v7448 = vsel %vm474, %v7295, 0
      %v7451 = vsel %vm474, %v7296, 0
      %v7454 = vsel %vm474, %v7297, 0
      %v7457 = vsel %vm474, %v7298, 0
      %v7460 = vsel %vm474, %v7299, 0
      %v7463 = vsel %vm474, %v7300, 0
      %v7466 = vsel %vm474, %v7301, 0
      %v7469 = vsel %vm474, %v7302, 0
      %v7472 = vsel %vm474, %v7303, 0
      %v7475 = vsel %vm474, %v7304, 0
      %v7478 = vsel %vm474, %v7305, 0
      %v7481 = vsel %vm474, %v7306, 0
      %v7484 = vsel %vm474, %v7307, 0
      %v7487 = vsel %vm474, %v7308, 0
      %v7490 = vsel %vm474, %v7309, 0
      %v7493 = vsel %vm474, %v7310, 0
      %v7496 = vsel %vm474, %v7311, 0
      %v7499 = vsel %vm474, %v7312, 0
      %v7502 = vsel %vm474, %v7313, 0
      %v7505 = vsel %vm474, %v7314, 0
      %v7508 = vsel %vm474, %v7315, 0
      %v7511 = vsel %vm474, %v7316, 0
      %v7514 = vsel %vm474, %v7317, 0
      %v7517 = vsel %vm474, %v7318, 0
      %v7520 = vsel %vm474, %v7319, 0
      %v7523 = vsel %vm474, %v7320, 0
      %v7526 = vsel %vm474, %v7321, 0
      %v7529 = vsel %vm474, %v7322, 0
      %v7532 = vsel %vm474, %v7323, 0
      %v7535 = vsel %vm474, %v7324, 0
      %v7538 = vsel %vm474, %v7325, 0
      %v7541 = vsel %vm474, %v7326, 0
      %v7544 = vsel %vm474, %v7327, 0
      %v7547 = vsel %vm474, %v7328, 0
      %v7550 = vsel %vm474, %v7329, 0
      %v7553 = vsel %vm474, %v7330, 0
      %v7556 = vsel %vm474, %v7331, 0
      %v7559 = vsel %vm474, %v7332, 0
      %v7562 = vsel %vm474, %v7333, 0
      %v7565 = vsel %vm474, %v7334, 0
      %v7568 = vsel %vm474, %v7335, 0
      %v7571 = vsel %vm474, %v7336, 0
      %v7574 = vsel %vm474, %v7337, 0
      %v7577 = vsel %vm474, %v7338, 0
      %v7580 = vsel %vm474, %v7339, 0
      %v7583 = vsel %vm474, %v7340, 0
      %v7586 = vsel %vm474, %v7341, 0
      %v7589 = vsel %vm474, %v7342, 0
      %v7592 = vsel %vm474, %v7343, 0
      %v7595 = vsel %vm474, %v7344, 0
      %v7598 = vsel %vm474, %v7345, 0
      %v7601 = vsel %vm474, %v7346, 0
      %v7604 = vsel %vm474, %v7347, 0
      %v7607 = vsel %vm474, %v7348, 0
      %v7610 = vsel %vm474, %v7349, 0
      %v7613 = vsel %vm474, %v7350, 0
      %v7616 = vsel %vm474, %v7351, 0
      %v7619 = vsel %vm474, %v7352, 0
      %v7622 = vsel %vm474, %v7353, 0
      %v7625 = vsel %vm474, %v7354, 0
      %v7628 = vsel %vm474, %v7355, 0
      %v7631 = vsel %vm474, %v7356, 0
      %v7634 = vsel %vm474, %v7357, 0
      %v7637 = vsel %vm474, %v7358, 0
      %v7640 = vsel %vm474, %v7359, 0
      %v7643 = vsel %vm474, %v7360, 0
      %v7646 = vsel %vm474, %v7361, 0
      %v7649 = vsel %vm474, %v7362, 0
      %v7652 = vsel %vm474, %v7363, 0
      %v7655 = vsel %vm474, %v7364, 0
      %v7658 = vsel %vm474, %v7365, 0
      %v7661 = vsel %vm474, %v7366, 0
      %v7664 = vsel %vm474, %v7367, 0
      %v7667 = vsel %vm474, %v7368, 0
      %v7670 = vsel %vm474, %v7369, 0
      %v7673 = vsel %vm474, %v7370, 0
      %v7676 = vsel %vm474, %v7371, 0
      %v7679 = vsel %vm474, %v7372, 0
      %v7682 = vsel %vm474, %v7373, 0
      %v7685 = vsel %vm474, %v7374, 0
      %v7688 = vsel %vm474, %v7375, 0
      %v7691 = vsel %vm474, %v7376, 0
      %v7694 = vsel %vm474, %v7377, 0
      %v7697 = vsel %vm474, %v7378, 0
      %v7700 = vsel %vm474, %v7379, 0
      %v7703 = vsel %vm474, %v7380, 0
      %v7706 = vsel %vm474, %v7381, 0
      %v7709 = vsel %vm474, %v7382, 0
      %v7712 = vsel %vm474, %v7383, 0
      %v7715 = vsel %vm474, %v7384, 0
      %v7718 = vsel %vm474, %v7385, 0
      %v7721 = vsel %vm474, %v7386, 0
      %v7724 = vsel %vm474, %v7387, 0
      %v7727 = vsel %vm474, %v7388, 0
      %v7730 = vsel %vm474, %v7389, 0
      %v7733 = vsel %vm474, %v7390, 0
      %v7736 = vsel %vm474, %v7391, 0
      %v7739 = vsel %vm474, %v7392, 0
      %v7742 = vsel %vm474, %v7393, 0
      %v7745 = vsel %vm474, %v7394, 0
      %v7748 = vsel %vm474, %v7395, 0
      %v7751 = vsel %vm474, %v7396, 0
      %v7754 = vsel %vm474, %v7397, 0
      %v7757 = vsel %vm474, %v7398, 0
      %v7760 = vsel %vm474, %v7399, 0
      %v7763 = vsel %vm474, %v7400, 0
      %v7766 = vsel %vm474, %v7401, 0
      %v7769 = vsel %vm474, %v7402, 0
      %v7772 = vsel %vm474, %v7403, 0
      %v7775 = vsel %vm474, %v7404, 0
      %v7778 = vsel %vm474, %v7405, 0
      %v7781 = vsel %vm474, %v7406, 0
      %v7784 = vsel %vm474, %v7407, 0
      %v7787 = vsel %vm474, %v7408, 0
      %v7790 = vsel %vm474, %v7409, 0
      %v7793 = vsel %vm474, %v7410, 0
      %v7796 = vsel %vm474, %v7411, 0
      %v7799 = vsel %vm859, %v7413, 0
      %7801 = vmatpush.msra.mxu0 0.0
      %7802 = vmatpush.msra.mxu0 0.0
      %7803 = vmatpush.msra.mxu0 0.0
      %7804 = vmatpush.msra.mxu0 0.0
      %7805 = vmatpush.msra.mxu0 0.0
      %7806 = vmatpush.msra.mxu0 0.0
      %7807 = vmatpush.msra.mxu0 0.0
      %7808 = vmatpush.msra.mxu0 0.0
      %7809 = vmatpush.msra.mxu0 0.0
      %7810 = vmatpush.msra.mxu0 0.0
      %7811 = vmatpush.msra.mxu0 0.0
      %7812 = vmatpush.msra.mxu0 0.0
      %7813 = vmatpush.msra.mxu0 0.0
      %7814 = vmatpush.msra.mxu0 0.0
      %7815 = vmatpush.msra.mxu0 0.0
      %7816 = vmatpush.msra.mxu0 %v7799
      %7817 = vmatmul.f32.gmra.mxu0 %v7415
      %v7818 = vpop.f32.mrf.mxu0
      %v7819 = vadd.f32 0.0, %v7818
      %7820 = vmatmul.f32.gmra.mxu0 %v7418
      %v7821 = vpop.f32.mrf.mxu0
      %v7822 = vadd.f32 0.0, %v7821
      %7823 = vmatmul.f32.gmra.mxu0 %v7421
      %v7824 = vpop.f32.mrf.mxu0
      %v7825 = vadd.f32 0.0, %v7824
      %7826 = vmatmul.f32.gmra.mxu0 %v7424
      %v7827 = vpop.f32.mrf.mxu0
      %v7828 = vadd.f32 0.0, %v7827
      %7829 = vmatmul.f32.gmra.mxu0 %v7427
      %v7830 = vpop.f32.mrf.mxu0
      %v7831 = vadd.f32 0.0, %v7830
      %7832 = vmatmul.f32.gmra.mxu0 %v7430
      %v7833 = vpop.f32.mrf.mxu0
      %v7834 = vadd.f32 0.0, %v7833
      %7835 = vmatmul.f32.gmra.mxu0 %v7433
      %v7836 = vpop.f32.mrf.mxu0
      %v7837 = vadd.f32 0.0, %v7836
      %7838 = vmatmul.f32.gmra.mxu0 %v7436
      %v7839 = vpop.f32.mrf.mxu0
      %v7840 = vadd.f32 0.0, %v7839
      %7841 = vmatmul.f32.gmra.mxu0 %v7439
      %v7842 = vpop.f32.mrf.mxu0
      %v7843 = vadd.f32 0.0, %v7842
      %7844 = vmatmul.f32.gmra.mxu0 %v7442
      %v7845 = vpop.f32.mrf.mxu0
      %v7846 = vadd.f32 0.0, %v7845
      %7847 = vmatmul.f32.gmra.mxu0 %v7445
      %v7848 = vpop.f32.mrf.mxu0
      %v7849 = vadd.f32 0.0, %v7848
      %7850 = vmatmul.f32.gmra.mxu0 %v7448
      %v7851 = vpop.f32.mrf.mxu0
      %v7852 = vadd.f32 0.0, %v7851
      %7853 = vmatmul.f32.gmra.mxu0 %v7451
      %v7854 = vpop.f32.mrf.mxu0
      %v7855 = vadd.f32 0.0, %v7854
      %7856 = vmatmul.f32.gmra.mxu0 %v7454
      %v7857 = vpop.f32.mrf.mxu0
      %v7858 = vadd.f32 0.0, %v7857
      %7859 = vmatmul.f32.gmra.mxu0 %v7457
      %v7860 = vpop.f32.mrf.mxu0
      %v7861 = vadd.f32 0.0, %v7860
      %7862 = vmatmul.f32.gmra.mxu0 %v7460
      %v7863 = vpop.f32.mrf.mxu0
      %v7864 = vadd.f32 0.0, %v7863
      %7865 = vmatmul.f32.gmra.mxu0 %v7463
      %v7866 = vpop.f32.mrf.mxu0
      %v7867 = vadd.f32 0.0, %v7866
      %7868 = vmatmul.f32.gmra.mxu0 %v7466
      %v7869 = vpop.f32.mrf.mxu0
      %v7870 = vadd.f32 0.0, %v7869
      %7871 = vmatmul.f32.gmra.mxu0 %v7469
      %v7872 = vpop.f32.mrf.mxu0
      %v7873 = vadd.f32 0.0, %v7872
      %7874 = vmatmul.f32.gmra.mxu0 %v7472
      %v7875 = vpop.f32.mrf.mxu0
      %v7876 = vadd.f32 0.0, %v7875
      %7877 = vmatmul.f32.gmra.mxu0 %v7475
      %v7878 = vpop.f32.mrf.mxu0
      %v7879 = vadd.f32 0.0, %v7878
      %7880 = vmatmul.f32.gmra.mxu0 %v7478
      %v7881 = vpop.f32.mrf.mxu0
      %v7882 = vadd.f32 0.0, %v7881
      %7883 = vmatmul.f32.gmra.mxu0 %v7481
      %v7884 = vpop.f32.mrf.mxu0
      %v7885 = vadd.f32 0.0, %v7884
      %7886 = vmatmul.f32.gmra.mxu0 %v7484
      %v7887 = vpop.f32.mrf.mxu0
      %v7888 = vadd.f32 0.0, %v7887
      %7889 = vmatmul.f32.gmra.mxu0 %v7487
      %v7890 = vpop.f32.mrf.mxu0
      %v7891 = vadd.f32 0.0, %v7890
      %7892 = vmatmul.f32.gmra.mxu0 %v7490
      %v7893 = vpop.f32.mrf.mxu0
      %v7894 = vadd.f32 0.0, %v7893
      %7895 = vmatmul.f32.gmra.mxu0 %v7493
      %v7896 = vpop.f32.mrf.mxu0
      %v7897 = vadd.f32 0.0, %v7896
      %7898 = vmatmul.f32.gmra.mxu0 %v7496
      %v7899 = vpop.f32.mrf.mxu0
      %v7900 = vadd.f32 0.0, %v7899
      %7901 = vmatmul.f32.gmra.mxu0 %v7499
      %v7902 = vpop.f32.mrf.mxu0
      %v7903 = vadd.f32 0.0, %v7902
      %7904 = vmatmul.f32.gmra.mxu0 %v7502
      %v7905 = vpop.f32.mrf.mxu0
      %v7906 = vadd.f32 0.0, %v7905
      %7907 = vmatmul.f32.gmra.mxu0 %v7505
      %v7908 = vpop.f32.mrf.mxu0
      %v7909 = vadd.f32 0.0, %v7908
      %7910 = vmatmul.f32.gmra.mxu0 %v7508
      %v7911 = vpop.f32.mrf.mxu0
      %v7912 = vadd.f32 0.0, %v7911
      %7913 = vmatmul.f32.gmra.mxu0 %v7511
      %v7914 = vpop.f32.mrf.mxu0
      %v7915 = vadd.f32 0.0, %v7914
      %7916 = vmatmul.f32.gmra.mxu0 %v7514
      %v7917 = vpop.f32.mrf.mxu0
      %v7918 = vadd.f32 0.0, %v7917
      %7919 = vmatmul.f32.gmra.mxu0 %v7517
      %v7920 = vpop.f32.mrf.mxu0
      %v7921 = vadd.f32 0.0, %v7920
      %7922 = vmatmul.f32.gmra.mxu0 %v7520
      %v7923 = vpop.f32.mrf.mxu0
      %v7924 = vadd.f32 0.0, %v7923
      %7925 = vmatmul.f32.gmra.mxu0 %v7523
      %v7926 = vpop.f32.mrf.mxu0
      %v7927 = vadd.f32 0.0, %v7926
      %7928 = vmatmul.f32.gmra.mxu0 %v7526
      %v7929 = vpop.f32.mrf.mxu0
      %v7930 = vadd.f32 0.0, %v7929
      %7931 = vmatmul.f32.gmra.mxu0 %v7529
      %v7932 = vpop.f32.mrf.mxu0
      %v7933 = vadd.f32 0.0, %v7932
      %7934 = vmatmul.f32.gmra.mxu0 %v7532
      %v7935 = vpop.f32.mrf.mxu0
      %v7936 = vadd.f32 0.0, %v7935
      %7937 = vmatmul.f32.gmra.mxu0 %v7535
      %v7938 = vpop.f32.mrf.mxu0
      %v7939 = vadd.f32 0.0, %v7938
      %7940 = vmatmul.f32.gmra.mxu0 %v7538
      %v7941 = vpop.f32.mrf.mxu0
      %v7942 = vadd.f32 0.0, %v7941
      %7943 = vmatmul.f32.gmra.mxu0 %v7541
      %v7944 = vpop.f32.mrf.mxu0
      %v7945 = vadd.f32 0.0, %v7944
      %7946 = vmatmul.f32.gmra.mxu0 %v7544
      %v7947 = vpop.f32.mrf.mxu0
      %v7948 = vadd.f32 0.0, %v7947
      %7949 = vmatmul.f32.gmra.mxu0 %v7547
      %v7950 = vpop.f32.mrf.mxu0
      %v7951 = vadd.f32 0.0, %v7950
      %7952 = vmatmul.f32.gmra.mxu0 %v7550
      %v7953 = vpop.f32.mrf.mxu0
      %v7954 = vadd.f32 0.0, %v7953
      %7955 = vmatmul.f32.gmra.mxu0 %v7553
      %v7956 = vpop.f32.mrf.mxu0
      %v7957 = vadd.f32 0.0, %v7956
      %7958 = vmatmul.f32.gmra.mxu0 %v7556
      %v7959 = vpop.f32.mrf.mxu0
      %v7960 = vadd.f32 0.0, %v7959
      %7961 = vmatmul.f32.gmra.mxu0 %v7559
      %v7962 = vpop.f32.mrf.mxu0
      %v7963 = vadd.f32 0.0, %v7962
      %7964 = vmatmul.f32.gmra.mxu0 %v7562
      %v7965 = vpop.f32.mrf.mxu0
      %v7966 = vadd.f32 0.0, %v7965
      %7967 = vmatmul.f32.gmra.mxu0 %v7565
      %v7968 = vpop.f32.mrf.mxu0
      %v7969 = vadd.f32 0.0, %v7968
      %7970 = vmatmul.f32.gmra.mxu0 %v7568
      %v7971 = vpop.f32.mrf.mxu0
      %v7972 = vadd.f32 0.0, %v7971
      %7973 = vmatmul.f32.gmra.mxu0 %v7571
      %v7974 = vpop.f32.mrf.mxu0
      %v7975 = vadd.f32 0.0, %v7974
      %7976 = vmatmul.f32.gmra.mxu0 %v7574
      %v7977 = vpop.f32.mrf.mxu0
      %v7978 = vadd.f32 0.0, %v7977
      %7979 = vmatmul.f32.gmra.mxu0 %v7577
      %v7980 = vpop.f32.mrf.mxu0
      %v7981 = vadd.f32 0.0, %v7980
      %7982 = vmatmul.f32.gmra.mxu0 %v7580
      %v7983 = vpop.f32.mrf.mxu0
      %v7984 = vadd.f32 0.0, %v7983
      %7985 = vmatmul.f32.gmra.mxu0 %v7583
      %v7986 = vpop.f32.mrf.mxu0
      %v7987 = vadd.f32 0.0, %v7986
      %7988 = vmatmul.f32.gmra.mxu0 %v7586
      %v7989 = vpop.f32.mrf.mxu0
      %v7990 = vadd.f32 0.0, %v7989
      %7991 = vmatmul.f32.gmra.mxu0 %v7589
      %v7992 = vpop.f32.mrf.mxu0
      %v7993 = vadd.f32 0.0, %v7992
      %7994 = vmatmul.f32.gmra.mxu0 %v7592
      %v7995 = vpop.f32.mrf.mxu0
      %v7996 = vadd.f32 0.0, %v7995
      %7997 = vmatmul.f32.gmra.mxu0 %v7595
      %v7998 = vpop.f32.mrf.mxu0
      %v7999 = vadd.f32 0.0, %v7998
      %8000 = vmatmul.f32.gmra.mxu0 %v7598
      %v8001 = vpop.f32.mrf.mxu0
      %v8002 = vadd.f32 0.0, %v8001
      %8003 = vmatmul.f32.gmra.mxu0 %v7601
      %v8004 = vpop.f32.mrf.mxu0
      %v8005 = vadd.f32 0.0, %v8004
      %8006 = vmatmul.f32.gmra.mxu0 %v7604
      %v8007 = vpop.f32.mrf.mxu0
      %v8008 = vadd.f32 0.0, %v8007
      %8009 = vmatmul.f32.gmra.mxu0 %v7607
      %v8010 = vpop.f32.mrf.mxu0
      %v8011 = vadd.f32 0.0, %v8010
      %8012 = vmatmul.f32.gmra.mxu0 %v7610
      %v8013 = vpop.f32.mrf.mxu0
      %v8014 = vadd.f32 0.0, %v8013
      %8015 = vmatmul.f32.gmra.mxu0 %v7613
      %v8016 = vpop.f32.mrf.mxu0
      %v8017 = vadd.f32 0.0, %v8016
      %8018 = vmatmul.f32.gmra.mxu0 %v7616
      %v8019 = vpop.f32.mrf.mxu0
      %v8020 = vadd.f32 0.0, %v8019
      %8021 = vmatmul.f32.gmra.mxu0 %v7619
      %v8022 = vpop.f32.mrf.mxu0
      %v8023 = vadd.f32 0.0, %v8022
      %8024 = vmatmul.f32.gmra.mxu0 %v7622
      %v8025 = vpop.f32.mrf.mxu0
      %v8026 = vadd.f32 0.0, %v8025
      %8027 = vmatmul.f32.gmra.mxu0 %v7625
      %v8028 = vpop.f32.mrf.mxu0
      %v8029 = vadd.f32 0.0, %v8028
      %8030 = vmatmul.f32.gmra.mxu0 %v7628
      %v8031 = vpop.f32.mrf.mxu0
      %v8032 = vadd.f32 0.0, %v8031
      %8033 = vmatmul.f32.gmra.mxu0 %v7631
      %v8034 = vpop.f32.mrf.mxu0
      %v8035 = vadd.f32 0.0, %v8034
      %8036 = vmatmul.f32.gmra.mxu0 %v7634
      %v8037 = vpop.f32.mrf.mxu0
      %v8038 = vadd.f32 0.0, %v8037
      %8039 = vmatmul.f32.gmra.mxu0 %v7637
      %v8040 = vpop.f32.mrf.mxu0
      %v8041 = vadd.f32 0.0, %v8040
      %8042 = vmatmul.f32.gmra.mxu0 %v7640
      %v8043 = vpop.f32.mrf.mxu0
      %v8044 = vadd.f32 0.0, %v8043
      %8045 = vmatmul.f32.gmra.mxu0 %v7643
      %v8046 = vpop.f32.mrf.mxu0
      %v8047 = vadd.f32 0.0, %v8046
      %8048 = vmatmul.f32.gmra.mxu0 %v7646
      %v8049 = vpop.f32.mrf.mxu0
      %v8050 = vadd.f32 0.0, %v8049
      %8051 = vmatmul.f32.gmra.mxu0 %v7649
      %v8052 = vpop.f32.mrf.mxu0
      %v8053 = vadd.f32 0.0, %v8052
      %8054 = vmatmul.f32.gmra.mxu0 %v7652
      %v8055 = vpop.f32.mrf.mxu0
      %v8056 = vadd.f32 0.0, %v8055
      %8057 = vmatmul.f32.gmra.mxu0 %v7655
      %v8058 = vpop.f32.mrf.mxu0
      %v8059 = vadd.f32 0.0, %v8058
      %8060 = vmatmul.f32.gmra.mxu0 %v7658
      %v8061 = vpop.f32.mrf.mxu0
      %v8062 = vadd.f32 0.0, %v8061
      %8063 = vmatmul.f32.gmra.mxu0 %v7661
      %v8064 = vpop.f32.mrf.mxu0
      %v8065 = vadd.f32 0.0, %v8064
      %8066 = vmatmul.f32.gmra.mxu0 %v7664
      %v8067 = vpop.f32.mrf.mxu0
      %v8068 = vadd.f32 0.0, %v8067
      %8069 = vmatmul.f32.gmra.mxu0 %v7667
      %v8070 = vpop.f32.mrf.mxu0
      %v8071 = vadd.f32 0.0, %v8070
      %8072 = vmatmul.f32.gmra.mxu0 %v7670
      %v8073 = vpop.f32.mrf.mxu0
      %v8074 = vadd.f32 0.0, %v8073
      %8075 = vmatmul.f32.gmra.mxu0 %v7673
      %v8076 = vpop.f32.mrf.mxu0
      %v8077 = vadd.f32 0.0, %v8076
      %8078 = vmatmul.f32.gmra.mxu0 %v7676
      %v8079 = vpop.f32.mrf.mxu0
      %v8080 = vadd.f32 0.0, %v8079
      %8081 = vmatmul.f32.gmra.mxu0 %v7679
      %v8082 = vpop.f32.mrf.mxu0
      %v8083 = vadd.f32 0.0, %v8082
      %8084 = vmatmul.f32.gmra.mxu0 %v7682
      %v8085 = vpop.f32.mrf.mxu0
      %v8086 = vadd.f32 0.0, %v8085
      %8087 = vmatmul.f32.gmra.mxu0 %v7685
      %v8088 = vpop.f32.mrf.mxu0
      %v8089 = vadd.f32 0.0, %v8088
      %8090 = vmatmul.f32.gmra.mxu0 %v7688
      %v8091 = vpop.f32.mrf.mxu0
      %v8092 = vadd.f32 0.0, %v8091
      %8093 = vmatmul.f32.gmra.mxu0 %v7691
      %v8094 = vpop.f32.mrf.mxu0
      %v8095 = vadd.f32 0.0, %v8094
      %8096 = vmatmul.f32.gmra.mxu0 %v7694
      %v8097 = vpop.f32.mrf.mxu0
      %v8098 = vadd.f32 0.0, %v8097
      %8099 = vmatmul.f32.gmra.mxu0 %v7697
      %v8100 = vpop.f32.mrf.mxu0
      %v8101 = vadd.f32 0.0, %v8100
      %8102 = vmatmul.f32.gmra.mxu0 %v7700
      %v8103 = vpop.f32.mrf.mxu0
      %v8104 = vadd.f32 0.0, %v8103
      %8105 = vmatmul.f32.gmra.mxu0 %v7703
      %v8106 = vpop.f32.mrf.mxu0
      %v8107 = vadd.f32 0.0, %v8106
      %8108 = vmatmul.f32.gmra.mxu0 %v7706
      %v8109 = vpop.f32.mrf.mxu0
      %v8110 = vadd.f32 0.0, %v8109
      %8111 = vmatmul.f32.gmra.mxu0 %v7709
      %v8112 = vpop.f32.mrf.mxu0
      %v8113 = vadd.f32 0.0, %v8112
      %8114 = vmatmul.f32.gmra.mxu0 %v7712
      %v8115 = vpop.f32.mrf.mxu0
      %v8116 = vadd.f32 0.0, %v8115
      %8117 = vmatmul.f32.gmra.mxu0 %v7715
      %v8118 = vpop.f32.mrf.mxu0
      %v8119 = vadd.f32 0.0, %v8118
      %8120 = vmatmul.f32.gmra.mxu0 %v7718
      %v8121 = vpop.f32.mrf.mxu0
      %v8122 = vadd.f32 0.0, %v8121
      %8123 = vmatmul.f32.gmra.mxu0 %v7721
      %v8124 = vpop.f32.mrf.mxu0
      %v8125 = vadd.f32 0.0, %v8124
      %8126 = vmatmul.f32.gmra.mxu0 %v7724
      %v8127 = vpop.f32.mrf.mxu0
      %v8128 = vadd.f32 0.0, %v8127
      %8129 = vmatmul.f32.gmra.mxu0 %v7727
      %v8130 = vpop.f32.mrf.mxu0
      %v8131 = vadd.f32 0.0, %v8130
      %8132 = vmatmul.f32.gmra.mxu0 %v7730
      %v8133 = vpop.f32.mrf.mxu0
      %v8134 = vadd.f32 0.0, %v8133
      %8135 = vmatmul.f32.gmra.mxu0 %v7733
      %v8136 = vpop.f32.mrf.mxu0
      %v8137 = vadd.f32 0.0, %v8136
      %8138 = vmatmul.f32.gmra.mxu0 %v7736
      %v8139 = vpop.f32.mrf.mxu0
      %v8140 = vadd.f32 0.0, %v8139
      %8141 = vmatmul.f32.gmra.mxu0 %v7739
      %v8142 = vpop.f32.mrf.mxu0
      %v8143 = vadd.f32 0.0, %v8142
      %8144 = vmatmul.f32.gmra.mxu0 %v7742
      %v8145 = vpop.f32.mrf.mxu0
      %v8146 = vadd.f32 0.0, %v8145
      %8147 = vmatmul.f32.gmra.mxu0 %v7745
      %v8148 = vpop.f32.mrf.mxu0
      %v8149 = vadd.f32 0.0, %v8148
      %8150 = vmatmul.f32.gmra.mxu0 %v7748
      %v8151 = vpop.f32.mrf.mxu0
      %v8152 = vadd.f32 0.0, %v8151
      %8153 = vmatmul.f32.gmra.mxu0 %v7751
      %v8154 = vpop.f32.mrf.mxu0
      %v8155 = vadd.f32 0.0, %v8154
      %8156 = vmatmul.f32.gmra.mxu0 %v7754
      %v8157 = vpop.f32.mrf.mxu0
      %v8158 = vadd.f32 0.0, %v8157
      %8159 = vmatmul.f32.gmra.mxu0 %v7757
      %v8160 = vpop.f32.mrf.mxu0
      %v8161 = vadd.f32 0.0, %v8160
      %8162 = vmatmul.f32.gmra.mxu0 %v7760
      %v8163 = vpop.f32.mrf.mxu0
      %v8164 = vadd.f32 0.0, %v8163
      %8165 = vmatmul.f32.gmra.mxu0 %v7763
      %v8166 = vpop.f32.mrf.mxu0
      %v8167 = vadd.f32 0.0, %v8166
      %8168 = vmatmul.f32.gmra.mxu0 %v7766
      %v8169 = vpop.f32.mrf.mxu0
      %v8170 = vadd.f32 0.0, %v8169
      %8171 = vmatmul.f32.gmra.mxu0 %v7769
      %v8172 = vpop.f32.mrf.mxu0
      %v8173 = vadd.f32 0.0, %v8172
      %8174 = vmatmul.f32.gmra.mxu0 %v7772
      %v8175 = vpop.f32.mrf.mxu0
      %v8176 = vadd.f32 0.0, %v8175
      %8177 = vmatmul.f32.gmra.mxu0 %v7775
      %v8178 = vpop.f32.mrf.mxu0
      %v8179 = vadd.f32 0.0, %v8178
      %8180 = vmatmul.f32.gmra.mxu0 %v7778
      %v8181 = vpop.f32.mrf.mxu0
      %v8182 = vadd.f32 0.0, %v8181
      %8183 = vmatmul.f32.gmra.mxu0 %v7781
      %v8184 = vpop.f32.mrf.mxu0
      %v8185 = vadd.f32 0.0, %v8184
      %8186 = vmatmul.f32.gmra.mxu0 %v7784
      %v8187 = vpop.f32.mrf.mxu0
      %v8188 = vadd.f32 0.0, %v8187
      %8189 = vmatmul.f32.gmra.mxu0 %v7787
      %v8190 = vpop.f32.mrf.mxu0
      %v8191 = vadd.f32 0.0, %v8190
      %8192 = vmatmul.f32.gmra.mxu0 %v7790
      %v8193 = vpop.f32.mrf.mxu0
      %v8194 = vadd.f32 0.0, %v8193
      %8195 = vmatmul.f32.gmra.mxu0 %v7793
      %v8196 = vpop.f32.mrf.mxu0
      %v8197 = vadd.f32 0.0, %v8196
      %8198 = vmatmul.f32.gmra.mxu0 %v7796
      %v8199 = vpop.f32.mrf.mxu0
      %v8200 = vadd.f32 0.0, %v8199
      %8201 = vdwg.mxu0
      %v8202 = vadd.f32 %v7156, %v7819
      %v8203 = vadd.f32 %v7157, %v7822
      %v8204 = vadd.f32 %v7158, %v7825
      %v8205 = vadd.f32 %v7159, %v7828
      %v8206 = vadd.f32 %v7160, %v7831
      %v8207 = vadd.f32 %v7161, %v7834
      %v8208 = vadd.f32 %v7162, %v7837
      %v8209 = vadd.f32 %v7163, %v7840
      %v8210 = vadd.f32 %v7164, %v7843
      %v8211 = vadd.f32 %v7165, %v7846
      %v8212 = vadd.f32 %v7166, %v7849
      %v8213 = vadd.f32 %v7167, %v7852
      %v8214 = vadd.f32 %v7168, %v7855
      %v8215 = vadd.f32 %v7169, %v7858
      %v8216 = vadd.f32 %v7170, %v7861
      %v8217 = vadd.f32 %v7171, %v7864
      %v8218 = vadd.f32 %v7172, %v7867
      %v8219 = vadd.f32 %v7173, %v7870
      %v8220 = vadd.f32 %v7174, %v7873
      %v8221 = vadd.f32 %v7175, %v7876
      %v8222 = vadd.f32 %v7176, %v7879
      %v8223 = vadd.f32 %v7177, %v7882
      %v8224 = vadd.f32 %v7178, %v7885
      %v8225 = vadd.f32 %v7179, %v7888
      %v8226 = vadd.f32 %v7180, %v7891
      %v8227 = vadd.f32 %v7181, %v7894
      %v8228 = vadd.f32 %v7182, %v7897
      %v8229 = vadd.f32 %v7183, %v7900
      %v8230 = vadd.f32 %v7184, %v7903
      %v8231 = vadd.f32 %v7185, %v7906
      %v8232 = vadd.f32 %v7186, %v7909
      %v8233 = vadd.f32 %v7187, %v7912
      %v8234 = vadd.f32 %v7188, %v7915
      %v8235 = vadd.f32 %v7189, %v7918
      %v8236 = vadd.f32 %v7190, %v7921
      %v8237 = vadd.f32 %v7191, %v7924
      %v8238 = vadd.f32 %v7192, %v7927
      %v8239 = vadd.f32 %v7193, %v7930
      %v8240 = vadd.f32 %v7194, %v7933
      %v8241 = vadd.f32 %v7195, %v7936
      %v8242 = vadd.f32 %v7196, %v7939
      %v8243 = vadd.f32 %v7197, %v7942
      %v8244 = vadd.f32 %v7198, %v7945
      %v8245 = vadd.f32 %v7199, %v7948
      %v8246 = vadd.f32 %v7200, %v7951
      %v8247 = vadd.f32 %v7201, %v7954
      %v8248 = vadd.f32 %v7202, %v7957
      %v8249 = vadd.f32 %v7203, %v7960
      %v8250 = vadd.f32 %v7204, %v7963
      %v8251 = vadd.f32 %v7205, %v7966
      %v8252 = vadd.f32 %v7206, %v7969
      %v8253 = vadd.f32 %v7207, %v7972
      %v8254 = vadd.f32 %v7208, %v7975
      %v8255 = vadd.f32 %v7209, %v7978
      %v8256 = vadd.f32 %v7210, %v7981
      %v8257 = vadd.f32 %v7211, %v7984
      %v8258 = vadd.f32 %v7212, %v7987
      %v8259 = vadd.f32 %v7213, %v7990
      %v8260 = vadd.f32 %v7214, %v7993
      %v8261 = vadd.f32 %v7215, %v7996
      %v8262 = vadd.f32 %v7216, %v7999
      %v8263 = vadd.f32 %v7217, %v8002
      %v8264 = vadd.f32 %v7218, %v8005
      %v8265 = vadd.f32 %v7219, %v8008
      %v8266 = vadd.f32 %v7220, %v8011
      %v8267 = vadd.f32 %v7221, %v8014
      %v8268 = vadd.f32 %v7222, %v8017
      %v8269 = vadd.f32 %v7223, %v8020
      %v8270 = vadd.f32 %v7224, %v8023
      %v8271 = vadd.f32 %v7225, %v8026
      %v8272 = vadd.f32 %v7226, %v8029
      %v8273 = vadd.f32 %v7227, %v8032
      %v8274 = vadd.f32 %v7228, %v8035
      %v8275 = vadd.f32 %v7229, %v8038
      %v8276 = vadd.f32 %v7230, %v8041
      %v8277 = vadd.f32 %v7231, %v8044
      %v8278 = vadd.f32 %v7232, %v8047
      %v8279 = vadd.f32 %v7233, %v8050
      %v8280 = vadd.f32 %v7234, %v8053
      %v8281 = vadd.f32 %v7235, %v8056
      %v8282 = vadd.f32 %v7236, %v8059
      %v8283 = vadd.f32 %v7237, %v8062
      %v8284 = vadd.f32 %v7238, %v8065
      %v8285 = vadd.f32 %v7239, %v8068
      %v8286 = vadd.f32 %v7240, %v8071
      %v8287 = vadd.f32 %v7241, %v8074
      %v8288 = vadd.f32 %v7242, %v8077
      %v8289 = vadd.f32 %v7243, %v8080
      %v8290 = vadd.f32 %v7244, %v8083
      %v8291 = vadd.f32 %v7245, %v8086
      %v8292 = vadd.f32 %v7246, %v8089
      %v8293 = vadd.f32 %v7247, %v8092
      %v8294 = vadd.f32 %v7248, %v8095
      %v8295 = vadd.f32 %v7249, %v8098
      %v8296 = vadd.f32 %v7250, %v8101
      %v8297 = vadd.f32 %v7251, %v8104
      %v8298 = vadd.f32 %v7252, %v8107
      %v8299 = vadd.f32 %v7253, %v8110
      %v8300 = vadd.f32 %v7254, %v8113
      %v8301 = vadd.f32 %v7255, %v8116
      %v8302 = vadd.f32 %v7256, %v8119
      %v8303 = vadd.f32 %v7257, %v8122
      %v8304 = vadd.f32 %v7258, %v8125
      %v8305 = vadd.f32 %v7259, %v8128
      %v8306 = vadd.f32 %v7260, %v8131
      %v8307 = vadd.f32 %v7261, %v8134
      %v8308 = vadd.f32 %v7262, %v8137
      %v8309 = vadd.f32 %v7263, %v8140
      %v8310 = vadd.f32 %v7264, %v8143
      %v8311 = vadd.f32 %v7265, %v8146
      %v8312 = vadd.f32 %v7266, %v8149
      %v8313 = vadd.f32 %v7267, %v8152
      %v8314 = vadd.f32 %v7268, %v8155
      %v8315 = vadd.f32 %v7269, %v8158
      %v8316 = vadd.f32 %v7270, %v8161
      %v8317 = vadd.f32 %v7271, %v8164
      %v8318 = vadd.f32 %v7272, %v8167
      %v8319 = vadd.f32 %v7273, %v8170
      %v8320 = vadd.f32 %v7274, %v8173
      %v8321 = vadd.f32 %v7275, %v8176
      %v8322 = vadd.f32 %v7276, %v8179
      %v8323 = vadd.f32 %v7277, %v8182
      %v8324 = vadd.f32 %v7278, %v8185
      %v8325 = vadd.f32 %v7279, %v8188
      %v8326 = vadd.f32 %v7280, %v8191
      %v8327 = vadd.f32 %v7281, %v8194
      %v8328 = vadd.f32 %v7282, %v8197
      %v8329 = vadd.f32 %v7283, %v8200
      %v8330 = vld [vmem:[%s6237 + $0x2] sm:$0xff]
      %v8331 = vld [vmem:[%s6237 + $0xa] sm:$0xff]
      %v8332 = vld [vmem:[%s6237 + $0x12] sm:$0xff]
      %v8333 = vld [vmem:[%s6237 + $0x1a] sm:$0xff]
      %v8334 = vld [vmem:[%s6237 + $0x2a] sm:$0xff]
      %v8335 = vld [vmem:[%s6237 + $0x32] sm:$0xff]
      %v8336 = vld [vmem:[%s6237 + $0x3a] sm:$0xff]
      %v8337 = vld [vmem:[%s6237 + $0x42] sm:$0xff]
      %v8338 = vld [vmem:[%s6237 + $0x52] sm:$0xff]
      %v8339 = vld [vmem:[%s6237 + $0x5a] sm:$0xff]
      %v8340 = vld [vmem:[%s6237 + $0x62] sm:$0xff]
      %v8341 = vld [vmem:[%s6237 + $0x6a] sm:$0xff]
      %v8342 = vld [vmem:[%s6237 + $0x7a] sm:$0xff]
      %v8343 = vld [vmem:[%s6237 + $0x82] sm:$0xff]
      %v8344 = vld [vmem:[%s6237 + $0x8a] sm:$0xff]
      %v8345 = vld [vmem:[%s6237 + $0x92] sm:$0xff]
      %v8346 = vld [vmem:[%s6237 + $0xa2] sm:$0xff]
      %v8347 = vld [vmem:[%s6237 + $0xaa] sm:$0xff]
      %v8348 = vld [vmem:[%s6237 + $0xb2] sm:$0xff]
      %v8349 = vld [vmem:[%s6237 + $0xba] sm:$0xff]
      %v8350 = vld [vmem:[%s6237 + $0xca] sm:$0xff]
      %v8351 = vld [vmem:[%s6237 + $0xd2] sm:$0xff]
      %v8352 = vld [vmem:[%s6237 + $0xda] sm:$0xff]
      %v8353 = vld [vmem:[%s6237 + $0xe2] sm:$0xff]
      %v8354 = vld [vmem:[%s6237 + $0xf2] sm:$0xff]
      %v8355 = vld [vmem:[%s6237 + $0xfa] sm:$0xff]
      %v8356 = vld [vmem:[%s6237 + $0x102] sm:$0xff]
      %v8357 = vld [vmem:[%s6237 + $0x10a] sm:$0xff]
      %v8358 = vld [vmem:[%s6237 + $0x11a] sm:$0xff]
      %v8359 = vld [vmem:[%s6237 + $0x122] sm:$0xff]
      %v8360 = vld [vmem:[%s6237 + $0x12a] sm:$0xff]
      %v8361 = vld [vmem:[%s6237 + $0x132] sm:$0xff]
      %v8362 = vld [vmem:[%s6237 + $0x142] sm:$0xff]
      %v8363 = vld [vmem:[%s6237 + $0x14a] sm:$0xff]
      %v8364 = vld [vmem:[%s6237 + $0x152] sm:$0xff]
      %v8365 = vld [vmem:[%s6237 + $0x15a] sm:$0xff]
      %v8366 = vld [vmem:[%s6237 + $0x16a] sm:$0xff]
      %v8367 = vld [vmem:[%s6237 + $0x172] sm:$0xff]
      %v8368 = vld [vmem:[%s6237 + $0x17a] sm:$0xff]
      %v8369 = vld [vmem:[%s6237 + $0x182] sm:$0xff]
      %v8370 = vld [vmem:[%s6237 + $0x192] sm:$0xff]
      %v8371 = vld [vmem:[%s6237 + $0x19a] sm:$0xff]
      %v8372 = vld [vmem:[%s6237 + $0x1a2] sm:$0xff]
      %v8373 = vld [vmem:[%s6237 + $0x1aa] sm:$0xff]
      %v8374 = vld [vmem:[%s6237 + $0x1ba] sm:$0xff]
      %v8375 = vld [vmem:[%s6237 + $0x1c2] sm:$0xff]
      %v8376 = vld [vmem:[%s6237 + $0x1ca] sm:$0xff]
      %v8377 = vld [vmem:[%s6237 + $0x1d2] sm:$0xff]
      %v8378 = vld [vmem:[%s6237 + $0x1e2] sm:$0xff]
      %v8379 = vld [vmem:[%s6237 + $0x1ea] sm:$0xff]
      %v8380 = vld [vmem:[%s6237 + $0x1f2] sm:$0xff]
      %v8381 = vld [vmem:[%s6237 + $0x1fa] sm:$0xff]
      %v8382 = vld [vmem:[%s6237 + $0x20a] sm:$0xff]
      %v8383 = vld [vmem:[%s6237 + $0x212] sm:$0xff]
      %v8384 = vld [vmem:[%s6237 + $0x21a] sm:$0xff]
      %v8385 = vld [vmem:[%s6237 + $0x222] sm:$0xff]
      %v8386 = vld [vmem:[%s6237 + $0x232] sm:$0xff]
      %v8387 = vld [vmem:[%s6237 + $0x23a] sm:$0xff]
      %v8388 = vld [vmem:[%s6237 + $0x242] sm:$0xff]
      %v8389 = vld [vmem:[%s6237 + $0x24a] sm:$0xff]
      %v8390 = vld [vmem:[%s6237 + $0x25a] sm:$0xff]
      %v8391 = vld [vmem:[%s6237 + $0x262] sm:$0xff]
      %v8392 = vld [vmem:[%s6237 + $0x26a] sm:$0xff]
      %v8393 = vld [vmem:[%s6237 + $0x272] sm:$0xff]
      %v8394 = vld [vmem:[%s6237 + $0x282] sm:$0xff]
      %v8395 = vld [vmem:[%s6237 + $0x28a] sm:$0xff]
      %v8396 = vld [vmem:[%s6237 + $0x292] sm:$0xff]
      %v8397 = vld [vmem:[%s6237 + $0x29a] sm:$0xff]
      %v8398 = vld [vmem:[%s6237 + $0x2aa] sm:$0xff]
      %v8399 = vld [vmem:[%s6237 + $0x2b2] sm:$0xff]
      %v8400 = vld [vmem:[%s6237 + $0x2ba] sm:$0xff]
      %v8401 = vld [vmem:[%s6237 + $0x2c2] sm:$0xff]
      %v8402 = vld [vmem:[%s6237 + $0x2d2] sm:$0xff]
      %v8403 = vld [vmem:[%s6237 + $0x2da] sm:$0xff]
      %v8404 = vld [vmem:[%s6237 + $0x2e2] sm:$0xff]
      %v8405 = vld [vmem:[%s6237 + $0x2ea] sm:$0xff]
      %v8406 = vld [vmem:[%s6237 + $0x2fa] sm:$0xff]
      %v8407 = vld [vmem:[%s6237 + $0x302] sm:$0xff]
      %v8408 = vld [vmem:[%s6237 + $0x30a] sm:$0xff]
      %v8409 = vld [vmem:[%s6237 + $0x312] sm:$0xff]
      %v8410 = vld [vmem:[%s6237 + $0x322] sm:$0xff]
      %v8411 = vld [vmem:[%s6237 + $0x32a] sm:$0xff]
      %v8412 = vld [vmem:[%s6237 + $0x332] sm:$0xff]
      %v8413 = vld [vmem:[%s6237 + $0x33a] sm:$0xff]
      %v8414 = vld [vmem:[%s6237 + $0x34a] sm:$0xff]
      %v8415 = vld [vmem:[%s6237 + $0x352] sm:$0xff]
      %v8416 = vld [vmem:[%s6237 + $0x35a] sm:$0xff]
      %v8417 = vld [vmem:[%s6237 + $0x362] sm:$0xff]
      %v8418 = vld [vmem:[%s6237 + $0x372] sm:$0xff]
      %v8419 = vld [vmem:[%s6237 + $0x37a] sm:$0xff]
      %v8420 = vld [vmem:[%s6237 + $0x382] sm:$0xff]
      %v8421 = vld [vmem:[%s6237 + $0x38a] sm:$0xff]
      %v8422 = vld [vmem:[%s6237 + $0x39a] sm:$0xff]
      %v8423 = vld [vmem:[%s6237 + $0x3a2] sm:$0xff]
      %v8424 = vld [vmem:[%s6237 + $0x3aa] sm:$0xff]
      %v8425 = vld [vmem:[%s6237 + $0x3b2] sm:$0xff]
      %v8426 = vld [vmem:[%s6237 + $0x3c2] sm:$0xff]
      %v8427 = vld [vmem:[%s6237 + $0x3ca] sm:$0xff]
      %v8428 = vld [vmem:[%s6237 + $0x3d2] sm:$0xff]
      %v8429 = vld [vmem:[%s6237 + $0x3da] sm:$0xff]
      %v8430 = vld [vmem:[%s6237 + $0x3ea] sm:$0xff]
      %v8431 = vld [vmem:[%s6237 + $0x3f2] sm:$0xff]
      %v8432 = vld [vmem:[%s6237 + $0x3fa] sm:$0xff]
      %v8433 = vld [vmem:[%s6237 + $0x402] sm:$0xff]
      %v8434 = vld [vmem:[%s6237 + $0x412] sm:$0xff]
      %v8435 = vld [vmem:[%s6237 + $0x41a] sm:$0xff]
      %v8436 = vld [vmem:[%s6237 + $0x422] sm:$0xff]
      %v8437 = vld [vmem:[%s6237 + $0x42a] sm:$0xff]
      %v8438 = vld [vmem:[%s6237 + $0x43a] sm:$0xff]
      %v8439 = vld [vmem:[%s6237 + $0x442] sm:$0xff]
      %v8440 = vld [vmem:[%s6237 + $0x44a] sm:$0xff]
      %v8441 = vld [vmem:[%s6237 + $0x452] sm:$0xff]
      %v8442 = vld [vmem:[%s6237 + $0x462] sm:$0xff]
      %v8443 = vld [vmem:[%s6237 + $0x46a] sm:$0xff]
      %v8444 = vld [vmem:[%s6237 + $0x472] sm:$0xff]
      %v8445 = vld [vmem:[%s6237 + $0x47a] sm:$0xff]
      %v8446 = vld [vmem:[%s6237 + $0x48a] sm:$0xff]
      %v8447 = vld [vmem:[%s6237 + $0x492] sm:$0xff]
      %v8448 = vld [vmem:[%s6237 + $0x49a] sm:$0xff]
      %v8449 = vld [vmem:[%s6237 + $0x4a2] sm:$0xff]
      %v8450 = vld [vmem:[%s6237 + $0x4b2] sm:$0xff]
      %v8451 = vld [vmem:[%s6237 + $0x4ba] sm:$0xff]
      %v8452 = vld [vmem:[%s6237 + $0x4c2] sm:$0xff]
      %v8453 = vld [vmem:[%s6237 + $0x4ca] sm:$0xff]
      %v8454 = vld [vmem:[%s6237 + $0x4da] sm:$0xff]
      %v8455 = vld [vmem:[%s6237 + $0x4e2] sm:$0xff]
      %v8456 = vld [vmem:[%s6237 + $0x4ea] sm:$0xff]
      %v8457 = vld [vmem:[%s6237 + $0x4f2] sm:$0xff]
      %s8458 = scalar_lea.vmem %s1, 32
      %v8459 = vld [vmem:[%s8458] sm:$0xf]
      %v8461 = vsel %vm474, %v8330, 0
      %v8464 = vsel %vm474, %v8331, 0
      %v8467 = vsel %vm474, %v8332, 0
      %v8470 = vsel %vm474, %v8333, 0
      %v8473 = vsel %vm474, %v8334, 0
      %v8476 = vsel %vm474, %v8335, 0
      %v8479 = vsel %vm474, %v8336, 0
      %v8482 = vsel %vm474, %v8337, 0
      %v8485 = vsel %vm474, %v8338, 0
      %v8488 = vsel %vm474, %v8339, 0
      %v8491 = vsel %vm474, %v8340, 0
      %v8494 = vsel %vm474, %v8341, 0
      %v8497 = vsel %vm474, %v8342, 0
      %v8500 = vsel %vm474, %v8343, 0
      %v8503 = vsel %vm474, %v8344, 0
      %v8506 = vsel %vm474, %v8345, 0
      %v8509 = vsel %vm474, %v8346, 0
      %v8512 = vsel %vm474, %v8347, 0
      %v8515 = vsel %vm474, %v8348, 0
      %v8518 = vsel %vm474, %v8349, 0
      %v8521 = vsel %vm474, %v8350, 0
      %v8524 = vsel %vm474, %v8351, 0
      %v8527 = vsel %vm474, %v8352, 0
      %v8530 = vsel %vm474, %v8353, 0
      %v8533 = vsel %vm474, %v8354, 0
      %v8536 = vsel %vm474, %v8355, 0
      %v8539 = vsel %vm474, %v8356, 0
      %v8542 = vsel %vm474, %v8357, 0
      %v8545 = vsel %vm474, %v8358, 0
      %v8548 = vsel %vm474, %v8359, 0
      %v8551 = vsel %vm474, %v8360, 0
      %v8554 = vsel %vm474, %v8361, 0
      %v8557 = vsel %vm474, %v8362, 0
      %v8560 = vsel %vm474, %v8363, 0
      %v8563 = vsel %vm474, %v8364, 0
      %v8566 = vsel %vm474, %v8365, 0
      %v8569 = vsel %vm474, %v8366, 0
      %v8572 = vsel %vm474, %v8367, 0
      %v8575 = vsel %vm474, %v8368, 0
      %v8578 = vsel %vm474, %v8369, 0
      %v8581 = vsel %vm474, %v8370, 0
      %v8584 = vsel %vm474, %v8371, 0
      %v8587 = vsel %vm474, %v8372, 0
      %v8590 = vsel %vm474, %v8373, 0
      %v8593 = vsel %vm474, %v8374, 0
      %v8596 = vsel %vm474, %v8375, 0
      %v8599 = vsel %vm474, %v8376, 0
      %v8602 = vsel %vm474, %v8377, 0
      %v8605 = vsel %vm474, %v8378, 0
      %v8608 = vsel %vm474, %v8379, 0
      %v8611 = vsel %vm474, %v8380, 0
      %v8614 = vsel %vm474, %v8381, 0
      %v8617 = vsel %vm474, %v8382, 0
      %v8620 = vsel %vm474, %v8383, 0
      %v8623 = vsel %vm474, %v8384, 0
      %v8626 = vsel %vm474, %v8385, 0
      %v8629 = vsel %vm474, %v8386, 0
      %v8632 = vsel %vm474, %v8387, 0
      %v8635 = vsel %vm474, %v8388, 0
      %v8638 = vsel %vm474, %v8389, 0
      %v8641 = vsel %vm474, %v8390, 0
      %v8644 = vsel %vm474, %v8391, 0
      %v8647 = vsel %vm474, %v8392, 0
      %v8650 = vsel %vm474, %v8393, 0
      %v8653 = vsel %vm474, %v8394, 0
      %v8656 = vsel %vm474, %v8395, 0
      %v8659 = vsel %vm474, %v8396, 0
      %v8662 = vsel %vm474, %v8397, 0
      %v8665 = vsel %vm474, %v8398, 0
      %v8668 = vsel %vm474, %v8399, 0
      %v8671 = vsel %vm474, %v8400, 0
      %v8674 = vsel %vm474, %v8401, 0
      %v8677 = vsel %vm474, %v8402, 0
      %v8680 = vsel %vm474, %v8403, 0
      %v8683 = vsel %vm474, %v8404, 0
      %v8686 = vsel %vm474, %v8405, 0
      %v8689 = vsel %vm474, %v8406, 0
      %v8692 = vsel %vm474, %v8407, 0
      %v8695 = vsel %vm474, %v8408, 0
      %v8698 = vsel %vm474, %v8409, 0
      %v8701 = vsel %vm474, %v8410, 0
      %v8704 = vsel %vm474, %v8411, 0
      %v8707 = vsel %vm474, %v8412, 0
      %v8710 = vsel %vm474, %v8413, 0
      %v8713 = vsel %vm474, %v8414, 0
      %v8716 = vsel %vm474, %v8415, 0
      %v8719 = vsel %vm474, %v8416, 0
      %v8722 = vsel %vm474, %v8417, 0
      %v8725 = vsel %vm474, %v8418, 0
      %v8728 = vsel %vm474, %v8419, 0
      %v8731 = vsel %vm474, %v8420, 0
      %v8734 = vsel %vm474, %v8421, 0
      %v8737 = vsel %vm474, %v8422, 0
      %v8740 = vsel %vm474, %v8423, 0
      %v8743 = vsel %vm474, %v8424, 0
      %v8746 = vsel %vm474, %v8425, 0
      %v8749 = vsel %vm474, %v8426, 0
      %v8752 = vsel %vm474, %v8427, 0
      %v8755 = vsel %vm474, %v8428, 0
      %v8758 = vsel %vm474, %v8429, 0
      %v8761 = vsel %vm474, %v8430, 0
      %v8764 = vsel %vm474, %v8431, 0
      %v8767 = vsel %vm474, %v8432, 0
      %v8770 = vsel %vm474, %v8433, 0
      %v8773 = vsel %vm474, %v8434, 0
      %v8776 = vsel %vm474, %v8435, 0
      %v8779 = vsel %vm474, %v8436, 0
      %v8782 = vsel %vm474, %v8437, 0
      %v8785 = vsel %vm474, %v8438, 0
      %v8788 = vsel %vm474, %v8439, 0
      %v8791 = vsel %vm474, %v8440, 0
      %v8794 = vsel %vm474, %v8441, 0
      %v8797 = vsel %vm474, %v8442, 0
      %v8800 = vsel %vm474, %v8443, 0
      %v8803 = vsel %vm474, %v8444, 0
      %v8806 = vsel %vm474, %v8445, 0
      %v8809 = vsel %vm474, %v8446, 0
      %v8812 = vsel %vm474, %v8447, 0
      %v8815 = vsel %vm474, %v8448, 0
      %v8818 = vsel %vm474, %v8449, 0
      %v8821 = vsel %vm474, %v8450, 0
      %v8824 = vsel %vm474, %v8451, 0
      %v8827 = vsel %vm474, %v8452, 0
      %v8830 = vsel %vm474, %v8453, 0
      %v8833 = vsel %vm474, %v8454, 0
      %v8836 = vsel %vm474, %v8455, 0
      %v8839 = vsel %vm474, %v8456, 0
      %v8842 = vsel %vm474, %v8457, 0
      %v8845 = vsel %vm859, %v8459, 0
      %8847 = vmatpush.msra.mxu0 0.0
      %8848 = vmatpush.msra.mxu0 0.0
      %8849 = vmatpush.msra.mxu0 0.0
      %8850 = vmatpush.msra.mxu0 0.0
      %8851 = vmatpush.msra.mxu0 0.0
      %8852 = vmatpush.msra.mxu0 0.0
      %8853 = vmatpush.msra.mxu0 0.0
      %8854 = vmatpush.msra.mxu0 0.0
      %8855 = vmatpush.msra.mxu0 0.0
      %8856 = vmatpush.msra.mxu0 0.0
      %8857 = vmatpush.msra.mxu0 0.0
      %8858 = vmatpush.msra.mxu0 0.0
      %8859 = vmatpush.msra.mxu0 0.0
      %8860 = vmatpush.msra.mxu0 0.0
      %8861 = vmatpush.msra.mxu0 0.0
      %8862 = vmatpush.msra.mxu0 %v8845
      %8863 = vmatmul.f32.gmra.mxu0 %v8461
      %v8864 = vpop.f32.mrf.mxu0
      %v8865 = vadd.f32 0.0, %v8864
      %8866 = vmatmul.f32.gmra.mxu0 %v8464
      %v8867 = vpop.f32.mrf.mxu0
      %v8868 = vadd.f32 0.0, %v8867
      %8869 = vmatmul.f32.gmra.mxu0 %v8467
      %v8870 = vpop.f32.mrf.mxu0
      %v8871 = vadd.f32 0.0, %v8870
      %8872 = vmatmul.f32.gmra.mxu0 %v8470
      %v8873 = vpop.f32.mrf.mxu0
      %v8874 = vadd.f32 0.0, %v8873
      %8875 = vmatmul.f32.gmra.mxu0 %v8473
      %v8876 = vpop.f32.mrf.mxu0
      %v8877 = vadd.f32 0.0, %v8876
      %8878 = vmatmul.f32.gmra.mxu0 %v8476
      %v8879 = vpop.f32.mrf.mxu0
      %v8880 = vadd.f32 0.0, %v8879
      %8881 = vmatmul.f32.gmra.mxu0 %v8479
      %v8882 = vpop.f32.mrf.mxu0
      %v8883 = vadd.f32 0.0, %v8882
      %8884 = vmatmul.f32.gmra.mxu0 %v8482
      %v8885 = vpop.f32.mrf.mxu0
      %v8886 = vadd.f32 0.0, %v8885
      %8887 = vmatmul.f32.gmra.mxu0 %v8485
      %v8888 = vpop.f32.mrf.mxu0
      %v8889 = vadd.f32 0.0, %v8888
      %8890 = vmatmul.f32.gmra.mxu0 %v8488
      %v8891 = vpop.f32.mrf.mxu0
      %v8892 = vadd.f32 0.0, %v8891
      %8893 = vmatmul.f32.gmra.mxu0 %v8491
      %v8894 = vpop.f32.mrf.mxu0
      %v8895 = vadd.f32 0.0, %v8894
      %8896 = vmatmul.f32.gmra.mxu0 %v8494
      %v8897 = vpop.f32.mrf.mxu0
      %v8898 = vadd.f32 0.0, %v8897
      %8899 = vmatmul.f32.gmra.mxu0 %v8497
      %v8900 = vpop.f32.mrf.mxu0
      %v8901 = vadd.f32 0.0, %v8900
      %8902 = vmatmul.f32.gmra.mxu0 %v8500
      %v8903 = vpop.f32.mrf.mxu0
      %v8904 = vadd.f32 0.0, %v8903
      %8905 = vmatmul.f32.gmra.mxu0 %v8503
      %v8906 = vpop.f32.mrf.mxu0
      %v8907 = vadd.f32 0.0, %v8906
      %8908 = vmatmul.f32.gmra.mxu0 %v8506
      %v8909 = vpop.f32.mrf.mxu0
      %v8910 = vadd.f32 0.0, %v8909
      %8911 = vmatmul.f32.gmra.mxu0 %v8509
      %v8912 = vpop.f32.mrf.mxu0
      %v8913 = vadd.f32 0.0, %v8912
      %8914 = vmatmul.f32.gmra.mxu0 %v8512
      %v8915 = vpop.f32.mrf.mxu0
      %v8916 = vadd.f32 0.0, %v8915
      %8917 = vmatmul.f32.gmra.mxu0 %v8515
      %v8918 = vpop.f32.mrf.mxu0
      %v8919 = vadd.f32 0.0, %v8918
      %8920 = vmatmul.f32.gmra.mxu0 %v8518
      %v8921 = vpop.f32.mrf.mxu0
      %v8922 = vadd.f32 0.0, %v8921
      %8923 = vmatmul.f32.gmra.mxu0 %v8521
      %v8924 = vpop.f32.mrf.mxu0
      %v8925 = vadd.f32 0.0, %v8924
      %8926 = vmatmul.f32.gmra.mxu0 %v8524
      %v8927 = vpop.f32.mrf.mxu0
      %v8928 = vadd.f32 0.0, %v8927
      %8929 = vmatmul.f32.gmra.mxu0 %v8527
      %v8930 = vpop.f32.mrf.mxu0
      %v8931 = vadd.f32 0.0, %v8930
      %8932 = vmatmul.f32.gmra.mxu0 %v8530
      %v8933 = vpop.f32.mrf.mxu0
      %v8934 = vadd.f32 0.0, %v8933
      %8935 = vmatmul.f32.gmra.mxu0 %v8533
      %v8936 = vpop.f32.mrf.mxu0
      %v8937 = vadd.f32 0.0, %v8936
      %8938 = vmatmul.f32.gmra.mxu0 %v8536
      %v8939 = vpop.f32.mrf.mxu0
      %v8940 = vadd.f32 0.0, %v8939
      %8941 = vmatmul.f32.gmra.mxu0 %v8539
      %v8942 = vpop.f32.mrf.mxu0
      %v8943 = vadd.f32 0.0, %v8942
      %8944 = vmatmul.f32.gmra.mxu0 %v8542
      %v8945 = vpop.f32.mrf.mxu0
      %v8946 = vadd.f32 0.0, %v8945
      %8947 = vmatmul.f32.gmra.mxu0 %v8545
      %v8948 = vpop.f32.mrf.mxu0
      %v8949 = vadd.f32 0.0, %v8948
      %8950 = vmatmul.f32.gmra.mxu0 %v8548
      %v8951 = vpop.f32.mrf.mxu0
      %v8952 = vadd.f32 0.0, %v8951
      %8953 = vmatmul.f32.gmra.mxu0 %v8551
      %v8954 = vpop.f32.mrf.mxu0
      %v8955 = vadd.f32 0.0, %v8954
      %8956 = vmatmul.f32.gmra.mxu0 %v8554
      %v8957 = vpop.f32.mrf.mxu0
      %v8958 = vadd.f32 0.0, %v8957
      %8959 = vmatmul.f32.gmra.mxu0 %v8557
      %v8960 = vpop.f32.mrf.mxu0
      %v8961 = vadd.f32 0.0, %v8960
      %8962 = vmatmul.f32.gmra.mxu0 %v8560
      %v8963 = vpop.f32.mrf.mxu0
      %v8964 = vadd.f32 0.0, %v8963
      %8965 = vmatmul.f32.gmra.mxu0 %v8563
      %v8966 = vpop.f32.mrf.mxu0
      %v8967 = vadd.f32 0.0, %v8966
      %8968 = vmatmul.f32.gmra.mxu0 %v8566
      %v8969 = vpop.f32.mrf.mxu0
      %v8970 = vadd.f32 0.0, %v8969
      %8971 = vmatmul.f32.gmra.mxu0 %v8569
      %v8972 = vpop.f32.mrf.mxu0
      %v8973 = vadd.f32 0.0, %v8972
      %8974 = vmatmul.f32.gmra.mxu0 %v8572
      %v8975 = vpop.f32.mrf.mxu0
      %v8976 = vadd.f32 0.0, %v8975
      %8977 = vmatmul.f32.gmra.mxu0 %v8575
      %v8978 = vpop.f32.mrf.mxu0
      %v8979 = vadd.f32 0.0, %v8978
      %8980 = vmatmul.f32.gmra.mxu0 %v8578
      %v8981 = vpop.f32.mrf.mxu0
      %v8982 = vadd.f32 0.0, %v8981
      %8983 = vmatmul.f32.gmra.mxu0 %v8581
      %v8984 = vpop.f32.mrf.mxu0
      %v8985 = vadd.f32 0.0, %v8984
      %8986 = vmatmul.f32.gmra.mxu0 %v8584
      %v8987 = vpop.f32.mrf.mxu0
      %v8988 = vadd.f32 0.0, %v8987
      %8989 = vmatmul.f32.gmra.mxu0 %v8587
      %v8990 = vpop.f32.mrf.mxu0
      %v8991 = vadd.f32 0.0, %v8990
      %8992 = vmatmul.f32.gmra.mxu0 %v8590
      %v8993 = vpop.f32.mrf.mxu0
      %v8994 = vadd.f32 0.0, %v8993
      %8995 = vmatmul.f32.gmra.mxu0 %v8593
      %v8996 = vpop.f32.mrf.mxu0
      %v8997 = vadd.f32 0.0, %v8996
      %8998 = vmatmul.f32.gmra.mxu0 %v8596
      %v8999 = vpop.f32.mrf.mxu0
      %v9000 = vadd.f32 0.0, %v8999
      %9001 = vmatmul.f32.gmra.mxu0 %v8599
      %v9002 = vpop.f32.mrf.mxu0
      %v9003 = vadd.f32 0.0, %v9002
      %9004 = vmatmul.f32.gmra.mxu0 %v8602
      %v9005 = vpop.f32.mrf.mxu0
      %v9006 = vadd.f32 0.0, %v9005
      %9007 = vmatmul.f32.gmra.mxu0 %v8605
      %v9008 = vpop.f32.mrf.mxu0
      %v9009 = vadd.f32 0.0, %v9008
      %9010 = vmatmul.f32.gmra.mxu0 %v8608
      %v9011 = vpop.f32.mrf.mxu0
      %v9012 = vadd.f32 0.0, %v9011
      %9013 = vmatmul.f32.gmra.mxu0 %v8611
      %v9014 = vpop.f32.mrf.mxu0
      %v9015 = vadd.f32 0.0, %v9014
      %9016 = vmatmul.f32.gmra.mxu0 %v8614
      %v9017 = vpop.f32.mrf.mxu0
      %v9018 = vadd.f32 0.0, %v9017
      %9019 = vmatmul.f32.gmra.mxu0 %v8617
      %v9020 = vpop.f32.mrf.mxu0
      %v9021 = vadd.f32 0.0, %v9020
      %9022 = vmatmul.f32.gmra.mxu0 %v8620
      %v9023 = vpop.f32.mrf.mxu0
      %v9024 = vadd.f32 0.0, %v9023
      %9025 = vmatmul.f32.gmra.mxu0 %v8623
      %v9026 = vpop.f32.mrf.mxu0
      %v9027 = vadd.f32 0.0, %v9026
      %9028 = vmatmul.f32.gmra.mxu0 %v8626
      %v9029 = vpop.f32.mrf.mxu0
      %v9030 = vadd.f32 0.0, %v9029
      %9031 = vmatmul.f32.gmra.mxu0 %v8629
      %v9032 = vpop.f32.mrf.mxu0
      %v9033 = vadd.f32 0.0, %v9032
      %9034 = vmatmul.f32.gmra.mxu0 %v8632
      %v9035 = vpop.f32.mrf.mxu0
      %v9036 = vadd.f32 0.0, %v9035
      %9037 = vmatmul.f32.gmra.mxu0 %v8635
      %v9038 = vpop.f32.mrf.mxu0
      %v9039 = vadd.f32 0.0, %v9038
      %9040 = vmatmul.f32.gmra.mxu0 %v8638
      %v9041 = vpop.f32.mrf.mxu0
      %v9042 = vadd.f32 0.0, %v9041
      %9043 = vmatmul.f32.gmra.mxu0 %v8641
      %v9044 = vpop.f32.mrf.mxu0
      %v9045 = vadd.f32 0.0, %v9044
      %9046 = vmatmul.f32.gmra.mxu0 %v8644
      %v9047 = vpop.f32.mrf.mxu0
      %v9048 = vadd.f32 0.0, %v9047
      %9049 = vmatmul.f32.gmra.mxu0 %v8647
      %v9050 = vpop.f32.mrf.mxu0
      %v9051 = vadd.f32 0.0, %v9050
      %9052 = vmatmul.f32.gmra.mxu0 %v8650
      %v9053 = vpop.f32.mrf.mxu0
      %v9054 = vadd.f32 0.0, %v9053
      %9055 = vmatmul.f32.gmra.mxu0 %v8653
      %v9056 = vpop.f32.mrf.mxu0
      %v9057 = vadd.f32 0.0, %v9056
      %9058 = vmatmul.f32.gmra.mxu0 %v8656
      %v9059 = vpop.f32.mrf.mxu0
      %v9060 = vadd.f32 0.0, %v9059
      %9061 = vmatmul.f32.gmra.mxu0 %v8659
      %v9062 = vpop.f32.mrf.mxu0
      %v9063 = vadd.f32 0.0, %v9062
      %9064 = vmatmul.f32.gmra.mxu0 %v8662
      %v9065 = vpop.f32.mrf.mxu0
      %v9066 = vadd.f32 0.0, %v9065
      %9067 = vmatmul.f32.gmra.mxu0 %v8665
      %v9068 = vpop.f32.mrf.mxu0
      %v9069 = vadd.f32 0.0, %v9068
      %9070 = vmatmul.f32.gmra.mxu0 %v8668
      %v9071 = vpop.f32.mrf.mxu0
      %v9072 = vadd.f32 0.0, %v9071
      %9073 = vmatmul.f32.gmra.mxu0 %v8671
      %v9074 = vpop.f32.mrf.mxu0
      %v9075 = vadd.f32 0.0, %v9074
      %9076 = vmatmul.f32.gmra.mxu0 %v8674
      %v9077 = vpop.f32.mrf.mxu0
      %v9078 = vadd.f32 0.0, %v9077
      %9079 = vmatmul.f32.gmra.mxu0 %v8677
      %v9080 = vpop.f32.mrf.mxu0
      %v9081 = vadd.f32 0.0, %v9080
      %9082 = vmatmul.f32.gmra.mxu0 %v8680
      %v9083 = vpop.f32.mrf.mxu0
      %v9084 = vadd.f32 0.0, %v9083
      %9085 = vmatmul.f32.gmra.mxu0 %v8683
      %v9086 = vpop.f32.mrf.mxu0
      %v9087 = vadd.f32 0.0, %v9086
      %9088 = vmatmul.f32.gmra.mxu0 %v8686
      %v9089 = vpop.f32.mrf.mxu0
      %v9090 = vadd.f32 0.0, %v9089
      %9091 = vmatmul.f32.gmra.mxu0 %v8689
      %v9092 = vpop.f32.mrf.mxu0
      %v9093 = vadd.f32 0.0, %v9092
      %9094 = vmatmul.f32.gmra.mxu0 %v8692
      %v9095 = vpop.f32.mrf.mxu0
      %v9096 = vadd.f32 0.0, %v9095
      %9097 = vmatmul.f32.gmra.mxu0 %v8695
      %v9098 = vpop.f32.mrf.mxu0
      %v9099 = vadd.f32 0.0, %v9098
      %9100 = vmatmul.f32.gmra.mxu0 %v8698
      %v9101 = vpop.f32.mrf.mxu0
      %v9102 = vadd.f32 0.0, %v9101
      %9103 = vmatmul.f32.gmra.mxu0 %v8701
      %v9104 = vpop.f32.mrf.mxu0
      %v9105 = vadd.f32 0.0, %v9104
      %9106 = vmatmul.f32.gmra.mxu0 %v8704
      %v9107 = vpop.f32.mrf.mxu0
      %v9108 = vadd.f32 0.0, %v9107
      %9109 = vmatmul.f32.gmra.mxu0 %v8707
      %v9110 = vpop.f32.mrf.mxu0
      %v9111 = vadd.f32 0.0, %v9110
      %9112 = vmatmul.f32.gmra.mxu0 %v8710
      %v9113 = vpop.f32.mrf.mxu0
      %v9114 = vadd.f32 0.0, %v9113
      %9115 = vmatmul.f32.gmra.mxu0 %v8713
      %v9116 = vpop.f32.mrf.mxu0
      %v9117 = vadd.f32 0.0, %v9116
      %9118 = vmatmul.f32.gmra.mxu0 %v8716
      %v9119 = vpop.f32.mrf.mxu0
      %v9120 = vadd.f32 0.0, %v9119
      %9121 = vmatmul.f32.gmra.mxu0 %v8719
      %v9122 = vpop.f32.mrf.mxu0
      %v9123 = vadd.f32 0.0, %v9122
      %9124 = vmatmul.f32.gmra.mxu0 %v8722
      %v9125 = vpop.f32.mrf.mxu0
      %v9126 = vadd.f32 0.0, %v9125
      %9127 = vmatmul.f32.gmra.mxu0 %v8725
      %v9128 = vpop.f32.mrf.mxu0
      %v9129 = vadd.f32 0.0, %v9128
      %9130 = vmatmul.f32.gmra.mxu0 %v8728
      %v9131 = vpop.f32.mrf.mxu0
      %v9132 = vadd.f32 0.0, %v9131
      %9133 = vmatmul.f32.gmra.mxu0 %v8731
      %v9134 = vpop.f32.mrf.mxu0
      %v9135 = vadd.f32 0.0, %v9134
      %9136 = vmatmul.f32.gmra.mxu0 %v8734
      %v9137 = vpop.f32.mrf.mxu0
      %v9138 = vadd.f32 0.0, %v9137
      %9139 = vmatmul.f32.gmra.mxu0 %v8737
      %v9140 = vpop.f32.mrf.mxu0
      %v9141 = vadd.f32 0.0, %v9140
      %9142 = vmatmul.f32.gmra.mxu0 %v8740
      %v9143 = vpop.f32.mrf.mxu0
      %v9144 = vadd.f32 0.0, %v9143
      %9145 = vmatmul.f32.gmra.mxu0 %v8743
      %v9146 = vpop.f32.mrf.mxu0
      %v9147 = vadd.f32 0.0, %v9146
      %9148 = vmatmul.f32.gmra.mxu0 %v8746
      %v9149 = vpop.f32.mrf.mxu0
      %v9150 = vadd.f32 0.0, %v9149
      %9151 = vmatmul.f32.gmra.mxu0 %v8749
      %v9152 = vpop.f32.mrf.mxu0
      %v9153 = vadd.f32 0.0, %v9152
      %9154 = vmatmul.f32.gmra.mxu0 %v8752
      %v9155 = vpop.f32.mrf.mxu0
      %v9156 = vadd.f32 0.0, %v9155
      %9157 = vmatmul.f32.gmra.mxu0 %v8755
      %v9158 = vpop.f32.mrf.mxu0
      %v9159 = vadd.f32 0.0, %v9158
      %9160 = vmatmul.f32.gmra.mxu0 %v8758
      %v9161 = vpop.f32.mrf.mxu0
      %v9162 = vadd.f32 0.0, %v9161
      %9163 = vmatmul.f32.gmra.mxu0 %v8761
      %v9164 = vpop.f32.mrf.mxu0
      %v9165 = vadd.f32 0.0, %v9164
      %9166 = vmatmul.f32.gmra.mxu0 %v8764
      %v9167 = vpop.f32.mrf.mxu0
      %v9168 = vadd.f32 0.0, %v9167
      %9169 = vmatmul.f32.gmra.mxu0 %v8767
      %v9170 = vpop.f32.mrf.mxu0
      %v9171 = vadd.f32 0.0, %v9170
      %9172 = vmatmul.f32.gmra.mxu0 %v8770
      %v9173 = vpop.f32.mrf.mxu0
      %v9174 = vadd.f32 0.0, %v9173
      %9175 = vmatmul.f32.gmra.mxu0 %v8773
      %v9176 = vpop.f32.mrf.mxu0
      %v9177 = vadd.f32 0.0, %v9176
      %9178 = vmatmul.f32.gmra.mxu0 %v8776
      %v9179 = vpop.f32.mrf.mxu0
      %v9180 = vadd.f32 0.0, %v9179
      %9181 = vmatmul.f32.gmra.mxu0 %v8779
      %v9182 = vpop.f32.mrf.mxu0
      %v9183 = vadd.f32 0.0, %v9182
      %9184 = vmatmul.f32.gmra.mxu0 %v8782
      %v9185 = vpop.f32.mrf.mxu0
      %v9186 = vadd.f32 0.0, %v9185
      %9187 = vmatmul.f32.gmra.mxu0 %v8785
      %v9188 = vpop.f32.mrf.mxu0
      %v9189 = vadd.f32 0.0, %v9188
      %9190 = vmatmul.f32.gmra.mxu0 %v8788
      %v9191 = vpop.f32.mrf.mxu0
      %v9192 = vadd.f32 0.0, %v9191
      %9193 = vmatmul.f32.gmra.mxu0 %v8791
      %v9194 = vpop.f32.mrf.mxu0
      %v9195 = vadd.f32 0.0, %v9194
      %9196 = vmatmul.f32.gmra.mxu0 %v8794
      %v9197 = vpop.f32.mrf.mxu0
      %v9198 = vadd.f32 0.0, %v9197
      %9199 = vmatmul.f32.gmra.mxu0 %v8797
      %v9200 = vpop.f32.mrf.mxu0
      %v9201 = vadd.f32 0.0, %v9200
      %9202 = vmatmul.f32.gmra.mxu0 %v8800
      %v9203 = vpop.f32.mrf.mxu0
      %v9204 = vadd.f32 0.0, %v9203
      %9205 = vmatmul.f32.gmra.mxu0 %v8803
      %v9206 = vpop.f32.mrf.mxu0
      %v9207 = vadd.f32 0.0, %v9206
      %9208 = vmatmul.f32.gmra.mxu0 %v8806
      %v9209 = vpop.f32.mrf.mxu0
      %v9210 = vadd.f32 0.0, %v9209
      %9211 = vmatmul.f32.gmra.mxu0 %v8809
      %v9212 = vpop.f32.mrf.mxu0
      %v9213 = vadd.f32 0.0, %v9212
      %9214 = vmatmul.f32.gmra.mxu0 %v8812
      %v9215 = vpop.f32.mrf.mxu0
      %v9216 = vadd.f32 0.0, %v9215
      %9217 = vmatmul.f32.gmra.mxu0 %v8815
      %v9218 = vpop.f32.mrf.mxu0
      %v9219 = vadd.f32 0.0, %v9218
      %9220 = vmatmul.f32.gmra.mxu0 %v8818
      %v9221 = vpop.f32.mrf.mxu0
      %v9222 = vadd.f32 0.0, %v9221
      %9223 = vmatmul.f32.gmra.mxu0 %v8821
      %v9224 = vpop.f32.mrf.mxu0
      %v9225 = vadd.f32 0.0, %v9224
      %9226 = vmatmul.f32.gmra.mxu0 %v8824
      %v9227 = vpop.f32.mrf.mxu0
      %v9228 = vadd.f32 0.0, %v9227
      %9229 = vmatmul.f32.gmra.mxu0 %v8827
      %v9230 = vpop.f32.mrf.mxu0
      %v9231 = vadd.f32 0.0, %v9230
      %9232 = vmatmul.f32.gmra.mxu0 %v8830
      %v9233 = vpop.f32.mrf.mxu0
      %v9234 = vadd.f32 0.0, %v9233
      %9235 = vmatmul.f32.gmra.mxu0 %v8833
      %v9236 = vpop.f32.mrf.mxu0
      %v9237 = vadd.f32 0.0, %v9236
      %9238 = vmatmul.f32.gmra.mxu0 %v8836
      %v9239 = vpop.f32.mrf.mxu0
      %v9240 = vadd.f32 0.0, %v9239
      %9241 = vmatmul.f32.gmra.mxu0 %v8839
      %v9242 = vpop.f32.mrf.mxu0
      %v9243 = vadd.f32 0.0, %v9242
      %9244 = vmatmul.f32.gmra.mxu0 %v8842
      %v9245 = vpop.f32.mrf.mxu0
      %v9246 = vadd.f32 0.0, %v9245
      %9247 = vdwg.mxu0
      %v9248 = vadd.f32 %v8202, %v8865
      %v9249 = vadd.f32 %v8203, %v8868
      %v9250 = vadd.f32 %v8204, %v8871
      %v9251 = vadd.f32 %v8205, %v8874
      %v9252 = vadd.f32 %v8206, %v8877
      %v9253 = vadd.f32 %v8207, %v8880
      %v9254 = vadd.f32 %v8208, %v8883
      %v9255 = vadd.f32 %v8209, %v8886
      %v9256 = vadd.f32 %v8210, %v8889
      %v9257 = vadd.f32 %v8211, %v8892
      %v9258 = vadd.f32 %v8212, %v8895
      %v9259 = vadd.f32 %v8213, %v8898
      %v9260 = vadd.f32 %v8214, %v8901
      %v9261 = vadd.f32 %v8215, %v8904
      %v9262 = vadd.f32 %v8216, %v8907
      %v9263 = vadd.f32 %v8217, %v8910
      %v9264 = vadd.f32 %v8218, %v8913
      %v9265 = vadd.f32 %v8219, %v8916
      %v9266 = vadd.f32 %v8220, %v8919
      %v9267 = vadd.f32 %v8221, %v8922
      %v9268 = vadd.f32 %v8222, %v8925
      %v9269 = vadd.f32 %v8223, %v8928
      %v9270 = vadd.f32 %v8224, %v8931
      %v9271 = vadd.f32 %v8225, %v8934
      %v9272 = vadd.f32 %v8226, %v8937
      %v9273 = vadd.f32 %v8227, %v8940
      %v9274 = vadd.f32 %v8228, %v8943
      %v9275 = vadd.f32 %v8229, %v8946
      %v9276 = vadd.f32 %v8230, %v8949
      %v9277 = vadd.f32 %v8231, %v8952
      %v9278 = vadd.f32 %v8232, %v8955
      %v9279 = vadd.f32 %v8233, %v8958
      %v9280 = vadd.f32 %v8234, %v8961
      %v9281 = vadd.f32 %v8235, %v8964
      %v9282 = vadd.f32 %v8236, %v8967
      %v9283 = vadd.f32 %v8237, %v8970
      %v9284 = vadd.f32 %v8238, %v8973
      %v9285 = vadd.f32 %v8239, %v8976
      %v9286 = vadd.f32 %v8240, %v8979
      %v9287 = vadd.f32 %v8241, %v8982
      %v9288 = vadd.f32 %v8242, %v8985
      %v9289 = vadd.f32 %v8243, %v8988
      %v9290 = vadd.f32 %v8244, %v8991
      %v9291 = vadd.f32 %v8245, %v8994
      %v9292 = vadd.f32 %v8246, %v8997
      %v9293 = vadd.f32 %v8247, %v9000
      %v9294 = vadd.f32 %v8248, %v9003
      %v9295 = vadd.f32 %v8249, %v9006
      %v9296 = vadd.f32 %v8250, %v9009
      %v9297 = vadd.f32 %v8251, %v9012
      %v9298 = vadd.f32 %v8252, %v9015
      %v9299 = vadd.f32 %v8253, %v9018
      %v9300 = vadd.f32 %v8254, %v9021
      %v9301 = vadd.f32 %v8255, %v9024
      %v9302 = vadd.f32 %v8256, %v9027
      %v9303 = vadd.f32 %v8257, %v9030
      %v9304 = vadd.f32 %v8258, %v9033
      %v9305 = vadd.f32 %v8259, %v9036
      %v9306 = vadd.f32 %v8260, %v9039
      %v9307 = vadd.f32 %v8261, %v9042
      %v9308 = vadd.f32 %v8262, %v9045
      %v9309 = vadd.f32 %v8263, %v9048
      %v9310 = vadd.f32 %v8264, %v9051
      %v9311 = vadd.f32 %v8265, %v9054
      %v9312 = vadd.f32 %v8266, %v9057
      %v9313 = vadd.f32 %v8267, %v9060
      %v9314 = vadd.f32 %v8268, %v9063
      %v9315 = vadd.f32 %v8269, %v9066
      %v9316 = vadd.f32 %v8270, %v9069
      %v9317 = vadd.f32 %v8271, %v9072
      %v9318 = vadd.f32 %v8272, %v9075
      %v9319 = vadd.f32 %v8273, %v9078
      %v9320 = vadd.f32 %v8274, %v9081
      %v9321 = vadd.f32 %v8275, %v9084
      %v9322 = vadd.f32 %v8276, %v9087
      %v9323 = vadd.f32 %v8277, %v9090
      %v9324 = vadd.f32 %v8278, %v9093
      %v9325 = vadd.f32 %v8279, %v9096
      %v9326 = vadd.f32 %v8280, %v9099
      %v9327 = vadd.f32 %v8281, %v9102
      %v9328 = vadd.f32 %v8282, %v9105
      %v9329 = vadd.f32 %v8283, %v9108
      %v9330 = vadd.f32 %v8284, %v9111
      %v9331 = vadd.f32 %v8285, %v9114
      %v9332 = vadd.f32 %v8286, %v9117
      %v9333 = vadd.f32 %v8287, %v9120
      %v9334 = vadd.f32 %v8288, %v9123
      %v9335 = vadd.f32 %v8289, %v9126
      %v9336 = vadd.f32 %v8290, %v9129
      %v9337 = vadd.f32 %v8291, %v9132
      %v9338 = vadd.f32 %v8292, %v9135
      %v9339 = vadd.f32 %v8293, %v9138
      %v9340 = vadd.f32 %v8294, %v9141
      %v9341 = vadd.f32 %v8295, %v9144
      %v9342 = vadd.f32 %v8296, %v9147
      %v9343 = vadd.f32 %v8297, %v9150
      %v9344 = vadd.f32 %v8298, %v9153
      %v9345 = vadd.f32 %v8299, %v9156
      %v9346 = vadd.f32 %v8300, %v9159
      %v9347 = vadd.f32 %v8301, %v9162
      %v9348 = vadd.f32 %v8302, %v9165
      %v9349 = vadd.f32 %v8303, %v9168
      %v9350 = vadd.f32 %v8304, %v9171
      %v9351 = vadd.f32 %v8305, %v9174
      %v9352 = vadd.f32 %v8306, %v9177
      %v9353 = vadd.f32 %v8307, %v9180
      %v9354 = vadd.f32 %v8308, %v9183
      %v9355 = vadd.f32 %v8309, %v9186
      %v9356 = vadd.f32 %v8310, %v9189
      %v9357 = vadd.f32 %v8311, %v9192
      %v9358 = vadd.f32 %v8312, %v9195
      %v9359 = vadd.f32 %v8313, %v9198
      %v9360 = vadd.f32 %v8314, %v9201
      %v9361 = vadd.f32 %v8315, %v9204
      %v9362 = vadd.f32 %v8316, %v9207
      %v9363 = vadd.f32 %v8317, %v9210
      %v9364 = vadd.f32 %v8318, %v9213
      %v9365 = vadd.f32 %v8319, %v9216
      %v9366 = vadd.f32 %v8320, %v9219
      %v9367 = vadd.f32 %v8321, %v9222
      %v9368 = vadd.f32 %v8322, %v9225
      %v9369 = vadd.f32 %v8323, %v9228
      %v9370 = vadd.f32 %v8324, %v9231
      %v9371 = vadd.f32 %v8325, %v9234
      %v9372 = vadd.f32 %v8326, %v9237
      %v9373 = vadd.f32 %v8327, %v9240
      %v9374 = vadd.f32 %v8328, %v9243
      %v9375 = vadd.f32 %v8329, %v9246
      %vm9376 = vcmask 64512
      %9377 = vst.msk [vmem:[%s208] sm:$0xff] %vm9376, %v9248
      %9378 = vst.msk [vmem:[%s208 + $0x8] sm:$0xff] %vm9376, %v9249
      %9379 = vst.msk [vmem:[%s208 + $0x10] sm:$0xff] %vm9376, %v9250
      %9380 = vst.msk [vmem:[%s208 + $0x18] sm:$0xff] %vm9376, %v9251
      %9381 = vst.msk [vmem:[%s208 + $0x20] sm:$0xff] %vm9376, %v9252
      %9382 = vst.msk [vmem:[%s208 + $0x28] sm:$0xff] %vm9376, %v9253
      %9383 = vst.msk [vmem:[%s208 + $0x30] sm:$0xff] %vm9376, %v9254
      %9384 = vst.msk [vmem:[%s208 + $0x38] sm:$0xff] %vm9376, %v9255
      %9385 = vst.msk [vmem:[%s208 + $0x40] sm:$0xff] %vm9376, %v9256
      %9386 = vst.msk [vmem:[%s208 + $0x48] sm:$0xff] %vm9376, %v9257
      %9387 = vst.msk [vmem:[%s208 + $0x50] sm:$0xff] %vm9376, %v9258
      %9388 = vst.msk [vmem:[%s208 + $0x58] sm:$0xff] %vm9376, %v9259
      %9389 = vst.msk [vmem:[%s208 + $0x60] sm:$0xff] %vm9376, %v9260
      %9390 = vst.msk [vmem:[%s208 + $0x68] sm:$0xff] %vm9376, %v9261
      %9391 = vst.msk [vmem:[%s208 + $0x70] sm:$0xff] %vm9376, %v9262
      %9392 = vst.msk [vmem:[%s208 + $0x78] sm:$0xff] %vm9376, %v9263
      %9393 = vst.msk [vmem:[%s208 + $0x80] sm:$0xff] %vm9376, %v9264
      %9394 = vst.msk [vmem:[%s208 + $0x88] sm:$0xff] %vm9376, %v9265
      %9395 = vst.msk [vmem:[%s208 + $0x90] sm:$0xff] %vm9376, %v9266
      %9396 = vst.msk [vmem:[%s208 + $0x98] sm:$0xff] %vm9376, %v9267
      %9397 = vst.msk [vmem:[%s208 + $0xa0] sm:$0xff] %vm9376, %v9268
      %9398 = vst.msk [vmem:[%s208 + $0xa8] sm:$0xff] %vm9376, %v9269
      %9399 = vst.msk [vmem:[%s208 + $0xb0] sm:$0xff] %vm9376, %v9270
      %9400 = vst.msk [vmem:[%s208 + $0xb8] sm:$0xff] %vm9376, %v9271
      %9401 = vst.msk [vmem:[%s208 + $0xc0] sm:$0xff] %vm9376, %v9272
      %9402 = vst.msk [vmem:[%s208 + $0xc8] sm:$0xff] %vm9376, %v9273
      %9403 = vst.msk [vmem:[%s208 + $0xd0] sm:$0xff] %vm9376, %v9274
      %9404 = vst.msk [vmem:[%s208 + $0xd8] sm:$0xff] %vm9376, %v9275
      %9405 = vst.msk [vmem:[%s208 + $0xe0] sm:$0xff] %vm9376, %v9276
      %9406 = vst.msk [vmem:[%s208 + $0xe8] sm:$0xff] %vm9376, %v9277
      %9407 = vst.msk [vmem:[%s208 + $0xf0] sm:$0xff] %vm9376, %v9278
      %9408 = vst.msk [vmem:[%s208 + $0xf8] sm:$0xff] %vm9376, %v9279
      %9409 = vst.msk [vmem:[%s208 + $0x100] sm:$0xff] %vm9376, %v9280
      %9410 = vst.msk [vmem:[%s208 + $0x108] sm:$0xff] %vm9376, %v9281
      %9411 = vst.msk [vmem:[%s208 + $0x110] sm:$0xff] %vm9376, %v9282
      %9412 = vst.msk [vmem:[%s208 + $0x118] sm:$0xff] %vm9376, %v9283
      %9413 = vst.msk [vmem:[%s208 + $0x120] sm:$0xff] %vm9376, %v9284
      %9414 = vst.msk [vmem:[%s208 + $0x128] sm:$0xff] %vm9376, %v9285
      %9415 = vst.msk [vmem:[%s208 + $0x130] sm:$0xff] %vm9376, %v9286
      %9416 = vst.msk [vmem:[%s208 + $0x138] sm:$0xff] %vm9376, %v9287
      %9417 = vst.msk [vmem:[%s208 + $0x140] sm:$0xff] %vm9376, %v9288
      %9418 = vst.msk [vmem:[%s208 + $0x148] sm:$0xff] %vm9376, %v9289
      %9419 = vst.msk [vmem:[%s208 + $0x150] sm:$0xff] %vm9376, %v9290
      %9420 = vst.msk [vmem:[%s208 + $0x158] sm:$0xff] %vm9376, %v9291
      %9421 = vst.msk [vmem:[%s208 + $0x160] sm:$0xff] %vm9376, %v9292
      %9422 = vst.msk [vmem:[%s208 + $0x168] sm:$0xff] %vm9376, %v9293
      %9423 = vst.msk [vmem:[%s208 + $0x170] sm:$0xff] %vm9376, %v9294
      %9424 = vst.msk [vmem:[%s208 + $0x178] sm:$0xff] %vm9376, %v9295
      %9425 = vst.msk [vmem:[%s208 + $0x180] sm:$0xff] %vm9376, %v9296
      %9426 = vst.msk [vmem:[%s208 + $0x188] sm:$0xff] %vm9376, %v9297
      %9427 = vst.msk [vmem:[%s208 + $0x190] sm:$0xff] %vm9376, %v9298
      %9428 = vst.msk [vmem:[%s208 + $0x198] sm:$0xff] %vm9376, %v9299
      %9429 = vst.msk [vmem:[%s208 + $0x1a0] sm:$0xff] %vm9376, %v9300
      %9430 = vst.msk [vmem:[%s208 + $0x1a8] sm:$0xff] %vm9376, %v9301
      %9431 = vst.msk [vmem:[%s208 + $0x1b0] sm:$0xff] %vm9376, %v9302
      %9432 = vst.msk [vmem:[%s208 + $0x1b8] sm:$0xff] %vm9376, %v9303
      %9433 = vst.msk [vmem:[%s208 + $0x1c0] sm:$0xff] %vm9376, %v9304
      %9434 = vst.msk [vmem:[%s208 + $0x1c8] sm:$0xff] %vm9376, %v9305
      %9435 = vst.msk [vmem:[%s208 + $0x1d0] sm:$0xff] %vm9376, %v9306
      %9436 = vst.msk [vmem:[%s208 + $0x1d8] sm:$0xff] %vm9376, %v9307
      %9437 = vst.msk [vmem:[%s208 + $0x1e0] sm:$0xff] %vm9376, %v9308
      %9438 = vst.msk [vmem:[%s208 + $0x1e8] sm:$0xff] %vm9376, %v9309
      %9439 = vst.msk [vmem:[%s208 + $0x1f0] sm:$0xff] %vm9376, %v9310
      %9440 = vst.msk [vmem:[%s208 + $0x1f8] sm:$0xff] %vm9376, %v9311
      %9441 = vst.msk [vmem:[%s208 + $0x200] sm:$0xff] %vm9376, %v9312
      %9442 = vst.msk [vmem:[%s208 + $0x208] sm:$0xff] %vm9376, %v9313
      %9443 = vst.msk [vmem:[%s208 + $0x210] sm:$0xff] %vm9376, %v9314
      %9444 = vst.msk [vmem:[%s208 + $0x218] sm:$0xff] %vm9376, %v9315
      %9445 = vst.msk [vmem:[%s208 + $0x220] sm:$0xff] %vm9376, %v9316
      %9446 = vst.msk [vmem:[%s208 + $0x228] sm:$0xff] %vm9376, %v9317
      %9447 = vst.msk [vmem:[%s208 + $0x230] sm:$0xff] %vm9376, %v9318
      %9448 = vst.msk [vmem:[%s208 + $0x238] sm:$0xff] %vm9376, %v9319
      %9449 = vst.msk [vmem:[%s208 + $0x240] sm:$0xff] %vm9376, %v9320
      %9450 = vst.msk [vmem:[%s208 + $0x248] sm:$0xff] %vm9376, %v9321
      %9451 = vst.msk [vmem:[%s208 + $0x250] sm:$0xff] %vm9376, %v9322
      %9452 = vst.msk [vmem:[%s208 + $0x258] sm:$0xff] %vm9376, %v9323
      %9453 = vst.msk [vmem:[%s208 + $0x260] sm:$0xff] %vm9376, %v9324
      %9454 = vst.msk [vmem:[%s208 + $0x268] sm:$0xff] %vm9376, %v9325
      %9455 = vst.msk [vmem:[%s208 + $0x270] sm:$0xff] %vm9376, %v9326
      %9456 = vst.msk [vmem:[%s208 + $0x278] sm:$0xff] %vm9376, %v9327
      %9457 = vst.msk [vmem:[%s208 + $0x280] sm:$0xff] %vm9376, %v9328
      %9458 = vst.msk [vmem:[%s208 + $0x288] sm:$0xff] %vm9376, %v9329
      %9459 = vst.msk [vmem:[%s208 + $0x290] sm:$0xff] %vm9376, %v9330
      %9460 = vst.msk [vmem:[%s208 + $0x298] sm:$0xff] %vm9376, %v9331
      %9461 = vst.msk [vmem:[%s208 + $0x2a0] sm:$0xff] %vm9376, %v9332
      %9462 = vst.msk [vmem:[%s208 + $0x2a8] sm:$0xff] %vm9376, %v9333
      %9463 = vst.msk [vmem:[%s208 + $0x2b0] sm:$0xff] %vm9376, %v9334
      %9464 = vst.msk [vmem:[%s208 + $0x2b8] sm:$0xff] %vm9376, %v9335
      %9465 = vst.msk [vmem:[%s208 + $0x2c0] sm:$0xff] %vm9376, %v9336
      %9466 = vst.msk [vmem:[%s208 + $0x2c8] sm:$0xff] %vm9376, %v9337
      %9467 = vst.msk [vmem:[%s208 + $0x2d0] sm:$0xff] %vm9376, %v9338
      %9468 = vst.msk [vmem:[%s208 + $0x2d8] sm:$0xff] %vm9376, %v9339
      %9469 = vst.msk [vmem:[%s208 + $0x2e0] sm:$0xff] %vm9376, %v9340
      %9470 = vst.msk [vmem:[%s208 + $0x2e8] sm:$0xff] %vm9376, %v9341
      %9471 = vst.msk [vmem:[%s208 + $0x2f0] sm:$0xff] %vm9376, %v9342
      %9472 = vst.msk [vmem:[%s208 + $0x2f8] sm:$0xff] %vm9376, %v9343
      %9473 = vst.msk [vmem:[%s208 + $0x300] sm:$0xff] %vm9376, %v9344
      %9474 = vst.msk [vmem:[%s208 + $0x308] sm:$0xff] %vm9376, %v9345
      %9475 = vst.msk [vmem:[%s208 + $0x310] sm:$0xff] %vm9376, %v9346
      %9476 = vst.msk [vmem:[%s208 + $0x318] sm:$0xff] %vm9376, %v9347
      %9477 = vst.msk [vmem:[%s208 + $0x320] sm:$0xff] %vm9376, %v9348
      %9478 = vst.msk [vmem:[%s208 + $0x328] sm:$0xff] %vm9376, %v9349
      %9479 = vst.msk [vmem:[%s208 + $0x330] sm:$0xff] %vm9376, %v9350
      %9480 = vst.msk [vmem:[%s208 + $0x338] sm:$0xff] %vm9376, %v9351
      %9481 = vst.msk [vmem:[%s208 + $0x340] sm:$0xff] %vm9376, %v9352
      %9482 = vst.msk [vmem:[%s208 + $0x348] sm:$0xff] %vm9376, %v9353
      %9483 = vst.msk [vmem:[%s208 + $0x350] sm:$0xff] %vm9376, %v9354
      %9484 = vst.msk [vmem:[%s208 + $0x358] sm:$0xff] %vm9376, %v9355
      %9485 = vst.msk [vmem:[%s208 + $0x360] sm:$0xff] %vm9376, %v9356
      %9486 = vst.msk [vmem:[%s208 + $0x368] sm:$0xff] %vm9376, %v9357
      %9487 = vst.msk [vmem:[%s208 + $0x370] sm:$0xff] %vm9376, %v9358
      %9488 = vst.msk [vmem:[%s208 + $0x378] sm:$0xff] %vm9376, %v9359
      %9489 = vst.msk [vmem:[%s208 + $0x380] sm:$0xff] %vm9376, %v9360
      %9490 = vst.msk [vmem:[%s208 + $0x388] sm:$0xff] %vm9376, %v9361
      %9491 = vst.msk [vmem:[%s208 + $0x390] sm:$0xff] %vm9376, %v9362
      %9492 = vst.msk [vmem:[%s208 + $0x398] sm:$0xff] %vm9376, %v9363
      %9493 = vst.msk [vmem:[%s208 + $0x3a0] sm:$0xff] %vm9376, %v9364
      %9494 = vst.msk [vmem:[%s208 + $0x3a8] sm:$0xff] %vm9376, %v9365
      %9495 = vst.msk [vmem:[%s208 + $0x3b0] sm:$0xff] %vm9376, %v9366
      %9496 = vst.msk [vmem:[%s208 + $0x3b8] sm:$0xff] %vm9376, %v9367
      %9497 = vst.msk [vmem:[%s208 + $0x3c0] sm:$0xff] %vm9376, %v9368
      %9498 = vst.msk [vmem:[%s208 + $0x3c8] sm:$0xff] %vm9376, %v9369
      %9499 = vst.msk [vmem:[%s208 + $0x3d0] sm:$0xff] %vm9376, %v9370
      %9500 = vst.msk [vmem:[%s208 + $0x3d8] sm:$0xff] %vm9376, %v9371
      %9501 = vst.msk [vmem:[%s208 + $0x3e0] sm:$0xff] %vm9376, %v9372
      %9502 = vst.msk [vmem:[%s208 + $0x3e8] sm:$0xff] %vm9376, %v9373
      %9503 = vst.msk [vmem:[%s208 + $0x3f0] sm:$0xff] %vm9376, %v9374
      %9504 = vst.msk [vmem:[%s208 + $0x3f8] sm:$0xff] %vm9376, %v9375
      %v9505 = vsel %vm9376, %v9248, 0.0
      %v9506 = vsel %vm9376, %v9249, 0.0
      %v9507 = vadd.f32 %v9505, %v9506
      %v9508 = vsel %vm9376, %v9250, 0.0
      %v9509 = vadd.f32 %v9507, %v9508
      %v9510 = vsel %vm9376, %v9251, 0.0
      %v9511 = vadd.f32 %v9509, %v9510
      %v9512 = vsel %vm9376, %v9252, 0.0
      %v9513 = vadd.f32 %v9511, %v9512
      %v9514 = vsel %vm9376, %v9253, 0.0
      %v9515 = vadd.f32 %v9513, %v9514
      %v9516 = vsel %vm9376, %v9254, 0.0
      %v9517 = vadd.f32 %v9515, %v9516
      %v9518 = vsel %vm9376, %v9255, 0.0
      %v9519 = vadd.f32 %v9517, %v9518
      %v9520 = vsel %vm9376, %v9256, 0.0
      %v9521 = vadd.f32 %v9519, %v9520
      %v9522 = vsel %vm9376, %v9257, 0.0
      %v9523 = vadd.f32 %v9521, %v9522
      %v9524 = vsel %vm9376, %v9258, 0.0
      %v9525 = vadd.f32 %v9523, %v9524
      %v9526 = vsel %vm9376, %v9259, 0.0
      %v9527 = vadd.f32 %v9525, %v9526
      %v9528 = vsel %vm9376, %v9260, 0.0
      %v9529 = vadd.f32 %v9527, %v9528
      %v9530 = vsel %vm9376, %v9261, 0.0
      %v9531 = vadd.f32 %v9529, %v9530
      %v9532 = vsel %vm9376, %v9262, 0.0
      %v9533 = vadd.f32 %v9531, %v9532
      %v9534 = vsel %vm9376, %v9263, 0.0
      %v9535 = vadd.f32 %v9533, %v9534
      %v9536 = vsel %vm9376, %v9264, 0.0
      %v9537 = vadd.f32 %v9535, %v9536
      %v9538 = vsel %vm9376, %v9265, 0.0
      %v9539 = vadd.f32 %v9537, %v9538
      %v9540 = vsel %vm9376, %v9266, 0.0
      %v9541 = vadd.f32 %v9539, %v9540
      %v9542 = vsel %vm9376, %v9267, 0.0
      %v9543 = vadd.f32 %v9541, %v9542
      %v9544 = vsel %vm9376, %v9268, 0.0
      %v9545 = vadd.f32 %v9543, %v9544
      %v9546 = vsel %vm9376, %v9269, 0.0
      %v9547 = vadd.f32 %v9545, %v9546
      %v9548 = vsel %vm9376, %v9270, 0.0
      %v9549 = vadd.f32 %v9547, %v9548
      %v9550 = vsel %vm9376, %v9271, 0.0
      %v9551 = vadd.f32 %v9549, %v9550
      %v9552 = vsel %vm9376, %v9272, 0.0
      %v9553 = vadd.f32 %v9551, %v9552
      %v9554 = vsel %vm9376, %v9273, 0.0
      %v9555 = vadd.f32 %v9553, %v9554
      %v9556 = vsel %vm9376, %v9274, 0.0
      %v9557 = vadd.f32 %v9555, %v9556
      %v9558 = vsel %vm9376, %v9275, 0.0
      %v9559 = vadd.f32 %v9557, %v9558
      %v9560 = vsel %vm9376, %v9276, 0.0
      %v9561 = vadd.f32 %v9559, %v9560
      %v9562 = vsel %vm9376, %v9277, 0.0
      %v9563 = vadd.f32 %v9561, %v9562
      %v9564 = vsel %vm9376, %v9278, 0.0
      %v9565 = vadd.f32 %v9563, %v9564
      %v9566 = vsel %vm9376, %v9279, 0.0
      %v9567 = vadd.f32 %v9565, %v9566
      %v9568 = vsel %vm9376, %v9280, 0.0
      %v9569 = vadd.f32 %v9567, %v9568
      %v9570 = vsel %vm9376, %v9281, 0.0
      %v9571 = vadd.f32 %v9569, %v9570
      %v9572 = vsel %vm9376, %v9282, 0.0
      %v9573 = vadd.f32 %v9571, %v9572
      %v9574 = vsel %vm9376, %v9283, 0.0
      %v9575 = vadd.f32 %v9573, %v9574
      %v9576 = vsel %vm9376, %v9284, 0.0
      %v9577 = vadd.f32 %v9575, %v9576
      %v9578 = vsel %vm9376, %v9285, 0.0
      %v9579 = vadd.f32 %v9577, %v9578
      %v9580 = vsel %vm9376, %v9286, 0.0
      %v9581 = vadd.f32 %v9579, %v9580
      %v9582 = vsel %vm9376, %v9287, 0.0
      %v9583 = vadd.f32 %v9581, %v9582
      %v9584 = vsel %vm9376, %v9288, 0.0
      %v9585 = vadd.f32 %v9583, %v9584
      %v9586 = vsel %vm9376, %v9289, 0.0
      %v9587 = vadd.f32 %v9585, %v9586
      %v9588 = vsel %vm9376, %v9290, 0.0
      %v9589 = vadd.f32 %v9587, %v9588
      %v9590 = vsel %vm9376, %v9291, 0.0
      %v9591 = vadd.f32 %v9589, %v9590
      %v9592 = vsel %vm9376, %v9292, 0.0
      %v9593 = vadd.f32 %v9591, %v9592
      %v9594 = vsel %vm9376, %v9293, 0.0
      %v9595 = vadd.f32 %v9593, %v9594
      %v9596 = vsel %vm9376, %v9294, 0.0
      %v9597 = vadd.f32 %v9595, %v9596
      %v9598 = vsel %vm9376, %v9295, 0.0
      %v9599 = vadd.f32 %v9597, %v9598
      %v9600 = vsel %vm9376, %v9296, 0.0
      %v9601 = vadd.f32 %v9599, %v9600
      %v9602 = vsel %vm9376, %v9297, 0.0
      %v9603 = vadd.f32 %v9601, %v9602
      %v9604 = vsel %vm9376, %v9298, 0.0
      %v9605 = vadd.f32 %v9603, %v9604
      %v9606 = vsel %vm9376, %v9299, 0.0
      %v9607 = vadd.f32 %v9605, %v9606
      %v9608 = vsel %vm9376, %v9300, 0.0
      %v9609 = vadd.f32 %v9607, %v9608
      %v9610 = vsel %vm9376, %v9301, 0.0
      %v9611 = vadd.f32 %v9609, %v9610
      %v9612 = vsel %vm9376, %v9302, 0.0
      %v9613 = vadd.f32 %v9611, %v9612
      %v9614 = vsel %vm9376, %v9303, 0.0
      %v9615 = vadd.f32 %v9613, %v9614
      %v9616 = vsel %vm9376, %v9304, 0.0
      %v9617 = vadd.f32 %v9615, %v9616
      %v9618 = vsel %vm9376, %v9305, 0.0
      %v9619 = vadd.f32 %v9617, %v9618
      %v9620 = vsel %vm9376, %v9306, 0.0
      %v9621 = vadd.f32 %v9619, %v9620
      %v9622 = vsel %vm9376, %v9307, 0.0
      %v9623 = vadd.f32 %v9621, %v9622
      %v9624 = vsel %vm9376, %v9308, 0.0
      %v9625 = vadd.f32 %v9623, %v9624
      %v9626 = vsel %vm9376, %v9309, 0.0
      %v9627 = vadd.f32 %v9625, %v9626
      %v9628 = vsel %vm9376, %v9310, 0.0
      %v9629 = vadd.f32 %v9627, %v9628
      %v9630 = vsel %vm9376, %v9311, 0.0
      %v9631 = vadd.f32 %v9629, %v9630
      %v9632 = vsel %vm9376, %v9312, 0.0
      %v9633 = vadd.f32 %v9631, %v9632
      %v9634 = vsel %vm9376, %v9313, 0.0
      %v9635 = vadd.f32 %v9633, %v9634
      %v9636 = vsel %vm9376, %v9314, 0.0
      %v9637 = vadd.f32 %v9635, %v9636
      %v9638 = vsel %vm9376, %v9315, 0.0
      %v9639 = vadd.f32 %v9637, %v9638
      %v9640 = vsel %vm9376, %v9316, 0.0
      %v9641 = vadd.f32 %v9639, %v9640
      %v9642 = vsel %vm9376, %v9317, 0.0
      %v9643 = vadd.f32 %v9641, %v9642
      %v9644 = vsel %vm9376, %v9318, 0.0
      %v9645 = vadd.f32 %v9643, %v9644
      %v9646 = vsel %vm9376, %v9319, 0.0
      %v9647 = vadd.f32 %v9645, %v9646
      %v9648 = vsel %vm9376, %v9320, 0.0
      %v9649 = vadd.f32 %v9647, %v9648
      %v9650 = vsel %vm9376, %v9321, 0.0
      %v9651 = vadd.f32 %v9649, %v9650
      %v9652 = vsel %vm9376, %v9322, 0.0
      %v9653 = vadd.f32 %v9651, %v9652
      %v9654 = vsel %vm9376, %v9323, 0.0
      %v9655 = vadd.f32 %v9653, %v9654
      %v9656 = vsel %vm9376, %v9324, 0.0
      %v9657 = vadd.f32 %v9655, %v9656
      %v9658 = vsel %vm9376, %v9325, 0.0
      %v9659 = vadd.f32 %v9657, %v9658
      %v9660 = vsel %vm9376, %v9326, 0.0
      %v9661 = vadd.f32 %v9659, %v9660
      %v9662 = vsel %vm9376, %v9327, 0.0
      %v9663 = vadd.f32 %v9661, %v9662
      %v9664 = vsel %vm9376, %v9328, 0.0
      %v9665 = vadd.f32 %v9663, %v9664
      %v9666 = vsel %vm9376, %v9329, 0.0
      %v9667 = vadd.f32 %v9665, %v9666
      %v9668 = vsel %vm9376, %v9330, 0.0
      %v9669 = vadd.f32 %v9667, %v9668
      %v9670 = vsel %vm9376, %v9331, 0.0
      %v9671 = vadd.f32 %v9669, %v9670
      %v9672 = vsel %vm9376, %v9332, 0.0
      %v9673 = vadd.f32 %v9671, %v9672
      %v9674 = vsel %vm9376, %v9333, 0.0
      %v9675 = vadd.f32 %v9673, %v9674
      %v9676 = vsel %vm9376, %v9334, 0.0
      %v9677 = vadd.f32 %v9675, %v9676
      %v9678 = vsel %vm9376, %v9335, 0.0
      %v9679 = vadd.f32 %v9677, %v9678
      %v9680 = vsel %vm9376, %v9336, 0.0
      %v9681 = vadd.f32 %v9679, %v9680
      %v9682 = vsel %vm9376, %v9337, 0.0
      %v9683 = vadd.f32 %v9681, %v9682
      %v9684 = vsel %vm9376, %v9338, 0.0
      %v9685 = vadd.f32 %v9683, %v9684
      %v9686 = vsel %vm9376, %v9339, 0.0
      %v9687 = vadd.f32 %v9685, %v9686
      %v9688 = vsel %vm9376, %v9340, 0.0
      %v9689 = vadd.f32 %v9687, %v9688
      %v9690 = vsel %vm9376, %v9341, 0.0
      %v9691 = vadd.f32 %v9689, %v9690
      %v9692 = vsel %vm9376, %v9342, 0.0
      %v9693 = vadd.f32 %v9691, %v9692
      %v9694 = vsel %vm9376, %v9343, 0.0
      %v9695 = vadd.f32 %v9693, %v9694
      %v9696 = vsel %vm9376, %v9344, 0.0
      %v9697 = vadd.f32 %v9695, %v9696
      %v9698 = vsel %vm9376, %v9345, 0.0
      %v9699 = vadd.f32 %v9697, %v9698
      %v9700 = vsel %vm9376, %v9346, 0.0
      %v9701 = vadd.f32 %v9699, %v9700
      %v9702 = vsel %vm9376, %v9347, 0.0
      %v9703 = vadd.f32 %v9701, %v9702
      %v9704 = vsel %vm9376, %v9348, 0.0
      %v9705 = vadd.f32 %v9703, %v9704
      %v9706 = vsel %vm9376, %v9349, 0.0
      %v9707 = vadd.f32 %v9705, %v9706
      %v9708 = vsel %vm9376, %v9350, 0.0
      %v9709 = vadd.f32 %v9707, %v9708
      %v9710 = vsel %vm9376, %v9351, 0.0
      %v9711 = vadd.f32 %v9709, %v9710
      %v9712 = vsel %vm9376, %v9352, 0.0
      %v9713 = vadd.f32 %v9711, %v9712
      %v9714 = vsel %vm9376, %v9353, 0.0
      %v9715 = vadd.f32 %v9713, %v9714
      %v9716 = vsel %vm9376, %v9354, 0.0
      %v9717 = vadd.f32 %v9715, %v9716
      %v9718 = vsel %vm9376, %v9355, 0.0
      %v9719 = vadd.f32 %v9717, %v9718
      %v9720 = vsel %vm9376, %v9356, 0.0
      %v9721 = vadd.f32 %v9719, %v9720
      %v9722 = vsel %vm9376, %v9357, 0.0
      %v9723 = vadd.f32 %v9721, %v9722
      %v9724 = vsel %vm9376, %v9358, 0.0
      %v9725 = vadd.f32 %v9723, %v9724
      %v9726 = vsel %vm9376, %v9359, 0.0
      %v9727 = vadd.f32 %v9725, %v9726
      %v9728 = vsel %vm9376, %v9360, 0.0
      %v9729 = vadd.f32 %v9727, %v9728
      %v9730 = vsel %vm9376, %v9361, 0.0
      %v9731 = vadd.f32 %v9729, %v9730
      %v9732 = vsel %vm9376, %v9362, 0.0
      %v9733 = vadd.f32 %v9731, %v9732
      %v9734 = vsel %vm9376, %v9363, 0.0
      %v9735 = vadd.f32 %v9733, %v9734
      %v9736 = vsel %vm9376, %v9364, 0.0
      %v9737 = vadd.f32 %v9735, %v9736
      %v9738 = vsel %vm9376, %v9365, 0.0
      %v9739 = vadd.f32 %v9737, %v9738
      %v9740 = vsel %vm9376, %v9366, 0.0
      %v9741 = vadd.f32 %v9739, %v9740
      %v9742 = vsel %vm9376, %v9367, 0.0
      %v9743 = vadd.f32 %v9741, %v9742
      %v9744 = vsel %vm9376, %v9368, 0.0
      %v9745 = vadd.f32 %v9743, %v9744
      %v9746 = vsel %vm9376, %v9369, 0.0
      %v9747 = vadd.f32 %v9745, %v9746
      %v9748 = vsel %vm9376, %v9370, 0.0
      %v9749 = vadd.f32 %v9747, %v9748
      %v9750 = vsel %vm9376, %v9371, 0.0
      %v9751 = vadd.f32 %v9749, %v9750
      %v9752 = vsel %vm9376, %v9372, 0.0
      %v9753 = vadd.f32 %v9751, %v9752
      %v9754 = vsel %vm9376, %v9373, 0.0
      %v9755 = vadd.f32 %v9753, %v9754
      %v9756 = vsel %vm9376, %v9374, 0.0
      %v9757 = vadd.f32 %v9755, %v9756
      %v9758 = vsel %vm9376, %v9375, 0.0
      %v9759 = vadd.f32 %v9757, %v9758
      %v9760 = vrot.slane %v9759, 4
      %v9761 = vadd.f32 %v9759, %v9760
      %v9762 = vrot.slane %v9761, 2
      %v9763 = vadd.f32 %v9761, %v9762
      %v9764 = vrot.slane %v9763, 1
      %v9765 = vadd.f32 %v9763, %v9764
      %vm9766 = vcmask 57344
      %9767 = vst.msk [vmem:[%s211] sm:$0x1] %vm9766, %v9765
      %v9768 = vmul.f32 %v9248, %v9248
      %v9769 = vmul.f32 %v9249, %v9249
      %v9770 = vmul.f32 %v9250, %v9250
      %v9771 = vmul.f32 %v9251, %v9251
      %v9772 = vmul.f32 %v9252, %v9252
      %v9773 = vmul.f32 %v9253, %v9253
      %v9774 = vmul.f32 %v9254, %v9254
      %v9775 = vmul.f32 %v9255, %v9255
      %v9776 = vmul.f32 %v9256, %v9256
      %v9777 = vmul.f32 %v9257, %v9257
      %v9778 = vmul.f32 %v9258, %v9258
      %v9779 = vmul.f32 %v9259, %v9259
      %v9780 = vmul.f32 %v9260, %v9260
      %v9781 = vmul.f32 %v9261, %v9261
      %v9782 = vmul.f32 %v9262, %v9262
      %v9783 = vmul.f32 %v9263, %v9263
      %v9784 = vmul.f32 %v9264, %v9264
      %v9785 = vmul.f32 %v9265, %v9265
      %v9786 = vmul.f32 %v9266, %v9266
      %v9787 = vmul.f32 %v9267, %v9267
      %v9788 = vmul.f32 %v9268, %v9268
      %v9789 = vmul.f32 %v9269, %v9269
      %v9790 = vmul.f32 %v9270, %v9270
      %v9791 = vmul.f32 %v9271, %v9271
      %v9792 = vmul.f32 %v9272, %v9272
      %v9793 = vmul.f32 %v9273, %v9273
      %v9794 = vmul.f32 %v9274, %v9274
      %v9795 = vmul.f32 %v9275, %v9275
      %v9796 = vmul.f32 %v9276, %v9276
      %v9797 = vmul.f32 %v9277, %v9277
      %v9798 = vmul.f32 %v9278, %v9278
      %v9799 = vmul.f32 %v9279, %v9279
      %v9800 = vmul.f32 %v9280, %v9280
      %v9801 = vmul.f32 %v9281, %v9281
      %v9802 = vmul.f32 %v9282, %v9282
      %v9803 = vmul.f32 %v9283, %v9283
      %v9804 = vmul.f32 %v9284, %v9284
      %v9805 = vmul.f32 %v9285, %v9285
      %v9806 = vmul.f32 %v9286, %v9286
      %v9807 = vmul.f32 %v9287, %v9287
      %v9808 = vmul.f32 %v9288, %v9288
      %v9809 = vmul.f32 %v9289, %v9289
      %v9810 = vmul.f32 %v9290, %v9290
      %v9811 = vmul.f32 %v9291, %v9291
      %v9812 = vmul.f32 %v9292, %v9292
      %v9813 = vmul.f32 %v9293, %v9293
      %v9814 = vmul.f32 %v9294, %v9294
      %v9815 = vmul.f32 %v9295, %v9295
      %v9816 = vmul.f32 %v9296, %v9296
      %v9817 = vmul.f32 %v9297, %v9297
      %v9818 = vmul.f32 %v9298, %v9298
      %v9819 = vmul.f32 %v9299, %v9299
      %v9820 = vmul.f32 %v9300, %v9300
      %v9821 = vmul.f32 %v9301, %v9301
      %v9822 = vmul.f32 %v9302, %v9302
      %v9823 = vmul.f32 %v9303, %v9303
      %v9824 = vmul.f32 %v9304, %v9304
      %v9825 = vmul.f32 %v9305, %v9305
      %v9826 = vmul.f32 %v9306, %v9306
      %v9827 = vmul.f32 %v9307, %v9307
      %v9828 = vmul.f32 %v9308, %v9308
      %v9829 = vmul.f32 %v9309, %v9309
      %v9830 = vmul.f32 %v9310, %v9310
      %v9831 = vmul.f32 %v9311, %v9311
      %v9832 = vmul.f32 %v9312, %v9312
      %v9833 = vmul.f32 %v9313, %v9313
      %v9834 = vmul.f32 %v9314, %v9314
      %v9835 = vmul.f32 %v9315, %v9315
      %v9836 = vmul.f32 %v9316, %v9316
      %v9837 = vmul.f32 %v9317, %v9317
      %v9838 = vmul.f32 %v9318, %v9318
      %v9839 = vmul.f32 %v9319, %v9319
      %v9840 = vmul.f32 %v9320, %v9320
      %v9841 = vmul.f32 %v9321, %v9321
      %v9842 = vmul.f32 %v9322, %v9322
      %v9843 = vmul.f32 %v9323, %v9323
      %v9844 = vmul.f32 %v9324, %v9324
      %v9845 = vmul.f32 %v9325, %v9325
      %v9846 = vmul.f32 %v9326, %v9326
      %v9847 = vmul.f32 %v9327, %v9327
      %v9848 = vmul.f32 %v9328, %v9328
      %v9849 = vmul.f32 %v9329, %v9329
      %v9850 = vmul.f32 %v9330, %v9330
      %v9851 = vmul.f32 %v9331, %v9331
      %v9852 = vmul.f32 %v9332, %v9332
      %v9853 = vmul.f32 %v9333, %v9333
      %v9854 = vmul.f32 %v9334, %v9334
      %v9855 = vmul.f32 %v9335, %v9335
      %v9856 = vmul.f32 %v9336, %v9336
      %v9857 = vmul.f32 %v9337, %v9337
      %v9858 = vmul.f32 %v9338, %v9338
      %v9859 = vmul.f32 %v9339, %v9339
      %v9860 = vmul.f32 %v9340, %v9340
      %v9861 = vmul.f32 %v9341, %v9341
      %v9862 = vmul.f32 %v9342, %v9342
      %v9863 = vmul.f32 %v9343, %v9343
      %v9864 = vmul.f32 %v9344, %v9344
      %v9865 = vmul.f32 %v9345, %v9345
      %v9866 = vmul.f32 %v9346, %v9346
      %v9867 = vmul.f32 %v9347, %v9347
      %v9868 = vmul.f32 %v9348, %v9348
      %v9869 = vmul.f32 %v9349, %v9349
      %v9870 = vmul.f32 %v9350, %v9350
      %v9871 = vmul.f32 %v9351, %v9351
      %v9872 = vmul.f32 %v9352, %v9352
      %v9873 = vmul.f32 %v9353, %v9353
      %v9874 = vmul.f32 %v9354, %v9354
      %v9875 = vmul.f32 %v9355, %v9355
      %v9876 = vmul.f32 %v9356, %v9356
      %v9877 = vmul.f32 %v9357, %v9357
      %v9878 = vmul.f32 %v9358, %v9358
      %v9879 = vmul.f32 %v9359, %v9359
      %v9880 = vmul.f32 %v9360, %v9360
      %v9881 = vmul.f32 %v9361, %v9361
      %v9882 = vmul.f32 %v9362, %v9362
      %v9883 = vmul.f32 %v9363, %v9363
      %v9884 = vmul.f32 %v9364, %v9364
      %v9885 = vmul.f32 %v9365, %v9365
      %v9886 = vmul.f32 %v9366, %v9366
      %v9887 = vmul.f32 %v9367, %v9367
      %v9888 = vmul.f32 %v9368, %v9368
      %v9889 = vmul.f32 %v9369, %v9369
      %v9890 = vmul.f32 %v9370, %v9370
      %v9891 = vmul.f32 %v9371, %v9371
      %v9892 = vmul.f32 %v9372, %v9372
      %v9893 = vmul.f32 %v9373, %v9373
      %v9894 = vmul.f32 %v9374, %v9374
      %v9895 = vmul.f32 %v9375, %v9375
      %v9896 = vsel %vm9376, %v9768, 0.0
      %v9897 = vsel %vm9376, %v9769, 0.0
      %v9898 = vadd.f32 %v9896, %v9897
      %v9899 = vsel %vm9376, %v9770, 0.0
      %v9900 = vadd.f32 %v9898, %v9899
      %v9901 = vsel %vm9376, %v9771, 0.0
      %v9902 = vadd.f32 %v9900, %v9901
      %v9903 = vsel %vm9376, %v9772, 0.0
      %v9904 = vadd.f32 %v9902, %v9903
      %v9905 = vsel %vm9376, %v9773, 0.0
      %v9906 = vadd.f32 %v9904, %v9905
      %v9907 = vsel %vm9376, %v9774, 0.0
      %v9908 = vadd.f32 %v9906, %v9907
      %v9909 = vsel %vm9376, %v9775, 0.0
      %v9910 = vadd.f32 %v9908, %v9909
      %v9911 = vsel %vm9376, %v9776, 0.0
      %v9912 = vadd.f32 %v9910, %v9911
      %v9913 = vsel %vm9376, %v9777, 0.0
      %v9914 = vadd.f32 %v9912, %v9913
      %v9915 = vsel %vm9376, %v9778, 0.0
      %v9916 = vadd.f32 %v9914, %v9915
      %v9917 = vsel %vm9376, %v9779, 0.0
      %v9918 = vadd.f32 %v9916, %v9917
      %v9919 = vsel %vm9376, %v9780, 0.0
      %v9920 = vadd.f32 %v9918, %v9919
      %v9921 = vsel %vm9376, %v9781, 0.0
      %v9922 = vadd.f32 %v9920, %v9921
      %v9923 = vsel %vm9376, %v9782, 0.0
      %v9924 = vadd.f32 %v9922, %v9923
      %v9925 = vsel %vm9376, %v9783, 0.0
      %v9926 = vadd.f32 %v9924, %v9925
      %v9927 = vsel %vm9376, %v9784, 0.0
      %v9928 = vadd.f32 %v9926, %v9927
      %v9929 = vsel %vm9376, %v9785, 0.0
      %v9930 = vadd.f32 %v9928, %v9929
      %v9931 = vsel %vm9376, %v9786, 0.0
      %v9932 = vadd.f32 %v9930, %v9931
      %v9933 = vsel %vm9376, %v9787, 0.0
      %v9934 = vadd.f32 %v9932, %v9933
      %v9935 = vsel %vm9376, %v9788, 0.0
      %v9936 = vadd.f32 %v9934, %v9935
      %v9937 = vsel %vm9376, %v9789, 0.0
      %v9938 = vadd.f32 %v9936, %v9937
      %v9939 = vsel %vm9376, %v9790, 0.0
      %v9940 = vadd.f32 %v9938, %v9939
      %v9941 = vsel %vm9376, %v9791, 0.0
      %v9942 = vadd.f32 %v9940, %v9941
      %v9943 = vsel %vm9376, %v9792, 0.0
      %v9944 = vadd.f32 %v9942, %v9943
      %v9945 = vsel %vm9376, %v9793, 0.0
      %v9946 = vadd.f32 %v9944, %v9945
      %v9947 = vsel %vm9376, %v9794, 0.0
      %v9948 = vadd.f32 %v9946, %v9947
      %v9949 = vsel %vm9376, %v9795, 0.0
      %v9950 = vadd.f32 %v9948, %v9949
      %v9951 = vsel %vm9376, %v9796, 0.0
      %v9952 = vadd.f32 %v9950, %v9951
      %v9953 = vsel %vm9376, %v9797, 0.0
      %v9954 = vadd.f32 %v9952, %v9953
      %v9955 = vsel %vm9376, %v9798, 0.0
      %v9956 = vadd.f32 %v9954, %v9955
      %v9957 = vsel %vm9376, %v9799, 0.0
      %v9958 = vadd.f32 %v9956, %v9957
      %v9959 = vsel %vm9376, %v9800, 0.0
      %v9960 = vadd.f32 %v9958, %v9959
      %v9961 = vsel %vm9376, %v9801, 0.0
      %v9962 = vadd.f32 %v9960, %v9961
      %v9963 = vsel %vm9376, %v9802, 0.0
      %v9964 = vadd.f32 %v9962, %v9963
      %v9965 = vsel %vm9376, %v9803, 0.0
      %v9966 = vadd.f32 %v9964, %v9965
      %v9967 = vsel %vm9376, %v9804, 0.0
      %v9968 = vadd.f32 %v9966, %v9967
      %v9969 = vsel %vm9376, %v9805, 0.0
      %v9970 = vadd.f32 %v9968, %v9969
      %v9971 = vsel %vm9376, %v9806, 0.0
      %v9972 = vadd.f32 %v9970, %v9971
      %v9973 = vsel %vm9376, %v9807, 0.0
      %v9974 = vadd.f32 %v9972, %v9973
      %v9975 = vsel %vm9376, %v9808, 0.0
      %v9976 = vadd.f32 %v9974, %v9975
      %v9977 = vsel %vm9376, %v9809, 0.0
      %v9978 = vadd.f32 %v9976, %v9977
      %v9979 = vsel %vm9376, %v9810, 0.0
      %v9980 = vadd.f32 %v9978, %v9979
      %v9981 = vsel %vm9376, %v9811, 0.0
      %v9982 = vadd.f32 %v9980, %v9981
      %v9983 = vsel %vm9376, %v9812, 0.0
      %v9984 = vadd.f32 %v9982, %v9983
      %v9985 = vsel %vm9376, %v9813, 0.0
      %v9986 = vadd.f32 %v9984, %v9985
      %v9987 = vsel %vm9376, %v9814, 0.0
      %v9988 = vadd.f32 %v9986, %v9987
      %v9989 = vsel %vm9376, %v9815, 0.0
      %v9990 = vadd.f32 %v9988, %v9989
      %v9991 = vsel %vm9376, %v9816, 0.0
      %v9992 = vadd.f32 %v9990, %v9991
      %v9993 = vsel %vm9376, %v9817, 0.0
      %v9994 = vadd.f32 %v9992, %v9993
      %v9995 = vsel %vm9376, %v9818, 0.0
      %v9996 = vadd.f32 %v9994, %v9995
      %v9997 = vsel %vm9376, %v9819, 0.0
      %v9998 = vadd.f32 %v9996, %v9997
      %v9999 = vsel %vm9376, %v9820, 0.0
      %v10000 = vadd.f32 %v9998, %v9999
      %v10001 = vsel %vm9376, %v9821, 0.0
      %v10002 = vadd.f32 %v10000, %v10001
      %v10003 = vsel %vm9376, %v9822, 0.0
      %v10004 = vadd.f32 %v10002, %v10003
      %v10005 = vsel %vm9376, %v9823, 0.0
      %v10006 = vadd.f32 %v10004, %v10005
      %v10007 = vsel %vm9376, %v9824, 0.0
      %v10008 = vadd.f32 %v10006, %v10007
      %v10009 = vsel %vm9376, %v9825, 0.0
      %v10010 = vadd.f32 %v10008, %v10009
      %v10011 = vsel %vm9376, %v9826, 0.0
      %v10012 = vadd.f32 %v10010, %v10011
      %v10013 = vsel %vm9376, %v9827, 0.0
      %v10014 = vadd.f32 %v10012, %v10013
      %v10015 = vsel %vm9376, %v9828, 0.0
      %v10016 = vadd.f32 %v10014, %v10015
      %v10017 = vsel %vm9376, %v9829, 0.0
      %v10018 = vadd.f32 %v10016, %v10017
      %v10019 = vsel %vm9376, %v9830, 0.0
      %v10020 = vadd.f32 %v10018, %v10019
      %v10021 = vsel %vm9376, %v9831, 0.0
      %v10022 = vadd.f32 %v10020, %v10021
      %v10023 = vsel %vm9376, %v9832, 0.0
      %v10024 = vadd.f32 %v10022, %v10023
      %v10025 = vsel %vm9376, %v9833, 0.0
      %v10026 = vadd.f32 %v10024, %v10025
      %v10027 = vsel %vm9376, %v9834, 0.0
      %v10028 = vadd.f32 %v10026, %v10027
      %v10029 = vsel %vm9376, %v9835, 0.0
      %v10030 = vadd.f32 %v10028, %v10029
      %v10031 = vsel %vm9376, %v9836, 0.0
      %v10032 = vadd.f32 %v10030, %v10031
      %v10033 = vsel %vm9376, %v9837, 0.0
      %v10034 = vadd.f32 %v10032, %v10033
      %v10035 = vsel %vm9376, %v9838, 0.0
      %v10036 = vadd.f32 %v10034, %v10035
      %v10037 = vsel %vm9376, %v9839, 0.0
      %v10038 = vadd.f32 %v10036, %v10037
      %v10039 = vsel %vm9376, %v9840, 0.0
      %v10040 = vadd.f32 %v10038, %v10039
      %v10041 = vsel %vm9376, %v9841, 0.0
      %v10042 = vadd.f32 %v10040, %v10041
      %v10043 = vsel %vm9376, %v9842, 0.0
      %v10044 = vadd.f32 %v10042, %v10043
      %v10045 = vsel %vm9376, %v9843, 0.0
      %v10046 = vadd.f32 %v10044, %v10045
      %v10047 = vsel %vm9376, %v9844, 0.0
      %v10048 = vadd.f32 %v10046, %v10047
      %v10049 = vsel %vm9376, %v9845, 0.0
      %v10050 = vadd.f32 %v10048, %v10049
      %v10051 = vsel %vm9376, %v9846, 0.0
      %v10052 = vadd.f32 %v10050, %v10051
      %v10053 = vsel %vm9376, %v9847, 0.0
      %v10054 = vadd.f32 %v10052, %v10053
      %v10055 = vsel %vm9376, %v9848, 0.0
      %v10056 = vadd.f32 %v10054, %v10055
      %v10057 = vsel %vm9376, %v9849, 0.0
      %v10058 = vadd.f32 %v10056, %v10057
      %v10059 = vsel %vm9376, %v9850, 0.0
      %v10060 = vadd.f32 %v10058, %v10059
      %v10061 = vsel %vm9376, %v9851, 0.0
      %v10062 = vadd.f32 %v10060, %v10061
      %v10063 = vsel %vm9376, %v9852, 0.0
      %v10064 = vadd.f32 %v10062, %v10063
      %v10065 = vsel %vm9376, %v9853, 0.0
      %v10066 = vadd.f32 %v10064, %v10065
      %v10067 = vsel %vm9376, %v9854, 0.0
      %v10068 = vadd.f32 %v10066, %v10067
      %v10069 = vsel %vm9376, %v9855, 0.0
      %v10070 = vadd.f32 %v10068, %v10069
      %v10071 = vsel %vm9376, %v9856, 0.0
      %v10072 = vadd.f32 %v10070, %v10071
      %v10073 = vsel %vm9376, %v9857, 0.0
      %v10074 = vadd.f32 %v10072, %v10073
      %v10075 = vsel %vm9376, %v9858, 0.0
      %v10076 = vadd.f32 %v10074, %v10075
      %v10077 = vsel %vm9376, %v9859, 0.0
      %v10078 = vadd.f32 %v10076, %v10077
      %v10079 = vsel %vm9376, %v9860, 0.0
      %v10080 = vadd.f32 %v10078, %v10079
      %v10081 = vsel %vm9376, %v9861, 0.0
      %v10082 = vadd.f32 %v10080, %v10081
      %v10083 = vsel %vm9376, %v9862, 0.0
      %v10084 = vadd.f32 %v10082, %v10083
      %v10085 = vsel %vm9376, %v9863, 0.0
      %v10086 = vadd.f32 %v10084, %v10085
      %v10087 = vsel %vm9376, %v9864, 0.0
      %v10088 = vadd.f32 %v10086, %v10087
      %v10089 = vsel %vm9376, %v9865, 0.0
      %v10090 = vadd.f32 %v10088, %v10089
      %v10091 = vsel %vm9376, %v9866, 0.0
      %v10092 = vadd.f32 %v10090, %v10091
      %v10093 = vsel %vm9376, %v9867, 0.0
      %v10094 = vadd.f32 %v10092, %v10093
      %v10095 = vsel %vm9376, %v9868, 0.0
      %v10096 = vadd.f32 %v10094, %v10095
      %v10097 = vsel %vm9376, %v9869, 0.0
      %v10098 = vadd.f32 %v10096, %v10097
      %v10099 = vsel %vm9376, %v9870, 0.0
      %v10100 = vadd.f32 %v10098, %v10099
      %v10101 = vsel %vm9376, %v9871, 0.0
      %v10102 = vadd.f32 %v10100, %v10101
      %v10103 = vsel %vm9376, %v9872, 0.0
      %v10104 = vadd.f32 %v10102, %v10103
      %v10105 = vsel %vm9376, %v9873, 0.0
      %v10106 = vadd.f32 %v10104, %v10105
      %v10107 = vsel %vm9376, %v9874, 0.0
      %v10108 = vadd.f32 %v10106, %v10107
      %v10109 = vsel %vm9376, %v9875, 0.0
      %v10110 = vadd.f32 %v10108, %v10109
      %v10111 = vsel %vm9376, %v9876, 0.0
      %v10112 = vadd.f32 %v10110, %v10111
      %v10113 = vsel %vm9376, %v9877, 0.0
      %v10114 = vadd.f32 %v10112, %v10113
      %v10115 = vsel %vm9376, %v9878, 0.0
      %v10116 = vadd.f32 %v10114, %v10115
      %v10117 = vsel %vm9376, %v9879, 0.0
      %v10118 = vadd.f32 %v10116, %v10117
      %v10119 = vsel %vm9376, %v9880, 0.0
      %v10120 = vadd.f32 %v10118, %v10119
      %v10121 = vsel %vm9376, %v9881, 0.0
      %v10122 = vadd.f32 %v10120, %v10121
      %v10123 = vsel %vm9376, %v9882, 0.0
      %v10124 = vadd.f32 %v10122, %v10123
      %v10125 = vsel %vm9376, %v9883, 0.0
      %v10126 = vadd.f32 %v10124, %v10125
      %v10127 = vsel %vm9376, %v9884, 0.0
      %v10128 = vadd.f32 %v10126, %v10127
      %v10129 = vsel %vm9376, %v9885, 0.0
      %v10130 = vadd.f32 %v10128, %v10129
      %v10131 = vsel %vm9376, %v9886, 0.0
      %v10132 = vadd.f32 %v10130, %v10131
      %v10133 = vsel %vm9376, %v9887, 0.0
      %v10134 = vadd.f32 %v10132, %v10133
      %v10135 = vsel %vm9376, %v9888, 0.0
      %v10136 = vadd.f32 %v10134, %v10135
      %v10137 = vsel %vm9376, %v9889, 0.0
      %v10138 = vadd.f32 %v10136, %v10137
      %v10139 = vsel %vm9376, %v9890, 0.0
      %v10140 = vadd.f32 %v10138, %v10139
      %v10141 = vsel %vm9376, %v9891, 0.0
      %v10142 = vadd.f32 %v10140, %v10141
      %v10143 = vsel %vm9376, %v9892, 0.0
      %v10144 = vadd.f32 %v10142, %v10143
      %v10145 = vsel %vm9376, %v9893, 0.0
      %v10146 = vadd.f32 %v10144, %v10145
      %v10147 = vsel %vm9376, %v9894, 0.0
      %v10148 = vadd.f32 %v10146, %v10147
      %v10149 = vsel %vm9376, %v9895, 0.0
      %v10150 = vadd.f32 %v10148, %v10149
      %v10151 = vrot.slane %v10150, 4
      %v10152 = vadd.f32 %v10150, %v10151
      %v10153 = vrot.slane %v10152, 2
      %v10154 = vadd.f32 %v10152, %v10153
      %v10155 = vrot.slane %v10154, 1
      %v10156 = vadd.f32 %v10154, %v10155
      %10157 = vst.msk [vmem:[%s214] sm:$0x1] %vm9766, %v10156
      %p10158 = scmp.lt.s32.totalorder %s16, 1
      %s10159 = scalar_select %p10158, %s16, 1
      %s10160 = smul.addr %s10159, 128
      %s10161 = smul.addr %s10160, 8
      %s10162 = scalar_lea.vmem %s2, %s10161
      %p10163 = scmp.lt.s32.totalorder %s16, 1
      %s10164 = scalar_select %p10163, %s16, 1
      %s10165 = scalar_lea.vmem %s3, %s10164
      %p10166 = scmp.lt.s32.totalorder %s16, 1
      %s10167 = scalar_select %p10166, %s16, 1
      %s10168 = scalar_lea.vmem %s4, %s10167
      // Predicated region
      $region29: #{upsample_block_forward.5} parent=27 // pred_check
        %p10169 = pneg %p81
      $region30: #{upsample_block_forward.5} parent=27 // pred_check_branch
        %10171 = sbr.rel (%p10169) target = $region32
      $region31: #{upsample_block_forward.5} parent=27 // pred_region
        _
      $region32: #{upsample_block_forward.5} parent=27 // pred_fallthru
        _
      // Predicated region
      $region33: #{upsample_block_forward.5} parent=27 // pred_check
        %p10172 = pneg %p107
      $region34: #{upsample_block_forward.5} parent=27 // pred_check_branch
        %10174 = sbr.rel (%p10172) target = $region36
      $region35: #{upsample_block_forward.5} parent=27 // pred_region
        _
      $region36: #{upsample_block_forward.5} parent=27 // pred_fallthru
        _
      // Predicated region
      $region37: #{upsample_block_forward.5} parent=27 // pred_check
        %p10175 = pneg %p133
      $region38: #{upsample_block_forward.5} parent=27 // pred_check_branch
        %10177 = sbr.rel (%p10175) target = $region40
      $region39: #{upsample_block_forward.5} parent=27 // pred_region
        _
      $region40: #{upsample_block_forward.5} parent=27 // pred_fallthru
        _
    $region28: #{upsample_block_forward.5} parent=5 // pred_fallthru
      _
    %p10178 = scmp.le.s32.totalorder 2, %s11
    // Predicated region
    $region41: #{upsample_block_forward.5} parent=5 // pred_check
      %p10179 = pneg %p10178
    $region42: #{upsample_block_forward.5} parent=5 // pred_check_branch
      %10181 = sbr.rel (%p10179) target = $region44
    $region43: #{upsample_block_forward.5} parent=5 // pred_region
      %s10182 = ssub.s32 %s11, 2
      // Predicated region
      $region45: #{upsample_block_forward.5} parent=43 // pred_check
        %p10183 = pneg %p87
      $region46: #{upsample_block_forward.5} parent=43 // pred_check_branch
        %10185 = sbr.rel (%p10183) target = $region48
      $region47: #{upsample_block_forward.5} parent=43 // pred_region
        %p10186 = scmp.lt.s32.totalorder %s17, 1
        %s10187 = scalar_select %p10186, %s17, 1
        %s10188 = smul.addr %s10187, 128
        %s10189 = smul.addr %s10188, 8
        %s10190 = scalar_lea.vmem %s2, %s10189
      $region48: #{upsample_block_forward.5} parent=43 // pred_fallthru
        _
      // Predicated region
      $region49: #{upsample_block_forward.5} parent=43 // pred_check
        %p10191 = pneg %p113
      $region50: #{upsample_block_forward.5} parent=43 // pred_check_branch
        %10193 = sbr.rel (%p10191) target = $region52
      $region51: #{upsample_block_forward.5} parent=43 // pred_region
        %p10194 = scmp.lt.s32.totalorder %s17, 1
        %s10195 = scalar_select %p10194, %s17, 1
        %s10196 = scalar_lea.vmem %s3, %s10195
      $region52: #{upsample_block_forward.5} parent=43 // pred_fallthru
        _
      // Predicated region
      $region53: #{upsample_block_forward.5} parent=43 // pred_check
        %p10197 = pneg %p139
      $region54: #{upsample_block_forward.5} parent=43 // pred_check_branch
        %10199 = sbr.rel (%p10197) target = $region56
      $region55: #{upsample_block_forward.5} parent=43 // pred_region
        %p10200 = scmp.lt.s32.totalorder %s17, 1
        %s10201 = scalar_select %p10200, %s17, 1
        %s10202 = scalar_lea.vmem %s4, %s10201
      $region56: #{upsample_block_forward.5} parent=43 // pred_fallthru
        _
    $region44: #{upsample_block_forward.5} parent=5 // pred_fallthru
      _
  $region6: #{upsample_block_forward.5} parent=0 // loop_footer
    %s15 = sadd.s32 1, %s11
  $region7: #{upsample_block_forward.5} parent=0 // loop_footer_branch
    %10 = sbr.rel target = $region3
  $region8: #{upsample_block_forward.5} parent=0 // loop_exit
    _

</llo_original>
